<compile_context>
chip_gen: v5e
topology: v5e:2x2
jax: 0.10.0
libtpu: 0.0.40
codegen_flags: <defaults>
</compile_context>

<pallas_src>
import functools

import jax
import jax.numpy as jnp
from jax import lax
from jax.experimental import pallas as pl
from jax.experimental.pallas import tpu as pltpu

LN_EPS = 1e-5


# --------------------------------------------------------------------------
# In-kernel building blocks (operate on values + param refs, all in VMEM)
# --------------------------------------------------------------------------

def _layer_norm(y, ln):
    mu = jnp.mean(y, axis=-1, keepdims=True)
    var = jnp.mean((y - mu) ** 2, axis=-1, keepdims=True)
    return (y - mu) * lax.rsqrt(var + LN_EPS) * ln["g"][...] + ln["b"][...]


def _softmax_last(s):
    s = s - jnp.max(s, axis=-1, keepdims=True)
    e = jnp.exp(s)
    return e * pl.reciprocal(jnp.sum(e, axis=-1, keepdims=True), approx=True)


def _attention(q, k, v, wo_ref, bo_ref, nhead):
    # q: (Sq, E), k/v: (Skv, E).  Heads live in disjoint feature (lane) slices.
    # Instead of concatenating head outputs, project each head through the
    # matching row-slice of W_o and accumulate (identical result, no concat).
    e = q.shape[-1]
    dh = e // nhead
    scale = 1.0 / float(dh) ** 0.5
    out = bo_ref[...]                       # (1, E), broadcasts over rows
    for h in range(nhead):                  # static unroll (nhead=2)
        sl = slice(h * dh, (h + 1) * dh)
        qh, kh, vh = q[:, sl], k[:, sl], v[:, sl]
        s = lax.dot_general(qh, kh, (((1,), (1,)), ((), ())),
                            preferred_element_type=jnp.float32) * scale
        p = _softmax_last(s)
        ctx = jnp.dot(p, vh, preferred_element_type=jnp.float32)      # (Sq, dh)
        out = out + jnp.dot(ctx, wo_ref[sl, :],
                            preferred_element_type=jnp.float32)       # (Sq, E)
    return out


def _self_attention(x, ap, nhead):
    e = x.shape[-1]
    qkv = (jnp.dot(x, ap["wqkv"][...], preferred_element_type=jnp.float32)
           + ap["bqkv"][...])                                          # (S, 3E)
    q, k, v = qkv[:, 0:e], qkv[:, e:2 * e], qkv[:, 2 * e:3 * e]
    return _attention(q, k, v, ap["wo"], ap["bo"], nhead)


def _cross_attention(x, mem, ap, nhead):
    e = x.shape[-1]
    q = (jnp.dot(x, ap["wq"][...], preferred_element_type=jnp.float32)
         + ap["bq"][...])
    kv = (jnp.dot(mem, ap["wkv"][...], preferred_element_type=jnp.float32)
          + ap["bkv"][...])                                            # (S, 2E)
    k, v = kv[:, 0:e], kv[:, e:2 * e]
    return _attention(q, k, v, ap["wo"], ap["bo"], nhead)


def _ffn(x, fp):
    h = (jnp.dot(x, fp["w1"][...], preferred_element_type=jnp.float32)
         + fp["b1"][...])
    h = jnp.maximum(h, 0.0)
    return (jnp.dot(h, fp["w2"][...], preferred_element_type=jnp.float32)
            + fp["b2"][...])


# --------------------------------------------------------------------------
# Fused kernel: whole transformer forward in one pallas_call
# --------------------------------------------------------------------------

def fused_transformer_kernel(*refs, treedef, n_params, nhead):
    x_ref = refs[0]
    p = jax.tree_util.tree_unflatten(treedef, refs[1:1 + n_params])
    out_ref = refs[1 + n_params]

    # Input stage: normalization + positional encoding already folded into
    # in_w / in_b on the host.
    x = x_ref[...]
    h = (jnp.dot(x, p["in_w"][...], preferred_element_type=jnp.float32)
         + p["in_b"][...])

    # ---- encoder ----
    mem = h
    for layer in p["enc_layers"]:
        a = _self_attention(mem, layer["self_attn"], nhead)
        mem = _layer_norm(mem + a, layer["norm1"])
        f = _ffn(mem, layer["ffn"])
        mem = _layer_norm(mem + f, layer["norm2"])
    mem = _layer_norm(mem, p["enc_norm"])

    # ---- decoder ----  (no masks, matching nn.Transformer(src, tgt) call)
    out = h
    for layer in p["dec_layers"]:
        a = _self_attention(out, layer["self_attn"], nhead)
        out = _layer_norm(out + a, layer["norm1"])
        a = _cross_attention(out, mem, layer["cross_attn"], nhead)
        out = _layer_norm(out + a, layer["norm2"])
        f = _ffn(out, layer["ffn"])
        out = _layer_norm(out + f, layer["norm3"])
    out = _layer_norm(out, p["dec_norm"])

    # ---- output head ---- (squeeze(1) implicit: N=1 axis never carried)
    out_ref[...] = (jnp.dot(out, p["out_w"][...],
                            preferred_element_type=jnp.float32)
                    + p["out_b"][...])


def transformer_forward(params, x, *, nhead):
    """x: (B, d_model) -> (B, 3). One fused Pallas kernel, all operands in VMEM."""
    leaves, treedef = jax.tree_util.tree_flatten(params)
    n_params = len(leaves)
    kernel = functools.partial(fused_transformer_kernel, treedef=treedef,
                               n_params=n_params, nhead=nhead)
    vmem = pl.BlockSpec(memory_space=pltpu.MemorySpace.VMEM)
    num_out = params["out_w"].shape[1]
    return pl.pallas_call(
        kernel,
        out_shape=jax.ShapeDtypeStruct((x.shape[0], num_out), jnp.float32),
        in_specs=[vmem] * (1 + n_params),
        out_specs=vmem,
    )(x, *leaves)


# --------------------------------------------------------------------------
# Parameters.  Weights stored as (in_features, out_features) (transposed vs
# torch).  Attention Q/K/V weights are stored pre-merged ([Wq|Wk|Wv]), exactly
# like PyTorch's in_proj_weight.
# --------------------------------------------------------------------------

def init_params(key, d_model, nhead, num_layers, num_out=3, dff=2048, max_len=100):
    keys = iter(jax.random.split(key, 512))

    def W(shape, s=0.05):
        return jax.random.normal(next(keys), shape, jnp.float32) * s

    def self_attn_params():
        return dict(wqkv=W((d_model, 3 * d_model)), bqkv=W((1, 3 * d_model)),
                    wo=W((d_model, d_model)), bo=W((1, d_model)))

    def cross_attn_params():
        return dict(wq=W((d_model, d_model)), bq=W((1, d_model)),
                    wkv=W((d_model, 2 * d_model)), bkv=W((1, 2 * d_model)),
                    wo=W((d_model, d_model)), bo=W((1, d_model)))

    def ln_params():
        return dict(g=jnp.ones((1, d_model), jnp.float32),
                    b=jnp.zeros((1, d_model), jnp.float32))

    def ffn_params():
        return dict(w1=W((d_model, dff)), b1=W((1, dff)),
                    w2=W((dff, d_model)), b2=W((1, d_model)))

    return dict(
        mean=W((1, d_model), 0.5),
        scale=jnp.abs(W((1, d_model), 0.5)) + 0.5,
        in_w=W((d_model, d_model)),
        in_b=W((1, d_model)),
        # PyTorch init is torch.zeros(1, 100, d_model)
        pos=jnp.zeros((1, max_len, d_model), jnp.float32),
        enc_layers=[dict(self_attn=self_attn_params(), norm1=ln_params(),
                         ffn=ffn_params(), norm2=ln_params())
                    for _ in range(num_layers)],
        enc_norm=ln_params(),
        dec_layers=[dict(self_attn=self_attn_params(), norm1=ln_params(),
                         cross_attn=cross_attn_params(), norm2=ln_params(),
                         ffn=ffn_params(), norm3=ln_params())
                    for _ in range(num_layers)],
        dec_norm=ln_params(),
        out_w=W((d_model, num_out)),
        out_b=W((1, num_out)),
    )


def prepare_params(raw):
    """Fold (x - mean)/scale and positional_encoding[:, :1] into the input linear."""
    inv_scale = 1.0 / raw["scale"]                              # (1, E)
    in_w = raw["in_w"] * jnp.transpose(inv_scale)               # diag(1/scale) @ W
    in_b = (raw["in_b"]
            - (raw["mean"] * inv_scale) @ raw["in_w"]
            + raw["pos"][:, 0, :])                              # (1, E)
    p = {k: v for k, v in raw.items()
         if k not in ("mean", "scale", "in_w", "in_b", "pos")}
    p["in_w"] = in_w
    p["in_b"] = in_b
    return p


# --------------------------------------------------------------------------
# Pure-JAX reference (original, unfolded formulation) for correctness check.
# --------------------------------------------------------------------------

def reference_forward(raw, x, *, nhead):
    e = x.shape[-1]

    def ln(y, p_):
        mu = y.mean(-1, keepdims=True)
        var = ((y - mu) ** 2).mean(-1, keepdims=True)
        return (y - mu) / jnp.sqrt(var + LN_EPS) * p_["g"] + p_["b"]

    def softmax(s):
        s = s - s.max(-1, keepdims=True)
        z = jnp.exp(s)
        return z / z.sum(-1, keepdims=True)

    def attention(q, k, v, ap):
        dh = e // nhead
        outs = []
        for h in range(nhead):
            sl = slice(h * dh, (h + 1) * dh)
            s = (q[:, sl] @ k[:, sl].T) / (dh ** 0.5)
            outs.append(softmax(s) @ v[:, sl])
        return jnp.concatenate(outs, -1) @ ap["wo"] + ap["bo"]

    def self_attn(y, ap):
        qkv = y @ ap["wqkv"] + ap["bqkv"]
        return attention(qkv[:, :e], qkv[:, e:2 * e], qkv[:, 2 * e:], ap)

    def cross_attn(y, m, ap):
        q = y @ ap["wq"] + ap["bq"]
        kv = m @ ap["wkv"] + ap["bkv"]
        return attention(q, kv[:, :e], kv[:, e:], ap)

    def ffn(y, fp):
        return jnp.maximum(y @ fp["w1"] + fp["b1"], 0.0) @ fp["w2"] + fp["b2"]

    h = (x - raw["mean"]) / raw["scale"]
    h = h @ raw["in_w"] + raw["in_b"] + raw["pos"][:, 0, :]
    mem = h
    for layer in raw["enc_layers"]:
        mem = ln(mem + self_attn(mem, layer["self_attn"]), layer["norm1"])
        mem = ln(mem + ffn(mem, layer["ffn"]), layer["norm2"])
    mem = ln(mem, raw["enc_norm"])
    out = h
    for layer in raw["dec_layers"]:
        out = ln(out + self_attn(out, layer["self_attn"]), layer["norm1"])
        out = ln(out + cross_attn(out, mem, layer["cross_attn"]), layer["norm2"])
        out = ln(out + ffn(out, layer["ffn"]), layer["norm3"])
    out = ln(out, raw["dec_norm"])
    return out @ raw["out_w"] + raw["out_b"]


# --------------------------------------------------------------------------

if __name__ == "__main__":
    # TODO(synk): dropout layers are identity in eval/inference mode and are omitted.
    B, D_MODEL, NHEAD, NUM_LAYERS = 8, 32, 2, 2

    key = jax.random.PRNGKey(0)
    kx, kp = jax.random.split(key)
    x = jax.random.normal(kx, (B, D_MODEL), dtype=jnp.float32)

    raw_params = init_params(kp, D_MODEL, NHEAD, NUM_LAYERS)
    params = prepare_params(raw_params)

    fwd = jax.jit(functools.partial(transformer_forward, nhead=NHEAD))
    y = fwd(params, x)
    jax.block_until_ready(y)

    assert y.shape == (B, 3), y.shape
    assert y.dtype == jnp.float32
    assert bool(jnp.all(jnp.isfinite(y)))

    # Numerical check against the plain-JAX reference (unfolded formulation).
    with jax.default_matmul_precision("highest"):
        y_ref = reference_forward(raw_params, x, nhead=NHEAD)
    assert bool(jnp.allclose(y, y_ref, rtol=5e-2, atol=5e-2)), (y, y_ref)

    print("KERNEL_OK")
</pallas_src>

<mosaic_0001>
module attributes {stable_mosaic.version = 11 : i64} {
  func.func @fused_transformer_kernel(%arg0: memref<8x32xf32, #tpu.memory_space<vmem>>, %arg1: memref<1x64xf32, #tpu.memory_space<vmem>>, %arg2: memref<1x32xf32, #tpu.memory_space<vmem>>, %arg3: memref<1x32xf32, #tpu.memory_space<vmem>>, %arg4: memref<32x64xf32, #tpu.memory_space<vmem>>, %arg5: memref<32x32xf32, #tpu.memory_space<vmem>>, %arg6: memref<32x32xf32, #tpu.memory_space<vmem>>, %arg7: memref<1x2048xf32, #tpu.memory_space<vmem>>, %arg8: memref<1x32xf32, #tpu.memory_space<vmem>>, %arg9: memref<32x2048xf32, #tpu.memory_space<vmem>>, %arg10: memref<2048x32xf32, #tpu.memory_space<vmem>>, %arg11: memref<1x32xf32, #tpu.memory_space<vmem>>, %arg12: memref<1x32xf32, #tpu.memory_space<vmem>>, %arg13: memref<1x32xf32, #tpu.memory_space<vmem>>, %arg14: memref<1x32xf32, #tpu.memory_space<vmem>>, %arg15: memref<1x32xf32, #tpu.memory_space<vmem>>, %arg16: memref<1x32xf32, #tpu.memory_space<vmem>>, %arg17: memref<1x32xf32, #tpu.memory_space<vmem>>, %arg18: memref<1x96xf32, #tpu.memory_space<vmem>>, %arg19: memref<32x32xf32, #tpu.memory_space<vmem>>, %arg20: memref<32x96xf32, #tpu.memory_space<vmem>>, %arg21: memref<1x64xf32, #tpu.memory_space<vmem>>, %arg22: memref<1x32xf32, #tpu.memory_space<vmem>>, %arg23: memref<1x32xf32, #tpu.memory_space<vmem>>, %arg24: memref<32x64xf32, #tpu.memory_space<vmem>>, %arg25: memref<32x32xf32, #tpu.memory_space<vmem>>, %arg26: memref<32x32xf32, #tpu.memory_space<vmem>>, %arg27: memref<1x2048xf32, #tpu.memory_space<vmem>>, %arg28: memref<1x32xf32, #tpu.memory_space<vmem>>, %arg29: memref<32x2048xf32, #tpu.memory_space<vmem>>, %arg30: memref<2048x32xf32, #tpu.memory_space<vmem>>, %arg31: memref<1x32xf32, #tpu.memory_space<vmem>>, %arg32: memref<1x32xf32, #tpu.memory_space<vmem>>, %arg33: memref<1x32xf32, #tpu.memory_space<vmem>>, %arg34: memref<1x32xf32, #tpu.memory_space<vmem>>, %arg35: memref<1x32xf32, #tpu.memory_space<vmem>>, %arg36: memref<1x32xf32, #tpu.memory_space<vmem>>, %arg37: memref<1x32xf32, #tpu.memory_space<vmem>>, %arg38: memref<1x96xf32, #tpu.memory_space<vmem>>, %arg39: memref<32x32xf32, #tpu.memory_space<vmem>>, %arg40: memref<32x96xf32, #tpu.memory_space<vmem>>, %arg41: memref<1x32xf32, #tpu.memory_space<vmem>>, %arg42: memref<1x32xf32, #tpu.memory_space<vmem>>, %arg43: memref<1x2048xf32, #tpu.memory_space<vmem>>, %arg44: memref<1x32xf32, #tpu.memory_space<vmem>>, %arg45: memref<32x2048xf32, #tpu.memory_space<vmem>>, %arg46: memref<2048x32xf32, #tpu.memory_space<vmem>>, %arg47: memref<1x32xf32, #tpu.memory_space<vmem>>, %arg48: memref<1x32xf32, #tpu.memory_space<vmem>>, %arg49: memref<1x32xf32, #tpu.memory_space<vmem>>, %arg50: memref<1x32xf32, #tpu.memory_space<vmem>>, %arg51: memref<1x32xf32, #tpu.memory_space<vmem>>, %arg52: memref<1x96xf32, #tpu.memory_space<vmem>>, %arg53: memref<32x32xf32, #tpu.memory_space<vmem>>, %arg54: memref<32x96xf32, #tpu.memory_space<vmem>>, %arg55: memref<1x2048xf32, #tpu.memory_space<vmem>>, %arg56: memref<1x32xf32, #tpu.memory_space<vmem>>, %arg57: memref<32x2048xf32, #tpu.memory_space<vmem>>, %arg58: memref<2048x32xf32, #tpu.memory_space<vmem>>, %arg59: memref<1x32xf32, #tpu.memory_space<vmem>>, %arg60: memref<1x32xf32, #tpu.memory_space<vmem>>, %arg61: memref<1x32xf32, #tpu.memory_space<vmem>>, %arg62: memref<1x32xf32, #tpu.memory_space<vmem>>, %arg63: memref<1x32xf32, #tpu.memory_space<vmem>>, %arg64: memref<1x96xf32, #tpu.memory_space<vmem>>, %arg65: memref<32x32xf32, #tpu.memory_space<vmem>>, %arg66: memref<32x96xf32, #tpu.memory_space<vmem>>, %arg67: memref<1x32xf32, #tpu.memory_space<vmem>>, %arg68: memref<1x32xf32, #tpu.memory_space<vmem>>, %arg69: memref<1x32xf32, #tpu.memory_space<vmem>>, %arg70: memref<32x32xf32, #tpu.memory_space<vmem>>, %arg71: memref<1x3xf32, #tpu.memory_space<vmem>>, %arg72: memref<32x3xf32, #tpu.memory_space<vmem>>, %arg73: memref<8x3xf32, #tpu.memory_space<vmem>>) attributes {dimension_semantics = [], scalar_prefetch = 0 : i64, scratch_operands = 0 : i64, tpu.core_type = #tpu.core_type<tc>} {
    %c0 = arith.constant 0 : index
    %c0_0 = arith.constant 0 : index
    %0 = vector.load %arg0[%c0, %c0_0] : memref<8x32xf32, #tpu.memory_space<vmem>>, vector<8x32xf32>
    %c0_1 = arith.constant 0 : index
    %c0_2 = arith.constant 0 : index
    %1 = vector.load %arg70[%c0_1, %c0_2] : memref<32x32xf32, #tpu.memory_space<vmem>>, vector<32x32xf32>
    %cst = arith.constant dense<0.000000e+00> : vector<8x32xf32>
    %2 = tpu.matmul %0, %1, %cst {dimension_numbers = #tpu.dot_dimension_numbers<[1], [0], [0], [1], [0, 0, 1, 1], [], []>} : vector<8x32xf32>, vector<32x32xf32>, vector<8x32xf32> -> vector<8x32xf32>
    %c0_3 = arith.constant 0 : index
    %c0_4 = arith.constant 0 : index
    %3 = vector.load %arg69[%c0_3, %c0_4] : memref<1x32xf32, #tpu.memory_space<vmem>>, vector<1x32xf32>
    %4 = vector.broadcast %3 : vector<1x32xf32> to vector<8x32xf32>
    %5 = arith.addf %2, %4 : vector<8x32xf32>
    %c0_5 = arith.constant 0 : index
    %c0_6 = arith.constant 0 : index
    %6 = vector.load %arg54[%c0_5, %c0_6] : memref<32x96xf32, #tpu.memory_space<vmem>>, vector<32x96xf32>
    %cst_7 = arith.constant dense<0.000000e+00> : vector<8x96xf32>
    %7 = tpu.matmul %5, %6, %cst_7 {dimension_numbers = #tpu.dot_dimension_numbers<[1], [0], [0], [1], [0, 0, 1, 1], [], []>} : vector<8x32xf32>, vector<32x96xf32>, vector<8x96xf32> -> vector<8x96xf32>
    %c0_8 = arith.constant 0 : index
    %c0_9 = arith.constant 0 : index
    %8 = vector.load %arg52[%c0_8, %c0_9] : memref<1x96xf32, #tpu.memory_space<vmem>>, vector<1x96xf32>
    %9 = vector.broadcast %8 : vector<1x96xf32> to vector<8x96xf32>
    %10 = arith.addf %7, %9 : vector<8x96xf32>
    %11 = vector.extract_strided_slice %10 {offsets = [0, 0], sizes = [8, 32], strides = [1, 1]} : vector<8x96xf32> to vector<8x32xf32>
    %12 = vector.extract_strided_slice %10 {offsets = [0, 32], sizes = [8, 32], strides = [1, 1]} : vector<8x96xf32> to vector<8x32xf32>
    %13 = vector.extract_strided_slice %10 {offsets = [0, 64], sizes = [8, 32], strides = [1, 1]} : vector<8x96xf32> to vector<8x32xf32>
    %c0_10 = arith.constant 0 : index
    %c0_11 = arith.constant 0 : index
    %14 = vector.load %arg51[%c0_10, %c0_11] : memref<1x32xf32, #tpu.memory_space<vmem>>, vector<1x32xf32>
    %15 = vector.extract_strided_slice %11 {offsets = [0, 0], sizes = [8, 16], strides = [1, 1]} : vector<8x32xf32> to vector<8x16xf32>
    %16 = vector.extract_strided_slice %12 {offsets = [0, 0], sizes = [8, 16], strides = [1, 1]} : vector<8x32xf32> to vector<8x16xf32>
    %17 = vector.extract_strided_slice %13 {offsets = [0, 0], sizes = [8, 16], strides = [1, 1]} : vector<8x32xf32> to vector<8x16xf32>
    %cst_12 = arith.constant dense<0.000000e+00> : vector<8x8xf32>
    %18 = tpu.matmul %15, %16, %cst_12 {dimension_numbers = #tpu.dot_dimension_numbers<[1], [1], [0], [0], [0, 0, 1, 0], [], []>} : vector<8x16xf32>, vector<8x16xf32>, vector<8x8xf32> -> vector<8x8xf32>
    %cst_13 = arith.constant 2.500000e-01 : f32
    %19 = vector.broadcast %cst_13 : f32 to vector<8x8xf32>
    %20 = arith.mulf %18, %19 : vector<8x8xf32>
    %cst_14 = arith.constant dense<0xFF800000> : vector<8xf32>
    %21 = vector.multi_reduction <maximumf>, %20, %cst_14 [1] : vector<8x8xf32> to vector<8xf32>
    %22 = vector.shape_cast %21 : vector<8xf32> to vector<8x1xf32>
    %23 = vector.broadcast %22 : vector<8x1xf32> to vector<8x8xf32>
    %24 = arith.subf %20, %23 : vector<8x8xf32>
    %25 = math.exp %24 : vector<8x8xf32>
    %cst_15 = arith.constant dense<0.000000e+00> : vector<8xf32>
    %26 = vector.multi_reduction <add>, %25, %cst_15 [1] : vector<8x8xf32> to vector<8xf32>
    %27 = vector.shape_cast %26 : vector<8xf32> to vector<8x1xf32>
    %28 = tpu.reciprocal %27 {approx = true} : vector<8x1xf32> -> vector<8x1xf32>
    %29 = vector.broadcast %28 : vector<8x1xf32> to vector<8x8xf32>
    %30 = arith.mulf %25, %29 : vector<8x8xf32>
    %cst_16 = arith.constant dense<0.000000e+00> : vector<8x16xf32>
    %31 = tpu.matmul %30, %17, %cst_16 {dimension_numbers = #tpu.dot_dimension_numbers<[1], [0], [0], [1], [0, 0, 1, 1], [], []>} : vector<8x8xf32>, vector<8x16xf32>, vector<8x16xf32> -> vector<8x16xf32>
    %c0_17 = arith.constant 0 : index
    %c0_18 = arith.constant 0 : index
    %32 = vector.load %arg53[%c0_17, %c0_18] : memref<32x32xf32, #tpu.memory_space<vmem>>, vector<16x32xf32>
    %cst_19 = arith.constant dense<0.000000e+00> : vector<8x32xf32>
    %33 = tpu.matmul %31, %32, %cst_19 {dimension_numbers = #tpu.dot_dimension_numbers<[1], [0], [0], [1], [0, 0, 1, 1], [], []>} : vector<8x16xf32>, vector<16x32xf32>, vector<8x32xf32> -> vector<8x32xf32>
    %34 = vector.broadcast %14 : vector<1x32xf32> to vector<8x32xf32>
    %35 = arith.addf %34, %33 : vector<8x32xf32>
    %36 = vector.extract_strided_slice %11 {offsets = [0, 16], sizes = [8, 16], strides = [1, 1]} : vector<8x32xf32> to vector<8x16xf32>
    %37 = vector.extract_strided_slice %12 {offsets = [0, 16], sizes = [8, 16], strides = [1, 1]} : vector<8x32xf32> to vector<8x16xf32>
    %38 = vector.extract_strided_slice %13 {offsets = [0, 16], sizes = [8, 16], strides = [1, 1]} : vector<8x32xf32> to vector<8x16xf32>
    %cst_20 = arith.constant dense<0.000000e+00> : vector<8x8xf32>
    %39 = tpu.matmul %36, %37, %cst_20 {dimension_numbers = #tpu.dot_dimension_numbers<[1], [1], [0], [0], [0, 0, 1, 0], [], []>} : vector<8x16xf32>, vector<8x16xf32>, vector<8x8xf32> -> vector<8x8xf32>
    %cst_21 = arith.constant 2.500000e-01 : f32
    %40 = vector.broadcast %cst_21 : f32 to vector<8x8xf32>
    %41 = arith.mulf %39, %40 : vector<8x8xf32>
    %cst_22 = arith.constant dense<0xFF800000> : vector<8xf32>
    %42 = vector.multi_reduction <maximumf>, %41, %cst_22 [1] : vector<8x8xf32> to vector<8xf32>
    %43 = vector.shape_cast %42 : vector<8xf32> to vector<8x1xf32>
    %44 = vector.broadcast %43 : vector<8x1xf32> to vector<8x8xf32>
    %45 = arith.subf %41, %44 : vector<8x8xf32>
    %46 = math.exp %45 : vector<8x8xf32>
    %cst_23 = arith.constant dense<0.000000e+00> : vector<8xf32>
    %47 = vector.multi_reduction <add>, %46, %cst_23 [1] : vector<8x8xf32> to vector<8xf32>
    %48 = vector.shape_cast %47 : vector<8xf32> to vector<8x1xf32>
    %49 = tpu.reciprocal %48 {approx = true} : vector<8x1xf32> -> vector<8x1xf32>
    %50 = vector.broadcast %49 : vector<8x1xf32> to vector<8x8xf32>
    %51 = arith.mulf %46, %50 : vector<8x8xf32>
    %cst_24 = arith.constant dense<0.000000e+00> : vector<8x16xf32>
    %52 = tpu.matmul %51, %38, %cst_24 {dimension_numbers = #tpu.dot_dimension_numbers<[1], [0], [0], [1], [0, 0, 1, 1], [], []>} : vector<8x8xf32>, vector<8x16xf32>, vector<8x16xf32> -> vector<8x16xf32>
    %c16 = arith.constant 16 : index
    %c0_25 = arith.constant 0 : index
    %53 = vector.load %arg53[%c16, %c0_25] : memref<32x32xf32, #tpu.memory_space<vmem>>, vector<16x32xf32>
    %cst_26 = arith.constant dense<0.000000e+00> : vector<8x32xf32>
    %54 = tpu.matmul %52, %53, %cst_26 {dimension_numbers = #tpu.dot_dimension_numbers<[1], [0], [0], [1], [0, 0, 1, 1], [], []>} : vector<8x16xf32>, vector<16x32xf32>, vector<8x32xf32> -> vector<8x32xf32>
    %55 = arith.addf %35, %54 : vector<8x32xf32>
    %56 = arith.addf %5, %55 : vector<8x32xf32>
    %cst_27 = arith.constant dense<0.000000e+00> : vector<8xf32>
    %57 = vector.multi_reduction <add>, %56, %cst_27 [1] : vector<8x32xf32> to vector<8xf32>
    %58 = vector.shape_cast %57 : vector<8xf32> to vector<8x1xf32>
    %cst_28 = arith.constant 3.200000e+01 : f32
    %59 = vector.broadcast %cst_28 : f32 to vector<8x1xf32>
    %60 = arith.divf %58, %59 : vector<8x1xf32>
    %61 = vector.broadcast %60 : vector<8x1xf32> to vector<8x32xf32>
    %62 = arith.subf %56, %61 : vector<8x32xf32>
    %63 = arith.mulf %62, %62 : vector<8x32xf32>
    %cst_29 = arith.constant dense<0.000000e+00> : vector<8xf32>
    %64 = vector.multi_reduction <add>, %63, %cst_29 [1] : vector<8x32xf32> to vector<8xf32>
    %65 = vector.shape_cast %64 : vector<8xf32> to vector<8x1xf32>
    %cst_30 = arith.constant 3.200000e+01 : f32
    %66 = vector.broadcast %cst_30 : f32 to vector<8x1xf32>
    %67 = arith.divf %65, %66 : vector<8x1xf32>
    %68 = vector.broadcast %60 : vector<8x1xf32> to vector<8x32xf32>
    %69 = arith.subf %56, %68 : vector<8x32xf32>
    %cst_31 = arith.constant 9.99999974E-6 : f32
    %70 = vector.broadcast %cst_31 : f32 to vector<8x1xf32>
    %71 = arith.addf %67, %70 : vector<8x1xf32>
    %72 = math.rsqrt %71 : vector<8x1xf32>
    %73 = vector.broadcast %72 : vector<8x1xf32> to vector<8x32xf32>
    %74 = arith.mulf %69, %73 : vector<8x32xf32>
    %c0_32 = arith.constant 0 : index
    %c0_33 = arith.constant 0 : index
    %75 = vector.load %arg48[%c0_32, %c0_33] : memref<1x32xf32, #tpu.memory_space<vmem>>, vector<1x32xf32>
    %76 = vector.broadcast %75 : vector<1x32xf32> to vector<8x32xf32>
    %77 = arith.mulf %74, %76 : vector<8x32xf32>
    %c0_34 = arith.constant 0 : index
    %c0_35 = arith.constant 0 : index
    %78 = vector.load %arg47[%c0_34, %c0_35] : memref<1x32xf32, #tpu.memory_space<vmem>>, vector<1x32xf32>
    %79 = vector.broadcast %78 : vector<1x32xf32> to vector<8x32xf32>
    %80 = arith.addf %77, %79 : vector<8x32xf32>
    %c0_36 = arith.constant 0 : index
    %c0_37 = arith.constant 0 : index
    %81 = vector.load %arg45[%c0_36, %c0_37] : memref<32x2048xf32, #tpu.memory_space<vmem>>, vector<32x2048xf32>
    %cst_38 = arith.constant dense<0.000000e+00> : vector<8x2048xf32>
    %82 = tpu.matmul %80, %81, %cst_38 {dimension_numbers = #tpu.dot_dimension_numbers<[1], [0], [0], [1], [0, 0, 1, 1], [], []>} : vector<8x32xf32>, vector<32x2048xf32>, vector<8x2048xf32> -> vector<8x2048xf32>
    %c0_39 = arith.constant 0 : index
    %c0_40 = arith.constant 0 : index
    %83 = vector.load %arg43[%c0_39, %c0_40] : memref<1x2048xf32, #tpu.memory_space<vmem>>, vector<1x2048xf32>
    %84 = vector.broadcast %83 : vector<1x2048xf32> to vector<8x2048xf32>
    %85 = arith.addf %82, %84 : vector<8x2048xf32>
    %cst_41 = arith.constant 0.000000e+00 : f32
    %86 = vector.broadcast %cst_41 : f32 to vector<8x2048xf32>
    %87 = arith.maximumf %85, %86 : vector<8x2048xf32>
    %c0_42 = arith.constant 0 : index
    %c0_43 = arith.constant 0 : index
    %88 = vector.load %arg46[%c0_42, %c0_43] : memref<2048x32xf32, #tpu.memory_space<vmem>>, vector<2048x32xf32>
    %cst_44 = arith.constant dense<0.000000e+00> : vector<8x32xf32>
    %89 = tpu.matmul %87, %88, %cst_44 {dimension_numbers = #tpu.dot_dimension_numbers<[1], [0], [0], [1], [0, 0, 1, 1], [], []>} : vector<8x2048xf32>, vector<2048x32xf32>, vector<8x32xf32> -> vector<8x32xf32>
    %c0_45 = arith.constant 0 : index
    %c0_46 = arith.constant 0 : index
    %90 = vector.load %arg44[%c0_45, %c0_46] : memref<1x32xf32, #tpu.memory_space<vmem>>, vector<1x32xf32>
    %91 = vector.broadcast %90 : vector<1x32xf32> to vector<8x32xf32>
    %92 = arith.addf %89, %91 : vector<8x32xf32>
    %93 = arith.addf %80, %92 : vector<8x32xf32>
    %cst_47 = arith.constant dense<0.000000e+00> : vector<8xf32>
    %94 = vector.multi_reduction <add>, %93, %cst_47 [1] : vector<8x32xf32> to vector<8xf32>
    %95 = vector.shape_cast %94 : vector<8xf32> to vector<8x1xf32>
    %cst_48 = arith.constant 3.200000e+01 : f32
    %96 = vector.broadcast %cst_48 : f32 to vector<8x1xf32>
    %97 = arith.divf %95, %96 : vector<8x1xf32>
    %98 = vector.broadcast %97 : vector<8x1xf32> to vector<8x32xf32>
    %99 = arith.subf %93, %98 : vector<8x32xf32>
    %100 = arith.mulf %99, %99 : vector<8x32xf32>
    %cst_49 = arith.constant dense<0.000000e+00> : vector<8xf32>
    %101 = vector.multi_reduction <add>, %100, %cst_49 [1] : vector<8x32xf32> to vector<8xf32>
    %102 = vector.shape_cast %101 : vector<8xf32> to vector<8x1xf32>
    %cst_50 = arith.constant 3.200000e+01 : f32
    %103 = vector.broadcast %cst_50 : f32 to vector<8x1xf32>
    %104 = arith.divf %102, %103 : vector<8x1xf32>
    %105 = vector.broadcast %97 : vector<8x1xf32> to vector<8x32xf32>
    %106 = arith.subf %93, %105 : vector<8x32xf32>
    %cst_51 = arith.constant 9.99999974E-6 : f32
    %107 = vector.broadcast %cst_51 : f32 to vector<8x1xf32>
    %108 = arith.addf %104, %107 : vector<8x1xf32>
    %109 = math.rsqrt %108 : vector<8x1xf32>
    %110 = vector.broadcast %109 : vector<8x1xf32> to vector<8x32xf32>
    %111 = arith.mulf %106, %110 : vector<8x32xf32>
    %c0_52 = arith.constant 0 : index
    %c0_53 = arith.constant 0 : index
    %112 = vector.load %arg50[%c0_52, %c0_53] : memref<1x32xf32, #tpu.memory_space<vmem>>, vector<1x32xf32>
    %113 = vector.broadcast %112 : vector<1x32xf32> to vector<8x32xf32>
    %114 = arith.mulf %111, %113 : vector<8x32xf32>
    %c0_54 = arith.constant 0 : index
    %c0_55 = arith.constant 0 : index
    %115 = vector.load %arg49[%c0_54, %c0_55] : memref<1x32xf32, #tpu.memory_space<vmem>>, vector<1x32xf32>
    %116 = vector.broadcast %115 : vector<1x32xf32> to vector<8x32xf32>
    %117 = arith.addf %114, %116 : vector<8x32xf32>
    %c0_56 = arith.constant 0 : index
    %c0_57 = arith.constant 0 : index
    %118 = vector.load %arg66[%c0_56, %c0_57] : memref<32x96xf32, #tpu.memory_space<vmem>>, vector<32x96xf32>
    %cst_58 = arith.constant dense<0.000000e+00> : vector<8x96xf32>
    %119 = tpu.matmul %117, %118, %cst_58 {dimension_numbers = #tpu.dot_dimension_numbers<[1], [0], [0], [1], [0, 0, 1, 1], [], []>} : vector<8x32xf32>, vector<32x96xf32>, vector<8x96xf32> -> vector<8x96xf32>
    %c0_59 = arith.constant 0 : index
    %c0_60 = arith.constant 0 : index
    %120 = vector.load %arg64[%c0_59, %c0_60] : memref<1x96xf32, #tpu.memory_space<vmem>>, vector<1x96xf32>
    %121 = vector.broadcast %120 : vector<1x96xf32> to vector<8x96xf32>
    %122 = arith.addf %119, %121 : vector<8x96xf32>
    %123 = vector.extract_strided_slice %122 {offsets = [0, 0], sizes = [8, 32], strides = [1, 1]} : vector<8x96xf32> to vector<8x32xf32>
    %124 = vector.extract_strided_slice %122 {offsets = [0, 32], sizes = [8, 32], strides = [1, 1]} : vector<8x96xf32> to vector<8x32xf32>
    %125 = vector.extract_strided_slice %122 {offsets = [0, 64], sizes = [8, 32], strides = [1, 1]} : vector<8x96xf32> to vector<8x32xf32>
    %c0_61 = arith.constant 0 : index
    %c0_62 = arith.constant 0 : index
    %126 = vector.load %arg63[%c0_61, %c0_62] : memref<1x32xf32, #tpu.memory_space<vmem>>, vector<1x32xf32>
    %127 = vector.extract_strided_slice %123 {offsets = [0, 0], sizes = [8, 16], strides = [1, 1]} : vector<8x32xf32> to vector<8x16xf32>
    %128 = vector.extract_strided_slice %124 {offsets = [0, 0], sizes = [8, 16], strides = [1, 1]} : vector<8x32xf32> to vector<8x16xf32>
    %129 = vector.extract_strided_slice %125 {offsets = [0, 0], sizes = [8, 16], strides = [1, 1]} : vector<8x32xf32> to vector<8x16xf32>
    %cst_63 = arith.constant dense<0.000000e+00> : vector<8x8xf32>
    %130 = tpu.matmul %127, %128, %cst_63 {dimension_numbers = #tpu.dot_dimension_numbers<[1], [1], [0], [0], [0, 0, 1, 0], [], []>} : vector<8x16xf32>, vector<8x16xf32>, vector<8x8xf32> -> vector<8x8xf32>
    %cst_64 = arith.constant 2.500000e-01 : f32
    %131 = vector.broadcast %cst_64 : f32 to vector<8x8xf32>
    %132 = arith.mulf %130, %131 : vector<8x8xf32>
    %cst_65 = arith.constant dense<0xFF800000> : vector<8xf32>
    %133 = vector.multi_reduction <maximumf>, %132, %cst_65 [1] : vector<8x8xf32> to vector<8xf32>
    %134 = vector.shape_cast %133 : vector<8xf32> to vector<8x1xf32>
    %135 = vector.broadcast %134 : vector<8x1xf32> to vector<8x8xf32>
    %136 = arith.subf %132, %135 : vector<8x8xf32>
    %137 = math.exp %136 : vector<8x8xf32>
    %cst_66 = arith.constant dense<0.000000e+00> : vector<8xf32>
    %138 = vector.multi_reduction <add>, %137, %cst_66 [1] : vector<8x8xf32> to vector<8xf32>
    %139 = vector.shape_cast %138 : vector<8xf32> to vector<8x1xf32>
    %140 = tpu.reciprocal %139 {approx = true} : vector<8x1xf32> -> vector<8x1xf32>
    %141 = vector.broadcast %140 : vector<8x1xf32> to vector<8x8xf32>
    %142 = arith.mulf %137, %141 : vector<8x8xf32>
    %cst_67 = arith.constant dense<0.000000e+00> : vector<8x16xf32>
    %143 = tpu.matmul %142, %129, %cst_67 {dimension_numbers = #tpu.dot_dimension_numbers<[1], [0], [0], [1], [0, 0, 1, 1], [], []>} : vector<8x8xf32>, vector<8x16xf32>, vector<8x16xf32> -> vector<8x16xf32>
    %c0_68 = arith.constant 0 : index
    %c0_69 = arith.constant 0 : index
    %144 = vector.load %arg65[%c0_68, %c0_69] : memref<32x32xf32, #tpu.memory_space<vmem>>, vector<16x32xf32>
    %cst_70 = arith.constant dense<0.000000e+00> : vector<8x32xf32>
    %145 = tpu.matmul %143, %144, %cst_70 {dimension_numbers = #tpu.dot_dimension_numbers<[1], [0], [0], [1], [0, 0, 1, 1], [], []>} : vector<8x16xf32>, vector<16x32xf32>, vector<8x32xf32> -> vector<8x32xf32>
    %146 = vector.broadcast %126 : vector<1x32xf32> to vector<8x32xf32>
    %147 = arith.addf %146, %145 : vector<8x32xf32>
    %148 = vector.extract_strided_slice %123 {offsets = [0, 16], sizes = [8, 16], strides = [1, 1]} : vector<8x32xf32> to vector<8x16xf32>
    %149 = vector.extract_strided_slice %124 {offsets = [0, 16], sizes = [8, 16], strides = [1, 1]} : vector<8x32xf32> to vector<8x16xf32>
    %150 = vector.extract_strided_slice %125 {offsets = [0, 16], sizes = [8, 16], strides = [1, 1]} : vector<8x32xf32> to vector<8x16xf32>
    %cst_71 = arith.constant dense<0.000000e+00> : vector<8x8xf32>
    %151 = tpu.matmul %148, %149, %cst_71 {dimension_numbers = #tpu.dot_dimension_numbers<[1], [1], [0], [0], [0, 0, 1, 0], [], []>} : vector<8x16xf32>, vector<8x16xf32>, vector<8x8xf32> -> vector<8x8xf32>
    %cst_72 = arith.constant 2.500000e-01 : f32
    %152 = vector.broadcast %cst_72 : f32 to vector<8x8xf32>
    %153 = arith.mulf %151, %152 : vector<8x8xf32>
    %cst_73 = arith.constant dense<0xFF800000> : vector<8xf32>
    %154 = vector.multi_reduction <maximumf>, %153, %cst_73 [1] : vector<8x8xf32> to vector<8xf32>
    %155 = vector.shape_cast %154 : vector<8xf32> to vector<8x1xf32>
    %156 = vector.broadcast %155 : vector<8x1xf32> to vector<8x8xf32>
    %157 = arith.subf %153, %156 : vector<8x8xf32>
    %158 = math.exp %157 : vector<8x8xf32>
    %cst_74 = arith.constant dense<0.000000e+00> : vector<8xf32>
    %159 = vector.multi_reduction <add>, %158, %cst_74 [1] : vector<8x8xf32> to vector<8xf32>
    %160 = vector.shape_cast %159 : vector<8xf32> to vector<8x1xf32>
    %161 = tpu.reciprocal %160 {approx = true} : vector<8x1xf32> -> vector<8x1xf32>
    %162 = vector.broadcast %161 : vector<8x1xf32> to vector<8x8xf32>
    %163 = arith.mulf %158, %162 : vector<8x8xf32>
    %cst_75 = arith.constant dense<0.000000e+00> : vector<8x16xf32>
    %164 = tpu.matmul %163, %150, %cst_75 {dimension_numbers = #tpu.dot_dimension_numbers<[1], [0], [0], [1], [0, 0, 1, 1], [], []>} : vector<8x8xf32>, vector<8x16xf32>, vector<8x16xf32> -> vector<8x16xf32>
    %c16_76 = arith.constant 16 : index
    %c0_77 = arith.constant 0 : index
    %165 = vector.load %arg65[%c16_76, %c0_77] : memref<32x32xf32, #tpu.memory_space<vmem>>, vector<16x32xf32>
    %cst_78 = arith.constant dense<0.000000e+00> : vector<8x32xf32>
    %166 = tpu.matmul %164, %165, %cst_78 {dimension_numbers = #tpu.dot_dimension_numbers<[1], [0], [0], [1], [0, 0, 1, 1], [], []>} : vector<8x16xf32>, vector<16x32xf32>, vector<8x32xf32> -> vector<8x32xf32>
    %167 = arith.addf %147, %166 : vector<8x32xf32>
    %168 = arith.addf %117, %167 : vector<8x32xf32>
    %cst_79 = arith.constant dense<0.000000e+00> : vector<8xf32>
    %169 = vector.multi_reduction <add>, %168, %cst_79 [1] : vector<8x32xf32> to vector<8xf32>
    %170 = vector.shape_cast %169 : vector<8xf32> to vector<8x1xf32>
    %cst_80 = arith.constant 3.200000e+01 : f32
    %171 = vector.broadcast %cst_80 : f32 to vector<8x1xf32>
    %172 = arith.divf %170, %171 : vector<8x1xf32>
    %173 = vector.broadcast %172 : vector<8x1xf32> to vector<8x32xf32>
    %174 = arith.subf %168, %173 : vector<8x32xf32>
    %175 = arith.mulf %174, %174 : vector<8x32xf32>
    %cst_81 = arith.constant dense<0.000000e+00> : vector<8xf32>
    %176 = vector.multi_reduction <add>, %175, %cst_81 [1] : vector<8x32xf32> to vector<8xf32>
    %177 = vector.shape_cast %176 : vector<8xf32> to vector<8x1xf32>
    %cst_82 = arith.constant 3.200000e+01 : f32
    %178 = vector.broadcast %cst_82 : f32 to vector<8x1xf32>
    %179 = arith.divf %177, %178 : vector<8x1xf32>
    %180 = vector.broadcast %172 : vector<8x1xf32> to vector<8x32xf32>
    %181 = arith.subf %168, %180 : vector<8x32xf32>
    %cst_83 = arith.constant 9.99999974E-6 : f32
    %182 = vector.broadcast %cst_83 : f32 to vector<8x1xf32>
    %183 = arith.addf %179, %182 : vector<8x1xf32>
    %184 = math.rsqrt %183 : vector<8x1xf32>
    %185 = vector.broadcast %184 : vector<8x1xf32> to vector<8x32xf32>
    %186 = arith.mulf %181, %185 : vector<8x32xf32>
    %c0_84 = arith.constant 0 : index
    %c0_85 = arith.constant 0 : index
    %187 = vector.load %arg60[%c0_84, %c0_85] : memref<1x32xf32, #tpu.memory_space<vmem>>, vector<1x32xf32>
    %188 = vector.broadcast %187 : vector<1x32xf32> to vector<8x32xf32>
    %189 = arith.mulf %186, %188 : vector<8x32xf32>
    %c0_86 = arith.constant 0 : index
    %c0_87 = arith.constant 0 : index
    %190 = vector.load %arg59[%c0_86, %c0_87] : memref<1x32xf32, #tpu.memory_space<vmem>>, vector<1x32xf32>
    %191 = vector.broadcast %190 : vector<1x32xf32> to vector<8x32xf32>
    %192 = arith.addf %189, %191 : vector<8x32xf32>
    %c0_88 = arith.constant 0 : index
    %c0_89 = arith.constant 0 : index
    %193 = vector.load %arg57[%c0_88, %c0_89] : memref<32x2048xf32, #tpu.memory_space<vmem>>, vector<32x2048xf32>
    %cst_90 = arith.constant dense<0.000000e+00> : vector<8x2048xf32>
    %194 = tpu.matmul %192, %193, %cst_90 {dimension_numbers = #tpu.dot_dimension_numbers<[1], [0], [0], [1], [0, 0, 1, 1], [], []>} : vector<8x32xf32>, vector<32x2048xf32>, vector<8x2048xf32> -> vector<8x2048xf32>
    %c0_91 = arith.constant 0 : index
    %c0_92 = arith.constant 0 : index
    %195 = vector.load %arg55[%c0_91, %c0_92] : memref<1x2048xf32, #tpu.memory_space<vmem>>, vector<1x2048xf32>
    %196 = vector.broadcast %195 : vector<1x2048xf32> to vector<8x2048xf32>
    %197 = arith.addf %194, %196 : vector<8x2048xf32>
    %cst_93 = arith.constant 0.000000e+00 : f32
    %198 = vector.broadcast %cst_93 : f32 to vector<8x2048xf32>
    %199 = arith.maximumf %197, %198 : vector<8x2048xf32>
    %c0_94 = arith.constant 0 : index
    %c0_95 = arith.constant 0 : index
    %200 = vector.load %arg58[%c0_94, %c0_95] : memref<2048x32xf32, #tpu.memory_space<vmem>>, vector<2048x32xf32>
    %cst_96 = arith.constant dense<0.000000e+00> : vector<8x32xf32>
    %201 = tpu.matmul %199, %200, %cst_96 {dimension_numbers = #tpu.dot_dimension_numbers<[1], [0], [0], [1], [0, 0, 1, 1], [], []>} : vector<8x2048xf32>, vector<2048x32xf32>, vector<8x32xf32> -> vector<8x32xf32>
    %c0_97 = arith.constant 0 : index
    %c0_98 = arith.constant 0 : index
    %202 = vector.load %arg56[%c0_97, %c0_98] : memref<1x32xf32, #tpu.memory_space<vmem>>, vector<1x32xf32>
    %203 = vector.broadcast %202 : vector<1x32xf32> to vector<8x32xf32>
    %204 = arith.addf %201, %203 : vector<8x32xf32>
    %205 = arith.addf %192, %204 : vector<8x32xf32>
    %cst_99 = arith.constant dense<0.000000e+00> : vector<8xf32>
    %206 = vector.multi_reduction <add>, %205, %cst_99 [1] : vector<8x32xf32> to vector<8xf32>
    %207 = vector.shape_cast %206 : vector<8xf32> to vector<8x1xf32>
    %cst_100 = arith.constant 3.200000e+01 : f32
    %208 = vector.broadcast %cst_100 : f32 to vector<8x1xf32>
    %209 = arith.divf %207, %208 : vector<8x1xf32>
    %210 = vector.broadcast %209 : vector<8x1xf32> to vector<8x32xf32>
    %211 = arith.subf %205, %210 : vector<8x32xf32>
    %212 = arith.mulf %211, %211 : vector<8x32xf32>
    %cst_101 = arith.constant dense<0.000000e+00> : vector<8xf32>
    %213 = vector.multi_reduction <add>, %212, %cst_101 [1] : vector<8x32xf32> to vector<8xf32>
    %214 = vector.shape_cast %213 : vector<8xf32> to vector<8x1xf32>
    %cst_102 = arith.constant 3.200000e+01 : f32
    %215 = vector.broadcast %cst_102 : f32 to vector<8x1xf32>
    %216 = arith.divf %214, %215 : vector<8x1xf32>
    %217 = vector.broadcast %209 : vector<8x1xf32> to vector<8x32xf32>
    %218 = arith.subf %205, %217 : vector<8x32xf32>
    %cst_103 = arith.constant 9.99999974E-6 : f32
    %219 = vector.broadcast %cst_103 : f32 to vector<8x1xf32>
    %220 = arith.addf %216, %219 : vector<8x1xf32>
    %221 = math.rsqrt %220 : vector<8x1xf32>
    %222 = vector.broadcast %221 : vector<8x1xf32> to vector<8x32xf32>
    %223 = arith.mulf %218, %222 : vector<8x32xf32>
    %c0_104 = arith.constant 0 : index
    %c0_105 = arith.constant 0 : index
    %224 = vector.load %arg62[%c0_104, %c0_105] : memref<1x32xf32, #tpu.memory_space<vmem>>, vector<1x32xf32>
    %225 = vector.broadcast %224 : vector<1x32xf32> to vector<8x32xf32>
    %226 = arith.mulf %223, %225 : vector<8x32xf32>
    %c0_106 = arith.constant 0 : index
    %c0_107 = arith.constant 0 : index
    %227 = vector.load %arg61[%c0_106, %c0_107] : memref<1x32xf32, #tpu.memory_space<vmem>>, vector<1x32xf32>
    %228 = vector.broadcast %227 : vector<1x32xf32> to vector<8x32xf32>
    %229 = arith.addf %226, %228 : vector<8x32xf32>
    %cst_108 = arith.constant dense<0.000000e+00> : vector<8xf32>
    %230 = vector.multi_reduction <add>, %229, %cst_108 [1] : vector<8x32xf32> to vector<8xf32>
    %231 = vector.shape_cast %230 : vector<8xf32> to vector<8x1xf32>
    %cst_109 = arith.constant 3.200000e+01 : f32
    %232 = vector.broadcast %cst_109 : f32 to vector<8x1xf32>
    %233 = arith.divf %231, %232 : vector<8x1xf32>
    %234 = vector.broadcast %233 : vector<8x1xf32> to vector<8x32xf32>
    %235 = arith.subf %229, %234 : vector<8x32xf32>
    %236 = arith.mulf %235, %235 : vector<8x32xf32>
    %cst_110 = arith.constant dense<0.000000e+00> : vector<8xf32>
    %237 = vector.multi_reduction <add>, %236, %cst_110 [1] : vector<8x32xf32> to vector<8xf32>
    %238 = vector.shape_cast %237 : vector<8xf32> to vector<8x1xf32>
    %cst_111 = arith.constant 3.200000e+01 : f32
    %239 = vector.broadcast %cst_111 : f32 to vector<8x1xf32>
    %240 = arith.divf %238, %239 : vector<8x1xf32>
    %241 = vector.broadcast %233 : vector<8x1xf32> to vector<8x32xf32>
    %242 = arith.subf %229, %241 : vector<8x32xf32>
    %cst_112 = arith.constant 9.99999974E-6 : f32
    %243 = vector.broadcast %cst_112 : f32 to vector<8x1xf32>
    %244 = arith.addf %240, %243 : vector<8x1xf32>
    %245 = math.rsqrt %244 : vector<8x1xf32>
    %246 = vector.broadcast %245 : vector<8x1xf32> to vector<8x32xf32>
    %247 = arith.mulf %242, %246 : vector<8x32xf32>
    %c0_113 = arith.constant 0 : index
    %c0_114 = arith.constant 0 : index
    %248 = vector.load %arg68[%c0_113, %c0_114] : memref<1x32xf32, #tpu.memory_space<vmem>>, vector<1x32xf32>
    %249 = vector.broadcast %248 : vector<1x32xf32> to vector<8x32xf32>
    %250 = arith.mulf %247, %249 : vector<8x32xf32>
    %c0_115 = arith.constant 0 : index
    %c0_116 = arith.constant 0 : index
    %251 = vector.load %arg67[%c0_115, %c0_116] : memref<1x32xf32, #tpu.memory_space<vmem>>, vector<1x32xf32>
    %252 = vector.broadcast %251 : vector<1x32xf32> to vector<8x32xf32>
    %253 = arith.addf %250, %252 : vector<8x32xf32>
    %c0_117 = arith.constant 0 : index
    %c0_118 = arith.constant 0 : index
    %254 = vector.load %arg20[%c0_117, %c0_118] : memref<32x96xf32, #tpu.memory_space<vmem>>, vector<32x96xf32>
    %cst_119 = arith.constant dense<0.000000e+00> : vector<8x96xf32>
    %255 = tpu.matmul %5, %254, %cst_119 {dimension_numbers = #tpu.dot_dimension_numbers<[1], [0], [0], [1], [0, 0, 1, 1], [], []>} : vector<8x32xf32>, vector<32x96xf32>, vector<8x96xf32> -> vector<8x96xf32>
    %c0_120 = arith.constant 0 : index
    %c0_121 = arith.constant 0 : index
    %256 = vector.load %arg18[%c0_120, %c0_121] : memref<1x96xf32, #tpu.memory_space<vmem>>, vector<1x96xf32>
    %257 = vector.broadcast %256 : vector<1x96xf32> to vector<8x96xf32>
    %258 = arith.addf %255, %257 : vector<8x96xf32>
    %259 = vector.extract_strided_slice %258 {offsets = [0, 0], sizes = [8, 32], strides = [1, 1]} : vector<8x96xf32> to vector<8x32xf32>
    %260 = vector.extract_strided_slice %258 {offsets = [0, 32], sizes = [8, 32], strides = [1, 1]} : vector<8x96xf32> to vector<8x32xf32>
    %261 = vector.extract_strided_slice %258 {offsets = [0, 64], sizes = [8, 32], strides = [1, 1]} : vector<8x96xf32> to vector<8x32xf32>
    %c0_122 = arith.constant 0 : index
    %c0_123 = arith.constant 0 : index
    %262 = vector.load %arg17[%c0_122, %c0_123] : memref<1x32xf32, #tpu.memory_space<vmem>>, vector<1x32xf32>
    %263 = vector.extract_strided_slice %259 {offsets = [0, 0], sizes = [8, 16], strides = [1, 1]} : vector<8x32xf32> to vector<8x16xf32>
    %264 = vector.extract_strided_slice %260 {offsets = [0, 0], sizes = [8, 16], strides = [1, 1]} : vector<8x32xf32> to vector<8x16xf32>
    %265 = vector.extract_strided_slice %261 {offsets = [0, 0], sizes = [8, 16], strides = [1, 1]} : vector<8x32xf32> to vector<8x16xf32>
    %cst_124 = arith.constant dense<0.000000e+00> : vector<8x8xf32>
    %266 = tpu.matmul %263, %264, %cst_124 {dimension_numbers = #tpu.dot_dimension_numbers<[1], [1], [0], [0], [0, 0, 1, 0], [], []>} : vector<8x16xf32>, vector<8x16xf32>, vector<8x8xf32> -> vector<8x8xf32>
    %cst_125 = arith.constant 2.500000e-01 : f32
    %267 = vector.broadcast %cst_125 : f32 to vector<8x8xf32>
    %268 = arith.mulf %266, %267 : vector<8x8xf32>
    %cst_126 = arith.constant dense<0xFF800000> : vector<8xf32>
    %269 = vector.multi_reduction <maximumf>, %268, %cst_126 [1] : vector<8x8xf32> to vector<8xf32>
    %270 = vector.shape_cast %269 : vector<8xf32> to vector<8x1xf32>
    %271 = vector.broadcast %270 : vector<8x1xf32> to vector<8x8xf32>
    %272 = arith.subf %268, %271 : vector<8x8xf32>
    %273 = math.exp %272 : vector<8x8xf32>
    %cst_127 = arith.constant dense<0.000000e+00> : vector<8xf32>
    %274 = vector.multi_reduction <add>, %273, %cst_127 [1] : vector<8x8xf32> to vector<8xf32>
    %275 = vector.shape_cast %274 : vector<8xf32> to vector<8x1xf32>
    %276 = tpu.reciprocal %275 {approx = true} : vector<8x1xf32> -> vector<8x1xf32>
    %277 = vector.broadcast %276 : vector<8x1xf32> to vector<8x8xf32>
    %278 = arith.mulf %273, %277 : vector<8x8xf32>
    %cst_128 = arith.constant dense<0.000000e+00> : vector<8x16xf32>
    %279 = tpu.matmul %278, %265, %cst_128 {dimension_numbers = #tpu.dot_dimension_numbers<[1], [0], [0], [1], [0, 0, 1, 1], [], []>} : vector<8x8xf32>, vector<8x16xf32>, vector<8x16xf32> -> vector<8x16xf32>
    %c0_129 = arith.constant 0 : index
    %c0_130 = arith.constant 0 : index
    %280 = vector.load %arg19[%c0_129, %c0_130] : memref<32x32xf32, #tpu.memory_space<vmem>>, vector<16x32xf32>
    %cst_131 = arith.constant dense<0.000000e+00> : vector<8x32xf32>
    %281 = tpu.matmul %279, %280, %cst_131 {dimension_numbers = #tpu.dot_dimension_numbers<[1], [0], [0], [1], [0, 0, 1, 1], [], []>} : vector<8x16xf32>, vector<16x32xf32>, vector<8x32xf32> -> vector<8x32xf32>
    %282 = vector.broadcast %262 : vector<1x32xf32> to vector<8x32xf32>
    %283 = arith.addf %282, %281 : vector<8x32xf32>
    %284 = vector.extract_strided_slice %259 {offsets = [0, 16], sizes = [8, 16], strides = [1, 1]} : vector<8x32xf32> to vector<8x16xf32>
    %285 = vector.extract_strided_slice %260 {offsets = [0, 16], sizes = [8, 16], strides = [1, 1]} : vector<8x32xf32> to vector<8x16xf32>
    %286 = vector.extract_strided_slice %261 {offsets = [0, 16], sizes = [8, 16], strides = [1, 1]} : vector<8x32xf32> to vector<8x16xf32>
    %cst_132 = arith.constant dense<0.000000e+00> : vector<8x8xf32>
    %287 = tpu.matmul %284, %285, %cst_132 {dimension_numbers = #tpu.dot_dimension_numbers<[1], [1], [0], [0], [0, 0, 1, 0], [], []>} : vector<8x16xf32>, vector<8x16xf32>, vector<8x8xf32> -> vector<8x8xf32>
    %cst_133 = arith.constant 2.500000e-01 : f32
    %288 = vector.broadcast %cst_133 : f32 to vector<8x8xf32>
    %289 = arith.mulf %287, %288 : vector<8x8xf32>
    %cst_134 = arith.constant dense<0xFF800000> : vector<8xf32>
    %290 = vector.multi_reduction <maximumf>, %289, %cst_134 [1] : vector<8x8xf32> to vector<8xf32>
    %291 = vector.shape_cast %290 : vector<8xf32> to vector<8x1xf32>
    %292 = vector.broadcast %291 : vector<8x1xf32> to vector<8x8xf32>
    %293 = arith.subf %289, %292 : vector<8x8xf32>
    %294 = math.exp %293 : vector<8x8xf32>
    %cst_135 = arith.constant dense<0.000000e+00> : vector<8xf32>
    %295 = vector.multi_reduction <add>, %294, %cst_135 [1] : vector<8x8xf32> to vector<8xf32>
    %296 = vector.shape_cast %295 : vector<8xf32> to vector<8x1xf32>
    %297 = tpu.reciprocal %296 {approx = true} : vector<8x1xf32> -> vector<8x1xf32>
    %298 = vector.broadcast %297 : vector<8x1xf32> to vector<8x8xf32>
    %299 = arith.mulf %294, %298 : vector<8x8xf32>
    %cst_136 = arith.constant dense<0.000000e+00> : vector<8x16xf32>
    %300 = tpu.matmul %299, %286, %cst_136 {dimension_numbers = #tpu.dot_dimension_numbers<[1], [0], [0], [1], [0, 0, 1, 1], [], []>} : vector<8x8xf32>, vector<8x16xf32>, vector<8x16xf32> -> vector<8x16xf32>
    %c16_137 = arith.constant 16 : index
    %c0_138 = arith.constant 0 : index
    %301 = vector.load %arg19[%c16_137, %c0_138] : memref<32x32xf32, #tpu.memory_space<vmem>>, vector<16x32xf32>
    %cst_139 = arith.constant dense<0.000000e+00> : vector<8x32xf32>
    %302 = tpu.matmul %300, %301, %cst_139 {dimension_numbers = #tpu.dot_dimension_numbers<[1], [0], [0], [1], [0, 0, 1, 1], [], []>} : vector<8x16xf32>, vector<16x32xf32>, vector<8x32xf32> -> vector<8x32xf32>
    %303 = arith.addf %283, %302 : vector<8x32xf32>
    %304 = arith.addf %5, %303 : vector<8x32xf32>
    %cst_140 = arith.constant dense<0.000000e+00> : vector<8xf32>
    %305 = vector.multi_reduction <add>, %304, %cst_140 [1] : vector<8x32xf32> to vector<8xf32>
    %306 = vector.shape_cast %305 : vector<8xf32> to vector<8x1xf32>
    %cst_141 = arith.constant 3.200000e+01 : f32
    %307 = vector.broadcast %cst_141 : f32 to vector<8x1xf32>
    %308 = arith.divf %306, %307 : vector<8x1xf32>
    %309 = vector.broadcast %308 : vector<8x1xf32> to vector<8x32xf32>
    %310 = arith.subf %304, %309 : vector<8x32xf32>
    %311 = arith.mulf %310, %310 : vector<8x32xf32>
    %cst_142 = arith.constant dense<0.000000e+00> : vector<8xf32>
    %312 = vector.multi_reduction <add>, %311, %cst_142 [1] : vector<8x32xf32> to vector<8xf32>
    %313 = vector.shape_cast %312 : vector<8xf32> to vector<8x1xf32>
    %cst_143 = arith.constant 3.200000e+01 : f32
    %314 = vector.broadcast %cst_143 : f32 to vector<8x1xf32>
    %315 = arith.divf %313, %314 : vector<8x1xf32>
    %316 = vector.broadcast %308 : vector<8x1xf32> to vector<8x32xf32>
    %317 = arith.subf %304, %316 : vector<8x32xf32>
    %cst_144 = arith.constant 9.99999974E-6 : f32
    %318 = vector.broadcast %cst_144 : f32 to vector<8x1xf32>
    %319 = arith.addf %315, %318 : vector<8x1xf32>
    %320 = math.rsqrt %319 : vector<8x1xf32>
    %321 = vector.broadcast %320 : vector<8x1xf32> to vector<8x32xf32>
    %322 = arith.mulf %317, %321 : vector<8x32xf32>
    %c0_145 = arith.constant 0 : index
    %c0_146 = arith.constant 0 : index
    %323 = vector.load %arg12[%c0_145, %c0_146] : memref<1x32xf32, #tpu.memory_space<vmem>>, vector<1x32xf32>
    %324 = vector.broadcast %323 : vector<1x32xf32> to vector<8x32xf32>
    %325 = arith.mulf %322, %324 : vector<8x32xf32>
    %c0_147 = arith.constant 0 : index
    %c0_148 = arith.constant 0 : index
    %326 = vector.load %arg11[%c0_147, %c0_148] : memref<1x32xf32, #tpu.memory_space<vmem>>, vector<1x32xf32>
    %327 = vector.broadcast %326 : vector<1x32xf32> to vector<8x32xf32>
    %328 = arith.addf %325, %327 : vector<8x32xf32>
    %c0_149 = arith.constant 0 : index
    %c0_150 = arith.constant 0 : index
    %329 = vector.load %arg6[%c0_149, %c0_150] : memref<32x32xf32, #tpu.memory_space<vmem>>, vector<32x32xf32>
    %cst_151 = arith.constant dense<0.000000e+00> : vector<8x32xf32>
    %330 = tpu.matmul %328, %329, %cst_151 {dimension_numbers = #tpu.dot_dimension_numbers<[1], [0], [0], [1], [0, 0, 1, 1], [], []>} : vector<8x32xf32>, vector<32x32xf32>, vector<8x32xf32> -> vector<8x32xf32>
    %c0_152 = arith.constant 0 : index
    %c0_153 = arith.constant 0 : index
    %331 = vector.load %arg3[%c0_152, %c0_153] : memref<1x32xf32, #tpu.memory_space<vmem>>, vector<1x32xf32>
    %332 = vector.broadcast %331 : vector<1x32xf32> to vector<8x32xf32>
    %333 = arith.addf %330, %332 : vector<8x32xf32>
    %c0_154 = arith.constant 0 : index
    %c0_155 = arith.constant 0 : index
    %334 = vector.load %arg4[%c0_154, %c0_155] : memref<32x64xf32, #tpu.memory_space<vmem>>, vector<32x64xf32>
    %cst_156 = arith.constant dense<0.000000e+00> : vector<8x64xf32>
    %335 = tpu.matmul %253, %334, %cst_156 {dimension_numbers = #tpu.dot_dimension_numbers<[1], [0], [0], [1], [0, 0, 1, 1], [], []>} : vector<8x32xf32>, vector<32x64xf32>, vector<8x64xf32> -> vector<8x64xf32>
    %c0_157 = arith.constant 0 : index
    %c0_158 = arith.constant 0 : index
    %336 = vector.load %arg1[%c0_157, %c0_158] : memref<1x64xf32, #tpu.memory_space<vmem>>, vector<1x64xf32>
    %337 = vector.broadcast %336 : vector<1x64xf32> to vector<8x64xf32>
    %338 = arith.addf %335, %337 : vector<8x64xf32>
    %339 = vector.extract_strided_slice %338 {offsets = [0, 0], sizes = [8, 32], strides = [1, 1]} : vector<8x64xf32> to vector<8x32xf32>
    %340 = vector.extract_strided_slice %338 {offsets = [0, 32], sizes = [8, 32], strides = [1, 1]} : vector<8x64xf32> to vector<8x32xf32>
    %c0_159 = arith.constant 0 : index
    %c0_160 = arith.constant 0 : index
    %341 = vector.load %arg2[%c0_159, %c0_160] : memref<1x32xf32, #tpu.memory_space<vmem>>, vector<1x32xf32>
    %342 = vector.extract_strided_slice %333 {offsets = [0, 0], sizes = [8, 16], strides = [1, 1]} : vector<8x32xf32> to vector<8x16xf32>
    %343 = vector.extract_strided_slice %339 {offsets = [0, 0], sizes = [8, 16], strides = [1, 1]} : vector<8x32xf32> to vector<8x16xf32>
    %344 = vector.extract_strided_slice %340 {offsets = [0, 0], sizes = [8, 16], strides = [1, 1]} : vector<8x32xf32> to vector<8x16xf32>
    %cst_161 = arith.constant dense<0.000000e+00> : vector<8x8xf32>
    %345 = tpu.matmul %342, %343, %cst_161 {dimension_numbers = #tpu.dot_dimension_numbers<[1], [1], [0], [0], [0, 0, 1, 0], [], []>} : vector<8x16xf32>, vector<8x16xf32>, vector<8x8xf32> -> vector<8x8xf32>
    %cst_162 = arith.constant 2.500000e-01 : f32
    %346 = vector.broadcast %cst_162 : f32 to vector<8x8xf32>
    %347 = arith.mulf %345, %346 : vector<8x8xf32>
    %cst_163 = arith.constant dense<0xFF800000> : vector<8xf32>
    %348 = vector.multi_reduction <maximumf>, %347, %cst_163 [1] : vector<8x8xf32> to vector<8xf32>
    %349 = vector.shape_cast %348 : vector<8xf32> to vector<8x1xf32>
    %350 = vector.broadcast %349 : vector<8x1xf32> to vector<8x8xf32>
    %351 = arith.subf %347, %350 : vector<8x8xf32>
    %352 = math.exp %351 : vector<8x8xf32>
    %cst_164 = arith.constant dense<0.000000e+00> : vector<8xf32>
    %353 = vector.multi_reduction <add>, %352, %cst_164 [1] : vector<8x8xf32> to vector<8xf32>
    %354 = vector.shape_cast %353 : vector<8xf32> to vector<8x1xf32>
    %355 = tpu.reciprocal %354 {approx = true} : vector<8x1xf32> -> vector<8x1xf32>
    %356 = vector.broadcast %355 : vector<8x1xf32> to vector<8x8xf32>
    %357 = arith.mulf %352, %356 : vector<8x8xf32>
    %cst_165 = arith.constant dense<0.000000e+00> : vector<8x16xf32>
    %358 = tpu.matmul %357, %344, %cst_165 {dimension_numbers = #tpu.dot_dimension_numbers<[1], [0], [0], [1], [0, 0, 1, 1], [], []>} : vector<8x8xf32>, vector<8x16xf32>, vector<8x16xf32> -> vector<8x16xf32>
    %c0_166 = arith.constant 0 : index
    %c0_167 = arith.constant 0 : index
    %359 = vector.load %arg5[%c0_166, %c0_167] : memref<32x32xf32, #tpu.memory_space<vmem>>, vector<16x32xf32>
    %cst_168 = arith.constant dense<0.000000e+00> : vector<8x32xf32>
    %360 = tpu.matmul %358, %359, %cst_168 {dimension_numbers = #tpu.dot_dimension_numbers<[1], [0], [0], [1], [0, 0, 1, 1], [], []>} : vector<8x16xf32>, vector<16x32xf32>, vector<8x32xf32> -> vector<8x32xf32>
    %361 = vector.broadcast %341 : vector<1x32xf32> to vector<8x32xf32>
    %362 = arith.addf %361, %360 : vector<8x32xf32>
    %363 = vector.extract_strided_slice %333 {offsets = [0, 16], sizes = [8, 16], strides = [1, 1]} : vector<8x32xf32> to vector<8x16xf32>
    %364 = vector.extract_strided_slice %339 {offsets = [0, 16], sizes = [8, 16], strides = [1, 1]} : vector<8x32xf32> to vector<8x16xf32>
    %365 = vector.extract_strided_slice %340 {offsets = [0, 16], sizes = [8, 16], strides = [1, 1]} : vector<8x32xf32> to vector<8x16xf32>
    %cst_169 = arith.constant dense<0.000000e+00> : vector<8x8xf32>
    %366 = tpu.matmul %363, %364, %cst_169 {dimension_numbers = #tpu.dot_dimension_numbers<[1], [1], [0], [0], [0, 0, 1, 0], [], []>} : vector<8x16xf32>, vector<8x16xf32>, vector<8x8xf32> -> vector<8x8xf32>
    %cst_170 = arith.constant 2.500000e-01 : f32
    %367 = vector.broadcast %cst_170 : f32 to vector<8x8xf32>
    %368 = arith.mulf %366, %367 : vector<8x8xf32>
    %cst_171 = arith.constant dense<0xFF800000> : vector<8xf32>
    %369 = vector.multi_reduction <maximumf>, %368, %cst_171 [1] : vector<8x8xf32> to vector<8xf32>
    %370 = vector.shape_cast %369 : vector<8xf32> to vector<8x1xf32>
    %371 = vector.broadcast %370 : vector<8x1xf32> to vector<8x8xf32>
    %372 = arith.subf %368, %371 : vector<8x8xf32>
    %373 = math.exp %372 : vector<8x8xf32>
    %cst_172 = arith.constant dense<0.000000e+00> : vector<8xf32>
    %374 = vector.multi_reduction <add>, %373, %cst_172 [1] : vector<8x8xf32> to vector<8xf32>
    %375 = vector.shape_cast %374 : vector<8xf32> to vector<8x1xf32>
    %376 = tpu.reciprocal %375 {approx = true} : vector<8x1xf32> -> vector<8x1xf32>
    %377 = vector.broadcast %376 : vector<8x1xf32> to vector<8x8xf32>
    %378 = arith.mulf %373, %377 : vector<8x8xf32>
    %cst_173 = arith.constant dense<0.000000e+00> : vector<8x16xf32>
    %379 = tpu.matmul %378, %365, %cst_173 {dimension_numbers = #tpu.dot_dimension_numbers<[1], [0], [0], [1], [0, 0, 1, 1], [], []>} : vector<8x8xf32>, vector<8x16xf32>, vector<8x16xf32> -> vector<8x16xf32>
    %c16_174 = arith.constant 16 : index
    %c0_175 = arith.constant 0 : index
    %380 = vector.load %arg5[%c16_174, %c0_175] : memref<32x32xf32, #tpu.memory_space<vmem>>, vector<16x32xf32>
    %cst_176 = arith.constant dense<0.000000e+00> : vector<8x32xf32>
    %381 = tpu.matmul %379, %380, %cst_176 {dimension_numbers = #tpu.dot_dimension_numbers<[1], [0], [0], [1], [0, 0, 1, 1], [], []>} : vector<8x16xf32>, vector<16x32xf32>, vector<8x32xf32> -> vector<8x32xf32>
    %382 = arith.addf %362, %381 : vector<8x32xf32>
    %383 = arith.addf %328, %382 : vector<8x32xf32>
    %cst_177 = arith.constant dense<0.000000e+00> : vector<8xf32>
    %384 = vector.multi_reduction <add>, %383, %cst_177 [1] : vector<8x32xf32> to vector<8xf32>
    %385 = vector.shape_cast %384 : vector<8xf32> to vector<8x1xf32>
    %cst_178 = arith.constant 3.200000e+01 : f32
    %386 = vector.broadcast %cst_178 : f32 to vector<8x1xf32>
    %387 = arith.divf %385, %386 : vector<8x1xf32>
    %388 = vector.broadcast %387 : vector<8x1xf32> to vector<8x32xf32>
    %389 = arith.subf %383, %388 : vector<8x32xf32>
    %390 = arith.mulf %389, %389 : vector<8x32xf32>
    %cst_179 = arith.constant dense<0.000000e+00> : vector<8xf32>
    %391 = vector.multi_reduction <add>, %390, %cst_179 [1] : vector<8x32xf32> to vector<8xf32>
    %392 = vector.shape_cast %391 : vector<8xf32> to vector<8x1xf32>
    %cst_180 = arith.constant 3.200000e+01 : f32
    %393 = vector.broadcast %cst_180 : f32 to vector<8x1xf32>
    %394 = arith.divf %392, %393 : vector<8x1xf32>
    %395 = vector.broadcast %387 : vector<8x1xf32> to vector<8x32xf32>
    %396 = arith.subf %383, %395 : vector<8x32xf32>
    %cst_181 = arith.constant 9.99999974E-6 : f32
    %397 = vector.broadcast %cst_181 : f32 to vector<8x1xf32>
    %398 = arith.addf %394, %397 : vector<8x1xf32>
    %399 = math.rsqrt %398 : vector<8x1xf32>
    %400 = vector.broadcast %399 : vector<8x1xf32> to vector<8x32xf32>
    %401 = arith.mulf %396, %400 : vector<8x32xf32>
    %c0_182 = arith.constant 0 : index
    %c0_183 = arith.constant 0 : index
    %402 = vector.load %arg14[%c0_182, %c0_183] : memref<1x32xf32, #tpu.memory_space<vmem>>, vector<1x32xf32>
    %403 = vector.broadcast %402 : vector<1x32xf32> to vector<8x32xf32>
    %404 = arith.mulf %401, %403 : vector<8x32xf32>
    %c0_184 = arith.constant 0 : index
    %c0_185 = arith.constant 0 : index
    %405 = vector.load %arg13[%c0_184, %c0_185] : memref<1x32xf32, #tpu.memory_space<vmem>>, vector<1x32xf32>
    %406 = vector.broadcast %405 : vector<1x32xf32> to vector<8x32xf32>
    %407 = arith.addf %404, %406 : vector<8x32xf32>
    %c0_186 = arith.constant 0 : index
    %c0_187 = arith.constant 0 : index
    %408 = vector.load %arg9[%c0_186, %c0_187] : memref<32x2048xf32, #tpu.memory_space<vmem>>, vector<32x2048xf32>
    %cst_188 = arith.constant dense<0.000000e+00> : vector<8x2048xf32>
    %409 = tpu.matmul %407, %408, %cst_188 {dimension_numbers = #tpu.dot_dimension_numbers<[1], [0], [0], [1], [0, 0, 1, 1], [], []>} : vector<8x32xf32>, vector<32x2048xf32>, vector<8x2048xf32> -> vector<8x2048xf32>
    %c0_189 = arith.constant 0 : index
    %c0_190 = arith.constant 0 : index
    %410 = vector.load %arg7[%c0_189, %c0_190] : memref<1x2048xf32, #tpu.memory_space<vmem>>, vector<1x2048xf32>
    %411 = vector.broadcast %410 : vector<1x2048xf32> to vector<8x2048xf32>
    %412 = arith.addf %409, %411 : vector<8x2048xf32>
    %cst_191 = arith.constant 0.000000e+00 : f32
    %413 = vector.broadcast %cst_191 : f32 to vector<8x2048xf32>
    %414 = arith.maximumf %412, %413 : vector<8x2048xf32>
    %c0_192 = arith.constant 0 : index
    %c0_193 = arith.constant 0 : index
    %415 = vector.load %arg10[%c0_192, %c0_193] : memref<2048x32xf32, #tpu.memory_space<vmem>>, vector<2048x32xf32>
    %cst_194 = arith.constant dense<0.000000e+00> : vector<8x32xf32>
    %416 = tpu.matmul %414, %415, %cst_194 {dimension_numbers = #tpu.dot_dimension_numbers<[1], [0], [0], [1], [0, 0, 1, 1], [], []>} : vector<8x2048xf32>, vector<2048x32xf32>, vector<8x32xf32> -> vector<8x32xf32>
    %c0_195 = arith.constant 0 : index
    %c0_196 = arith.constant 0 : index
    %417 = vector.load %arg8[%c0_195, %c0_196] : memref<1x32xf32, #tpu.memory_space<vmem>>, vector<1x32xf32>
    %418 = vector.broadcast %417 : vector<1x32xf32> to vector<8x32xf32>
    %419 = arith.addf %416, %418 : vector<8x32xf32>
    %420 = arith.addf %407, %419 : vector<8x32xf32>
    %cst_197 = arith.constant dense<0.000000e+00> : vector<8xf32>
    %421 = vector.multi_reduction <add>, %420, %cst_197 [1] : vector<8x32xf32> to vector<8xf32>
    %422 = vector.shape_cast %421 : vector<8xf32> to vector<8x1xf32>
    %cst_198 = arith.constant 3.200000e+01 : f32
    %423 = vector.broadcast %cst_198 : f32 to vector<8x1xf32>
    %424 = arith.divf %422, %423 : vector<8x1xf32>
    %425 = vector.broadcast %424 : vector<8x1xf32> to vector<8x32xf32>
    %426 = arith.subf %420, %425 : vector<8x32xf32>
    %427 = arith.mulf %426, %426 : vector<8x32xf32>
    %cst_199 = arith.constant dense<0.000000e+00> : vector<8xf32>
    %428 = vector.multi_reduction <add>, %427, %cst_199 [1] : vector<8x32xf32> to vector<8xf32>
    %429 = vector.shape_cast %428 : vector<8xf32> to vector<8x1xf32>
    %cst_200 = arith.constant 3.200000e+01 : f32
    %430 = vector.broadcast %cst_200 : f32 to vector<8x1xf32>
    %431 = arith.divf %429, %430 : vector<8x1xf32>
    %432 = vector.broadcast %424 : vector<8x1xf32> to vector<8x32xf32>
    %433 = arith.subf %420, %432 : vector<8x32xf32>
    %cst_201 = arith.constant 9.99999974E-6 : f32
    %434 = vector.broadcast %cst_201 : f32 to vector<8x1xf32>
    %435 = arith.addf %431, %434 : vector<8x1xf32>
    %436 = math.rsqrt %435 : vector<8x1xf32>
    %437 = vector.broadcast %436 : vector<8x1xf32> to vector<8x32xf32>
    %438 = arith.mulf %433, %437 : vector<8x32xf32>
    %c0_202 = arith.constant 0 : index
    %c0_203 = arith.constant 0 : index
    %439 = vector.load %arg16[%c0_202, %c0_203] : memref<1x32xf32, #tpu.memory_space<vmem>>, vector<1x32xf32>
    %440 = vector.broadcast %439 : vector<1x32xf32> to vector<8x32xf32>
    %441 = arith.mulf %438, %440 : vector<8x32xf32>
    %c0_204 = arith.constant 0 : index
    %c0_205 = arith.constant 0 : index
    %442 = vector.load %arg15[%c0_204, %c0_205] : memref<1x32xf32, #tpu.memory_space<vmem>>, vector<1x32xf32>
    %443 = vector.broadcast %442 : vector<1x32xf32> to vector<8x32xf32>
    %444 = arith.addf %441, %443 : vector<8x32xf32>
    %c0_206 = arith.constant 0 : index
    %c0_207 = arith.constant 0 : index
    %445 = vector.load %arg40[%c0_206, %c0_207] : memref<32x96xf32, #tpu.memory_space<vmem>>, vector<32x96xf32>
    %cst_208 = arith.constant dense<0.000000e+00> : vector<8x96xf32>
    %446 = tpu.matmul %444, %445, %cst_208 {dimension_numbers = #tpu.dot_dimension_numbers<[1], [0], [0], [1], [0, 0, 1, 1], [], []>} : vector<8x32xf32>, vector<32x96xf32>, vector<8x96xf32> -> vector<8x96xf32>
    %c0_209 = arith.constant 0 : index
    %c0_210 = arith.constant 0 : index
    %447 = vector.load %arg38[%c0_209, %c0_210] : memref<1x96xf32, #tpu.memory_space<vmem>>, vector<1x96xf32>
    %448 = vector.broadcast %447 : vector<1x96xf32> to vector<8x96xf32>
    %449 = arith.addf %446, %448 : vector<8x96xf32>
    %450 = vector.extract_strided_slice %449 {offsets = [0, 0], sizes = [8, 32], strides = [1, 1]} : vector<8x96xf32> to vector<8x32xf32>
    %451 = vector.extract_strided_slice %449 {offsets = [0, 32], sizes = [8, 32], strides = [1, 1]} : vector<8x96xf32> to vector<8x32xf32>
    %452 = vector.extract_strided_slice %449 {offsets = [0, 64], sizes = [8, 32], strides = [1, 1]} : vector<8x96xf32> to vector<8x32xf32>
    %c0_211 = arith.constant 0 : index
    %c0_212 = arith.constant 0 : index
    %453 = vector.load %arg37[%c0_211, %c0_212] : memref<1x32xf32, #tpu.memory_space<vmem>>, vector<1x32xf32>
    %454 = vector.extract_strided_slice %450 {offsets = [0, 0], sizes = [8, 16], strides = [1, 1]} : vector<8x32xf32> to vector<8x16xf32>
    %455 = vector.extract_strided_slice %451 {offsets = [0, 0], sizes = [8, 16], strides = [1, 1]} : vector<8x32xf32> to vector<8x16xf32>
    %456 = vector.extract_strided_slice %452 {offsets = [0, 0], sizes = [8, 16], strides = [1, 1]} : vector<8x32xf32> to vector<8x16xf32>
    %cst_213 = arith.constant dense<0.000000e+00> : vector<8x8xf32>
    %457 = tpu.matmul %454, %455, %cst_213 {dimension_numbers = #tpu.dot_dimension_numbers<[1], [1], [0], [0], [0, 0, 1, 0], [], []>} : vector<8x16xf32>, vector<8x16xf32>, vector<8x8xf32> -> vector<8x8xf32>
    %cst_214 = arith.constant 2.500000e-01 : f32
    %458 = vector.broadcast %cst_214 : f32 to vector<8x8xf32>
    %459 = arith.mulf %457, %458 : vector<8x8xf32>
    %cst_215 = arith.constant dense<0xFF800000> : vector<8xf32>
    %460 = vector.multi_reduction <maximumf>, %459, %cst_215 [1] : vector<8x8xf32> to vector<8xf32>
    %461 = vector.shape_cast %460 : vector<8xf32> to vector<8x1xf32>
    %462 = vector.broadcast %461 : vector<8x1xf32> to vector<8x8xf32>
    %463 = arith.subf %459, %462 : vector<8x8xf32>
    %464 = math.exp %463 : vector<8x8xf32>
    %cst_216 = arith.constant dense<0.000000e+00> : vector<8xf32>
    %465 = vector.multi_reduction <add>, %464, %cst_216 [1] : vector<8x8xf32> to vector<8xf32>
    %466 = vector.shape_cast %465 : vector<8xf32> to vector<8x1xf32>
    %467 = tpu.reciprocal %466 {approx = true} : vector<8x1xf32> -> vector<8x1xf32>
    %468 = vector.broadcast %467 : vector<8x1xf32> to vector<8x8xf32>
    %469 = arith.mulf %464, %468 : vector<8x8xf32>
    %cst_217 = arith.constant dense<0.000000e+00> : vector<8x16xf32>
    %470 = tpu.matmul %469, %456, %cst_217 {dimension_numbers = #tpu.dot_dimension_numbers<[1], [0], [0], [1], [0, 0, 1, 1], [], []>} : vector<8x8xf32>, vector<8x16xf32>, vector<8x16xf32> -> vector<8x16xf32>
    %c0_218 = arith.constant 0 : index
    %c0_219 = arith.constant 0 : index
    %471 = vector.load %arg39[%c0_218, %c0_219] : memref<32x32xf32, #tpu.memory_space<vmem>>, vector<16x32xf32>
    %cst_220 = arith.constant dense<0.000000e+00> : vector<8x32xf32>
    %472 = tpu.matmul %470, %471, %cst_220 {dimension_numbers = #tpu.dot_dimension_numbers<[1], [0], [0], [1], [0, 0, 1, 1], [], []>} : vector<8x16xf32>, vector<16x32xf32>, vector<8x32xf32> -> vector<8x32xf32>
    %473 = vector.broadcast %453 : vector<1x32xf32> to vector<8x32xf32>
    %474 = arith.addf %473, %472 : vector<8x32xf32>
    %475 = vector.extract_strided_slice %450 {offsets = [0, 16], sizes = [8, 16], strides = [1, 1]} : vector<8x32xf32> to vector<8x16xf32>
    %476 = vector.extract_strided_slice %451 {offsets = [0, 16], sizes = [8, 16], strides = [1, 1]} : vector<8x32xf32> to vector<8x16xf32>
    %477 = vector.extract_strided_slice %452 {offsets = [0, 16], sizes = [8, 16], strides = [1, 1]} : vector<8x32xf32> to vector<8x16xf32>
    %cst_221 = arith.constant dense<0.000000e+00> : vector<8x8xf32>
    %478 = tpu.matmul %475, %476, %cst_221 {dimension_numbers = #tpu.dot_dimension_numbers<[1], [1], [0], [0], [0, 0, 1, 0], [], []>} : vector<8x16xf32>, vector<8x16xf32>, vector<8x8xf32> -> vector<8x8xf32>
    %cst_222 = arith.constant 2.500000e-01 : f32
    %479 = vector.broadcast %cst_222 : f32 to vector<8x8xf32>
    %480 = arith.mulf %478, %479 : vector<8x8xf32>
    %cst_223 = arith.constant dense<0xFF800000> : vector<8xf32>
    %481 = vector.multi_reduction <maximumf>, %480, %cst_223 [1] : vector<8x8xf32> to vector<8xf32>
    %482 = vector.shape_cast %481 : vector<8xf32> to vector<8x1xf32>
    %483 = vector.broadcast %482 : vector<8x1xf32> to vector<8x8xf32>
    %484 = arith.subf %480, %483 : vector<8x8xf32>
    %485 = math.exp %484 : vector<8x8xf32>
    %cst_224 = arith.constant dense<0.000000e+00> : vector<8xf32>
    %486 = vector.multi_reduction <add>, %485, %cst_224 [1] : vector<8x8xf32> to vector<8xf32>
    %487 = vector.shape_cast %486 : vector<8xf32> to vector<8x1xf32>
    %488 = tpu.reciprocal %487 {approx = true} : vector<8x1xf32> -> vector<8x1xf32>
    %489 = vector.broadcast %488 : vector<8x1xf32> to vector<8x8xf32>
    %490 = arith.mulf %485, %489 : vector<8x8xf32>
    %cst_225 = arith.constant dense<0.000000e+00> : vector<8x16xf32>
    %491 = tpu.matmul %490, %477, %cst_225 {dimension_numbers = #tpu.dot_dimension_numbers<[1], [0], [0], [1], [0, 0, 1, 1], [], []>} : vector<8x8xf32>, vector<8x16xf32>, vector<8x16xf32> -> vector<8x16xf32>
    %c16_226 = arith.constant 16 : index
    %c0_227 = arith.constant 0 : index
    %492 = vector.load %arg39[%c16_226, %c0_227] : memref<32x32xf32, #tpu.memory_space<vmem>>, vector<16x32xf32>
    %cst_228 = arith.constant dense<0.000000e+00> : vector<8x32xf32>
    %493 = tpu.matmul %491, %492, %cst_228 {dimension_numbers = #tpu.dot_dimension_numbers<[1], [0], [0], [1], [0, 0, 1, 1], [], []>} : vector<8x16xf32>, vector<16x32xf32>, vector<8x32xf32> -> vector<8x32xf32>
    %494 = arith.addf %474, %493 : vector<8x32xf32>
    %495 = arith.addf %444, %494 : vector<8x32xf32>
    %cst_229 = arith.constant dense<0.000000e+00> : vector<8xf32>
    %496 = vector.multi_reduction <add>, %495, %cst_229 [1] : vector<8x32xf32> to vector<8xf32>
    %497 = vector.shape_cast %496 : vector<8xf32> to vector<8x1xf32>
    %cst_230 = arith.constant 3.200000e+01 : f32
    %498 = vector.broadcast %cst_230 : f32 to vector<8x1xf32>
    %499 = arith.divf %497, %498 : vector<8x1xf32>
    %500 = vector.broadcast %499 : vector<8x1xf32> to vector<8x32xf32>
    %501 = arith.subf %495, %500 : vector<8x32xf32>
    %502 = arith.mulf %501, %501 : vector<8x32xf32>
    %cst_231 = arith.constant dense<0.000000e+00> : vector<8xf32>
    %503 = vector.multi_reduction <add>, %502, %cst_231 [1] : vector<8x32xf32> to vector<8xf32>
    %504 = vector.shape_cast %503 : vector<8xf32> to vector<8x1xf32>
    %cst_232 = arith.constant 3.200000e+01 : f32
    %505 = vector.broadcast %cst_232 : f32 to vector<8x1xf32>
    %506 = arith.divf %504, %505 : vector<8x1xf32>
    %507 = vector.broadcast %499 : vector<8x1xf32> to vector<8x32xf32>
    %508 = arith.subf %495, %507 : vector<8x32xf32>
    %cst_233 = arith.constant 9.99999974E-6 : f32
    %509 = vector.broadcast %cst_233 : f32 to vector<8x1xf32>
    %510 = arith.addf %506, %509 : vector<8x1xf32>
    %511 = math.rsqrt %510 : vector<8x1xf32>
    %512 = vector.broadcast %511 : vector<8x1xf32> to vector<8x32xf32>
    %513 = arith.mulf %508, %512 : vector<8x32xf32>
    %c0_234 = arith.constant 0 : index
    %c0_235 = arith.constant 0 : index
    %514 = vector.load %arg32[%c0_234, %c0_235] : memref<1x32xf32, #tpu.memory_space<vmem>>, vector<1x32xf32>
    %515 = vector.broadcast %514 : vector<1x32xf32> to vector<8x32xf32>
    %516 = arith.mulf %513, %515 : vector<8x32xf32>
    %c0_236 = arith.constant 0 : index
    %c0_237 = arith.constant 0 : index
    %517 = vector.load %arg31[%c0_236, %c0_237] : memref<1x32xf32, #tpu.memory_space<vmem>>, vector<1x32xf32>
    %518 = vector.broadcast %517 : vector<1x32xf32> to vector<8x32xf32>
    %519 = arith.addf %516, %518 : vector<8x32xf32>
    %c0_238 = arith.constant 0 : index
    %c0_239 = arith.constant 0 : index
    %520 = vector.load %arg26[%c0_238, %c0_239] : memref<32x32xf32, #tpu.memory_space<vmem>>, vector<32x32xf32>
    %cst_240 = arith.constant dense<0.000000e+00> : vector<8x32xf32>
    %521 = tpu.matmul %519, %520, %cst_240 {dimension_numbers = #tpu.dot_dimension_numbers<[1], [0], [0], [1], [0, 0, 1, 1], [], []>} : vector<8x32xf32>, vector<32x32xf32>, vector<8x32xf32> -> vector<8x32xf32>
    %c0_241 = arith.constant 0 : index
    %c0_242 = arith.constant 0 : index
    %522 = vector.load %arg23[%c0_241, %c0_242] : memref<1x32xf32, #tpu.memory_space<vmem>>, vector<1x32xf32>
    %523 = vector.broadcast %522 : vector<1x32xf32> to vector<8x32xf32>
    %524 = arith.addf %521, %523 : vector<8x32xf32>
    %c0_243 = arith.constant 0 : index
    %c0_244 = arith.constant 0 : index
    %525 = vector.load %arg24[%c0_243, %c0_244] : memref<32x64xf32, #tpu.memory_space<vmem>>, vector<32x64xf32>
    %cst_245 = arith.constant dense<0.000000e+00> : vector<8x64xf32>
    %526 = tpu.matmul %253, %525, %cst_245 {dimension_numbers = #tpu.dot_dimension_numbers<[1], [0], [0], [1], [0, 0, 1, 1], [], []>} : vector<8x32xf32>, vector<32x64xf32>, vector<8x64xf32> -> vector<8x64xf32>
    %c0_246 = arith.constant 0 : index
    %c0_247 = arith.constant 0 : index
    %527 = vector.load %arg21[%c0_246, %c0_247] : memref<1x64xf32, #tpu.memory_space<vmem>>, vector<1x64xf32>
    %528 = vector.broadcast %527 : vector<1x64xf32> to vector<8x64xf32>
    %529 = arith.addf %526, %528 : vector<8x64xf32>
    %530 = vector.extract_strided_slice %529 {offsets = [0, 0], sizes = [8, 32], strides = [1, 1]} : vector<8x64xf32> to vector<8x32xf32>
    %531 = vector.extract_strided_slice %529 {offsets = [0, 32], sizes = [8, 32], strides = [1, 1]} : vector<8x64xf32> to vector<8x32xf32>
    %c0_248 = arith.constant 0 : index
    %c0_249 = arith.constant 0 : index
    %532 = vector.load %arg22[%c0_248, %c0_249] : memref<1x32xf32, #tpu.memory_space<vmem>>, vector<1x32xf32>
    %533 = vector.extract_strided_slice %524 {offsets = [0, 0], sizes = [8, 16], strides = [1, 1]} : vector<8x32xf32> to vector<8x16xf32>
    %534 = vector.extract_strided_slice %530 {offsets = [0, 0], sizes = [8, 16], strides = [1, 1]} : vector<8x32xf32> to vector<8x16xf32>
    %535 = vector.extract_strided_slice %531 {offsets = [0, 0], sizes = [8, 16], strides = [1, 1]} : vector<8x32xf32> to vector<8x16xf32>
    %cst_250 = arith.constant dense<0.000000e+00> : vector<8x8xf32>
    %536 = tpu.matmul %533, %534, %cst_250 {dimension_numbers = #tpu.dot_dimension_numbers<[1], [1], [0], [0], [0, 0, 1, 0], [], []>} : vector<8x16xf32>, vector<8x16xf32>, vector<8x8xf32> -> vector<8x8xf32>
    %cst_251 = arith.constant 2.500000e-01 : f32
    %537 = vector.broadcast %cst_251 : f32 to vector<8x8xf32>
    %538 = arith.mulf %536, %537 : vector<8x8xf32>
    %cst_252 = arith.constant dense<0xFF800000> : vector<8xf32>
    %539 = vector.multi_reduction <maximumf>, %538, %cst_252 [1] : vector<8x8xf32> to vector<8xf32>
    %540 = vector.shape_cast %539 : vector<8xf32> to vector<8x1xf32>
    %541 = vector.broadcast %540 : vector<8x1xf32> to vector<8x8xf32>
    %542 = arith.subf %538, %541 : vector<8x8xf32>
    %543 = math.exp %542 : vector<8x8xf32>
    %cst_253 = arith.constant dense<0.000000e+00> : vector<8xf32>
    %544 = vector.multi_reduction <add>, %543, %cst_253 [1] : vector<8x8xf32> to vector<8xf32>
    %545 = vector.shape_cast %544 : vector<8xf32> to vector<8x1xf32>
    %546 = tpu.reciprocal %545 {approx = true} : vector<8x1xf32> -> vector<8x1xf32>
    %547 = vector.broadcast %546 : vector<8x1xf32> to vector<8x8xf32>
    %548 = arith.mulf %543, %547 : vector<8x8xf32>
    %cst_254 = arith.constant dense<0.000000e+00> : vector<8x16xf32>
    %549 = tpu.matmul %548, %535, %cst_254 {dimension_numbers = #tpu.dot_dimension_numbers<[1], [0], [0], [1], [0, 0, 1, 1], [], []>} : vector<8x8xf32>, vector<8x16xf32>, vector<8x16xf32> -> vector<8x16xf32>
    %c0_255 = arith.constant 0 : index
    %c0_256 = arith.constant 0 : index
    %550 = vector.load %arg25[%c0_255, %c0_256] : memref<32x32xf32, #tpu.memory_space<vmem>>, vector<16x32xf32>
    %cst_257 = arith.constant dense<0.000000e+00> : vector<8x32xf32>
    %551 = tpu.matmul %549, %550, %cst_257 {dimension_numbers = #tpu.dot_dimension_numbers<[1], [0], [0], [1], [0, 0, 1, 1], [], []>} : vector<8x16xf32>, vector<16x32xf32>, vector<8x32xf32> -> vector<8x32xf32>
    %552 = vector.broadcast %532 : vector<1x32xf32> to vector<8x32xf32>
    %553 = arith.addf %552, %551 : vector<8x32xf32>
    %554 = vector.extract_strided_slice %524 {offsets = [0, 16], sizes = [8, 16], strides = [1, 1]} : vector<8x32xf32> to vector<8x16xf32>
    %555 = vector.extract_strided_slice %530 {offsets = [0, 16], sizes = [8, 16], strides = [1, 1]} : vector<8x32xf32> to vector<8x16xf32>
    %556 = vector.extract_strided_slice %531 {offsets = [0, 16], sizes = [8, 16], strides = [1, 1]} : vector<8x32xf32> to vector<8x16xf32>
    %cst_258 = arith.constant dense<0.000000e+00> : vector<8x8xf32>
    %557 = tpu.matmul %554, %555, %cst_258 {dimension_numbers = #tpu.dot_dimension_numbers<[1], [1], [0], [0], [0, 0, 1, 0], [], []>} : vector<8x16xf32>, vector<8x16xf32>, vector<8x8xf32> -> vector<8x8xf32>
    %cst_259 = arith.constant 2.500000e-01 : f32
    %558 = vector.broadcast %cst_259 : f32 to vector<8x8xf32>
    %559 = arith.mulf %557, %558 : vector<8x8xf32>
    %cst_260 = arith.constant dense<0xFF800000> : vector<8xf32>
    %560 = vector.multi_reduction <maximumf>, %559, %cst_260 [1] : vector<8x8xf32> to vector<8xf32>
    %561 = vector.shape_cast %560 : vector<8xf32> to vector<8x1xf32>
    %562 = vector.broadcast %561 : vector<8x1xf32> to vector<8x8xf32>
    %563 = arith.subf %559, %562 : vector<8x8xf32>
    %564 = math.exp %563 : vector<8x8xf32>
    %cst_261 = arith.constant dense<0.000000e+00> : vector<8xf32>
    %565 = vector.multi_reduction <add>, %564, %cst_261 [1] : vector<8x8xf32> to vector<8xf32>
    %566 = vector.shape_cast %565 : vector<8xf32> to vector<8x1xf32>
    %567 = tpu.reciprocal %566 {approx = true} : vector<8x1xf32> -> vector<8x1xf32>
    %568 = vector.broadcast %567 : vector<8x1xf32> to vector<8x8xf32>
    %569 = arith.mulf %564, %568 : vector<8x8xf32>
    %cst_262 = arith.constant dense<0.000000e+00> : vector<8x16xf32>
    %570 = tpu.matmul %569, %556, %cst_262 {dimension_numbers = #tpu.dot_dimension_numbers<[1], [0], [0], [1], [0, 0, 1, 1], [], []>} : vector<8x8xf32>, vector<8x16xf32>, vector<8x16xf32> -> vector<8x16xf32>
    %c16_263 = arith.constant 16 : index
    %c0_264 = arith.constant 0 : index
    %571 = vector.load %arg25[%c16_263, %c0_264] : memref<32x32xf32, #tpu.memory_space<vmem>>, vector<16x32xf32>
    %cst_265 = arith.constant dense<0.000000e+00> : vector<8x32xf32>
    %572 = tpu.matmul %570, %571, %cst_265 {dimension_numbers = #tpu.dot_dimension_numbers<[1], [0], [0], [1], [0, 0, 1, 1], [], []>} : vector<8x16xf32>, vector<16x32xf32>, vector<8x32xf32> -> vector<8x32xf32>
    %573 = arith.addf %553, %572 : vector<8x32xf32>
    %574 = arith.addf %519, %573 : vector<8x32xf32>
    %cst_266 = arith.constant dense<0.000000e+00> : vector<8xf32>
    %575 = vector.multi_reduction <add>, %574, %cst_266 [1] : vector<8x32xf32> to vector<8xf32>
    %576 = vector.shape_cast %575 : vector<8xf32> to vector<8x1xf32>
    %cst_267 = arith.constant 3.200000e+01 : f32
    %577 = vector.broadcast %cst_267 : f32 to vector<8x1xf32>
    %578 = arith.divf %576, %577 : vector<8x1xf32>
    %579 = vector.broadcast %578 : vector<8x1xf32> to vector<8x32xf32>
    %580 = arith.subf %574, %579 : vector<8x32xf32>
    %581 = arith.mulf %580, %580 : vector<8x32xf32>
    %cst_268 = arith.constant dense<0.000000e+00> : vector<8xf32>
    %582 = vector.multi_reduction <add>, %581, %cst_268 [1] : vector<8x32xf32> to vector<8xf32>
    %583 = vector.shape_cast %582 : vector<8xf32> to vector<8x1xf32>
    %cst_269 = arith.constant 3.200000e+01 : f32
    %584 = vector.broadcast %cst_269 : f32 to vector<8x1xf32>
    %585 = arith.divf %583, %584 : vector<8x1xf32>
    %586 = vector.broadcast %578 : vector<8x1xf32> to vector<8x32xf32>
    %587 = arith.subf %574, %586 : vector<8x32xf32>
    %cst_270 = arith.constant 9.99999974E-6 : f32
    %588 = vector.broadcast %cst_270 : f32 to vector<8x1xf32>
    %589 = arith.addf %585, %588 : vector<8x1xf32>
    %590 = math.rsqrt %589 : vector<8x1xf32>
    %591 = vector.broadcast %590 : vector<8x1xf32> to vector<8x32xf32>
    %592 = arith.mulf %587, %591 : vector<8x32xf32>
    %c0_271 = arith.constant 0 : index
    %c0_272 = arith.constant 0 : index
    %593 = vector.load %arg34[%c0_271, %c0_272] : memref<1x32xf32, #tpu.memory_space<vmem>>, vector<1x32xf32>
    %594 = vector.broadcast %593 : vector<1x32xf32> to vector<8x32xf32>
    %595 = arith.mulf %592, %594 : vector<8x32xf32>
    %c0_273 = arith.constant 0 : index
    %c0_274 = arith.constant 0 : index
    %596 = vector.load %arg33[%c0_273, %c0_274] : memref<1x32xf32, #tpu.memory_space<vmem>>, vector<1x32xf32>
    %597 = vector.broadcast %596 : vector<1x32xf32> to vector<8x32xf32>
    %598 = arith.addf %595, %597 : vector<8x32xf32>
    %c0_275 = arith.constant 0 : index
    %c0_276 = arith.constant 0 : index
    %599 = vector.load %arg29[%c0_275, %c0_276] : memref<32x2048xf32, #tpu.memory_space<vmem>>, vector<32x2048xf32>
    %cst_277 = arith.constant dense<0.000000e+00> : vector<8x2048xf32>
    %600 = tpu.matmul %598, %599, %cst_277 {dimension_numbers = #tpu.dot_dimension_numbers<[1], [0], [0], [1], [0, 0, 1, 1], [], []>} : vector<8x32xf32>, vector<32x2048xf32>, vector<8x2048xf32> -> vector<8x2048xf32>
    %c0_278 = arith.constant 0 : index
    %c0_279 = arith.constant 0 : index
    %601 = vector.load %arg27[%c0_278, %c0_279] : memref<1x2048xf32, #tpu.memory_space<vmem>>, vector<1x2048xf32>
    %602 = vector.broadcast %601 : vector<1x2048xf32> to vector<8x2048xf32>
    %603 = arith.addf %600, %602 : vector<8x2048xf32>
    %cst_280 = arith.constant 0.000000e+00 : f32
    %604 = vector.broadcast %cst_280 : f32 to vector<8x2048xf32>
    %605 = arith.maximumf %603, %604 : vector<8x2048xf32>
    %c0_281 = arith.constant 0 : index
    %c0_282 = arith.constant 0 : index
    %606 = vector.load %arg30[%c0_281, %c0_282] : memref<2048x32xf32, #tpu.memory_space<vmem>>, vector<2048x32xf32>
    %cst_283 = arith.constant dense<0.000000e+00> : vector<8x32xf32>
    %607 = tpu.matmul %605, %606, %cst_283 {dimension_numbers = #tpu.dot_dimension_numbers<[1], [0], [0], [1], [0, 0, 1, 1], [], []>} : vector<8x2048xf32>, vector<2048x32xf32>, vector<8x32xf32> -> vector<8x32xf32>
    %c0_284 = arith.constant 0 : index
    %c0_285 = arith.constant 0 : index
    %608 = vector.load %arg28[%c0_284, %c0_285] : memref<1x32xf32, #tpu.memory_space<vmem>>, vector<1x32xf32>
    %609 = vector.broadcast %608 : vector<1x32xf32> to vector<8x32xf32>
    %610 = arith.addf %607, %609 : vector<8x32xf32>
    %611 = arith.addf %598, %610 : vector<8x32xf32>
    %cst_286 = arith.constant dense<0.000000e+00> : vector<8xf32>
    %612 = vector.multi_reduction <add>, %611, %cst_286 [1] : vector<8x32xf32> to vector<8xf32>
    %613 = vector.shape_cast %612 : vector<8xf32> to vector<8x1xf32>
    %cst_287 = arith.constant 3.200000e+01 : f32
    %614 = vector.broadcast %cst_287 : f32 to vector<8x1xf32>
    %615 = arith.divf %613, %614 : vector<8x1xf32>
    %616 = vector.broadcast %615 : vector<8x1xf32> to vector<8x32xf32>
    %617 = arith.subf %611, %616 : vector<8x32xf32>
    %618 = arith.mulf %617, %617 : vector<8x32xf32>
    %cst_288 = arith.constant dense<0.000000e+00> : vector<8xf32>
    %619 = vector.multi_reduction <add>, %618, %cst_288 [1] : vector<8x32xf32> to vector<8xf32>
    %620 = vector.shape_cast %619 : vector<8xf32> to vector<8x1xf32>
    %cst_289 = arith.constant 3.200000e+01 : f32
    %621 = vector.broadcast %cst_289 : f32 to vector<8x1xf32>
    %622 = arith.divf %620, %621 : vector<8x1xf32>
    %623 = vector.broadcast %615 : vector<8x1xf32> to vector<8x32xf32>
    %624 = arith.subf %611, %623 : vector<8x32xf32>
    %cst_290 = arith.constant 9.99999974E-6 : f32
    %625 = vector.broadcast %cst_290 : f32 to vector<8x1xf32>
    %626 = arith.addf %622, %625 : vector<8x1xf32>
    %627 = math.rsqrt %626 : vector<8x1xf32>
    %628 = vector.broadcast %627 : vector<8x1xf32> to vector<8x32xf32>
    %629 = arith.mulf %624, %628 : vector<8x32xf32>
    %c0_291 = arith.constant 0 : index
    %c0_292 = arith.constant 0 : index
    %630 = vector.load %arg36[%c0_291, %c0_292] : memref<1x32xf32, #tpu.memory_space<vmem>>, vector<1x32xf32>
    %631 = vector.broadcast %630 : vector<1x32xf32> to vector<8x32xf32>
    %632 = arith.mulf %629, %631 : vector<8x32xf32>
    %c0_293 = arith.constant 0 : index
    %c0_294 = arith.constant 0 : index
    %633 = vector.load %arg35[%c0_293, %c0_294] : memref<1x32xf32, #tpu.memory_space<vmem>>, vector<1x32xf32>
    %634 = vector.broadcast %633 : vector<1x32xf32> to vector<8x32xf32>
    %635 = arith.addf %632, %634 : vector<8x32xf32>
    %cst_295 = arith.constant dense<0.000000e+00> : vector<8xf32>
    %636 = vector.multi_reduction <add>, %635, %cst_295 [1] : vector<8x32xf32> to vector<8xf32>
    %637 = vector.shape_cast %636 : vector<8xf32> to vector<8x1xf32>
    %cst_296 = arith.constant 3.200000e+01 : f32
    %638 = vector.broadcast %cst_296 : f32 to vector<8x1xf32>
    %639 = arith.divf %637, %638 : vector<8x1xf32>
    %640 = vector.broadcast %639 : vector<8x1xf32> to vector<8x32xf32>
    %641 = arith.subf %635, %640 : vector<8x32xf32>
    %642 = arith.mulf %641, %641 : vector<8x32xf32>
    %cst_297 = arith.constant dense<0.000000e+00> : vector<8xf32>
    %643 = vector.multi_reduction <add>, %642, %cst_297 [1] : vector<8x32xf32> to vector<8xf32>
    %644 = vector.shape_cast %643 : vector<8xf32> to vector<8x1xf32>
    %cst_298 = arith.constant 3.200000e+01 : f32
    %645 = vector.broadcast %cst_298 : f32 to vector<8x1xf32>
    %646 = arith.divf %644, %645 : vector<8x1xf32>
    %647 = vector.broadcast %639 : vector<8x1xf32> to vector<8x32xf32>
    %648 = arith.subf %635, %647 : vector<8x32xf32>
    %cst_299 = arith.constant 9.99999974E-6 : f32
    %649 = vector.broadcast %cst_299 : f32 to vector<8x1xf32>
    %650 = arith.addf %646, %649 : vector<8x1xf32>
    %651 = math.rsqrt %650 : vector<8x1xf32>
    %652 = vector.broadcast %651 : vector<8x1xf32> to vector<8x32xf32>
    %653 = arith.mulf %648, %652 : vector<8x32xf32>
    %c0_300 = arith.constant 0 : index
    %c0_301 = arith.constant 0 : index
    %654 = vector.load %arg42[%c0_300, %c0_301] : memref<1x32xf32, #tpu.memory_space<vmem>>, vector<1x32xf32>
    %655 = vector.broadcast %654 : vector<1x32xf32> to vector<8x32xf32>
    %656 = arith.mulf %653, %655 : vector<8x32xf32>
    %c0_302 = arith.constant 0 : index
    %c0_303 = arith.constant 0 : index
    %657 = vector.load %arg41[%c0_302, %c0_303] : memref<1x32xf32, #tpu.memory_space<vmem>>, vector<1x32xf32>
    %658 = vector.broadcast %657 : vector<1x32xf32> to vector<8x32xf32>
    %659 = arith.addf %656, %658 : vector<8x32xf32>
    %c0_304 = arith.constant 0 : index
    %c0_305 = arith.constant 0 : index
    %660 = vector.load %arg72[%c0_304, %c0_305] : memref<32x3xf32, #tpu.memory_space<vmem>>, vector<32x3xf32>
    %cst_306 = arith.constant dense<0.000000e+00> : vector<8x3xf32>
    %661 = tpu.matmul %659, %660, %cst_306 {dimension_numbers = #tpu.dot_dimension_numbers<[1], [0], [0], [1], [0, 0, 1, 1], [], []>} : vector<8x32xf32>, vector<32x3xf32>, vector<8x3xf32> -> vector<8x3xf32>
    %c0_307 = arith.constant 0 : index
    %c0_308 = arith.constant 0 : index
    %662 = vector.load %arg71[%c0_307, %c0_308] : memref<1x3xf32, #tpu.memory_space<vmem>>, vector<1x3xf32>
    %663 = vector.broadcast %662 : vector<1x3xf32> to vector<8x3xf32>
    %664 = arith.addf %661, %663 : vector<8x3xf32>
    %c0_309 = arith.constant 0 : index
    %c0_310 = arith.constant 0 : index
    %665 = vector.load %arg73[%c0_309, %c0_310] : memref<8x3xf32, #tpu.memory_space<vmem>>, vector<8x3xf32>
    tpu.vector_store %arg73[%c0_309, %c0_310], %664 {strides = array<i32>} : memref<8x3xf32, #tpu.memory_space<vmem>>, vector<8x3xf32>,
    return
  }
}

</mosaic_0001>

<llo_original>
// kernel: transformer_forward.1
$region0: #{transformer_forward.1}
  #allocation0 [shape = 'u32[]', space=smem, size = 0x4, offset = 0x4, fixed_abs, tag = 'smem constant byte address 0x4 - core index']
  #allocation1 [shape = 'u32[72,128]{1,0:T(1,128)}', space=vmem, size = 0x9000, scoped, tag = 'internal scratch']
  %s0 = inlined_call_operand.smem [shape: u32[74], index: -1, kind: input, shape index: {}]
  %s1 = sld [smem:[%s0]]
  %s2 = scalar_lea.smem %s0, 1
  %s3 = sld [smem:[%s2]]
  %s4 = scalar_lea.smem %s0, 2
  %s5 = sld [smem:[%s4]]
  %s6 = scalar_lea.smem %s0, 3
  %s7 = sld [smem:[%s6]]
  %s8 = scalar_lea.smem %s0, 4
  %s9 = sld [smem:[%s8]]
  %s10 = scalar_lea.smem %s0, 5
  %s11 = sld [smem:[%s10]]
  %s12 = scalar_lea.smem %s0, 6
  %s13 = sld [smem:[%s12]]
  %s14 = scalar_lea.smem %s0, 7
  %s15 = sld [smem:[%s14]]
  %s16 = scalar_lea.smem %s0, 8
  %s17 = sld [smem:[%s16]]
  %s18 = scalar_lea.smem %s0, 9
  %s19 = sld [smem:[%s18]]
  %s20 = scalar_lea.smem %s0, 10
  %s21 = sld [smem:[%s20]]
  %s22 = scalar_lea.smem %s0, 11
  %s23 = sld [smem:[%s22]]
  %s24 = scalar_lea.smem %s0, 12
  %s25 = sld [smem:[%s24]]
  %s26 = scalar_lea.smem %s0, 13
  %s27 = sld [smem:[%s26]]
  %s28 = scalar_lea.smem %s0, 14
  %s29 = sld [smem:[%s28]]
  %s30 = scalar_lea.smem %s0, 15
  %s31 = sld [smem:[%s30]]
  %s32 = scalar_lea.smem %s0, 16
  %s33 = sld [smem:[%s32]]
  %s34 = scalar_lea.smem %s0, 17
  %s35 = sld [smem:[%s34]]
  %s36 = scalar_lea.smem %s0, 18
  %s37 = sld [smem:[%s36]]
  %s38 = scalar_lea.smem %s0, 19
  %s39 = sld [smem:[%s38]]
  %s40 = scalar_lea.smem %s0, 20
  %s41 = sld [smem:[%s40]]
  %s42 = scalar_lea.smem %s0, 21
  %s43 = sld [smem:[%s42]]
  %s44 = scalar_lea.smem %s0, 22
  %s45 = sld [smem:[%s44]]
  %s46 = scalar_lea.smem %s0, 23
  %s47 = sld [smem:[%s46]]
  %s48 = scalar_lea.smem %s0, 24
  %s49 = sld [smem:[%s48]]
  %s50 = scalar_lea.smem %s0, 25
  %s51 = sld [smem:[%s50]]
  %s52 = scalar_lea.smem %s0, 26
  %s53 = sld [smem:[%s52]]
  %s54 = scalar_lea.smem %s0, 27
  %s55 = sld [smem:[%s54]]
  %s56 = scalar_lea.smem %s0, 28
  %s57 = sld [smem:[%s56]]
  %s58 = scalar_lea.smem %s0, 29
  %s59 = sld [smem:[%s58]]
  %s60 = scalar_lea.smem %s0, 30
  %s61 = sld [smem:[%s60]]
  %s62 = scalar_lea.smem %s0, 31
  %s63 = sld [smem:[%s62]]
  %s64 = scalar_lea.smem %s0, 32
  %s65 = sld [smem:[%s64]]
  %s66 = scalar_lea.smem %s0, 33
  %s67 = sld [smem:[%s66]]
  %s68 = scalar_lea.smem %s0, 34
  %s69 = sld [smem:[%s68]]
  %s70 = scalar_lea.smem %s0, 35
  %s71 = sld [smem:[%s70]]
  %s72 = scalar_lea.smem %s0, 36
  %s73 = sld [smem:[%s72]]
  %s74 = scalar_lea.smem %s0, 37
  %s75 = sld [smem:[%s74]]
  %s76 = scalar_lea.smem %s0, 38
  %s77 = sld [smem:[%s76]]
  %s78 = scalar_lea.smem %s0, 39
  %s79 = sld [smem:[%s78]]
  %s80 = scalar_lea.smem %s0, 40
  %s81 = sld [smem:[%s80]]
  %s82 = scalar_lea.smem %s0, 41
  %s83 = sld [smem:[%s82]]
  %s84 = scalar_lea.smem %s0, 42
  %s85 = sld [smem:[%s84]]
  %s86 = scalar_lea.smem %s0, 43
  %s87 = sld [smem:[%s86]]
  %s88 = scalar_lea.smem %s0, 44
  %s89 = sld [smem:[%s88]]
  %s90 = scalar_lea.smem %s0, 45
  %s91 = sld [smem:[%s90]]
  %s92 = scalar_lea.smem %s0, 46
  %s93 = sld [smem:[%s92]]
  %s94 = scalar_lea.smem %s0, 47
  %s95 = sld [smem:[%s94]]
  %s96 = scalar_lea.smem %s0, 48
  %s97 = sld [smem:[%s96]]
  %s98 = scalar_lea.smem %s0, 49
  %s99 = sld [smem:[%s98]]
  %s100 = scalar_lea.smem %s0, 50
  %s101 = sld [smem:[%s100]]
  %s102 = scalar_lea.smem %s0, 51
  %s103 = sld [smem:[%s102]]
  %s104 = scalar_lea.smem %s0, 52
  %s105 = sld [smem:[%s104]]
  %s106 = scalar_lea.smem %s0, 53
  %s107 = sld [smem:[%s106]]
  %s108 = scalar_lea.smem %s0, 54
  %s109 = sld [smem:[%s108]]
  %s110 = scalar_lea.smem %s0, 55
  %s111 = sld [smem:[%s110]]
  %s112 = scalar_lea.smem %s0, 56
  %s113 = sld [smem:[%s112]]
  %s114 = scalar_lea.smem %s0, 57
  %s115 = sld [smem:[%s114]]
  %s116 = scalar_lea.smem %s0, 58
  %s117 = sld [smem:[%s116]]
  %s118 = scalar_lea.smem %s0, 59
  %s119 = sld [smem:[%s118]]
  %s120 = scalar_lea.smem %s0, 60
  %s121 = sld [smem:[%s120]]
  %s122 = scalar_lea.smem %s0, 61
  %s123 = sld [smem:[%s122]]
  %s124 = scalar_lea.smem %s0, 62
  %s125 = sld [smem:[%s124]]
  %s126 = scalar_lea.smem %s0, 63
  %s127 = sld [smem:[%s126]]
  %s128 = scalar_lea.smem %s0, 64
  %s129 = sld [smem:[%s128]]
  %s130 = scalar_lea.smem %s0, 65
  %s131 = sld [smem:[%s130]]
  %s132 = scalar_lea.smem %s0, 66
  %s133 = sld [smem:[%s132]]
  %s134 = scalar_lea.smem %s0, 67
  %s135 = sld [smem:[%s134]]
  %s136 = scalar_lea.smem %s0, 68
  %s137 = sld [smem:[%s136]]
  %s138 = scalar_lea.smem %s0, 69
  %s139 = sld [smem:[%s138]]
  %s140 = scalar_lea.smem %s0, 70
  %s141 = sld [smem:[%s140]]
  %s142 = scalar_lea.smem %s0, 71
  %s143 = sld [smem:[%s142]]
  %s144 = scalar_lea.smem %s0, 72
  %s145 = sld [smem:[%s144]]
  %s146 = scalar_lea.smem %s0, 73
  %s147 = sld [smem:[%s146]]
  %s148 = sld [smem:[#allocation0]]
  $region426: #{transformer_forward.1} parent=0
    _
  %s150 = ssub.s32 1, %s148
  %s151 = scalar_select 0, %s150, %s148
  $region1: #{transformer_forward.1} parent=0
    #allocation2 [shape = 'u8[512]{0}', space=vmem, size = 0x400, scoped, tag = 'input window, operand 22, single buffered']
    #allocation3 [shape = 's32[1]{0}', space=sflag, size = 0x4, scoped, tag = 'scoped memory for transformer_forward.1']
    #allocation4 [shape = 'u8[512]{0}', space=vmem, size = 0x400, scoped, tag = 'input window, operand 23, single buffered']
    #allocation5 [shape = 's32[1]{0}', space=sflag, size = 0x4, scoped, tag = 'scoped memory for transformer_forward.1']
    #allocation6 [shape = 'u8[512]{0}', space=vmem, size = 0x400, scoped, tag = 'input window, operand 28, single buffered']
    #allocation7 [shape = 'u8[512]{0}', space=vmem, size = 0x400, scoped, tag = 'input window, operand 31, single buffered']
    #allocation8 [shape = 's32[1]{0}', space=sflag, size = 0x4, scoped, tag = 'scoped memory for transformer_forward.1']
    #allocation9 [shape = 'u8[512]{0}', space=vmem, size = 0x400, scoped, tag = 'input window, operand 32, single buffered']
    #allocation10 [shape = 'u8[512]{0}', space=vmem, size = 0x400, scoped, tag = 'input window, operand 33, single buffered']
    #allocation11 [shape = 's32[1]{0}', space=sflag, size = 0x4, scoped, tag = 'scoped memory for transformer_forward.1']
    #allocation12 [shape = 'u8[512]{0}', space=vmem, size = 0x400, scoped, tag = 'input window, operand 34, single buffered']
    #allocation13 [shape = 'u8[512]{0}', space=vmem, size = 0x400, scoped, tag = 'input window, operand 35, single buffered']
    #allocation14 [shape = 's32[1]{0}', space=sflag, size = 0x4, scoped, tag = 'scoped memory for transformer_forward.1']
    #allocation15 [shape = 'u8[512]{0}', space=vmem, size = 0x400, scoped, tag = 'input window, operand 36, single buffered']
    #allocation16 [shape = 'u8[512]{0}', space=vmem, size = 0x400, scoped, tag = 'input window, operand 37, single buffered']
    #allocation17 [shape = 's32[1]{0}', space=sflag, size = 0x4, scoped, tag = 'scoped memory for transformer_forward.1']
    #allocation18 [shape = 'u8[512]{0}', space=vmem, size = 0x400, scoped, tag = 'input window, operand 38, single buffered']
    #allocation19 [shape = 'u8[512]{0}', space=vmem, size = 0x400, scoped, tag = 'input window, operand 41, single buffered']
    #allocation20 [shape = 's32[1]{0}', space=sflag, size = 0x4, scoped, tag = 'scoped memory for transformer_forward.1']
    #allocation21 [shape = 'u8[512]{0}', space=vmem, size = 0x400, scoped, tag = 'input window, operand 42, single buffered']
    #allocation22 [shape = 'u8[512]{0}', space=vmem, size = 0x400, scoped, tag = 'input window, operand 44, single buffered']
    #allocation23 [shape = 's32[1]{0}', space=sflag, size = 0x4, scoped, tag = 'scoped memory for transformer_forward.1']
    #allocation24 [shape = 'u8[512]{0}', space=vmem, size = 0x400, scoped, tag = 'input window, operand 47, single buffered']
    #allocation25 [shape = 'u8[512]{0}', space=vmem, size = 0x400, scoped, tag = 'input window, operand 48, single buffered']
    #allocation26 [shape = 's32[1]{0}', space=sflag, size = 0x4, scoped, tag = 'scoped memory for transformer_forward.1']
    #allocation27 [shape = 'u8[512]{0}', space=vmem, size = 0x400, scoped, tag = 'input window, operand 49, single buffered']
    #allocation28 [shape = 'u8[512]{0}', space=vmem, size = 0x400, scoped, tag = 'input window, operand 50, single buffered']
    #allocation29 [shape = 's32[1]{0}', space=sflag, size = 0x4, scoped, tag = 'scoped memory for transformer_forward.1']
    #allocation30 [shape = 'u8[512]{0}', space=vmem, size = 0x400, scoped, tag = 'input window, operand 51, single buffered']
    #allocation31 [shape = 'u8[512]{0}', space=vmem, size = 0x400, scoped, tag = 'input window, operand 52, single buffered']
    #allocation32 [shape = 's32[1]{0}', space=sflag, size = 0x4, scoped, tag = 'scoped memory for transformer_forward.1']
    #allocation33 [shape = 'u8[512]{0}', space=vmem, size = 0x400, scoped, tag = 'input window, operand 56, single buffered']
    #allocation34 [shape = 'u8[512]{0}', space=vmem, size = 0x400, scoped, tag = 'input window, operand 59, single buffered']
    #allocation35 [shape = 's32[1]{0}', space=sflag, size = 0x4, scoped, tag = 'scoped memory for transformer_forward.1']
    #allocation36 [shape = 'u8[512]{0}', space=vmem, size = 0x400, scoped, tag = 'input window, operand 60, single buffered']
    #allocation37 [shape = 'u8[512]{0}', space=vmem, size = 0x400, scoped, tag = 'input window, operand 61, single buffered']
    #allocation38 [shape = 's32[1]{0}', space=sflag, size = 0x4, scoped, tag = 'scoped memory for transformer_forward.1']
    #allocation39 [shape = 'u8[512]{0}', space=vmem, size = 0x400, scoped, tag = 'input window, operand 62, single buffered']
    #allocation40 [shape = 'u8[512]{0}', space=vmem, size = 0x400, scoped, tag = 'input window, operand 63, single buffered']
    #allocation41 [shape = 's32[1]{0}', space=sflag, size = 0x4, scoped, tag = 'scoped memory for transformer_forward.1']
    #allocation42 [shape = 'u8[512]{0}', space=vmem, size = 0x400, scoped, tag = 'input window, operand 64, single buffered']
    #allocation43 [shape = 'u8[512]{0}', space=vmem, size = 0x400, scoped, tag = 'input window, operand 67, single buffered']
    #allocation44 [shape = 's32[1]{0}', space=sflag, size = 0x4, scoped, tag = 'scoped memory for transformer_forward.1']
    #allocation45 [shape = 'u8[512]{0}', space=vmem, size = 0x400, scoped, tag = 'input window, operand 68, single buffered']
    #allocation46 [shape = 'u8[512]{0}', space=vmem, size = 0x400, scoped, tag = 'input window, operand 69, single buffered']
    #allocation47 [shape = 's32[1]{0}', space=sflag, size = 0x4, scoped, tag = 'scoped memory for transformer_forward.1']
    #allocation48 [shape = 'u8[512]{0}', space=vmem, size = 0x400, scoped, tag = 'input window, operand 71, single buffered']
    %152 = vsyncpa [#allocation3], 0
    %153 = vsyncpa [#allocation5], 0
    %154 = vsyncpa [#allocation8], 0
    %155 = vsyncpa [#allocation11], 0
    %156 = vsyncpa [#allocation14], 0
    %157 = vsyncpa [#allocation17], 0
    %158 = vsyncpa [#allocation20], 0
    %159 = vsyncpa [#allocation23], 0
    %160 = vsyncpa [#allocation26], 0
    %161 = vsyncpa [#allocation29], 0
    %162 = vsyncpa [#allocation32], 0
    %163 = vsyncpa [#allocation35], 0
    %164 = vsyncpa [#allocation38], 0
    %165 = vsyncpa [#allocation41], 0
    %166 = vsyncpa [#allocation44], 0
    %167 = vsyncpa [#allocation47], 0
    // Predicated region
    $region2: #{transformer_forward.1} parent=1 // pred_check
      _
    $region3: #{transformer_forward.1} parent=1 // pred_check_branch
      %169 = sbr.rel (0) target = $region5
    $region4: #{transformer_forward.1} parent=1 // pred_region
      _
    $region5: #{transformer_forward.1} parent=1 // pred_fallthru
      _
    // Predicated region
    $region6: #{transformer_forward.1} parent=1 // pred_check
      _
    $region7: #{transformer_forward.1} parent=1 // pred_check_branch
      %171 = sbr.rel (0) target = $region9
    $region8: #{transformer_forward.1} parent=1 // pred_region
      _
    $region9: #{transformer_forward.1} parent=1 // pred_fallthru
      _
    // Predicated region
    $region10: #{transformer_forward.1} parent=1 // pred_check
      _
    $region11: #{transformer_forward.1} parent=1 // pred_check_branch
      %173 = sbr.rel (0) target = $region13
    $region12: #{transformer_forward.1} parent=1 // pred_region
      _
    $region13: #{transformer_forward.1} parent=1 // pred_fallthru
      _
    // Predicated region
    $region14: #{transformer_forward.1} parent=1 // pred_check
      _
    $region15: #{transformer_forward.1} parent=1 // pred_check_branch
      %175 = sbr.rel (0) target = $region17
    $region16: #{transformer_forward.1} parent=1 // pred_region
      _
    $region17: #{transformer_forward.1} parent=1 // pred_fallthru
      _
    // Predicated region
    $region18: #{transformer_forward.1} parent=1 // pred_check
      _
    $region19: #{transformer_forward.1} parent=1 // pred_check_branch
      %177 = sbr.rel (0) target = $region21
    $region20: #{transformer_forward.1} parent=1 // pred_region
      _
    $region21: #{transformer_forward.1} parent=1 // pred_fallthru
      _
    // Predicated region
    $region22: #{transformer_forward.1} parent=1 // pred_check
      _
    $region23: #{transformer_forward.1} parent=1 // pred_check_branch
      %179 = sbr.rel (0) target = $region25
    $region24: #{transformer_forward.1} parent=1 // pred_region
      _
    $region25: #{transformer_forward.1} parent=1 // pred_fallthru
      _
    // Predicated region
    $region26: #{transformer_forward.1} parent=1 // pred_check
      _
    $region27: #{transformer_forward.1} parent=1 // pred_check_branch
      %181 = sbr.rel (0) target = $region29
    $region28: #{transformer_forward.1} parent=1 // pred_region
      _
    $region29: #{transformer_forward.1} parent=1 // pred_fallthru
      _
    // Predicated region
    $region30: #{transformer_forward.1} parent=1 // pred_check
      _
    $region31: #{transformer_forward.1} parent=1 // pred_check_branch
      %183 = sbr.rel (0) target = $region33
    $region32: #{transformer_forward.1} parent=1 // pred_region
      _
    $region33: #{transformer_forward.1} parent=1 // pred_fallthru
      _
    // Predicated region
    $region34: #{transformer_forward.1} parent=1 // pred_check
      _
    $region35: #{transformer_forward.1} parent=1 // pred_check_branch
      %185 = sbr.rel (0) target = $region37
    $region36: #{transformer_forward.1} parent=1 // pred_region
      _
    $region37: #{transformer_forward.1} parent=1 // pred_fallthru
      _
    // Predicated region
    $region38: #{transformer_forward.1} parent=1 // pred_check
      _
    $region39: #{transformer_forward.1} parent=1 // pred_check_branch
      %187 = sbr.rel (0) target = $region41
    $region40: #{transformer_forward.1} parent=1 // pred_region
      _
    $region41: #{transformer_forward.1} parent=1 // pred_fallthru
      _
    // Predicated region
    $region42: #{transformer_forward.1} parent=1 // pred_check
      _
    $region43: #{transformer_forward.1} parent=1 // pred_check_branch
      %189 = sbr.rel (0) target = $region45
    $region44: #{transformer_forward.1} parent=1 // pred_region
      _
    $region45: #{transformer_forward.1} parent=1 // pred_fallthru
      _
    // Predicated region
    $region46: #{transformer_forward.1} parent=1 // pred_check
      _
    $region47: #{transformer_forward.1} parent=1 // pred_check_branch
      %191 = sbr.rel (0) target = $region49
    $region48: #{transformer_forward.1} parent=1 // pred_region
      _
    $region49: #{transformer_forward.1} parent=1 // pred_fallthru
      _
    // Predicated region
    $region50: #{transformer_forward.1} parent=1 // pred_check
      _
    $region51: #{transformer_forward.1} parent=1 // pred_check_branch
      %193 = sbr.rel (0) target = $region53
    $region52: #{transformer_forward.1} parent=1 // pred_region
      _
    $region53: #{transformer_forward.1} parent=1 // pred_fallthru
      _
    // Predicated region
    $region54: #{transformer_forward.1} parent=1 // pred_check
      _
    $region55: #{transformer_forward.1} parent=1 // pred_check_branch
      %195 = sbr.rel (0) target = $region57
    $region56: #{transformer_forward.1} parent=1 // pred_region
      _
    $region57: #{transformer_forward.1} parent=1 // pred_fallthru
      _
    // Predicated region
    $region58: #{transformer_forward.1} parent=1 // pred_check
      _
    $region59: #{transformer_forward.1} parent=1 // pred_check_branch
      %197 = sbr.rel (0) target = $region61
    $region60: #{transformer_forward.1} parent=1 // pred_region
      _
    $region61: #{transformer_forward.1} parent=1 // pred_fallthru
      _
    // Predicated region
    $region62: #{transformer_forward.1} parent=1 // pred_check
      _
    $region63: #{transformer_forward.1} parent=1 // pred_check_branch
      %199 = sbr.rel (0) target = $region65
    $region64: #{transformer_forward.1} parent=1 // pred_region
      _
    $region65: #{transformer_forward.1} parent=1 // pred_fallthru
      _
    // Predicated region
    $region66: #{transformer_forward.1} parent=1 // pred_check
      _
    $region67: #{transformer_forward.1} parent=1 // pred_check_branch
      %201 = sbr.rel (0) target = $region69
    $region68: #{transformer_forward.1} parent=1 // pred_region
      _
    $region69: #{transformer_forward.1} parent=1 // pred_fallthru
      _
    // Predicated region
    $region70: #{transformer_forward.1} parent=1 // pred_check
      _
    $region71: #{transformer_forward.1} parent=1 // pred_check_branch
      %203 = sbr.rel (0) target = $region73
    $region72: #{transformer_forward.1} parent=1 // pred_region
      _
    $region73: #{transformer_forward.1} parent=1 // pred_fallthru
      _
    // Predicated region
    $region74: #{transformer_forward.1} parent=1 // pred_check
      _
    $region75: #{transformer_forward.1} parent=1 // pred_check_branch
      %205 = sbr.rel (0) target = $region77
    $region76: #{transformer_forward.1} parent=1 // pred_region
      _
    $region77: #{transformer_forward.1} parent=1 // pred_fallthru
      _
    // Predicated region
    $region78: #{transformer_forward.1} parent=1 // pred_check
      _
    $region79: #{transformer_forward.1} parent=1 // pred_check_branch
      %207 = sbr.rel (0) target = $region81
    $region80: #{transformer_forward.1} parent=1 // pred_region
      _
    $region81: #{transformer_forward.1} parent=1 // pred_fallthru
      _
    // Predicated region
    $region82: #{transformer_forward.1} parent=1 // pred_check
      _
    $region83: #{transformer_forward.1} parent=1 // pred_check_branch
      %209 = sbr.rel (0) target = $region85
    $region84: #{transformer_forward.1} parent=1 // pred_region
      _
    $region85: #{transformer_forward.1} parent=1 // pred_fallthru
      _
    // Predicated region
    $region86: #{transformer_forward.1} parent=1 // pred_check
      _
    $region87: #{transformer_forward.1} parent=1 // pred_check_branch
      %211 = sbr.rel (0) target = $region89
    $region88: #{transformer_forward.1} parent=1 // pred_region
      _
    $region89: #{transformer_forward.1} parent=1 // pred_fallthru
      _
    // Predicated region
    $region90: #{transformer_forward.1} parent=1 // pred_check
      _
    $region91: #{transformer_forward.1} parent=1 // pred_check_branch
      %213 = sbr.rel (0) target = $region93
    $region92: #{transformer_forward.1} parent=1 // pred_region
      %215 = vsyncadd [#allocation3], 0
      %s217 = sshll.u32 %s45, 4
      %s218 = int_to_ptr.hbm [resolvable:$true] %s217
      %s219 = sshll.u32 [#allocation2], 4
      %s220 = int_to_ptr.vmem [resolvable:$true] %s219
      %222 = dma.hbm_to_vmem [thread:$0]  %s218, 16, %s220, [#allocation3]
    $region93: #{transformer_forward.1} parent=1 // pred_fallthru
      _
    // Predicated region
    $region94: #{transformer_forward.1} parent=1 // pred_check
      _
    $region95: #{transformer_forward.1} parent=1 // pred_check_branch
      %224 = sbr.rel (0) target = $region97
    $region96: #{transformer_forward.1} parent=1 // pred_region
      %226 = vsyncadd [#allocation5], 0
      %s228 = sshll.u32 %s47, 4
      %s229 = int_to_ptr.hbm [resolvable:$true] %s228
      %s230 = sshll.u32 [#allocation4], 4
      %s231 = int_to_ptr.vmem [resolvable:$true] %s230
      %233 = dma.hbm_to_vmem [thread:$0]  %s229, 16, %s231, [#allocation5]
    $region97: #{transformer_forward.1} parent=1 // pred_fallthru
      _
    // Predicated region
    $region98: #{transformer_forward.1} parent=1 // pred_check
      _
    $region99: #{transformer_forward.1} parent=1 // pred_check_branch
      %235 = sbr.rel (0) target = $region101
    $region100: #{transformer_forward.1} parent=1 // pred_region
      _
    $region101: #{transformer_forward.1} parent=1 // pred_fallthru
      _
    // Predicated region
    $region102: #{transformer_forward.1} parent=1 // pred_check
      _
    $region103: #{transformer_forward.1} parent=1 // pred_check_branch
      %237 = sbr.rel (0) target = $region105
    $region104: #{transformer_forward.1} parent=1 // pred_region
      _
    $region105: #{transformer_forward.1} parent=1 // pred_fallthru
      _
    // Predicated region
    $region106: #{transformer_forward.1} parent=1 // pred_check
      _
    $region107: #{transformer_forward.1} parent=1 // pred_check_branch
      %239 = sbr.rel (0) target = $region109
    $region108: #{transformer_forward.1} parent=1 // pred_region
      _
    $region109: #{transformer_forward.1} parent=1 // pred_fallthru
      _
    // Predicated region
    $region110: #{transformer_forward.1} parent=1 // pred_check
      _
    $region111: #{transformer_forward.1} parent=1 // pred_check_branch
      %241 = sbr.rel (0) target = $region113
    $region112: #{transformer_forward.1} parent=1 // pred_region
      _
    $region113: #{transformer_forward.1} parent=1 // pred_fallthru
      _
    // Predicated region
    $region114: #{transformer_forward.1} parent=1 // pred_check
      _
    $region115: #{transformer_forward.1} parent=1 // pred_check_branch
      %243 = sbr.rel (0) target = $region117
    $region116: #{transformer_forward.1} parent=1 // pred_region
      %245 = vsyncadd [#allocation5], 0
      %s247 = sshll.u32 %s57, 4
      %s248 = int_to_ptr.hbm [resolvable:$true] %s247
      %s249 = sshll.u32 [#allocation6], 4
      %s250 = int_to_ptr.vmem [resolvable:$true] %s249
      %252 = dma.hbm_to_vmem [thread:$0]  %s248, 16, %s250, [#allocation5]
    $region117: #{transformer_forward.1} parent=1 // pred_fallthru
      _
    // Predicated region
    $region118: #{transformer_forward.1} parent=1 // pred_check
      _
    $region119: #{transformer_forward.1} parent=1 // pred_check_branch
      %254 = sbr.rel (0) target = $region121
    $region120: #{transformer_forward.1} parent=1 // pred_region
      _
    $region121: #{transformer_forward.1} parent=1 // pred_fallthru
      _
    // Predicated region
    $region122: #{transformer_forward.1} parent=1 // pred_check
      _
    $region123: #{transformer_forward.1} parent=1 // pred_check_branch
      %256 = sbr.rel (0) target = $region125
    $region124: #{transformer_forward.1} parent=1 // pred_region
      _
    $region125: #{transformer_forward.1} parent=1 // pred_fallthru
      _
    // Predicated region
    $region126: #{transformer_forward.1} parent=1 // pred_check
      _
    $region127: #{transformer_forward.1} parent=1 // pred_check_branch
      %258 = sbr.rel (0) target = $region129
    $region128: #{transformer_forward.1} parent=1 // pred_region
      %260 = vsyncadd [#allocation8], 0
      %s262 = sshll.u32 %s63, 4
      %s263 = int_to_ptr.hbm [resolvable:$true] %s262
      %s264 = sshll.u32 [#allocation7], 4
      %s265 = int_to_ptr.vmem [resolvable:$true] %s264
      %267 = dma.hbm_to_vmem [thread:$0]  %s263, 16, %s265, [#allocation8]
    $region129: #{transformer_forward.1} parent=1 // pred_fallthru
      _
    // Predicated region
    $region130: #{transformer_forward.1} parent=1 // pred_check
      _
    $region131: #{transformer_forward.1} parent=1 // pred_check_branch
      %269 = sbr.rel (0) target = $region133
    $region132: #{transformer_forward.1} parent=1 // pred_region
      %271 = vsyncadd [#allocation8], 0
      %s273 = sshll.u32 %s65, 4
      %s274 = int_to_ptr.hbm [resolvable:$true] %s273
      %s275 = sshll.u32 [#allocation9], 4
      %s276 = int_to_ptr.vmem [resolvable:$true] %s275
      %278 = dma.hbm_to_vmem [thread:$0]  %s274, 16, %s276, [#allocation8]
    $region133: #{transformer_forward.1} parent=1 // pred_fallthru
      _
    // Predicated region
    $region134: #{transformer_forward.1} parent=1 // pred_check
      _
    $region135: #{transformer_forward.1} parent=1 // pred_check_branch
      %280 = sbr.rel (0) target = $region137
    $region136: #{transformer_forward.1} parent=1 // pred_region
      %282 = vsyncadd [#allocation11], 0
      %s284 = sshll.u32 %s67, 4
      %s285 = int_to_ptr.hbm [resolvable:$true] %s284
      %s286 = sshll.u32 [#allocation10], 4
      %s287 = int_to_ptr.vmem [resolvable:$true] %s286
      %289 = dma.hbm_to_vmem [thread:$0]  %s285, 16, %s287, [#allocation11]
    $region137: #{transformer_forward.1} parent=1 // pred_fallthru
      _
    // Predicated region
    $region138: #{transformer_forward.1} parent=1 // pred_check
      _
    $region139: #{transformer_forward.1} parent=1 // pred_check_branch
      %291 = sbr.rel (0) target = $region141
    $region140: #{transformer_forward.1} parent=1 // pred_region
      %293 = vsyncadd [#allocation11], 0
      %s295 = sshll.u32 %s69, 4
      %s296 = int_to_ptr.hbm [resolvable:$true] %s295
      %s297 = sshll.u32 [#allocation12], 4
      %s298 = int_to_ptr.vmem [resolvable:$true] %s297
      %300 = dma.hbm_to_vmem [thread:$0]  %s296, 16, %s298, [#allocation11]
    $region141: #{transformer_forward.1} parent=1 // pred_fallthru
      _
    // Predicated region
    $region142: #{transformer_forward.1} parent=1 // pred_check
      _
    $region143: #{transformer_forward.1} parent=1 // pred_check_branch
      %302 = sbr.rel (0) target = $region145
    $region144: #{transformer_forward.1} parent=1 // pred_region
      %304 = vsyncadd [#allocation14], 0
      %s306 = sshll.u32 %s71, 4
      %s307 = int_to_ptr.hbm [resolvable:$true] %s306
      %s308 = sshll.u32 [#allocation13], 4
      %s309 = int_to_ptr.vmem [resolvable:$true] %s308
      %311 = dma.hbm_to_vmem [thread:$0]  %s307, 16, %s309, [#allocation14]
    $region145: #{transformer_forward.1} parent=1 // pred_fallthru
      _
    // Predicated region
    $region146: #{transformer_forward.1} parent=1 // pred_check
      _
    $region147: #{transformer_forward.1} parent=1 // pred_check_branch
      %313 = sbr.rel (0) target = $region149
    $region148: #{transformer_forward.1} parent=1 // pred_region
      %315 = vsyncadd [#allocation14], 0
      %s317 = sshll.u32 %s73, 4
      %s318 = int_to_ptr.hbm [resolvable:$true] %s317
      %s319 = sshll.u32 [#allocation15], 4
      %s320 = int_to_ptr.vmem [resolvable:$true] %s319
      %322 = dma.hbm_to_vmem [thread:$0]  %s318, 16, %s320, [#allocation14]
    $region149: #{transformer_forward.1} parent=1 // pred_fallthru
      _
    // Predicated region
    $region150: #{transformer_forward.1} parent=1 // pred_check
      _
    $region151: #{transformer_forward.1} parent=1 // pred_check_branch
      %324 = sbr.rel (0) target = $region153
    $region152: #{transformer_forward.1} parent=1 // pred_region
      %326 = vsyncadd [#allocation17], 0
      %s328 = sshll.u32 %s75, 4
      %s329 = int_to_ptr.hbm [resolvable:$true] %s328
      %s330 = sshll.u32 [#allocation16], 4
      %s331 = int_to_ptr.vmem [resolvable:$true] %s330
      %333 = dma.hbm_to_vmem [thread:$0]  %s329, 16, %s331, [#allocation17]
    $region153: #{transformer_forward.1} parent=1 // pred_fallthru
      _
    // Predicated region
    $region154: #{transformer_forward.1} parent=1 // pred_check
      _
    $region155: #{transformer_forward.1} parent=1 // pred_check_branch
      %335 = sbr.rel (0) target = $region157
    $region156: #{transformer_forward.1} parent=1 // pred_region
      %337 = vsyncadd [#allocation17], 0
      %s339 = sshll.u32 %s77, 4
      %s340 = int_to_ptr.hbm [resolvable:$true] %s339
      %s341 = sshll.u32 [#allocation18], 4
      %s342 = int_to_ptr.vmem [resolvable:$true] %s341
      %344 = dma.hbm_to_vmem [thread:$0]  %s340, 16, %s342, [#allocation17]
    $region157: #{transformer_forward.1} parent=1 // pred_fallthru
      _
    // Predicated region
    $region158: #{transformer_forward.1} parent=1 // pred_check
      _
    $region159: #{transformer_forward.1} parent=1 // pred_check_branch
      %346 = sbr.rel (0) target = $region161
    $region160: #{transformer_forward.1} parent=1 // pred_region
      _
    $region161: #{transformer_forward.1} parent=1 // pred_fallthru
      _
    // Predicated region
    $region162: #{transformer_forward.1} parent=1 // pred_check
      _
    $region163: #{transformer_forward.1} parent=1 // pred_check_branch
      %348 = sbr.rel (0) target = $region165
    $region164: #{transformer_forward.1} parent=1 // pred_region
      _
    $region165: #{transformer_forward.1} parent=1 // pred_fallthru
      _
    // Predicated region
    $region166: #{transformer_forward.1} parent=1 // pred_check
      _
    $region167: #{transformer_forward.1} parent=1 // pred_check_branch
      %350 = sbr.rel (0) target = $region169
    $region168: #{transformer_forward.1} parent=1 // pred_region
      %352 = vsyncadd [#allocation20], 0
      %s354 = sshll.u32 %s83, 4
      %s355 = int_to_ptr.hbm [resolvable:$true] %s354
      %s356 = sshll.u32 [#allocation19], 4
      %s357 = int_to_ptr.vmem [resolvable:$true] %s356
      %359 = dma.hbm_to_vmem [thread:$0]  %s355, 16, %s357, [#allocation20]
    $region169: #{transformer_forward.1} parent=1 // pred_fallthru
      _
    // Predicated region
    $region170: #{transformer_forward.1} parent=1 // pred_check
      _
    $region171: #{transformer_forward.1} parent=1 // pred_check_branch
      %361 = sbr.rel (0) target = $region173
    $region172: #{transformer_forward.1} parent=1 // pred_region
      %363 = vsyncadd [#allocation20], 0
      %s365 = sshll.u32 %s85, 4
      %s366 = int_to_ptr.hbm [resolvable:$true] %s365
      %s367 = sshll.u32 [#allocation21], 4
      %s368 = int_to_ptr.vmem [resolvable:$true] %s367
      %370 = dma.hbm_to_vmem [thread:$0]  %s366, 16, %s368, [#allocation20]
    $region173: #{transformer_forward.1} parent=1 // pred_fallthru
      _
    // Predicated region
    $region174: #{transformer_forward.1} parent=1 // pred_check
      _
    $region175: #{transformer_forward.1} parent=1 // pred_check_branch
      %372 = sbr.rel (0) target = $region177
    $region176: #{transformer_forward.1} parent=1 // pred_region
      _
    $region177: #{transformer_forward.1} parent=1 // pred_fallthru
      _
    // Predicated region
    $region178: #{transformer_forward.1} parent=1 // pred_check
      _
    $region179: #{transformer_forward.1} parent=1 // pred_check_branch
      %374 = sbr.rel (0) target = $region181
    $region180: #{transformer_forward.1} parent=1 // pred_region
      %376 = vsyncadd [#allocation23], 0
      %s378 = sshll.u32 %s89, 4
      %s379 = int_to_ptr.hbm [resolvable:$true] %s378
      %s380 = sshll.u32 [#allocation22], 4
      %s381 = int_to_ptr.vmem [resolvable:$true] %s380
      %383 = dma.hbm_to_vmem [thread:$0]  %s379, 16, %s381, [#allocation23]
    $region181: #{transformer_forward.1} parent=1 // pred_fallthru
      _
    // Predicated region
    $region182: #{transformer_forward.1} parent=1 // pred_check
      _
    $region183: #{transformer_forward.1} parent=1 // pred_check_branch
      %385 = sbr.rel (0) target = $region185
    $region184: #{transformer_forward.1} parent=1 // pred_region
      _
    $region185: #{transformer_forward.1} parent=1 // pred_fallthru
      _
    // Predicated region
    $region186: #{transformer_forward.1} parent=1 // pred_check
      _
    $region187: #{transformer_forward.1} parent=1 // pred_check_branch
      %387 = sbr.rel (0) target = $region189
    $region188: #{transformer_forward.1} parent=1 // pred_region
      _
    $region189: #{transformer_forward.1} parent=1 // pred_fallthru
      _
    // Predicated region
    $region190: #{transformer_forward.1} parent=1 // pred_check
      _
    $region191: #{transformer_forward.1} parent=1 // pred_check_branch
      %389 = sbr.rel (0) target = $region193
    $region192: #{transformer_forward.1} parent=1 // pred_region
      %391 = vsyncadd [#allocation23], 0
      %s393 = sshll.u32 %s95, 4
      %s394 = int_to_ptr.hbm [resolvable:$true] %s393
      %s395 = sshll.u32 [#allocation24], 4
      %s396 = int_to_ptr.vmem [resolvable:$true] %s395
      %398 = dma.hbm_to_vmem [thread:$0]  %s394, 16, %s396, [#allocation23]
    $region193: #{transformer_forward.1} parent=1 // pred_fallthru
      _
    // Predicated region
    $region194: #{transformer_forward.1} parent=1 // pred_check
      _
    $region195: #{transformer_forward.1} parent=1 // pred_check_branch
      %400 = sbr.rel (0) target = $region197
    $region196: #{transformer_forward.1} parent=1 // pred_region
      %402 = vsyncadd [#allocation26], 0
      %s404 = sshll.u32 %s97, 4
      %s405 = int_to_ptr.hbm [resolvable:$true] %s404
      %s406 = sshll.u32 [#allocation25], 4
      %s407 = int_to_ptr.vmem [resolvable:$true] %s406
      %409 = dma.hbm_to_vmem [thread:$0]  %s405, 16, %s407, [#allocation26]
    $region197: #{transformer_forward.1} parent=1 // pred_fallthru
      _
    // Predicated region
    $region198: #{transformer_forward.1} parent=1 // pred_check
      _
    $region199: #{transformer_forward.1} parent=1 // pred_check_branch
      %411 = sbr.rel (0) target = $region201
    $region200: #{transformer_forward.1} parent=1 // pred_region
      %413 = vsyncadd [#allocation26], 0
      %s415 = sshll.u32 %s99, 4
      %s416 = int_to_ptr.hbm [resolvable:$true] %s415
      %s417 = sshll.u32 [#allocation27], 4
      %s418 = int_to_ptr.vmem [resolvable:$true] %s417
      %420 = dma.hbm_to_vmem [thread:$0]  %s416, 16, %s418, [#allocation26]
    $region201: #{transformer_forward.1} parent=1 // pred_fallthru
      _
    // Predicated region
    $region202: #{transformer_forward.1} parent=1 // pred_check
      _
    $region203: #{transformer_forward.1} parent=1 // pred_check_branch
      %422 = sbr.rel (0) target = $region205
    $region204: #{transformer_forward.1} parent=1 // pred_region
      %424 = vsyncadd [#allocation29], 0
      %s426 = sshll.u32 %s101, 4
      %s427 = int_to_ptr.hbm [resolvable:$true] %s426
      %s428 = sshll.u32 [#allocation28], 4
      %s429 = int_to_ptr.vmem [resolvable:$true] %s428
      %431 = dma.hbm_to_vmem [thread:$0]  %s427, 16, %s429, [#allocation29]
    $region205: #{transformer_forward.1} parent=1 // pred_fallthru
      _
    // Predicated region
    $region206: #{transformer_forward.1} parent=1 // pred_check
      _
    $region207: #{transformer_forward.1} parent=1 // pred_check_branch
      %433 = sbr.rel (0) target = $region209
    $region208: #{transformer_forward.1} parent=1 // pred_region
      %435 = vsyncadd [#allocation29], 0
      %s437 = sshll.u32 %s103, 4
      %s438 = int_to_ptr.hbm [resolvable:$true] %s437
      %s439 = sshll.u32 [#allocation30], 4
      %s440 = int_to_ptr.vmem [resolvable:$true] %s439
      %442 = dma.hbm_to_vmem [thread:$0]  %s438, 16, %s440, [#allocation29]
    $region209: #{transformer_forward.1} parent=1 // pred_fallthru
      _
    // Predicated region
    $region210: #{transformer_forward.1} parent=1 // pred_check
      _
    $region211: #{transformer_forward.1} parent=1 // pred_check_branch
      %444 = sbr.rel (0) target = $region213
    $region212: #{transformer_forward.1} parent=1 // pred_region
      %446 = vsyncadd [#allocation32], 0
      %s448 = sshll.u32 %s105, 4
      %s449 = int_to_ptr.hbm [resolvable:$true] %s448
      %s450 = sshll.u32 [#allocation31], 4
      %s451 = int_to_ptr.vmem [resolvable:$true] %s450
      %453 = dma.hbm_to_vmem [thread:$0]  %s449, 16, %s451, [#allocation32]
    $region213: #{transformer_forward.1} parent=1 // pred_fallthru
      _
    // Predicated region
    $region214: #{transformer_forward.1} parent=1 // pred_check
      _
    $region215: #{transformer_forward.1} parent=1 // pred_check_branch
      %455 = sbr.rel (0) target = $region217
    $region216: #{transformer_forward.1} parent=1 // pred_region
      _
    $region217: #{transformer_forward.1} parent=1 // pred_fallthru
      _
    // Predicated region
    $region218: #{transformer_forward.1} parent=1 // pred_check
      _
    $region219: #{transformer_forward.1} parent=1 // pred_check_branch
      %457 = sbr.rel (0) target = $region221
    $region220: #{transformer_forward.1} parent=1 // pred_region
      _
    $region221: #{transformer_forward.1} parent=1 // pred_fallthru
      _
    // Predicated region
    $region222: #{transformer_forward.1} parent=1 // pred_check
      _
    $region223: #{transformer_forward.1} parent=1 // pred_check_branch
      %459 = sbr.rel (0) target = $region225
    $region224: #{transformer_forward.1} parent=1 // pred_region
      _
    $region225: #{transformer_forward.1} parent=1 // pred_fallthru
      _
    // Predicated region
    $region226: #{transformer_forward.1} parent=1 // pred_check
      _
    $region227: #{transformer_forward.1} parent=1 // pred_check_branch
      %461 = sbr.rel (0) target = $region229
    $region228: #{transformer_forward.1} parent=1 // pred_region
      %463 = vsyncadd [#allocation32], 0
      %s465 = sshll.u32 %s113, 4
      %s466 = int_to_ptr.hbm [resolvable:$true] %s465
      %s467 = sshll.u32 [#allocation33], 4
      %s468 = int_to_ptr.vmem [resolvable:$true] %s467
      %470 = dma.hbm_to_vmem [thread:$0]  %s466, 16, %s468, [#allocation32]
    $region229: #{transformer_forward.1} parent=1 // pred_fallthru
      _
    // Predicated region
    $region230: #{transformer_forward.1} parent=1 // pred_check
      _
    $region231: #{transformer_forward.1} parent=1 // pred_check_branch
      %472 = sbr.rel (0) target = $region233
    $region232: #{transformer_forward.1} parent=1 // pred_region
      _
    $region233: #{transformer_forward.1} parent=1 // pred_fallthru
      _
    // Predicated region
    $region234: #{transformer_forward.1} parent=1 // pred_check
      _
    $region235: #{transformer_forward.1} parent=1 // pred_check_branch
      %474 = sbr.rel (0) target = $region237
    $region236: #{transformer_forward.1} parent=1 // pred_region
      _
    $region237: #{transformer_forward.1} parent=1 // pred_fallthru
      _
    // Predicated region
    $region238: #{transformer_forward.1} parent=1 // pred_check
      _
    $region239: #{transformer_forward.1} parent=1 // pred_check_branch
      %476 = sbr.rel (0) target = $region241
    $region240: #{transformer_forward.1} parent=1 // pred_region
      %478 = vsyncadd [#allocation35], 0
      %s480 = sshll.u32 %s119, 4
      %s481 = int_to_ptr.hbm [resolvable:$true] %s480
      %s482 = sshll.u32 [#allocation34], 4
      %s483 = int_to_ptr.vmem [resolvable:$true] %s482
      %485 = dma.hbm_to_vmem [thread:$0]  %s481, 16, %s483, [#allocation35]
    $region241: #{transformer_forward.1} parent=1 // pred_fallthru
      _
    // Predicated region
    $region242: #{transformer_forward.1} parent=1 // pred_check
      _
    $region243: #{transformer_forward.1} parent=1 // pred_check_branch
      %487 = sbr.rel (0) target = $region245
    $region244: #{transformer_forward.1} parent=1 // pred_region
      %489 = vsyncadd [#allocation35], 0
      %s491 = sshll.u32 %s121, 4
      %s492 = int_to_ptr.hbm [resolvable:$true] %s491
      %s493 = sshll.u32 [#allocation36], 4
      %s494 = int_to_ptr.vmem [resolvable:$true] %s493
      %496 = dma.hbm_to_vmem [thread:$0]  %s492, 16, %s494, [#allocation35]
    $region245: #{transformer_forward.1} parent=1 // pred_fallthru
      _
    // Predicated region
    $region246: #{transformer_forward.1} parent=1 // pred_check
      _
    $region247: #{transformer_forward.1} parent=1 // pred_check_branch
      %498 = sbr.rel (0) target = $region249
    $region248: #{transformer_forward.1} parent=1 // pred_region
      %500 = vsyncadd [#allocation38], 0
      %s502 = sshll.u32 %s123, 4
      %s503 = int_to_ptr.hbm [resolvable:$true] %s502
      %s504 = sshll.u32 [#allocation37], 4
      %s505 = int_to_ptr.vmem [resolvable:$true] %s504
      %507 = dma.hbm_to_vmem [thread:$0]  %s503, 16, %s505, [#allocation38]
    $region249: #{transformer_forward.1} parent=1 // pred_fallthru
      _
    // Predicated region
    $region250: #{transformer_forward.1} parent=1 // pred_check
      _
    $region251: #{transformer_forward.1} parent=1 // pred_check_branch
      %509 = sbr.rel (0) target = $region253
    $region252: #{transformer_forward.1} parent=1 // pred_region
      %511 = vsyncadd [#allocation38], 0
      %s513 = sshll.u32 %s125, 4
      %s514 = int_to_ptr.hbm [resolvable:$true] %s513
      %s515 = sshll.u32 [#allocation39], 4
      %s516 = int_to_ptr.vmem [resolvable:$true] %s515
      %518 = dma.hbm_to_vmem [thread:$0]  %s514, 16, %s516, [#allocation38]
    $region253: #{transformer_forward.1} parent=1 // pred_fallthru
      _
    // Predicated region
    $region254: #{transformer_forward.1} parent=1 // pred_check
      _
    $region255: #{transformer_forward.1} parent=1 // pred_check_branch
      %520 = sbr.rel (0) target = $region257
    $region256: #{transformer_forward.1} parent=1 // pred_region
      %522 = vsyncadd [#allocation41], 0
      %s524 = sshll.u32 %s127, 4
      %s525 = int_to_ptr.hbm [resolvable:$true] %s524
      %s526 = sshll.u32 [#allocation40], 4
      %s527 = int_to_ptr.vmem [resolvable:$true] %s526
      %529 = dma.hbm_to_vmem [thread:$0]  %s525, 16, %s527, [#allocation41]
    $region257: #{transformer_forward.1} parent=1 // pred_fallthru
      _
    // Predicated region
    $region258: #{transformer_forward.1} parent=1 // pred_check
      _
    $region259: #{transformer_forward.1} parent=1 // pred_check_branch
      %531 = sbr.rel (0) target = $region261
    $region260: #{transformer_forward.1} parent=1 // pred_region
      %533 = vsyncadd [#allocation41], 0
      %s535 = sshll.u32 %s129, 4
      %s536 = int_to_ptr.hbm [resolvable:$true] %s535
      %s537 = sshll.u32 [#allocation42], 4
      %s538 = int_to_ptr.vmem [resolvable:$true] %s537
      %540 = dma.hbm_to_vmem [thread:$0]  %s536, 16, %s538, [#allocation41]
    $region261: #{transformer_forward.1} parent=1 // pred_fallthru
      _
    // Predicated region
    $region262: #{transformer_forward.1} parent=1 // pred_check
      _
    $region263: #{transformer_forward.1} parent=1 // pred_check_branch
      %542 = sbr.rel (0) target = $region265
    $region264: #{transformer_forward.1} parent=1 // pred_region
      _
    $region265: #{transformer_forward.1} parent=1 // pred_fallthru
      _
    // Predicated region
    $region266: #{transformer_forward.1} parent=1 // pred_check
      _
    $region267: #{transformer_forward.1} parent=1 // pred_check_branch
      %544 = sbr.rel (0) target = $region269
    $region268: #{transformer_forward.1} parent=1 // pred_region
      _
    $region269: #{transformer_forward.1} parent=1 // pred_fallthru
      _
    // Predicated region
    $region270: #{transformer_forward.1} parent=1 // pred_check
      _
    $region271: #{transformer_forward.1} parent=1 // pred_check_branch
      %546 = sbr.rel (0) target = $region273
    $region272: #{transformer_forward.1} parent=1 // pred_region
      %548 = vsyncadd [#allocation44], 0
      %s550 = sshll.u32 %s135, 4
      %s551 = int_to_ptr.hbm [resolvable:$true] %s550
      %s552 = sshll.u32 [#allocation43], 4
      %s553 = int_to_ptr.vmem [resolvable:$true] %s552
      %555 = dma.hbm_to_vmem [thread:$0]  %s551, 16, %s553, [#allocation44]
    $region273: #{transformer_forward.1} parent=1 // pred_fallthru
      _
    // Predicated region
    $region274: #{transformer_forward.1} parent=1 // pred_check
      _
    $region275: #{transformer_forward.1} parent=1 // pred_check_branch
      %557 = sbr.rel (0) target = $region277
    $region276: #{transformer_forward.1} parent=1 // pred_region
      %559 = vsyncadd [#allocation44], 0
      %s561 = sshll.u32 %s137, 4
      %s562 = int_to_ptr.hbm [resolvable:$true] %s561
      %s563 = sshll.u32 [#allocation45], 4
      %s564 = int_to_ptr.vmem [resolvable:$true] %s563
      %566 = dma.hbm_to_vmem [thread:$0]  %s562, 16, %s564, [#allocation44]
    $region277: #{transformer_forward.1} parent=1 // pred_fallthru
      _
    // Predicated region
    $region278: #{transformer_forward.1} parent=1 // pred_check
      _
    $region279: #{transformer_forward.1} parent=1 // pred_check_branch
      %568 = sbr.rel (0) target = $region281
    $region280: #{transformer_forward.1} parent=1 // pred_region
      %570 = vsyncadd [#allocation47], 0
      %s572 = sshll.u32 %s139, 4
      %s573 = int_to_ptr.hbm [resolvable:$true] %s572
      %s574 = sshll.u32 [#allocation46], 4
      %s575 = int_to_ptr.vmem [resolvable:$true] %s574
      %577 = dma.hbm_to_vmem [thread:$0]  %s573, 16, %s575, [#allocation47]
    $region281: #{transformer_forward.1} parent=1 // pred_fallthru
      _
    // Predicated region
    $region282: #{transformer_forward.1} parent=1 // pred_check
      _
    $region283: #{transformer_forward.1} parent=1 // pred_check_branch
      %579 = sbr.rel (0) target = $region285
    $region284: #{transformer_forward.1} parent=1 // pred_region
      _
    $region285: #{transformer_forward.1} parent=1 // pred_fallthru
      _
    // Predicated region
    $region286: #{transformer_forward.1} parent=1 // pred_check
      _
    $region287: #{transformer_forward.1} parent=1 // pred_check_branch
      %581 = sbr.rel (0) target = $region289
    $region288: #{transformer_forward.1} parent=1 // pred_region
      %583 = vsyncadd [#allocation47], 0
      %s585 = sshll.u32 %s143, 4
      %s586 = int_to_ptr.hbm [resolvable:$true] %s585
      %s587 = sshll.u32 [#allocation48], 4
      %s588 = int_to_ptr.vmem [resolvable:$true] %s587
      %590 = dma.hbm_to_vmem [thread:$0]  %s586, 16, %s588, [#allocation47]
    $region289: #{transformer_forward.1} parent=1 // pred_fallthru
      _
    // Predicated region
    $region290: #{transformer_forward.1} parent=1 // pred_check
      _
    $region291: #{transformer_forward.1} parent=1 // pred_check_branch
      %592 = sbr.rel (0) target = $region293
    $region292: #{transformer_forward.1} parent=1 // pred_region
      _
    $region293: #{transformer_forward.1} parent=1 // pred_fallthru
      _
    // Predicated region
    $region294: #{transformer_forward.1} parent=1 // pred_check
      _
    $region295: #{transformer_forward.1} parent=1 // pred_check_branch
      %594 = sbr.rel (0) target = $region297
    $region296: #{transformer_forward.1} parent=1 // pred_region
      %596 = dma.done [#allocation3], 16
    $region297: #{transformer_forward.1} parent=1 // pred_fallthru
      _
    // Predicated region
    $region298: #{transformer_forward.1} parent=1 // pred_check
      _
    $region299: #{transformer_forward.1} parent=1 // pred_check_branch
      %598 = sbr.rel (0) target = $region301
    $region300: #{transformer_forward.1} parent=1 // pred_region
      %600 = dma.done [#allocation5], 16
    $region301: #{transformer_forward.1} parent=1 // pred_fallthru
      _
    // Predicated region
    $region302: #{transformer_forward.1} parent=1 // pred_check
      _
    $region303: #{transformer_forward.1} parent=1 // pred_check_branch
      %602 = sbr.rel (0) target = $region305
    $region304: #{transformer_forward.1} parent=1 // pred_region
      %604 = dma.done [#allocation5], 16
    $region305: #{transformer_forward.1} parent=1 // pred_fallthru
      _
    // Predicated region
    $region306: #{transformer_forward.1} parent=1 // pred_check
      _
    $region307: #{transformer_forward.1} parent=1 // pred_check_branch
      %606 = sbr.rel (0) target = $region309
    $region308: #{transformer_forward.1} parent=1 // pred_region
      %608 = dma.done [#allocation8], 16
    $region309: #{transformer_forward.1} parent=1 // pred_fallthru
      _
    // Predicated region
    $region310: #{transformer_forward.1} parent=1 // pred_check
      _
    $region311: #{transformer_forward.1} parent=1 // pred_check_branch
      %610 = sbr.rel (0) target = $region313
    $region312: #{transformer_forward.1} parent=1 // pred_region
      %612 = dma.done [#allocation8], 16
    $region313: #{transformer_forward.1} parent=1 // pred_fallthru
      _
    // Predicated region
    $region314: #{transformer_forward.1} parent=1 // pred_check
      _
    $region315: #{transformer_forward.1} parent=1 // pred_check_branch
      %614 = sbr.rel (0) target = $region317
    $region316: #{transformer_forward.1} parent=1 // pred_region
      %616 = dma.done [#allocation11], 16
    $region317: #{transformer_forward.1} parent=1 // pred_fallthru
      _
    // Predicated region
    $region318: #{transformer_forward.1} parent=1 // pred_check
      _
    $region319: #{transformer_forward.1} parent=1 // pred_check_branch
      %618 = sbr.rel (0) target = $region321
    $region320: #{transformer_forward.1} parent=1 // pred_region
      %620 = dma.done [#allocation11], 16
    $region321: #{transformer_forward.1} parent=1 // pred_fallthru
      _
    // Predicated region
    $region322: #{transformer_forward.1} parent=1 // pred_check
      _
    $region323: #{transformer_forward.1} parent=1 // pred_check_branch
      %622 = sbr.rel (0) target = $region325
    $region324: #{transformer_forward.1} parent=1 // pred_region
      %624 = dma.done [#allocation14], 16
    $region325: #{transformer_forward.1} parent=1 // pred_fallthru
      _
    // Predicated region
    $region326: #{transformer_forward.1} parent=1 // pred_check
      _
    $region327: #{transformer_forward.1} parent=1 // pred_check_branch
      %626 = sbr.rel (0) target = $region329
    $region328: #{transformer_forward.1} parent=1 // pred_region
      %628 = dma.done [#allocation14], 16
    $region329: #{transformer_forward.1} parent=1 // pred_fallthru
      _
    // Predicated region
    $region330: #{transformer_forward.1} parent=1 // pred_check
      _
    $region331: #{transformer_forward.1} parent=1 // pred_check_branch
      %630 = sbr.rel (0) target = $region333
    $region332: #{transformer_forward.1} parent=1 // pred_region
      %632 = dma.done [#allocation17], 16
    $region333: #{transformer_forward.1} parent=1 // pred_fallthru
      _
    // Predicated region
    $region334: #{transformer_forward.1} parent=1 // pred_check
      _
    $region335: #{transformer_forward.1} parent=1 // pred_check_branch
      %634 = sbr.rel (0) target = $region337
    $region336: #{transformer_forward.1} parent=1 // pred_region
      %636 = dma.done [#allocation17], 16
    $region337: #{transformer_forward.1} parent=1 // pred_fallthru
      _
    // Predicated region
    $region338: #{transformer_forward.1} parent=1 // pred_check
      _
    $region339: #{transformer_forward.1} parent=1 // pred_check_branch
      %638 = sbr.rel (0) target = $region341
    $region340: #{transformer_forward.1} parent=1 // pred_region
      %640 = dma.done [#allocation20], 16
    $region341: #{transformer_forward.1} parent=1 // pred_fallthru
      _
    // Predicated region
    $region342: #{transformer_forward.1} parent=1 // pred_check
      _
    $region343: #{transformer_forward.1} parent=1 // pred_check_branch
      %642 = sbr.rel (0) target = $region345
    $region344: #{transformer_forward.1} parent=1 // pred_region
      %644 = dma.done [#allocation20], 16
    $region345: #{transformer_forward.1} parent=1 // pred_fallthru
      _
    // Predicated region
    $region346: #{transformer_forward.1} parent=1 // pred_check
      _
    $region347: #{transformer_forward.1} parent=1 // pred_check_branch
      %646 = sbr.rel (0) target = $region349
    $region348: #{transformer_forward.1} parent=1 // pred_region
      %648 = dma.done [#allocation23], 16
    $region349: #{transformer_forward.1} parent=1 // pred_fallthru
      _
    // Predicated region
    $region350: #{transformer_forward.1} parent=1 // pred_check
      _
    $region351: #{transformer_forward.1} parent=1 // pred_check_branch
      %650 = sbr.rel (0) target = $region353
    $region352: #{transformer_forward.1} parent=1 // pred_region
      %652 = dma.done [#allocation23], 16
    $region353: #{transformer_forward.1} parent=1 // pred_fallthru
      _
    // Predicated region
    $region354: #{transformer_forward.1} parent=1 // pred_check
      _
    $region355: #{transformer_forward.1} parent=1 // pred_check_branch
      %654 = sbr.rel (0) target = $region357
    $region356: #{transformer_forward.1} parent=1 // pred_region
      %656 = dma.done [#allocation26], 16
    $region357: #{transformer_forward.1} parent=1 // pred_fallthru
      _
    // Predicated region
    $region358: #{transformer_forward.1} parent=1 // pred_check
      _
    $region359: #{transformer_forward.1} parent=1 // pred_check_branch
      %658 = sbr.rel (0) target = $region361
    $region360: #{transformer_forward.1} parent=1 // pred_region
      %660 = dma.done [#allocation26], 16
    $region361: #{transformer_forward.1} parent=1 // pred_fallthru
      _
    // Predicated region
    $region362: #{transformer_forward.1} parent=1 // pred_check
      _
    $region363: #{transformer_forward.1} parent=1 // pred_check_branch
      %662 = sbr.rel (0) target = $region365
    $region364: #{transformer_forward.1} parent=1 // pred_region
      %664 = dma.done [#allocation29], 16
    $region365: #{transformer_forward.1} parent=1 // pred_fallthru
      _
    // Predicated region
    $region366: #{transformer_forward.1} parent=1 // pred_check
      _
    $region367: #{transformer_forward.1} parent=1 // pred_check_branch
      %666 = sbr.rel (0) target = $region369
    $region368: #{transformer_forward.1} parent=1 // pred_region
      %668 = dma.done [#allocation29], 16
    $region369: #{transformer_forward.1} parent=1 // pred_fallthru
      _
    // Predicated region
    $region370: #{transformer_forward.1} parent=1 // pred_check
      _
    $region371: #{transformer_forward.1} parent=1 // pred_check_branch
      %670 = sbr.rel (0) target = $region373
    $region372: #{transformer_forward.1} parent=1 // pred_region
      %672 = dma.done [#allocation32], 16
    $region373: #{transformer_forward.1} parent=1 // pred_fallthru
      _
    // Predicated region
    $region374: #{transformer_forward.1} parent=1 // pred_check
      _
    $region375: #{transformer_forward.1} parent=1 // pred_check_branch
      %674 = sbr.rel (0) target = $region377
    $region376: #{transformer_forward.1} parent=1 // pred_region
      %676 = dma.done [#allocation32], 16
    $region377: #{transformer_forward.1} parent=1 // pred_fallthru
      _
    // Predicated region
    $region378: #{transformer_forward.1} parent=1 // pred_check
      _
    $region379: #{transformer_forward.1} parent=1 // pred_check_branch
      %678 = sbr.rel (0) target = $region381
    $region380: #{transformer_forward.1} parent=1 // pred_region
      %680 = dma.done [#allocation35], 16
    $region381: #{transformer_forward.1} parent=1 // pred_fallthru
      _
    // Predicated region
    $region382: #{transformer_forward.1} parent=1 // pred_check
      _
    $region383: #{transformer_forward.1} parent=1 // pred_check_branch
      %682 = sbr.rel (0) target = $region385
    $region384: #{transformer_forward.1} parent=1 // pred_region
      %684 = dma.done [#allocation35], 16
    $region385: #{transformer_forward.1} parent=1 // pred_fallthru
      _
    // Predicated region
    $region386: #{transformer_forward.1} parent=1 // pred_check
      _
    $region387: #{transformer_forward.1} parent=1 // pred_check_branch
      %686 = sbr.rel (0) target = $region389
    $region388: #{transformer_forward.1} parent=1 // pred_region
      %688 = dma.done [#allocation38], 16
    $region389: #{transformer_forward.1} parent=1 // pred_fallthru
      _
    // Predicated region
    $region390: #{transformer_forward.1} parent=1 // pred_check
      _
    $region391: #{transformer_forward.1} parent=1 // pred_check_branch
      %690 = sbr.rel (0) target = $region393
    $region392: #{transformer_forward.1} parent=1 // pred_region
      %692 = dma.done [#allocation38], 16
    $region393: #{transformer_forward.1} parent=1 // pred_fallthru
      _
    // Predicated region
    $region394: #{transformer_forward.1} parent=1 // pred_check
      _
    $region395: #{transformer_forward.1} parent=1 // pred_check_branch
      %694 = sbr.rel (0) target = $region397
    $region396: #{transformer_forward.1} parent=1 // pred_region
      %696 = dma.done [#allocation41], 16
    $region397: #{transformer_forward.1} parent=1 // pred_fallthru
      _
    // Predicated region
    $region398: #{transformer_forward.1} parent=1 // pred_check
      _
    $region399: #{transformer_forward.1} parent=1 // pred_check_branch
      %698 = sbr.rel (0) target = $region401
    $region400: #{transformer_forward.1} parent=1 // pred_region
      %700 = dma.done [#allocation41], 16
    $region401: #{transformer_forward.1} parent=1 // pred_fallthru
      _
    // Predicated region
    $region402: #{transformer_forward.1} parent=1 // pred_check
      _
    $region403: #{transformer_forward.1} parent=1 // pred_check_branch
      %702 = sbr.rel (0) target = $region405
    $region404: #{transformer_forward.1} parent=1 // pred_region
      %704 = dma.done [#allocation44], 16
    $region405: #{transformer_forward.1} parent=1 // pred_fallthru
      _
    // Predicated region
    $region406: #{transformer_forward.1} parent=1 // pred_check
      _
    $region407: #{transformer_forward.1} parent=1 // pred_check_branch
      %706 = sbr.rel (0) target = $region409
    $region408: #{transformer_forward.1} parent=1 // pred_region
      %708 = dma.done [#allocation44], 16
    $region409: #{transformer_forward.1} parent=1 // pred_fallthru
      _
    // Predicated region
    $region410: #{transformer_forward.1} parent=1 // pred_check
      _
    $region411: #{transformer_forward.1} parent=1 // pred_check_branch
      %710 = sbr.rel (0) target = $region413
    $region412: #{transformer_forward.1} parent=1 // pred_region
      %712 = dma.done [#allocation47], 16
    $region413: #{transformer_forward.1} parent=1 // pred_fallthru
      _
    // Predicated region
    $region414: #{transformer_forward.1} parent=1 // pred_check
      _
    $region415: #{transformer_forward.1} parent=1 // pred_check_branch
      %714 = sbr.rel (0) target = $region417
    $region416: #{transformer_forward.1} parent=1 // pred_region
      %716 = dma.done [#allocation47], 16
    $region417: #{transformer_forward.1} parent=1 // pred_fallthru
      _
    %v717 = vld [vmem:[%s1] sm:$0xff]
    %v718 = vld [vmem:[%s141] sm:$0xff]
    %v719 = vld [vmem:[%s141 + $0x8] sm:$0xff]
    %v720 = vld [vmem:[%s141 + $0x10] sm:$0xff]
    %v721 = vld [vmem:[%s141 + $0x18] sm:$0xff]
    %v722 = vld [vmem:[#allocation46] sm:$0x1]
    %v724 = vperm.slane %v722, 0
    %vm726 = vcmask 261120
    %v728 = vsel %vm726, %v717, 0
    %730 = vmatpush.msra.mxu0 0.0
    %731 = vmatpush.msra.mxu0 0.0
    %732 = vmatpush.msra.mxu0 0.0
    %733 = vmatpush.msra.mxu0 0.0
    %734 = vmatpush.msra.mxu0 0.0
    %735 = vmatpush.msra.mxu0 0.0
    %736 = vmatpush.msra.mxu0 0.0
    %737 = vmatpush.msra.mxu0 0.0
    %738 = vmatpush.msra.mxu0 0.0
    %739 = vmatpush.msra.mxu0 0.0
    %740 = vmatpush.msra.mxu0 0.0
    %741 = vmatpush.msra.mxu0 0.0
    %742 = vmatpush.msra.mxu0 %v721
    %743 = vmatpush.msra.mxu0 %v720
    %744 = vmatpush.msra.mxu0 %v719
    %745 = vmatpush.msra.mxu0 %v718
    %746 = vmatmul.f32.gmra.mxu0 %v728
    %v747 = vpop.f32.mrf.mxu0
    %v748 = vadd.f32 %v724, %v747
    %749 = vdwg.mxu0
    %v750 = vld [vmem:[%s109] sm:$0xff]
    %v751 = vld [vmem:[%s109 + $0x8] sm:$0xff]
    %v752 = vld [vmem:[%s109 + $0x10] sm:$0xff]
    %v753 = vld [vmem:[%s109 + $0x18] sm:$0xff]
    %v754 = vld [vmem:[#allocation31] sm:$0x1]
    %v756 = vperm.slane %v754, 0
    %v759 = vsel %vm726, %v748, 0
    %761 = vmatpush.msra.mxu0 0.0
    %762 = vmatpush.msra.mxu0 0.0
    %763 = vmatpush.msra.mxu0 0.0
    %764 = vmatpush.msra.mxu0 0.0
    %765 = vmatpush.msra.mxu0 0.0
    %766 = vmatpush.msra.mxu0 0.0
    %767 = vmatpush.msra.mxu0 0.0
    %768 = vmatpush.msra.mxu0 0.0
    %769 = vmatpush.msra.mxu0 0.0
    %770 = vmatpush.msra.mxu0 0.0
    %771 = vmatpush.msra.mxu0 0.0
    %772 = vmatpush.msra.mxu0 0.0
    %773 = vmatpush.msra.mxu0 %v753
    %774 = vmatpush.msra.mxu0 %v752
    %775 = vmatpush.msra.mxu0 %v751
    %776 = vmatpush.msra.mxu0 %v750
    %777 = vmatmul.f32.gmra.mxu0 %v759
    %v778 = vpop.f32.mrf.mxu0
    %v779 = vadd.f32 %v756, %v778
    %780 = vdwg.mxu0
    %v781 = vld [vmem:[#allocation30] sm:$0x1]
    %783 = vrot.lane.b32.xlu0 %v779, 96
    %v784 = vpop.permute.xlu0 %783
    %vm785 = vcmask 130048
    %v786 = vsel %vm785, %v779, 0
    %v788 = vsel %vm785, %v784, 0
    %790 = vmatpush.xpose.msra.mxu0 0.0
    %791 = vmatpush.xpose.msra.mxu0 0.0
    %792 = vmatpush.xpose.msra.mxu0 0.0
    %793 = vmatpush.xpose.msra.mxu0 0.0
    %794 = vmatpush.xpose.msra.mxu0 0.0
    %795 = vmatpush.xpose.msra.mxu0 0.0
    %796 = vmatpush.xpose.msra.mxu0 0.0
    %797 = vmatpush.xpose.msra.mxu0 0.0
    %798 = vmatpush.xpose.msra.mxu0 0.0
    %799 = vmatpush.xpose.msra.mxu0 0.0
    %800 = vmatpush.xpose.msra.mxu0 0.0
    %801 = vmatpush.xpose.msra.mxu0 0.0
    %802 = vmatpush.xpose.msra.mxu0 0.0
    %803 = vmatpush.xpose.msra.mxu0 0.0
    %804 = vmatpush.xpose.msra.mxu0 0.0
    %805 = vmatpush.xpose.msra.mxu0 %v788
    %806 = vmatmul.f32.gmra.mxu0 %v786
    %v807 = vpop.f32.mrf.mxu0
    %v808 = vadd.f32 0.0, %v807
    %809 = vdwg.mxu0
    %v810 = vmul.f32 %v808, 0.25
    %vm811 = vcmask 64512
    %v812 = vsel %vm811, %v810, -inf
    %813 = vmax.xlane.f32.xlu0 %v812
    %v814 = vpop.xlane.xlu0 %813
    %v815 = vsub.f32 %v810, %v814
    %v816 = vmul.f32 %v815, 1.442695
    %v817 = vpow.pop %v816
    %v818 = vsel %vm811, %v817, 0.0
    %819 = vadd.xlane.f32.xlu0 %v818
    %v820 = vpop.xlane.xlu0 %819
    %v821 = vrcp.pop %v820
    %v822 = vmul.f32 %v817, %v821
    %823 = vrot.lane.b32.xlu0 %v779, 64
    %v824 = vpop.permute.xlu0 %823
    %v827 = vsel %vm811, %v822, 0
    %829 = vmatpush.msra.mxu0 0.0
    %830 = vmatpush.msra.mxu0 0.0
    %831 = vmatpush.msra.mxu0 0.0
    %832 = vmatpush.msra.mxu0 0.0
    %833 = vmatpush.msra.mxu0 0.0
    %834 = vmatpush.msra.mxu0 0.0
    %835 = vmatpush.msra.mxu0 0.0
    %836 = vmatpush.msra.mxu0 0.0
    %837 = vmatpush.msra.mxu0 0.0
    %838 = vmatpush.msra.mxu0 0.0
    %839 = vmatpush.msra.mxu0 0.0
    %840 = vmatpush.msra.mxu0 0.0
    %841 = vmatpush.msra.mxu0 0.0
    %842 = vmatpush.msra.mxu0 0.0
    %843 = vmatpush.msra.mxu0 0.0
    %844 = vmatpush.msra.mxu0 %v824
    %845 = vmatmul.f32.gmra.mxu0 %v827
    %v846 = vpop.f32.mrf.mxu0
    %v847 = vadd.f32 0.0, %v846
    %848 = vdwg.mxu0
    %v849 = vld [vmem:[%s107] sm:$0xff]
    %v850 = vld [vmem:[%s107 + $0x8] sm:$0xff]
    %v852 = vsel %vm785, %v847, 0
    %854 = vmatpush.msra.mxu0 0.0
    %855 = vmatpush.msra.mxu0 0.0
    %856 = vmatpush.msra.mxu0 0.0
    %857 = vmatpush.msra.mxu0 0.0
    %858 = vmatpush.msra.mxu0 0.0
    %859 = vmatpush.msra.mxu0 0.0
    %860 = vmatpush.msra.mxu0 0.0
    %861 = vmatpush.msra.mxu0 0.0
    %862 = vmatpush.msra.mxu0 0.0
    %863 = vmatpush.msra.mxu0 0.0
    %864 = vmatpush.msra.mxu0 0.0
    %865 = vmatpush.msra.mxu0 0.0
    %866 = vmatpush.msra.mxu0 0.0
    %867 = vmatpush.msra.mxu0 0.0
    %868 = vmatpush.msra.mxu0 %v850
    %869 = vmatpush.msra.mxu0 %v849
    %870 = vmatmul.f32.gmra.mxu0 %v852
    %v871 = vpop.f32.mrf.mxu0
    %v872 = vadd.f32 0.0, %v871
    %873 = vdwg.mxu0
    %v875 = vperm.slane %v781, 0
    %v877 = vadd.f32 %v875, %v872
    %878 = vrot.lane.b32.xlu0 %v779, 112
    %v879 = vpop.permute.xlu0 %878
    %880 = vrot.lane.b32.xlu0 %v779, 80
    %v881 = vpop.permute.xlu0 %880
    %v882 = vsel %vm785, %v879, 0
    %v884 = vsel %vm785, %v881, 0
    %886 = vmatpush.xpose.msra.mxu0 0.0
    %887 = vmatpush.xpose.msra.mxu0 0.0
    %888 = vmatpush.xpose.msra.mxu0 0.0
    %889 = vmatpush.xpose.msra.mxu0 0.0
    %890 = vmatpush.xpose.msra.mxu0 0.0
    %891 = vmatpush.xpose.msra.mxu0 0.0
    %892 = vmatpush.xpose.msra.mxu0 0.0
    %893 = vmatpush.xpose.msra.mxu0 0.0
    %894 = vmatpush.xpose.msra.mxu0 0.0
    %895 = vmatpush.xpose.msra.mxu0 0.0
    %896 = vmatpush.xpose.msra.mxu0 0.0
    %897 = vmatpush.xpose.msra.mxu0 0.0
    %898 = vmatpush.xpose.msra.mxu0 0.0
    %899 = vmatpush.xpose.msra.mxu0 0.0
    %900 = vmatpush.xpose.msra.mxu0 0.0
    %901 = vmatpush.xpose.msra.mxu0 %v884
    %902 = vmatmul.f32.gmra.mxu0 %v882
    %v903 = vpop.f32.mrf.mxu0
    %v904 = vadd.f32 0.0, %v903
    %905 = vdwg.mxu0
    %v906 = vmul.f32 %v904, 0.25
    %v907 = vsel %vm811, %v906, -inf
    %908 = vmax.xlane.f32.xlu0 %v907
    %v909 = vpop.xlane.xlu0 %908
    %v910 = vsub.f32 %v906, %v909
    %v911 = vmul.f32 %v910, 1.442695
    %v912 = vpow.pop %v911
    %v913 = vsel %vm811, %v912, 0.0
    %914 = vadd.xlane.f32.xlu0 %v913
    %v915 = vpop.xlane.xlu0 %914
    %v916 = vrcp.pop %v915
    %v917 = vmul.f32 %v912, %v916
    %918 = vrot.lane.b32.xlu0 %v779, 48
    %v919 = vpop.permute.xlu0 %918
    %v922 = vsel %vm811, %v917, 0
    %924 = vmatpush.msra.mxu0 0.0
    %925 = vmatpush.msra.mxu0 0.0
    %926 = vmatpush.msra.mxu0 0.0
    %927 = vmatpush.msra.mxu0 0.0
    %928 = vmatpush.msra.mxu0 0.0
    %929 = vmatpush.msra.mxu0 0.0
    %930 = vmatpush.msra.mxu0 0.0
    %931 = vmatpush.msra.mxu0 0.0
    %932 = vmatpush.msra.mxu0 0.0
    %933 = vmatpush.msra.mxu0 0.0
    %934 = vmatpush.msra.mxu0 0.0
    %935 = vmatpush.msra.mxu0 0.0
    %936 = vmatpush.msra.mxu0 0.0
    %937 = vmatpush.msra.mxu0 0.0
    %938 = vmatpush.msra.mxu0 0.0
    %939 = vmatpush.msra.mxu0 %v919
    %940 = vmatmul.f32.gmra.mxu0 %v922
    %v941 = vpop.f32.mrf.mxu0
    %v942 = vadd.f32 0.0, %v941
    %943 = vdwg.mxu0
    %v944 = vld [vmem:[%s107 + $0x10] sm:$0xff]
    %v945 = vld [vmem:[%s107 + $0x18] sm:$0xff]
    %v947 = vsel %vm785, %v942, 0
    %949 = vmatpush.msra.mxu0 0.0
    %950 = vmatpush.msra.mxu0 0.0
    %951 = vmatpush.msra.mxu0 0.0
    %952 = vmatpush.msra.mxu0 0.0
    %953 = vmatpush.msra.mxu0 0.0
    %954 = vmatpush.msra.mxu0 0.0
    %955 = vmatpush.msra.mxu0 0.0
    %956 = vmatpush.msra.mxu0 0.0
    %957 = vmatpush.msra.mxu0 0.0
    %958 = vmatpush.msra.mxu0 0.0
    %959 = vmatpush.msra.mxu0 0.0
    %960 = vmatpush.msra.mxu0 0.0
    %961 = vmatpush.msra.mxu0 0.0
    %962 = vmatpush.msra.mxu0 0.0
    %963 = vmatpush.msra.mxu0 %v945
    %964 = vmatpush.msra.mxu0 %v944
    %965 = vmatmul.f32.gmra.mxu0 %v947
    %v966 = vpop.f32.mrf.mxu0
    %v967 = vadd.f32 0.0, %v966
    %968 = vdwg.mxu0
    %v969 = vadd.f32 %v877, %v967
    %v970 = vadd.f32 %v748, %v969
    %v971 = vsel %vm726, %v970, 0.0
    %972 = vadd.xlane.f32.xlu0 %v971
    %v973 = vpop.xlane.xlu0 %972
    %v974 = vrcp.pop 32.0
    %v975 = vmul.f32 32.0, %v974
    %v976 = vsub.f32 1.0, %v975
    %v977 = vmul.f32 %v974, %v976
    %v978 = vadd.f32 %v974, %v977
    %vm979 = vweird.f32 %v974
    %v980 = vsel %vm979, %v974, %v978
    %v981 = vmul.f32 %v973, %v980
    %v982 = vsub.f32 %v970, %v981
    %v983 = vmul.f32 %v982, %v982
    %v984 = vsel %vm726, %v983, 0.0
    %985 = vadd.xlane.f32.xlu0 %v984
    %v986 = vpop.xlane.xlu0 %985
    %v987 = vmul.f32 %v986, %v980
    %v988 = vadd.f32 %v987, 1e-05
    %v989 = vrsqrt.pop %v988
    %v990 = vmul.f32 %v989, %v988
    %v991 = vmul.f32 %v990, %v989
    %v992 = vmul.f32 0.5, %v991
    %v993 = vsub.f32 1.5, %v992
    %v994 = vmul.f32 %v989, %v993
    %vm995 = vweird.f32 %v988
    %vm996 = vweird.f32 %v989
    %vm997 = vmor %vm995, %vm996
    %v998 = vsel %vm997, %v989, %v994
    %v999 = vmul.f32 %v982, %v998
    %v1000 = vld [vmem:[#allocation25] sm:$0x1]
    %v1002 = vperm.slane %v1000, 0
    %v1004 = vmul.f32 %v999, %v1002
    %v1005 = vld [vmem:[#allocation24] sm:$0x1]
    %v1007 = vperm.slane %v1005, 0
    %v1009 = vadd.f32 %v1004, %v1007
    %v1010 = vld [vmem:[%s91] sm:$0xff]
    %v1011 = vld [vmem:[%s91 + $0x8] sm:$0xff]
    %v1012 = vld [vmem:[%s91 + $0x10] sm:$0xff]
    %v1013 = vld [vmem:[%s91 + $0x18] sm:$0xff]
    %v1014 = vld [vmem:[%s91 + $0x20] sm:$0xff]
    %v1015 = vld [vmem:[%s91 + $0x28] sm:$0xff]
    %v1016 = vld [vmem:[%s91 + $0x30] sm:$0xff]
    %v1017 = vld [vmem:[%s91 + $0x38] sm:$0xff]
    %v1018 = vld [vmem:[%s91 + $0x40] sm:$0xff]
    %v1019 = vld [vmem:[%s91 + $0x48] sm:$0xff]
    %v1020 = vld [vmem:[%s91 + $0x50] sm:$0xff]
    %v1021 = vld [vmem:[%s91 + $0x58] sm:$0xff]
    %v1022 = vld [vmem:[%s91 + $0x60] sm:$0xff]
    %v1023 = vld [vmem:[%s91 + $0x68] sm:$0xff]
    %v1024 = vld [vmem:[%s91 + $0x70] sm:$0xff]
    %v1025 = vld [vmem:[%s91 + $0x78] sm:$0xff]
    %v1026 = vld [vmem:[%s91 + $0x80] sm:$0xff]
    %v1027 = vld [vmem:[%s91 + $0x88] sm:$0xff]
    %v1028 = vld [vmem:[%s91 + $0x90] sm:$0xff]
    %v1029 = vld [vmem:[%s91 + $0x98] sm:$0xff]
    %v1030 = vld [vmem:[%s91 + $0xa0] sm:$0xff]
    %v1031 = vld [vmem:[%s91 + $0xa8] sm:$0xff]
    %v1032 = vld [vmem:[%s91 + $0xb0] sm:$0xff]
    %v1033 = vld [vmem:[%s91 + $0xb8] sm:$0xff]
    %v1034 = vld [vmem:[%s91 + $0xc0] sm:$0xff]
    %v1035 = vld [vmem:[%s91 + $0xc8] sm:$0xff]
    %v1036 = vld [vmem:[%s91 + $0xd0] sm:$0xff]
    %v1037 = vld [vmem:[%s91 + $0xd8] sm:$0xff]
    %v1038 = vld [vmem:[%s91 + $0xe0] sm:$0xff]
    %v1039 = vld [vmem:[%s91 + $0xe8] sm:$0xff]
    %v1040 = vld [vmem:[%s91 + $0xf0] sm:$0xff]
    %v1041 = vld [vmem:[%s91 + $0xf8] sm:$0xff]
    %v1042 = vld [vmem:[%s91 + $0x100] sm:$0xff]
    %v1043 = vld [vmem:[%s91 + $0x108] sm:$0xff]
    %v1044 = vld [vmem:[%s91 + $0x110] sm:$0xff]
    %v1045 = vld [vmem:[%s91 + $0x118] sm:$0xff]
    %v1046 = vld [vmem:[%s91 + $0x120] sm:$0xff]
    %v1047 = vld [vmem:[%s91 + $0x128] sm:$0xff]
    %v1048 = vld [vmem:[%s91 + $0x130] sm:$0xff]
    %v1049 = vld [vmem:[%s91 + $0x138] sm:$0xff]
    %v1050 = vld [vmem:[%s91 + $0x140] sm:$0xff]
    %v1051 = vld [vmem:[%s91 + $0x148] sm:$0xff]
    %v1052 = vld [vmem:[%s91 + $0x150] sm:$0xff]
    %v1053 = vld [vmem:[%s91 + $0x158] sm:$0xff]
    %v1054 = vld [vmem:[%s91 + $0x160] sm:$0xff]
    %v1055 = vld [vmem:[%s91 + $0x168] sm:$0xff]
    %v1056 = vld [vmem:[%s91 + $0x170] sm:$0xff]
    %v1057 = vld [vmem:[%s91 + $0x178] sm:$0xff]
    %v1058 = vld [vmem:[%s91 + $0x180] sm:$0xff]
    %v1059 = vld [vmem:[%s91 + $0x188] sm:$0xff]
    %v1060 = vld [vmem:[%s91 + $0x190] sm:$0xff]
    %v1061 = vld [vmem:[%s91 + $0x198] sm:$0xff]
    %v1062 = vld [vmem:[%s91 + $0x1a0] sm:$0xff]
    %v1063 = vld [vmem:[%s91 + $0x1a8] sm:$0xff]
    %v1064 = vld [vmem:[%s91 + $0x1b0] sm:$0xff]
    %v1065 = vld [vmem:[%s91 + $0x1b8] sm:$0xff]
    %v1066 = vld [vmem:[%s91 + $0x1c0] sm:$0xff]
    %v1067 = vld [vmem:[%s91 + $0x1c8] sm:$0xff]
    %v1068 = vld [vmem:[%s91 + $0x1d0] sm:$0xff]
    %v1069 = vld [vmem:[%s91 + $0x1d8] sm:$0xff]
    %v1070 = vld [vmem:[%s91 + $0x1e0] sm:$0xff]
    %v1071 = vld [vmem:[%s91 + $0x1e8] sm:$0xff]
    %v1072 = vld [vmem:[%s91 + $0x1f0] sm:$0xff]
    %v1073 = vld [vmem:[%s91 + $0x1f8] sm:$0xff]
    %v1074 = vld [vmem:[%s87] sm:$0xff]
    %v1075 = vld [vmem:[%s87 + $0x8] sm:$0xff]
    %v1078 = vperm.slane %v1074, 0
    %v1079 = vperm.slane %v1074, 1
    %v1080 = vperm.slane %v1074, 2
    %v1081 = vperm.slane %v1074, 3
    %v1082 = vperm.slane %v1074, 4
    %v1083 = vperm.slane %v1074, 5
    %v1084 = vperm.slane %v1074, 6
    %v1085 = vperm.slane %v1074, 7
    %v1086 = vperm.slane %v1075, 0
    %v1087 = vperm.slane %v1075, 1
    %v1088 = vperm.slane %v1075, 2
    %v1089 = vperm.slane %v1075, 3
    %v1090 = vperm.slane %v1075, 4
    %v1091 = vperm.slane %v1075, 5
    %v1092 = vperm.slane %v1075, 6
    %v1093 = vperm.slane %v1075, 7
    %v1111 = vsel %vm726, %v1009, 0
    %1113 = vmatpush.msra.mxu0 0.0
    %1114 = vmatpush.msra.mxu0 0.0
    %1115 = vmatpush.msra.mxu0 0.0
    %1116 = vmatpush.msra.mxu0 0.0
    %1117 = vmatpush.msra.mxu0 0.0
    %1118 = vmatpush.msra.mxu0 0.0
    %1119 = vmatpush.msra.mxu0 0.0
    %1120 = vmatpush.msra.mxu0 0.0
    %1121 = vmatpush.msra.mxu0 0.0
    %1122 = vmatpush.msra.mxu0 0.0
    %1123 = vmatpush.msra.mxu0 0.0
    %1124 = vmatpush.msra.mxu0 0.0
    %1125 = vmatpush.msra.mxu0 %v1058
    %1126 = vmatpush.msra.mxu0 %v1042
    %1127 = vmatpush.msra.mxu0 %v1026
    %1128 = vmatpush.msra.mxu0 %v1010
    %1129 = vmatmul.f32.gmra.mxu0 %v1111
    %v1130 = vpop.f32.mrf.mxu0
    %v1131 = vadd.f32 %v1078, %v1130
    %1132 = vdwg.mxu0
    %1133 = vmatpush.msra.mxu0 0.0
    %1134 = vmatpush.msra.mxu0 0.0
    %1135 = vmatpush.msra.mxu0 0.0
    %1136 = vmatpush.msra.mxu0 0.0
    %1137 = vmatpush.msra.mxu0 0.0
    %1138 = vmatpush.msra.mxu0 0.0
    %1139 = vmatpush.msra.mxu0 0.0
    %1140 = vmatpush.msra.mxu0 0.0
    %1141 = vmatpush.msra.mxu0 0.0
    %1142 = vmatpush.msra.mxu0 0.0
    %1143 = vmatpush.msra.mxu0 0.0
    %1144 = vmatpush.msra.mxu0 0.0
    %1145 = vmatpush.msra.mxu0 %v1059
    %1146 = vmatpush.msra.mxu0 %v1043
    %1147 = vmatpush.msra.mxu0 %v1027
    %1148 = vmatpush.msra.mxu0 %v1011
    %1149 = vmatmul.f32.gmra.mxu0 %v1111
    %v1150 = vpop.f32.mrf.mxu0
    %v1151 = vadd.f32 %v1079, %v1150
    %1152 = vdwg.mxu0
    %1153 = vmatpush.msra.mxu0 0.0
    %1154 = vmatpush.msra.mxu0 0.0
    %1155 = vmatpush.msra.mxu0 0.0
    %1156 = vmatpush.msra.mxu0 0.0
    %1157 = vmatpush.msra.mxu0 0.0
    %1158 = vmatpush.msra.mxu0 0.0
    %1159 = vmatpush.msra.mxu0 0.0
    %1160 = vmatpush.msra.mxu0 0.0
    %1161 = vmatpush.msra.mxu0 0.0
    %1162 = vmatpush.msra.mxu0 0.0
    %1163 = vmatpush.msra.mxu0 0.0
    %1164 = vmatpush.msra.mxu0 0.0
    %1165 = vmatpush.msra.mxu0 %v1060
    %1166 = vmatpush.msra.mxu0 %v1044
    %1167 = vmatpush.msra.mxu0 %v1028
    %1168 = vmatpush.msra.mxu0 %v1012
    %1169 = vmatmul.f32.gmra.mxu0 %v1111
    %v1170 = vpop.f32.mrf.mxu0
    %v1171 = vadd.f32 %v1080, %v1170
    %1172 = vdwg.mxu0
    %1173 = vmatpush.msra.mxu0 0.0
    %1174 = vmatpush.msra.mxu0 0.0
    %1175 = vmatpush.msra.mxu0 0.0
    %1176 = vmatpush.msra.mxu0 0.0
    %1177 = vmatpush.msra.mxu0 0.0
    %1178 = vmatpush.msra.mxu0 0.0
    %1179 = vmatpush.msra.mxu0 0.0
    %1180 = vmatpush.msra.mxu0 0.0
    %1181 = vmatpush.msra.mxu0 0.0
    %1182 = vmatpush.msra.mxu0 0.0
    %1183 = vmatpush.msra.mxu0 0.0
    %1184 = vmatpush.msra.mxu0 0.0
    %1185 = vmatpush.msra.mxu0 %v1061
    %1186 = vmatpush.msra.mxu0 %v1045
    %1187 = vmatpush.msra.mxu0 %v1029
    %1188 = vmatpush.msra.mxu0 %v1013
    %1189 = vmatmul.f32.gmra.mxu0 %v1111
    %v1190 = vpop.f32.mrf.mxu0
    %v1191 = vadd.f32 %v1081, %v1190
    %1192 = vdwg.mxu0
    %1193 = vmatpush.msra.mxu0 0.0
    %1194 = vmatpush.msra.mxu0 0.0
    %1195 = vmatpush.msra.mxu0 0.0
    %1196 = vmatpush.msra.mxu0 0.0
    %1197 = vmatpush.msra.mxu0 0.0
    %1198 = vmatpush.msra.mxu0 0.0
    %1199 = vmatpush.msra.mxu0 0.0
    %1200 = vmatpush.msra.mxu0 0.0
    %1201 = vmatpush.msra.mxu0 0.0
    %1202 = vmatpush.msra.mxu0 0.0
    %1203 = vmatpush.msra.mxu0 0.0
    %1204 = vmatpush.msra.mxu0 0.0
    %1205 = vmatpush.msra.mxu0 %v1062
    %1206 = vmatpush.msra.mxu0 %v1046
    %1207 = vmatpush.msra.mxu0 %v1030
    %1208 = vmatpush.msra.mxu0 %v1014
    %1209 = vmatmul.f32.gmra.mxu0 %v1111
    %v1210 = vpop.f32.mrf.mxu0
    %v1211 = vadd.f32 %v1082, %v1210
    %1212 = vdwg.mxu0
    %1213 = vmatpush.msra.mxu0 0.0
    %1214 = vmatpush.msra.mxu0 0.0
    %1215 = vmatpush.msra.mxu0 0.0
    %1216 = vmatpush.msra.mxu0 0.0
    %1217 = vmatpush.msra.mxu0 0.0
    %1218 = vmatpush.msra.mxu0 0.0
    %1219 = vmatpush.msra.mxu0 0.0
    %1220 = vmatpush.msra.mxu0 0.0
    %1221 = vmatpush.msra.mxu0 0.0
    %1222 = vmatpush.msra.mxu0 0.0
    %1223 = vmatpush.msra.mxu0 0.0
    %1224 = vmatpush.msra.mxu0 0.0
    %1225 = vmatpush.msra.mxu0 %v1063
    %1226 = vmatpush.msra.mxu0 %v1047
    %1227 = vmatpush.msra.mxu0 %v1031
    %1228 = vmatpush.msra.mxu0 %v1015
    %1229 = vmatmul.f32.gmra.mxu0 %v1111
    %v1230 = vpop.f32.mrf.mxu0
    %v1231 = vadd.f32 %v1083, %v1230
    %1232 = vdwg.mxu0
    %1233 = vmatpush.msra.mxu0 0.0
    %1234 = vmatpush.msra.mxu0 0.0
    %1235 = vmatpush.msra.mxu0 0.0
    %1236 = vmatpush.msra.mxu0 0.0
    %1237 = vmatpush.msra.mxu0 0.0
    %1238 = vmatpush.msra.mxu0 0.0
    %1239 = vmatpush.msra.mxu0 0.0
    %1240 = vmatpush.msra.mxu0 0.0
    %1241 = vmatpush.msra.mxu0 0.0
    %1242 = vmatpush.msra.mxu0 0.0
    %1243 = vmatpush.msra.mxu0 0.0
    %1244 = vmatpush.msra.mxu0 0.0
    %1245 = vmatpush.msra.mxu0 %v1064
    %1246 = vmatpush.msra.mxu0 %v1048
    %1247 = vmatpush.msra.mxu0 %v1032
    %1248 = vmatpush.msra.mxu0 %v1016
    %1249 = vmatmul.f32.gmra.mxu0 %v1111
    %v1250 = vpop.f32.mrf.mxu0
    %v1251 = vadd.f32 %v1084, %v1250
    %1252 = vdwg.mxu0
    %1253 = vmatpush.msra.mxu0 0.0
    %1254 = vmatpush.msra.mxu0 0.0
    %1255 = vmatpush.msra.mxu0 0.0
    %1256 = vmatpush.msra.mxu0 0.0
    %1257 = vmatpush.msra.mxu0 0.0
    %1258 = vmatpush.msra.mxu0 0.0
    %1259 = vmatpush.msra.mxu0 0.0
    %1260 = vmatpush.msra.mxu0 0.0
    %1261 = vmatpush.msra.mxu0 0.0
    %1262 = vmatpush.msra.mxu0 0.0
    %1263 = vmatpush.msra.mxu0 0.0
    %1264 = vmatpush.msra.mxu0 0.0
    %1265 = vmatpush.msra.mxu0 %v1065
    %1266 = vmatpush.msra.mxu0 %v1049
    %1267 = vmatpush.msra.mxu0 %v1033
    %1268 = vmatpush.msra.mxu0 %v1017
    %1269 = vmatmul.f32.gmra.mxu0 %v1111
    %v1270 = vpop.f32.mrf.mxu0
    %v1271 = vadd.f32 %v1085, %v1270
    %1272 = vdwg.mxu0
    %1273 = vmatpush.msra.mxu0 0.0
    %1274 = vmatpush.msra.mxu0 0.0
    %1275 = vmatpush.msra.mxu0 0.0
    %1276 = vmatpush.msra.mxu0 0.0
    %1277 = vmatpush.msra.mxu0 0.0
    %1278 = vmatpush.msra.mxu0 0.0
    %1279 = vmatpush.msra.mxu0 0.0
    %1280 = vmatpush.msra.mxu0 0.0
    %1281 = vmatpush.msra.mxu0 0.0
    %1282 = vmatpush.msra.mxu0 0.0
    %1283 = vmatpush.msra.mxu0 0.0
    %1284 = vmatpush.msra.mxu0 0.0
    %1285 = vmatpush.msra.mxu0 %v1066
    %1286 = vmatpush.msra.mxu0 %v1050
    %1287 = vmatpush.msra.mxu0 %v1034
    %1288 = vmatpush.msra.mxu0 %v1018
    %1289 = vmatmul.f32.gmra.mxu0 %v1111
    %v1290 = vpop.f32.mrf.mxu0
    %v1291 = vadd.f32 %v1086, %v1290
    %1292 = vdwg.mxu0
    %1293 = vmatpush.msra.mxu0 0.0
    %1294 = vmatpush.msra.mxu0 0.0
    %1295 = vmatpush.msra.mxu0 0.0
    %1296 = vmatpush.msra.mxu0 0.0
    %1297 = vmatpush.msra.mxu0 0.0
    %1298 = vmatpush.msra.mxu0 0.0
    %1299 = vmatpush.msra.mxu0 0.0
    %1300 = vmatpush.msra.mxu0 0.0
    %1301 = vmatpush.msra.mxu0 0.0
    %1302 = vmatpush.msra.mxu0 0.0
    %1303 = vmatpush.msra.mxu0 0.0
    %1304 = vmatpush.msra.mxu0 0.0
    %1305 = vmatpush.msra.mxu0 %v1067
    %1306 = vmatpush.msra.mxu0 %v1051
    %1307 = vmatpush.msra.mxu0 %v1035
    %1308 = vmatpush.msra.mxu0 %v1019
    %1309 = vmatmul.f32.gmra.mxu0 %v1111
    %v1310 = vpop.f32.mrf.mxu0
    %v1311 = vadd.f32 %v1087, %v1310
    %1312 = vdwg.mxu0
    %1313 = vmatpush.msra.mxu0 0.0
    %1314 = vmatpush.msra.mxu0 0.0
    %1315 = vmatpush.msra.mxu0 0.0
    %1316 = vmatpush.msra.mxu0 0.0
    %1317 = vmatpush.msra.mxu0 0.0
    %1318 = vmatpush.msra.mxu0 0.0
    %1319 = vmatpush.msra.mxu0 0.0
    %1320 = vmatpush.msra.mxu0 0.0
    %1321 = vmatpush.msra.mxu0 0.0
    %1322 = vmatpush.msra.mxu0 0.0
    %1323 = vmatpush.msra.mxu0 0.0
    %1324 = vmatpush.msra.mxu0 0.0
    %1325 = vmatpush.msra.mxu0 %v1068
    %1326 = vmatpush.msra.mxu0 %v1052
    %1327 = vmatpush.msra.mxu0 %v1036
    %1328 = vmatpush.msra.mxu0 %v1020
    %1329 = vmatmul.f32.gmra.mxu0 %v1111
    %v1330 = vpop.f32.mrf.mxu0
    %v1331 = vadd.f32 %v1088, %v1330
    %1332 = vdwg.mxu0
    %1333 = vmatpush.msra.mxu0 0.0
    %1334 = vmatpush.msra.mxu0 0.0
    %1335 = vmatpush.msra.mxu0 0.0
    %1336 = vmatpush.msra.mxu0 0.0
    %1337 = vmatpush.msra.mxu0 0.0
    %1338 = vmatpush.msra.mxu0 0.0
    %1339 = vmatpush.msra.mxu0 0.0
    %1340 = vmatpush.msra.mxu0 0.0
    %1341 = vmatpush.msra.mxu0 0.0
    %1342 = vmatpush.msra.mxu0 0.0
    %1343 = vmatpush.msra.mxu0 0.0
    %1344 = vmatpush.msra.mxu0 0.0
    %1345 = vmatpush.msra.mxu0 %v1069
    %1346 = vmatpush.msra.mxu0 %v1053
    %1347 = vmatpush.msra.mxu0 %v1037
    %1348 = vmatpush.msra.mxu0 %v1021
    %1349 = vmatmul.f32.gmra.mxu0 %v1111
    %v1350 = vpop.f32.mrf.mxu0
    %v1351 = vadd.f32 %v1089, %v1350
    %1352 = vdwg.mxu0
    %1353 = vmatpush.msra.mxu0 0.0
    %1354 = vmatpush.msra.mxu0 0.0
    %1355 = vmatpush.msra.mxu0 0.0
    %1356 = vmatpush.msra.mxu0 0.0
    %1357 = vmatpush.msra.mxu0 0.0
    %1358 = vmatpush.msra.mxu0 0.0
    %1359 = vmatpush.msra.mxu0 0.0
    %1360 = vmatpush.msra.mxu0 0.0
    %1361 = vmatpush.msra.mxu0 0.0
    %1362 = vmatpush.msra.mxu0 0.0
    %1363 = vmatpush.msra.mxu0 0.0
    %1364 = vmatpush.msra.mxu0 0.0
    %1365 = vmatpush.msra.mxu0 %v1070
    %1366 = vmatpush.msra.mxu0 %v1054
    %1367 = vmatpush.msra.mxu0 %v1038
    %1368 = vmatpush.msra.mxu0 %v1022
    %1369 = vmatmul.f32.gmra.mxu0 %v1111
    %v1370 = vpop.f32.mrf.mxu0
    %v1371 = vadd.f32 %v1090, %v1370
    %1372 = vdwg.mxu0
    %1373 = vmatpush.msra.mxu0 0.0
    %1374 = vmatpush.msra.mxu0 0.0
    %1375 = vmatpush.msra.mxu0 0.0
    %1376 = vmatpush.msra.mxu0 0.0
    %1377 = vmatpush.msra.mxu0 0.0
    %1378 = vmatpush.msra.mxu0 0.0
    %1379 = vmatpush.msra.mxu0 0.0
    %1380 = vmatpush.msra.mxu0 0.0
    %1381 = vmatpush.msra.mxu0 0.0
    %1382 = vmatpush.msra.mxu0 0.0
    %1383 = vmatpush.msra.mxu0 0.0
    %1384 = vmatpush.msra.mxu0 0.0
    %1385 = vmatpush.msra.mxu0 %v1071
    %1386 = vmatpush.msra.mxu0 %v1055
    %1387 = vmatpush.msra.mxu0 %v1039
    %1388 = vmatpush.msra.mxu0 %v1023
    %1389 = vmatmul.f32.gmra.mxu0 %v1111
    %v1390 = vpop.f32.mrf.mxu0
    %v1391 = vadd.f32 %v1091, %v1390
    %1392 = vdwg.mxu0
    %1393 = vmatpush.msra.mxu0 0.0
    %1394 = vmatpush.msra.mxu0 0.0
    %1395 = vmatpush.msra.mxu0 0.0
    %1396 = vmatpush.msra.mxu0 0.0
    %1397 = vmatpush.msra.mxu0 0.0
    %1398 = vmatpush.msra.mxu0 0.0
    %1399 = vmatpush.msra.mxu0 0.0
    %1400 = vmatpush.msra.mxu0 0.0
    %1401 = vmatpush.msra.mxu0 0.0
    %1402 = vmatpush.msra.mxu0 0.0
    %1403 = vmatpush.msra.mxu0 0.0
    %1404 = vmatpush.msra.mxu0 0.0
    %1405 = vmatpush.msra.mxu0 %v1072
    %1406 = vmatpush.msra.mxu0 %v1056
    %1407 = vmatpush.msra.mxu0 %v1040
    %1408 = vmatpush.msra.mxu0 %v1024
    %1409 = vmatmul.f32.gmra.mxu0 %v1111
    %v1410 = vpop.f32.mrf.mxu0
    %v1411 = vadd.f32 %v1092, %v1410
    %1412 = vdwg.mxu0
    %1413 = vmatpush.msra.mxu0 0.0
    %1414 = vmatpush.msra.mxu0 0.0
    %1415 = vmatpush.msra.mxu0 0.0
    %1416 = vmatpush.msra.mxu0 0.0
    %1417 = vmatpush.msra.mxu0 0.0
    %1418 = vmatpush.msra.mxu0 0.0
    %1419 = vmatpush.msra.mxu0 0.0
    %1420 = vmatpush.msra.mxu0 0.0
    %1421 = vmatpush.msra.mxu0 0.0
    %1422 = vmatpush.msra.mxu0 0.0
    %1423 = vmatpush.msra.mxu0 0.0
    %1424 = vmatpush.msra.mxu0 0.0
    %1425 = vmatpush.msra.mxu0 %v1073
    %1426 = vmatpush.msra.mxu0 %v1057
    %1427 = vmatpush.msra.mxu0 %v1041
    %1428 = vmatpush.msra.mxu0 %v1025
    %1429 = vmatmul.f32.gmra.mxu0 %v1111
    %v1430 = vpop.f32.mrf.mxu0
    %v1431 = vadd.f32 %v1093, %v1430
    %1432 = vdwg.mxu0
    %v1433 = vmax.f32 %v1131, 0.0
    %v1434 = vmax.f32 %v1151, 0.0
    %v1435 = vmax.f32 %v1171, 0.0
    %v1436 = vmax.f32 %v1191, 0.0
    %v1437 = vmax.f32 %v1211, 0.0
    %v1438 = vmax.f32 %v1231, 0.0
    %v1439 = vmax.f32 %v1251, 0.0
    %v1440 = vmax.f32 %v1271, 0.0
    %v1441 = vmax.f32 %v1291, 0.0
    %v1442 = vmax.f32 %v1311, 0.0
    %v1443 = vmax.f32 %v1331, 0.0
    %v1444 = vmax.f32 %v1351, 0.0
    %v1445 = vmax.f32 %v1371, 0.0
    %v1446 = vmax.f32 %v1391, 0.0
    %v1447 = vmax.f32 %v1411, 0.0
    %v1448 = vmax.f32 %v1431, 0.0
    %v1449 = vld [vmem:[%s93] sm:$0xff]
    %v1450 = vld [vmem:[%s93 + $0x8] sm:$0xff]
    %v1451 = vld [vmem:[%s93 + $0x10] sm:$0xff]
    %v1452 = vld [vmem:[%s93 + $0x18] sm:$0xff]
    %v1453 = vld [vmem:[%s93 + $0x20] sm:$0xff]
    %v1454 = vld [vmem:[%s93 + $0x28] sm:$0xff]
    %v1455 = vld [vmem:[%s93 + $0x30] sm:$0xff]
    %v1456 = vld [vmem:[%s93 + $0x38] sm:$0xff]
    %v1457 = vld [vmem:[%s93 + $0x40] sm:$0xff]
    %v1458 = vld [vmem:[%s93 + $0x48] sm:$0xff]
    %v1459 = vld [vmem:[%s93 + $0x50] sm:$0xff]
    %v1460 = vld [vmem:[%s93 + $0x58] sm:$0xff]
    %v1461 = vld [vmem:[%s93 + $0x60] sm:$0xff]
    %v1462 = vld [vmem:[%s93 + $0x68] sm:$0xff]
    %v1463 = vld [vmem:[%s93 + $0x70] sm:$0xff]
    %v1464 = vld [vmem:[%s93 + $0x78] sm:$0xff]
    %v1465 = vld [vmem:[%s93 + $0x80] sm:$0xff]
    %v1466 = vld [vmem:[%s93 + $0x88] sm:$0xff]
    %v1467 = vld [vmem:[%s93 + $0x90] sm:$0xff]
    %v1468 = vld [vmem:[%s93 + $0x98] sm:$0xff]
    %v1469 = vld [vmem:[%s93 + $0xa0] sm:$0xff]
    %v1470 = vld [vmem:[%s93 + $0xa8] sm:$0xff]
    %v1471 = vld [vmem:[%s93 + $0xb0] sm:$0xff]
    %v1472 = vld [vmem:[%s93 + $0xb8] sm:$0xff]
    %v1473 = vld [vmem:[%s93 + $0xc0] sm:$0xff]
    %v1474 = vld [vmem:[%s93 + $0xc8] sm:$0xff]
    %v1475 = vld [vmem:[%s93 + $0xd0] sm:$0xff]
    %v1476 = vld [vmem:[%s93 + $0xd8] sm:$0xff]
    %v1477 = vld [vmem:[%s93 + $0xe0] sm:$0xff]
    %v1478 = vld [vmem:[%s93 + $0xe8] sm:$0xff]
    %v1479 = vld [vmem:[%s93 + $0xf0] sm:$0xff]
    %v1480 = vld [vmem:[%s93 + $0xf8] sm:$0xff]
    %v1481 = vld [vmem:[%s93 + $0x100] sm:$0xff]
    %v1482 = vld [vmem:[%s93 + $0x108] sm:$0xff]
    %v1483 = vld [vmem:[%s93 + $0x110] sm:$0xff]
    %v1484 = vld [vmem:[%s93 + $0x118] sm:$0xff]
    %v1485 = vld [vmem:[%s93 + $0x120] sm:$0xff]
    %v1486 = vld [vmem:[%s93 + $0x128] sm:$0xff]
    %v1487 = vld [vmem:[%s93 + $0x130] sm:$0xff]
    %v1488 = vld [vmem:[%s93 + $0x138] sm:$0xff]
    %v1489 = vld [vmem:[%s93 + $0x140] sm:$0xff]
    %v1490 = vld [vmem:[%s93 + $0x148] sm:$0xff]
    %v1491 = vld [vmem:[%s93 + $0x150] sm:$0xff]
    %v1492 = vld [vmem:[%s93 + $0x158] sm:$0xff]
    %v1493 = vld [vmem:[%s93 + $0x160] sm:$0xff]
    %v1494 = vld [vmem:[%s93 + $0x168] sm:$0xff]
    %v1495 = vld [vmem:[%s93 + $0x170] sm:$0xff]
    %v1496 = vld [vmem:[%s93 + $0x178] sm:$0xff]
    %v1497 = vld [vmem:[%s93 + $0x180] sm:$0xff]
    %v1498 = vld [vmem:[%s93 + $0x188] sm:$0xff]
    %v1499 = vld [vmem:[%s93 + $0x190] sm:$0xff]
    %v1500 = vld [vmem:[%s93 + $0x198] sm:$0xff]
    %v1501 = vld [vmem:[%s93 + $0x1a0] sm:$0xff]
    %v1502 = vld [vmem:[%s93 + $0x1a8] sm:$0xff]
    %v1503 = vld [vmem:[%s93 + $0x1b0] sm:$0xff]
    %v1504 = vld [vmem:[%s93 + $0x1b8] sm:$0xff]
    %v1505 = vld [vmem:[%s93 + $0x1c0] sm:$0xff]
    %v1506 = vld [vmem:[%s93 + $0x1c8] sm:$0xff]
    %v1507 = vld [vmem:[%s93 + $0x1d0] sm:$0xff]
    %v1508 = vld [vmem:[%s93 + $0x1d8] sm:$0xff]
    %v1509 = vld [vmem:[%s93 + $0x1e0] sm:$0xff]
    %v1510 = vld [vmem:[%s93 + $0x1e8] sm:$0xff]
    %v1511 = vld [vmem:[%s93 + $0x1f0] sm:$0xff]
    %v1512 = vld [vmem:[%s93 + $0x1f8] sm:$0xff]
    %v1513 = vld [vmem:[%s93 + $0x200] sm:$0xff]
    %v1514 = vld [vmem:[%s93 + $0x208] sm:$0xff]
    %v1515 = vld [vmem:[%s93 + $0x210] sm:$0xff]
    %v1516 = vld [vmem:[%s93 + $0x218] sm:$0xff]
    %v1517 = vld [vmem:[%s93 + $0x220] sm:$0xff]
    %v1518 = vld [vmem:[%s93 + $0x228] sm:$0xff]
    %v1519 = vld [vmem:[%s93 + $0x230] sm:$0xff]
    %v1520 = vld [vmem:[%s93 + $0x238] sm:$0xff]
    %v1521 = vld [vmem:[%s93 + $0x240] sm:$0xff]
    %v1522 = vld [vmem:[%s93 + $0x248] sm:$0xff]
    %v1523 = vld [vmem:[%s93 + $0x250] sm:$0xff]
    %v1524 = vld [vmem:[%s93 + $0x258] sm:$0xff]
    %v1525 = vld [vmem:[%s93 + $0x260] sm:$0xff]
    %v1526 = vld [vmem:[%s93 + $0x268] sm:$0xff]
    %v1527 = vld [vmem:[%s93 + $0x270] sm:$0xff]
    %v1528 = vld [vmem:[%s93 + $0x278] sm:$0xff]
    %v1529 = vld [vmem:[%s93 + $0x280] sm:$0xff]
    %v1530 = vld [vmem:[%s93 + $0x288] sm:$0xff]
    %v1531 = vld [vmem:[%s93 + $0x290] sm:$0xff]
    %v1532 = vld [vmem:[%s93 + $0x298] sm:$0xff]
    %v1533 = vld [vmem:[%s93 + $0x2a0] sm:$0xff]
    %v1534 = vld [vmem:[%s93 + $0x2a8] sm:$0xff]
    %v1535 = vld [vmem:[%s93 + $0x2b0] sm:$0xff]
    %v1536 = vld [vmem:[%s93 + $0x2b8] sm:$0xff]
    %v1537 = vld [vmem:[%s93 + $0x2c0] sm:$0xff]
    %v1538 = vld [vmem:[%s93 + $0x2c8] sm:$0xff]
    %v1539 = vld [vmem:[%s93 + $0x2d0] sm:$0xff]
    %v1540 = vld [vmem:[%s93 + $0x2d8] sm:$0xff]
    %v1541 = vld [vmem:[%s93 + $0x2e0] sm:$0xff]
    %v1542 = vld [vmem:[%s93 + $0x2e8] sm:$0xff]
    %v1543 = vld [vmem:[%s93 + $0x2f0] sm:$0xff]
    %v1544 = vld [vmem:[%s93 + $0x2f8] sm:$0xff]
    %v1545 = vld [vmem:[%s93 + $0x300] sm:$0xff]
    %v1546 = vld [vmem:[%s93 + $0x308] sm:$0xff]
    %v1547 = vld [vmem:[%s93 + $0x310] sm:$0xff]
    %v1548 = vld [vmem:[%s93 + $0x318] sm:$0xff]
    %v1549 = vld [vmem:[%s93 + $0x320] sm:$0xff]
    %v1550 = vld [vmem:[%s93 + $0x328] sm:$0xff]
    %v1551 = vld [vmem:[%s93 + $0x330] sm:$0xff]
    %v1552 = vld [vmem:[%s93 + $0x338] sm:$0xff]
    %v1553 = vld [vmem:[%s93 + $0x340] sm:$0xff]
    %v1554 = vld [vmem:[%s93 + $0x348] sm:$0xff]
    %v1555 = vld [vmem:[%s93 + $0x350] sm:$0xff]
    %v1556 = vld [vmem:[%s93 + $0x358] sm:$0xff]
    %v1557 = vld [vmem:[%s93 + $0x360] sm:$0xff]
    %v1558 = vld [vmem:[%s93 + $0x368] sm:$0xff]
    %v1559 = vld [vmem:[%s93 + $0x370] sm:$0xff]
    %v1560 = vld [vmem:[%s93 + $0x378] sm:$0xff]
    %v1561 = vld [vmem:[%s93 + $0x380] sm:$0xff]
    %v1562 = vld [vmem:[%s93 + $0x388] sm:$0xff]
    %v1563 = vld [vmem:[%s93 + $0x390] sm:$0xff]
    %v1564 = vld [vmem:[%s93 + $0x398] sm:$0xff]
    %v1565 = vld [vmem:[%s93 + $0x3a0] sm:$0xff]
    %v1566 = vld [vmem:[%s93 + $0x3a8] sm:$0xff]
    %v1567 = vld [vmem:[%s93 + $0x3b0] sm:$0xff]
    %v1568 = vld [vmem:[%s93 + $0x3b8] sm:$0xff]
    %v1569 = vld [vmem:[%s93 + $0x3c0] sm:$0xff]
    %v1570 = vld [vmem:[%s93 + $0x3c8] sm:$0xff]
    %v1571 = vld [vmem:[%s93 + $0x3d0] sm:$0xff]
    %v1572 = vld [vmem:[%s93 + $0x3d8] sm:$0xff]
    %v1573 = vld [vmem:[%s93 + $0x3e0] sm:$0xff]
    %v1574 = vld [vmem:[%s93 + $0x3e8] sm:$0xff]
    %v1575 = vld [vmem:[%s93 + $0x3f0] sm:$0xff]
    %v1576 = vld [vmem:[%s93 + $0x3f8] sm:$0xff]
    %v1577 = vld [vmem:[%s93 + $0x400] sm:$0xff]
    %v1578 = vld [vmem:[%s93 + $0x408] sm:$0xff]
    %v1579 = vld [vmem:[%s93 + $0x410] sm:$0xff]
    %v1580 = vld [vmem:[%s93 + $0x418] sm:$0xff]
    %v1581 = vld [vmem:[%s93 + $0x420] sm:$0xff]
    %v1582 = vld [vmem:[%s93 + $0x428] sm:$0xff]
    %v1583 = vld [vmem:[%s93 + $0x430] sm:$0xff]
    %v1584 = vld [vmem:[%s93 + $0x438] sm:$0xff]
    %v1585 = vld [vmem:[%s93 + $0x440] sm:$0xff]
    %v1586 = vld [vmem:[%s93 + $0x448] sm:$0xff]
    %v1587 = vld [vmem:[%s93 + $0x450] sm:$0xff]
    %v1588 = vld [vmem:[%s93 + $0x458] sm:$0xff]
    %v1589 = vld [vmem:[%s93 + $0x460] sm:$0xff]
    %v1590 = vld [vmem:[%s93 + $0x468] sm:$0xff]
    %v1591 = vld [vmem:[%s93 + $0x470] sm:$0xff]
    %v1592 = vld [vmem:[%s93 + $0x478] sm:$0xff]
    %v1593 = vld [vmem:[%s93 + $0x480] sm:$0xff]
    %v1594 = vld [vmem:[%s93 + $0x488] sm:$0xff]
    %v1595 = vld [vmem:[%s93 + $0x490] sm:$0xff]
    %v1596 = vld [vmem:[%s93 + $0x498] sm:$0xff]
    %v1597 = vld [vmem:[%s93 + $0x4a0] sm:$0xff]
    %v1598 = vld [vmem:[%s93 + $0x4a8] sm:$0xff]
    %v1599 = vld [vmem:[%s93 + $0x4b0] sm:$0xff]
    %v1600 = vld [vmem:[%s93 + $0x4b8] sm:$0xff]
    %v1601 = vld [vmem:[%s93 + $0x4c0] sm:$0xff]
    %v1602 = vld [vmem:[%s93 + $0x4c8] sm:$0xff]
    %v1603 = vld [vmem:[%s93 + $0x4d0] sm:$0xff]
    %v1604 = vld [vmem:[%s93 + $0x4d8] sm:$0xff]
    %v1605 = vld [vmem:[%s93 + $0x4e0] sm:$0xff]
    %v1606 = vld [vmem:[%s93 + $0x4e8] sm:$0xff]
    %v1607 = vld [vmem:[%s93 + $0x4f0] sm:$0xff]
    %v1608 = vld [vmem:[%s93 + $0x4f8] sm:$0xff]
    %v1609 = vld [vmem:[%s93 + $0x500] sm:$0xff]
    %v1610 = vld [vmem:[%s93 + $0x508] sm:$0xff]
    %v1611 = vld [vmem:[%s93 + $0x510] sm:$0xff]
    %v1612 = vld [vmem:[%s93 + $0x518] sm:$0xff]
    %v1613 = vld [vmem:[%s93 + $0x520] sm:$0xff]
    %v1614 = vld [vmem:[%s93 + $0x528] sm:$0xff]
    %v1615 = vld [vmem:[%s93 + $0x530] sm:$0xff]
    %v1616 = vld [vmem:[%s93 + $0x538] sm:$0xff]
    %v1617 = vld [vmem:[%s93 + $0x540] sm:$0xff]
    %v1618 = vld [vmem:[%s93 + $0x548] sm:$0xff]
    %v1619 = vld [vmem:[%s93 + $0x550] sm:$0xff]
    %v1620 = vld [vmem:[%s93 + $0x558] sm:$0xff]
    %v1621 = vld [vmem:[%s93 + $0x560] sm:$0xff]
    %v1622 = vld [vmem:[%s93 + $0x568] sm:$0xff]
    %v1623 = vld [vmem:[%s93 + $0x570] sm:$0xff]
    %v1624 = vld [vmem:[%s93 + $0x578] sm:$0xff]
    %v1625 = vld [vmem:[%s93 + $0x580] sm:$0xff]
    %v1626 = vld [vmem:[%s93 + $0x588] sm:$0xff]
    %v1627 = vld [vmem:[%s93 + $0x590] sm:$0xff]
    %v1628 = vld [vmem:[%s93 + $0x598] sm:$0xff]
    %v1629 = vld [vmem:[%s93 + $0x5a0] sm:$0xff]
    %v1630 = vld [vmem:[%s93 + $0x5a8] sm:$0xff]
    %v1631 = vld [vmem:[%s93 + $0x5b0] sm:$0xff]
    %v1632 = vld [vmem:[%s93 + $0x5b8] sm:$0xff]
    %v1633 = vld [vmem:[%s93 + $0x5c0] sm:$0xff]
    %v1634 = vld [vmem:[%s93 + $0x5c8] sm:$0xff]
    %v1635 = vld [vmem:[%s93 + $0x5d0] sm:$0xff]
    %v1636 = vld [vmem:[%s93 + $0x5d8] sm:$0xff]
    %v1637 = vld [vmem:[%s93 + $0x5e0] sm:$0xff]
    %v1638 = vld [vmem:[%s93 + $0x5e8] sm:$0xff]
    %v1639 = vld [vmem:[%s93 + $0x5f0] sm:$0xff]
    %v1640 = vld [vmem:[%s93 + $0x5f8] sm:$0xff]
    %v1641 = vld [vmem:[%s93 + $0x600] sm:$0xff]
    %v1642 = vld [vmem:[%s93 + $0x608] sm:$0xff]
    %v1643 = vld [vmem:[%s93 + $0x610] sm:$0xff]
    %v1644 = vld [vmem:[%s93 + $0x618] sm:$0xff]
    %v1645 = vld [vmem:[%s93 + $0x620] sm:$0xff]
    %v1646 = vld [vmem:[%s93 + $0x628] sm:$0xff]
    %v1647 = vld [vmem:[%s93 + $0x630] sm:$0xff]
    %v1648 = vld [vmem:[%s93 + $0x638] sm:$0xff]
    %v1649 = vld [vmem:[%s93 + $0x640] sm:$0xff]
    %v1650 = vld [vmem:[%s93 + $0x648] sm:$0xff]
    %v1651 = vld [vmem:[%s93 + $0x650] sm:$0xff]
    %v1652 = vld [vmem:[%s93 + $0x658] sm:$0xff]
    %v1653 = vld [vmem:[%s93 + $0x660] sm:$0xff]
    %v1654 = vld [vmem:[%s93 + $0x668] sm:$0xff]
    %v1655 = vld [vmem:[%s93 + $0x670] sm:$0xff]
    %v1656 = vld [vmem:[%s93 + $0x678] sm:$0xff]
    %v1657 = vld [vmem:[%s93 + $0x680] sm:$0xff]
    %v1658 = vld [vmem:[%s93 + $0x688] sm:$0xff]
    %v1659 = vld [vmem:[%s93 + $0x690] sm:$0xff]
    %v1660 = vld [vmem:[%s93 + $0x698] sm:$0xff]
    %v1661 = vld [vmem:[%s93 + $0x6a0] sm:$0xff]
    %v1662 = vld [vmem:[%s93 + $0x6a8] sm:$0xff]
    %v1663 = vld [vmem:[%s93 + $0x6b0] sm:$0xff]
    %v1664 = vld [vmem:[%s93 + $0x6b8] sm:$0xff]
    %v1665 = vld [vmem:[%s93 + $0x6c0] sm:$0xff]
    %v1666 = vld [vmem:[%s93 + $0x6c8] sm:$0xff]
    %v1667 = vld [vmem:[%s93 + $0x6d0] sm:$0xff]
    %v1668 = vld [vmem:[%s93 + $0x6d8] sm:$0xff]
    %v1669 = vld [vmem:[%s93 + $0x6e0] sm:$0xff]
    %v1670 = vld [vmem:[%s93 + $0x6e8] sm:$0xff]
    %v1671 = vld [vmem:[%s93 + $0x6f0] sm:$0xff]
    %v1672 = vld [vmem:[%s93 + $0x6f8] sm:$0xff]
    %v1673 = vld [vmem:[%s93 + $0x700] sm:$0xff]
    %v1674 = vld [vmem:[%s93 + $0x708] sm:$0xff]
    %v1675 = vld [vmem:[%s93 + $0x710] sm:$0xff]
    %v1676 = vld [vmem:[%s93 + $0x718] sm:$0xff]
    %v1677 = vld [vmem:[%s93 + $0x720] sm:$0xff]
    %v1678 = vld [vmem:[%s93 + $0x728] sm:$0xff]
    %v1679 = vld [vmem:[%s93 + $0x730] sm:$0xff]
    %v1680 = vld [vmem:[%s93 + $0x738] sm:$0xff]
    %v1681 = vld [vmem:[%s93 + $0x740] sm:$0xff]
    %v1682 = vld [vmem:[%s93 + $0x748] sm:$0xff]
    %v1683 = vld [vmem:[%s93 + $0x750] sm:$0xff]
    %v1684 = vld [vmem:[%s93 + $0x758] sm:$0xff]
    %v1685 = vld [vmem:[%s93 + $0x760] sm:$0xff]
    %v1686 = vld [vmem:[%s93 + $0x768] sm:$0xff]
    %v1687 = vld [vmem:[%s93 + $0x770] sm:$0xff]
    %v1688 = vld [vmem:[%s93 + $0x778] sm:$0xff]
    %v1689 = vld [vmem:[%s93 + $0x780] sm:$0xff]
    %v1690 = vld [vmem:[%s93 + $0x788] sm:$0xff]
    %v1691 = vld [vmem:[%s93 + $0x790] sm:$0xff]
    %v1692 = vld [vmem:[%s93 + $0x798] sm:$0xff]
    %v1693 = vld [vmem:[%s93 + $0x7a0] sm:$0xff]
    %v1694 = vld [vmem:[%s93 + $0x7a8] sm:$0xff]
    %v1695 = vld [vmem:[%s93 + $0x7b0] sm:$0xff]
    %v1696 = vld [vmem:[%s93 + $0x7b8] sm:$0xff]
    %v1697 = vld [vmem:[%s93 + $0x7c0] sm:$0xff]
    %v1698 = vld [vmem:[%s93 + $0x7c8] sm:$0xff]
    %v1699 = vld [vmem:[%s93 + $0x7d0] sm:$0xff]
    %v1700 = vld [vmem:[%s93 + $0x7d8] sm:$0xff]
    %v1701 = vld [vmem:[%s93 + $0x7e0] sm:$0xff]
    %v1702 = vld [vmem:[%s93 + $0x7e8] sm:$0xff]
    %v1703 = vld [vmem:[%s93 + $0x7f0] sm:$0xff]
    %v1704 = vld [vmem:[%s93 + $0x7f8] sm:$0xff]
    %v1705 = vld [vmem:[#allocation22] sm:$0x1]
    %v1707 = vperm.slane %v1705, 0
    %1709 = vmatpush.msra.mxu0 %v1464
    %1710 = vmatpush.msra.mxu0 %v1463
    %1711 = vmatpush.msra.mxu0 %v1462
    %1712 = vmatpush.msra.mxu0 %v1461
    %1713 = vmatpush.msra.mxu0 %v1460
    %1714 = vmatpush.msra.mxu0 %v1459
    %1715 = vmatpush.msra.mxu0 %v1458
    %1716 = vmatpush.msra.mxu0 %v1457
    %1717 = vmatpush.msra.mxu0 %v1456
    %1718 = vmatpush.msra.mxu0 %v1455
    %1719 = vmatpush.msra.mxu0 %v1454
    %1720 = vmatpush.msra.mxu0 %v1453
    %1721 = vmatpush.msra.mxu0 %v1452
    %1722 = vmatpush.msra.mxu0 %v1451
    %1723 = vmatpush.msra.mxu0 %v1450
    %1724 = vmatpush.msra.mxu0 %v1449
    %1725 = vmatmul.f32.gmra.mxu0 %v1433
    %v1726 = vpop.f32.mrf.mxu0
    %v1727 = vadd.f32 %v1707, %v1726
    %1728 = vdwg.mxu0
    %1729 = vmatpush.msra.mxu0 %v1480
    %1730 = vmatpush.msra.mxu0 %v1479
    %1731 = vmatpush.msra.mxu0 %v1478
    %1732 = vmatpush.msra.mxu0 %v1477
    %1733 = vmatpush.msra.mxu0 %v1476
    %1734 = vmatpush.msra.mxu0 %v1475
    %1735 = vmatpush.msra.mxu0 %v1474
    %1736 = vmatpush.msra.mxu0 %v1473
    %1737 = vmatpush.msra.mxu0 %v1472
    %1738 = vmatpush.msra.mxu0 %v1471
    %1739 = vmatpush.msra.mxu0 %v1470
    %1740 = vmatpush.msra.mxu0 %v1469
    %1741 = vmatpush.msra.mxu0 %v1468
    %1742 = vmatpush.msra.mxu0 %v1467
    %1743 = vmatpush.msra.mxu0 %v1466
    %1744 = vmatpush.msra.mxu0 %v1465
    %1745 = vmatmul.f32.gmra.mxu0 %v1434
    %v1746 = vpop.f32.mrf.mxu0
    %v1747 = vadd.f32 %v1727, %v1746
    %1748 = vdwg.mxu0
    %1749 = vmatpush.msra.mxu0 %v1496
    %1750 = vmatpush.msra.mxu0 %v1495
    %1751 = vmatpush.msra.mxu0 %v1494
    %1752 = vmatpush.msra.mxu0 %v1493
    %1753 = vmatpush.msra.mxu0 %v1492
    %1754 = vmatpush.msra.mxu0 %v1491
    %1755 = vmatpush.msra.mxu0 %v1490
    %1756 = vmatpush.msra.mxu0 %v1489
    %1757 = vmatpush.msra.mxu0 %v1488
    %1758 = vmatpush.msra.mxu0 %v1487
    %1759 = vmatpush.msra.mxu0 %v1486
    %1760 = vmatpush.msra.mxu0 %v1485
    %1761 = vmatpush.msra.mxu0 %v1484
    %1762 = vmatpush.msra.mxu0 %v1483
    %1763 = vmatpush.msra.mxu0 %v1482
    %1764 = vmatpush.msra.mxu0 %v1481
    %1765 = vmatmul.f32.gmra.mxu0 %v1435
    %v1766 = vpop.f32.mrf.mxu0
    %v1767 = vadd.f32 %v1747, %v1766
    %1768 = vdwg.mxu0
    %1769 = vmatpush.msra.mxu0 %v1512
    %1770 = vmatpush.msra.mxu0 %v1511
    %1771 = vmatpush.msra.mxu0 %v1510
    %1772 = vmatpush.msra.mxu0 %v1509
    %1773 = vmatpush.msra.mxu0 %v1508
    %1774 = vmatpush.msra.mxu0 %v1507
    %1775 = vmatpush.msra.mxu0 %v1506
    %1776 = vmatpush.msra.mxu0 %v1505
    %1777 = vmatpush.msra.mxu0 %v1504
    %1778 = vmatpush.msra.mxu0 %v1503
    %1779 = vmatpush.msra.mxu0 %v1502
    %1780 = vmatpush.msra.mxu0 %v1501
    %1781 = vmatpush.msra.mxu0 %v1500
    %1782 = vmatpush.msra.mxu0 %v1499
    %1783 = vmatpush.msra.mxu0 %v1498
    %1784 = vmatpush.msra.mxu0 %v1497
    %1785 = vmatmul.f32.gmra.mxu0 %v1436
    %v1786 = vpop.f32.mrf.mxu0
    %v1787 = vadd.f32 %v1767, %v1786
    %1788 = vdwg.mxu0
    %1789 = vmatpush.msra.mxu0 %v1528
    %1790 = vmatpush.msra.mxu0 %v1527
    %1791 = vmatpush.msra.mxu0 %v1526
    %1792 = vmatpush.msra.mxu0 %v1525
    %1793 = vmatpush.msra.mxu0 %v1524
    %1794 = vmatpush.msra.mxu0 %v1523
    %1795 = vmatpush.msra.mxu0 %v1522
    %1796 = vmatpush.msra.mxu0 %v1521
    %1797 = vmatpush.msra.mxu0 %v1520
    %1798 = vmatpush.msra.mxu0 %v1519
    %1799 = vmatpush.msra.mxu0 %v1518
    %1800 = vmatpush.msra.mxu0 %v1517
    %1801 = vmatpush.msra.mxu0 %v1516
    %1802 = vmatpush.msra.mxu0 %v1515
    %1803 = vmatpush.msra.mxu0 %v1514
    %1804 = vmatpush.msra.mxu0 %v1513
    %1805 = vmatmul.f32.gmra.mxu0 %v1437
    %v1806 = vpop.f32.mrf.mxu0
    %v1807 = vadd.f32 %v1787, %v1806
    %1808 = vdwg.mxu0
    %1809 = vmatpush.msra.mxu0 %v1544
    %1810 = vmatpush.msra.mxu0 %v1543
    %1811 = vmatpush.msra.mxu0 %v1542
    %1812 = vmatpush.msra.mxu0 %v1541
    %1813 = vmatpush.msra.mxu0 %v1540
    %1814 = vmatpush.msra.mxu0 %v1539
    %1815 = vmatpush.msra.mxu0 %v1538
    %1816 = vmatpush.msra.mxu0 %v1537
    %1817 = vmatpush.msra.mxu0 %v1536
    %1818 = vmatpush.msra.mxu0 %v1535
    %1819 = vmatpush.msra.mxu0 %v1534
    %1820 = vmatpush.msra.mxu0 %v1533
    %1821 = vmatpush.msra.mxu0 %v1532
    %1822 = vmatpush.msra.mxu0 %v1531
    %1823 = vmatpush.msra.mxu0 %v1530
    %1824 = vmatpush.msra.mxu0 %v1529
    %1825 = vmatmul.f32.gmra.mxu0 %v1438
    %v1826 = vpop.f32.mrf.mxu0
    %v1827 = vadd.f32 %v1807, %v1826
    %1828 = vdwg.mxu0
    %1829 = vmatpush.msra.mxu0 %v1560
    %1830 = vmatpush.msra.mxu0 %v1559
    %1831 = vmatpush.msra.mxu0 %v1558
    %1832 = vmatpush.msra.mxu0 %v1557
    %1833 = vmatpush.msra.mxu0 %v1556
    %1834 = vmatpush.msra.mxu0 %v1555
    %1835 = vmatpush.msra.mxu0 %v1554
    %1836 = vmatpush.msra.mxu0 %v1553
    %1837 = vmatpush.msra.mxu0 %v1552
    %1838 = vmatpush.msra.mxu0 %v1551
    %1839 = vmatpush.msra.mxu0 %v1550
    %1840 = vmatpush.msra.mxu0 %v1549
    %1841 = vmatpush.msra.mxu0 %v1548
    %1842 = vmatpush.msra.mxu0 %v1547
    %1843 = vmatpush.msra.mxu0 %v1546
    %1844 = vmatpush.msra.mxu0 %v1545
    %1845 = vmatmul.f32.gmra.mxu0 %v1439
    %v1846 = vpop.f32.mrf.mxu0
    %v1847 = vadd.f32 %v1827, %v1846
    %1848 = vdwg.mxu0
    %1849 = vmatpush.msra.mxu0 %v1576
    %1850 = vmatpush.msra.mxu0 %v1575
    %1851 = vmatpush.msra.mxu0 %v1574
    %1852 = vmatpush.msra.mxu0 %v1573
    %1853 = vmatpush.msra.mxu0 %v1572
    %1854 = vmatpush.msra.mxu0 %v1571
    %1855 = vmatpush.msra.mxu0 %v1570
    %1856 = vmatpush.msra.mxu0 %v1569
    %1857 = vmatpush.msra.mxu0 %v1568
    %1858 = vmatpush.msra.mxu0 %v1567
    %1859 = vmatpush.msra.mxu0 %v1566
    %1860 = vmatpush.msra.mxu0 %v1565
    %1861 = vmatpush.msra.mxu0 %v1564
    %1862 = vmatpush.msra.mxu0 %v1563
    %1863 = vmatpush.msra.mxu0 %v1562
    %1864 = vmatpush.msra.mxu0 %v1561
    %1865 = vmatmul.f32.gmra.mxu0 %v1440
    %v1866 = vpop.f32.mrf.mxu0
    %v1867 = vadd.f32 %v1847, %v1866
    %1868 = vdwg.mxu0
    %1869 = vmatpush.msra.mxu0 %v1592
    %1870 = vmatpush.msra.mxu0 %v1591
    %1871 = vmatpush.msra.mxu0 %v1590
    %1872 = vmatpush.msra.mxu0 %v1589
    %1873 = vmatpush.msra.mxu0 %v1588
    %1874 = vmatpush.msra.mxu0 %v1587
    %1875 = vmatpush.msra.mxu0 %v1586
    %1876 = vmatpush.msra.mxu0 %v1585
    %1877 = vmatpush.msra.mxu0 %v1584
    %1878 = vmatpush.msra.mxu0 %v1583
    %1879 = vmatpush.msra.mxu0 %v1582
    %1880 = vmatpush.msra.mxu0 %v1581
    %1881 = vmatpush.msra.mxu0 %v1580
    %1882 = vmatpush.msra.mxu0 %v1579
    %1883 = vmatpush.msra.mxu0 %v1578
    %1884 = vmatpush.msra.mxu0 %v1577
    %1885 = vmatmul.f32.gmra.mxu0 %v1441
    %v1886 = vpop.f32.mrf.mxu0
    %v1887 = vadd.f32 %v1867, %v1886
    %1888 = vdwg.mxu0
    %1889 = vmatpush.msra.mxu0 %v1608
    %1890 = vmatpush.msra.mxu0 %v1607
    %1891 = vmatpush.msra.mxu0 %v1606
    %1892 = vmatpush.msra.mxu0 %v1605
    %1893 = vmatpush.msra.mxu0 %v1604
    %1894 = vmatpush.msra.mxu0 %v1603
    %1895 = vmatpush.msra.mxu0 %v1602
    %1896 = vmatpush.msra.mxu0 %v1601
    %1897 = vmatpush.msra.mxu0 %v1600
    %1898 = vmatpush.msra.mxu0 %v1599
    %1899 = vmatpush.msra.mxu0 %v1598
    %1900 = vmatpush.msra.mxu0 %v1597
    %1901 = vmatpush.msra.mxu0 %v1596
    %1902 = vmatpush.msra.mxu0 %v1595
    %1903 = vmatpush.msra.mxu0 %v1594
    %1904 = vmatpush.msra.mxu0 %v1593
    %1905 = vmatmul.f32.gmra.mxu0 %v1442
    %v1906 = vpop.f32.mrf.mxu0
    %v1907 = vadd.f32 %v1887, %v1906
    %1908 = vdwg.mxu0
    %1909 = vmatpush.msra.mxu0 %v1624
    %1910 = vmatpush.msra.mxu0 %v1623
    %1911 = vmatpush.msra.mxu0 %v1622
    %1912 = vmatpush.msra.mxu0 %v1621
    %1913 = vmatpush.msra.mxu0 %v1620
    %1914 = vmatpush.msra.mxu0 %v1619
    %1915 = vmatpush.msra.mxu0 %v1618
    %1916 = vmatpush.msra.mxu0 %v1617
    %1917 = vmatpush.msra.mxu0 %v1616
    %1918 = vmatpush.msra.mxu0 %v1615
    %1919 = vmatpush.msra.mxu0 %v1614
    %1920 = vmatpush.msra.mxu0 %v1613
    %1921 = vmatpush.msra.mxu0 %v1612
    %1922 = vmatpush.msra.mxu0 %v1611
    %1923 = vmatpush.msra.mxu0 %v1610
    %1924 = vmatpush.msra.mxu0 %v1609
    %1925 = vmatmul.f32.gmra.mxu0 %v1443
    %v1926 = vpop.f32.mrf.mxu0
    %v1927 = vadd.f32 %v1907, %v1926
    %1928 = vdwg.mxu0
    %1929 = vmatpush.msra.mxu0 %v1640
    %1930 = vmatpush.msra.mxu0 %v1639
    %1931 = vmatpush.msra.mxu0 %v1638
    %1932 = vmatpush.msra.mxu0 %v1637
    %1933 = vmatpush.msra.mxu0 %v1636
    %1934 = vmatpush.msra.mxu0 %v1635
    %1935 = vmatpush.msra.mxu0 %v1634
    %1936 = vmatpush.msra.mxu0 %v1633
    %1937 = vmatpush.msra.mxu0 %v1632
    %1938 = vmatpush.msra.mxu0 %v1631
    %1939 = vmatpush.msra.mxu0 %v1630
    %1940 = vmatpush.msra.mxu0 %v1629
    %1941 = vmatpush.msra.mxu0 %v1628
    %1942 = vmatpush.msra.mxu0 %v1627
    %1943 = vmatpush.msra.mxu0 %v1626
    %1944 = vmatpush.msra.mxu0 %v1625
    %1945 = vmatmul.f32.gmra.mxu0 %v1444
    %v1946 = vpop.f32.mrf.mxu0
    %v1947 = vadd.f32 %v1927, %v1946
    %1948 = vdwg.mxu0
    %1949 = vmatpush.msra.mxu0 %v1656
    %1950 = vmatpush.msra.mxu0 %v1655
    %1951 = vmatpush.msra.mxu0 %v1654
    %1952 = vmatpush.msra.mxu0 %v1653
    %1953 = vmatpush.msra.mxu0 %v1652
    %1954 = vmatpush.msra.mxu0 %v1651
    %1955 = vmatpush.msra.mxu0 %v1650
    %1956 = vmatpush.msra.mxu0 %v1649
    %1957 = vmatpush.msra.mxu0 %v1648
    %1958 = vmatpush.msra.mxu0 %v1647
    %1959 = vmatpush.msra.mxu0 %v1646
    %1960 = vmatpush.msra.mxu0 %v1645
    %1961 = vmatpush.msra.mxu0 %v1644
    %1962 = vmatpush.msra.mxu0 %v1643
    %1963 = vmatpush.msra.mxu0 %v1642
    %1964 = vmatpush.msra.mxu0 %v1641
    %1965 = vmatmul.f32.gmra.mxu0 %v1445
    %v1966 = vpop.f32.mrf.mxu0
    %v1967 = vadd.f32 %v1947, %v1966
    %1968 = vdwg.mxu0
    %1969 = vmatpush.msra.mxu0 %v1672
    %1970 = vmatpush.msra.mxu0 %v1671
    %1971 = vmatpush.msra.mxu0 %v1670
    %1972 = vmatpush.msra.mxu0 %v1669
    %1973 = vmatpush.msra.mxu0 %v1668
    %1974 = vmatpush.msra.mxu0 %v1667
    %1975 = vmatpush.msra.mxu0 %v1666
    %1976 = vmatpush.msra.mxu0 %v1665
    %1977 = vmatpush.msra.mxu0 %v1664
    %1978 = vmatpush.msra.mxu0 %v1663
    %1979 = vmatpush.msra.mxu0 %v1662
    %1980 = vmatpush.msra.mxu0 %v1661
    %1981 = vmatpush.msra.mxu0 %v1660
    %1982 = vmatpush.msra.mxu0 %v1659
    %1983 = vmatpush.msra.mxu0 %v1658
    %1984 = vmatpush.msra.mxu0 %v1657
    %1985 = vmatmul.f32.gmra.mxu0 %v1446
    %v1986 = vpop.f32.mrf.mxu0
    %v1987 = vadd.f32 %v1967, %v1986
    %1988 = vdwg.mxu0
    %1989 = vmatpush.msra.mxu0 %v1688
    %1990 = vmatpush.msra.mxu0 %v1687
    %1991 = vmatpush.msra.mxu0 %v1686
    %1992 = vmatpush.msra.mxu0 %v1685
    %1993 = vmatpush.msra.mxu0 %v1684
    %1994 = vmatpush.msra.mxu0 %v1683
    %1995 = vmatpush.msra.mxu0 %v1682
    %1996 = vmatpush.msra.mxu0 %v1681
    %1997 = vmatpush.msra.mxu0 %v1680
    %1998 = vmatpush.msra.mxu0 %v1679
    %1999 = vmatpush.msra.mxu0 %v1678
    %2000 = vmatpush.msra.mxu0 %v1677
    %2001 = vmatpush.msra.mxu0 %v1676
    %2002 = vmatpush.msra.mxu0 %v1675
    %2003 = vmatpush.msra.mxu0 %v1674
    %2004 = vmatpush.msra.mxu0 %v1673
    %2005 = vmatmul.f32.gmra.mxu0 %v1447
    %v2006 = vpop.f32.mrf.mxu0
    %v2007 = vadd.f32 %v1987, %v2006
    %2008 = vdwg.mxu0
    %2009 = vmatpush.msra.mxu0 %v1704
    %2010 = vmatpush.msra.mxu0 %v1703
    %2011 = vmatpush.msra.mxu0 %v1702
    %2012 = vmatpush.msra.mxu0 %v1701
    %2013 = vmatpush.msra.mxu0 %v1700
    %2014 = vmatpush.msra.mxu0 %v1699
    %2015 = vmatpush.msra.mxu0 %v1698
    %2016 = vmatpush.msra.mxu0 %v1697
    %2017 = vmatpush.msra.mxu0 %v1696
    %2018 = vmatpush.msra.mxu0 %v1695
    %2019 = vmatpush.msra.mxu0 %v1694
    %2020 = vmatpush.msra.mxu0 %v1693
    %2021 = vmatpush.msra.mxu0 %v1692
    %2022 = vmatpush.msra.mxu0 %v1691
    %2023 = vmatpush.msra.mxu0 %v1690
    %2024 = vmatpush.msra.mxu0 %v1689
    %2025 = vmatmul.f32.gmra.mxu0 %v1448
    %v2026 = vpop.f32.mrf.mxu0
    %v2027 = vadd.f32 %v2007, %v2026
    %2028 = vdwg.mxu0
    %v2029 = vadd.f32 %v1009, %v2027
    %v2030 = vsel %vm726, %v2029, 0.0
    %2031 = vadd.xlane.f32.xlu0 %v2030
    %v2032 = vpop.xlane.xlu0 %2031
    %v2033 = vmul.f32 %v2032, %v980
    %v2034 = vsub.f32 %v2029, %v2033
    %v2035 = vmul.f32 %v2034, %v2034
    %v2036 = vsel %vm726, %v2035, 0.0
    %2037 = vadd.xlane.f32.xlu0 %v2036
    %v2038 = vpop.xlane.xlu0 %2037
    %v2039 = vmul.f32 %v2038, %v980
    %v2040 = vadd.f32 %v2039, 1e-05
    %v2041 = vrsqrt.pop %v2040
    %v2042 = vmul.f32 %v2041, %v2040
    %v2043 = vmul.f32 %v2042, %v2041
    %v2044 = vmul.f32 0.5, %v2043
    %v2045 = vsub.f32 1.5, %v2044
    %v2046 = vmul.f32 %v2041, %v2045
    %vm2047 = vweird.f32 %v2040
    %vm2048 = vweird.f32 %v2041
    %vm2049 = vmor %vm2047, %vm2048
    %v2050 = vsel %vm2049, %v2041, %v2046
    %v2051 = vmul.f32 %v2034, %v2050
    %v2052 = vld [vmem:[#allocation28] sm:$0x1]
    %v2054 = vperm.slane %v2052, 0
    %v2056 = vmul.f32 %v2051, %v2054
    %v2057 = vld [vmem:[#allocation27] sm:$0x1]
    %v2059 = vperm.slane %v2057, 0
    %v2061 = vadd.f32 %v2056, %v2059
    %v2062 = vld [vmem:[%s133] sm:$0xff]
    %v2063 = vld [vmem:[%s133 + $0x8] sm:$0xff]
    %v2064 = vld [vmem:[%s133 + $0x10] sm:$0xff]
    %v2065 = vld [vmem:[%s133 + $0x18] sm:$0xff]
    %v2066 = vld [vmem:[#allocation42] sm:$0x1]
    %v2068 = vperm.slane %v2066, 0
    %v2071 = vsel %vm726, %v2061, 0
    %2073 = vmatpush.msra.mxu0 0.0
    %2074 = vmatpush.msra.mxu0 0.0
    %2075 = vmatpush.msra.mxu0 0.0
    %2076 = vmatpush.msra.mxu0 0.0
    %2077 = vmatpush.msra.mxu0 0.0
    %2078 = vmatpush.msra.mxu0 0.0
    %2079 = vmatpush.msra.mxu0 0.0
    %2080 = vmatpush.msra.mxu0 0.0
    %2081 = vmatpush.msra.mxu0 0.0
    %2082 = vmatpush.msra.mxu0 0.0
    %2083 = vmatpush.msra.mxu0 0.0
    %2084 = vmatpush.msra.mxu0 0.0
    %2085 = vmatpush.msra.mxu0 %v2065
    %2086 = vmatpush.msra.mxu0 %v2064
    %2087 = vmatpush.msra.mxu0 %v2063
    %2088 = vmatpush.msra.mxu0 %v2062
    %2089 = vmatmul.f32.gmra.mxu0 %v2071
    %v2090 = vpop.f32.mrf.mxu0
    %v2091 = vadd.f32 %v2068, %v2090
    %2092 = vdwg.mxu0
    %v2093 = vld [vmem:[#allocation40] sm:$0x1]
    %2095 = vrot.lane.b32.xlu0 %v2091, 96
    %v2096 = vpop.permute.xlu0 %2095
    %v2097 = vsel %vm785, %v2091, 0
    %v2099 = vsel %vm785, %v2096, 0
    %2101 = vmatpush.xpose.msra.mxu0 0.0
    %2102 = vmatpush.xpose.msra.mxu0 0.0
    %2103 = vmatpush.xpose.msra.mxu0 0.0
    %2104 = vmatpush.xpose.msra.mxu0 0.0
    %2105 = vmatpush.xpose.msra.mxu0 0.0
    %2106 = vmatpush.xpose.msra.mxu0 0.0
    %2107 = vmatpush.xpose.msra.mxu0 0.0
    %2108 = vmatpush.xpose.msra.mxu0 0.0
    %2109 = vmatpush.xpose.msra.mxu0 0.0
    %2110 = vmatpush.xpose.msra.mxu0 0.0
    %2111 = vmatpush.xpose.msra.mxu0 0.0
    %2112 = vmatpush.xpose.msra.mxu0 0.0
    %2113 = vmatpush.xpose.msra.mxu0 0.0
    %2114 = vmatpush.xpose.msra.mxu0 0.0
    %2115 = vmatpush.xpose.msra.mxu0 0.0
    %2116 = vmatpush.xpose.msra.mxu0 %v2099
    %2117 = vmatmul.f32.gmra.mxu0 %v2097
    %v2118 = vpop.f32.mrf.mxu0
    %v2119 = vadd.f32 0.0, %v2118
    %2120 = vdwg.mxu0
    %v2121 = vmul.f32 %v2119, 0.25
    %v2122 = vsel %vm811, %v2121, -inf
    %2123 = vmax.xlane.f32.xlu0 %v2122
    %v2124 = vpop.xlane.xlu0 %2123
    %v2125 = vsub.f32 %v2121, %v2124
    %v2126 = vmul.f32 %v2125, 1.442695
    %v2127 = vpow.pop %v2126
    %v2128 = vsel %vm811, %v2127, 0.0
    %2129 = vadd.xlane.f32.xlu0 %v2128
    %v2130 = vpop.xlane.xlu0 %2129
    %v2131 = vrcp.pop %v2130
    %v2132 = vmul.f32 %v2127, %v2131
    %2133 = vrot.lane.b32.xlu0 %v2091, 64
    %v2134 = vpop.permute.xlu0 %2133
    %v2137 = vsel %vm811, %v2132, 0
    %2139 = vmatpush.msra.mxu0 0.0
    %2140 = vmatpush.msra.mxu0 0.0
    %2141 = vmatpush.msra.mxu0 0.0
    %2142 = vmatpush.msra.mxu0 0.0
    %2143 = vmatpush.msra.mxu0 0.0
    %2144 = vmatpush.msra.mxu0 0.0
    %2145 = vmatpush.msra.mxu0 0.0
    %2146 = vmatpush.msra.mxu0 0.0
    %2147 = vmatpush.msra.mxu0 0.0
    %2148 = vmatpush.msra.mxu0 0.0
    %2149 = vmatpush.msra.mxu0 0.0
    %2150 = vmatpush.msra.mxu0 0.0
    %2151 = vmatpush.msra.mxu0 0.0
    %2152 = vmatpush.msra.mxu0 0.0
    %2153 = vmatpush.msra.mxu0 0.0
    %2154 = vmatpush.msra.mxu0 %v2134
    %2155 = vmatmul.f32.gmra.mxu0 %v2137
    %v2156 = vpop.f32.mrf.mxu0
    %v2157 = vadd.f32 0.0, %v2156
    %2158 = vdwg.mxu0
    %v2159 = vld [vmem:[%s131] sm:$0xff]
    %v2160 = vld [vmem:[%s131 + $0x8] sm:$0xff]
    %v2162 = vsel %vm785, %v2157, 0
    %2164 = vmatpush.msra.mxu0 0.0
    %2165 = vmatpush.msra.mxu0 0.0
    %2166 = vmatpush.msra.mxu0 0.0
    %2167 = vmatpush.msra.mxu0 0.0
    %2168 = vmatpush.msra.mxu0 0.0
    %2169 = vmatpush.msra.mxu0 0.0
    %2170 = vmatpush.msra.mxu0 0.0
    %2171 = vmatpush.msra.mxu0 0.0
    %2172 = vmatpush.msra.mxu0 0.0
    %2173 = vmatpush.msra.mxu0 0.0
    %2174 = vmatpush.msra.mxu0 0.0
    %2175 = vmatpush.msra.mxu0 0.0
    %2176 = vmatpush.msra.mxu0 0.0
    %2177 = vmatpush.msra.mxu0 0.0
    %2178 = vmatpush.msra.mxu0 %v2160
    %2179 = vmatpush.msra.mxu0 %v2159
    %2180 = vmatmul.f32.gmra.mxu0 %v2162
    %v2181 = vpop.f32.mrf.mxu0
    %v2182 = vadd.f32 0.0, %v2181
    %2183 = vdwg.mxu0
    %v2185 = vperm.slane %v2093, 0
    %v2187 = vadd.f32 %v2185, %v2182
    %2188 = vrot.lane.b32.xlu0 %v2091, 112
    %v2189 = vpop.permute.xlu0 %2188
    %2190 = vrot.lane.b32.xlu0 %v2091, 80
    %v2191 = vpop.permute.xlu0 %2190
    %v2192 = vsel %vm785, %v2189, 0
    %v2194 = vsel %vm785, %v2191, 0
    %2196 = vmatpush.xpose.msra.mxu0 0.0
    %2197 = vmatpush.xpose.msra.mxu0 0.0
    %2198 = vmatpush.xpose.msra.mxu0 0.0
    %2199 = vmatpush.xpose.msra.mxu0 0.0
    %2200 = vmatpush.xpose.msra.mxu0 0.0
    %2201 = vmatpush.xpose.msra.mxu0 0.0
    %2202 = vmatpush.xpose.msra.mxu0 0.0
    %2203 = vmatpush.xpose.msra.mxu0 0.0
    %2204 = vmatpush.xpose.msra.mxu0 0.0
    %2205 = vmatpush.xpose.msra.mxu0 0.0
    %2206 = vmatpush.xpose.msra.mxu0 0.0
    %2207 = vmatpush.xpose.msra.mxu0 0.0
    %2208 = vmatpush.xpose.msra.mxu0 0.0
    %2209 = vmatpush.xpose.msra.mxu0 0.0
    %2210 = vmatpush.xpose.msra.mxu0 0.0
    %2211 = vmatpush.xpose.msra.mxu0 %v2194
    %2212 = vmatmul.f32.gmra.mxu0 %v2192
    %v2213 = vpop.f32.mrf.mxu0
    %v2214 = vadd.f32 0.0, %v2213
    %2215 = vdwg.mxu0
    %v2216 = vmul.f32 %v2214, 0.25
    %v2217 = vsel %vm811, %v2216, -inf
    %2218 = vmax.xlane.f32.xlu0 %v2217
    %v2219 = vpop.xlane.xlu0 %2218
    %v2220 = vsub.f32 %v2216, %v2219
    %v2221 = vmul.f32 %v2220, 1.442695
    %v2222 = vpow.pop %v2221
    %v2223 = vsel %vm811, %v2222, 0.0
    %2224 = vadd.xlane.f32.xlu0 %v2223
    %v2225 = vpop.xlane.xlu0 %2224
    %v2226 = vrcp.pop %v2225
    %v2227 = vmul.f32 %v2222, %v2226
    %2228 = vrot.lane.b32.xlu0 %v2091, 48
    %v2229 = vpop.permute.xlu0 %2228
    %v2232 = vsel %vm811, %v2227, 0
    %2234 = vmatpush.msra.mxu0 0.0
    %2235 = vmatpush.msra.mxu0 0.0
    %2236 = vmatpush.msra.mxu0 0.0
    %2237 = vmatpush.msra.mxu0 0.0
    %2238 = vmatpush.msra.mxu0 0.0
    %2239 = vmatpush.msra.mxu0 0.0
    %2240 = vmatpush.msra.mxu0 0.0
    %2241 = vmatpush.msra.mxu0 0.0
    %2242 = vmatpush.msra.mxu0 0.0
    %2243 = vmatpush.msra.mxu0 0.0
    %2244 = vmatpush.msra.mxu0 0.0
    %2245 = vmatpush.msra.mxu0 0.0
    %2246 = vmatpush.msra.mxu0 0.0
    %2247 = vmatpush.msra.mxu0 0.0
    %2248 = vmatpush.msra.mxu0 0.0
    %2249 = vmatpush.msra.mxu0 %v2229
    %2250 = vmatmul.f32.gmra.mxu0 %v2232
    %v2251 = vpop.f32.mrf.mxu0
    %v2252 = vadd.f32 0.0, %v2251
    %2253 = vdwg.mxu0
    %v2254 = vld [vmem:[%s131 + $0x10] sm:$0xff]
    %v2255 = vld [vmem:[%s131 + $0x18] sm:$0xff]
    %v2257 = vsel %vm785, %v2252, 0
    %2259 = vmatpush.msra.mxu0 0.0
    %2260 = vmatpush.msra.mxu0 0.0
    %2261 = vmatpush.msra.mxu0 0.0
    %2262 = vmatpush.msra.mxu0 0.0
    %2263 = vmatpush.msra.mxu0 0.0
    %2264 = vmatpush.msra.mxu0 0.0
    %2265 = vmatpush.msra.mxu0 0.0
    %2266 = vmatpush.msra.mxu0 0.0
    %2267 = vmatpush.msra.mxu0 0.0
    %2268 = vmatpush.msra.mxu0 0.0
    %2269 = vmatpush.msra.mxu0 0.0
    %2270 = vmatpush.msra.mxu0 0.0
    %2271 = vmatpush.msra.mxu0 0.0
    %2272 = vmatpush.msra.mxu0 0.0
    %2273 = vmatpush.msra.mxu0 %v2255
    %2274 = vmatpush.msra.mxu0 %v2254
    %2275 = vmatmul.f32.gmra.mxu0 %v2257
    %v2276 = vpop.f32.mrf.mxu0
    %v2277 = vadd.f32 0.0, %v2276
    %2278 = vdwg.mxu0
    %v2279 = vadd.f32 %v2187, %v2277
    %v2280 = vadd.f32 %v2061, %v2279
    %v2281 = vsel %vm726, %v2280, 0.0
    %2282 = vadd.xlane.f32.xlu0 %v2281
    %v2283 = vpop.xlane.xlu0 %2282
    %v2284 = vmul.f32 %v2283, %v980
    %v2285 = vsub.f32 %v2280, %v2284
    %v2286 = vmul.f32 %v2285, %v2285
    %v2287 = vsel %vm726, %v2286, 0.0
    %2288 = vadd.xlane.f32.xlu0 %v2287
    %v2289 = vpop.xlane.xlu0 %2288
    %v2290 = vmul.f32 %v2289, %v980
    %v2291 = vadd.f32 %v2290, 1e-05
    %v2292 = vrsqrt.pop %v2291
    %v2293 = vmul.f32 %v2292, %v2291
    %v2294 = vmul.f32 %v2293, %v2292
    %v2295 = vmul.f32 0.5, %v2294
    %v2296 = vsub.f32 1.5, %v2295
    %v2297 = vmul.f32 %v2292, %v2296
    %vm2298 = vweird.f32 %v2291
    %vm2299 = vweird.f32 %v2292
    %vm2300 = vmor %vm2298, %vm2299
    %v2301 = vsel %vm2300, %v2292, %v2297
    %v2302 = vmul.f32 %v2285, %v2301
    %v2303 = vld [vmem:[#allocation36] sm:$0x1]
    %v2305 = vperm.slane %v2303, 0
    %v2307 = vmul.f32 %v2302, %v2305
    %v2308 = vld [vmem:[#allocation34] sm:$0x1]
    %v2310 = vperm.slane %v2308, 0
    %v2312 = vadd.f32 %v2307, %v2310
    %v2313 = vld [vmem:[%s115] sm:$0xff]
    %v2314 = vld [vmem:[%s115 + $0x8] sm:$0xff]
    %v2315 = vld [vmem:[%s115 + $0x10] sm:$0xff]
    %v2316 = vld [vmem:[%s115 + $0x18] sm:$0xff]
    %v2317 = vld [vmem:[%s115 + $0x20] sm:$0xff]
    %v2318 = vld [vmem:[%s115 + $0x28] sm:$0xff]
    %v2319 = vld [vmem:[%s115 + $0x30] sm:$0xff]
    %v2320 = vld [vmem:[%s115 + $0x38] sm:$0xff]
    %v2321 = vld [vmem:[%s115 + $0x40] sm:$0xff]
    %v2322 = vld [vmem:[%s115 + $0x48] sm:$0xff]
    %v2323 = vld [vmem:[%s115 + $0x50] sm:$0xff]
    %v2324 = vld [vmem:[%s115 + $0x58] sm:$0xff]
    %v2325 = vld [vmem:[%s115 + $0x60] sm:$0xff]
    %v2326 = vld [vmem:[%s115 + $0x68] sm:$0xff]
    %v2327 = vld [vmem:[%s115 + $0x70] sm:$0xff]
    %v2328 = vld [vmem:[%s115 + $0x78] sm:$0xff]
    %v2329 = vld [vmem:[%s115 + $0x80] sm:$0xff]
    %v2330 = vld [vmem:[%s115 + $0x88] sm:$0xff]
    %v2331 = vld [vmem:[%s115 + $0x90] sm:$0xff]
    %v2332 = vld [vmem:[%s115 + $0x98] sm:$0xff]
    %v2333 = vld [vmem:[%s115 + $0xa0] sm:$0xff]
    %v2334 = vld [vmem:[%s115 + $0xa8] sm:$0xff]
    %v2335 = vld [vmem:[%s115 + $0xb0] sm:$0xff]
    %v2336 = vld [vmem:[%s115 + $0xb8] sm:$0xff]
    %v2337 = vld [vmem:[%s115 + $0xc0] sm:$0xff]
    %v2338 = vld [vmem:[%s115 + $0xc8] sm:$0xff]
    %v2339 = vld [vmem:[%s115 + $0xd0] sm:$0xff]
    %v2340 = vld [vmem:[%s115 + $0xd8] sm:$0xff]
    %v2341 = vld [vmem:[%s115 + $0xe0] sm:$0xff]
    %v2342 = vld [vmem:[%s115 + $0xe8] sm:$0xff]
    %v2343 = vld [vmem:[%s115 + $0xf0] sm:$0xff]
    %v2344 = vld [vmem:[%s115 + $0xf8] sm:$0xff]
    %v2345 = vld [vmem:[%s115 + $0x100] sm:$0xff]
    %v2346 = vld [vmem:[%s115 + $0x108] sm:$0xff]
    %v2347 = vld [vmem:[%s115 + $0x110] sm:$0xff]
    %v2348 = vld [vmem:[%s115 + $0x118] sm:$0xff]
    %v2349 = vld [vmem:[%s115 + $0x120] sm:$0xff]
    %v2350 = vld [vmem:[%s115 + $0x128] sm:$0xff]
    %v2351 = vld [vmem:[%s115 + $0x130] sm:$0xff]
    %v2352 = vld [vmem:[%s115 + $0x138] sm:$0xff]
    %v2353 = vld [vmem:[%s115 + $0x140] sm:$0xff]
    %v2354 = vld [vmem:[%s115 + $0x148] sm:$0xff]
    %v2355 = vld [vmem:[%s115 + $0x150] sm:$0xff]
    %v2356 = vld [vmem:[%s115 + $0x158] sm:$0xff]
    %v2357 = vld [vmem:[%s115 + $0x160] sm:$0xff]
    %v2358 = vld [vmem:[%s115 + $0x168] sm:$0xff]
    %v2359 = vld [vmem:[%s115 + $0x170] sm:$0xff]
    %v2360 = vld [vmem:[%s115 + $0x178] sm:$0xff]
    %v2361 = vld [vmem:[%s115 + $0x180] sm:$0xff]
    %v2362 = vld [vmem:[%s115 + $0x188] sm:$0xff]
    %v2363 = vld [vmem:[%s115 + $0x190] sm:$0xff]
    %v2364 = vld [vmem:[%s115 + $0x198] sm:$0xff]
    %v2365 = vld [vmem:[%s115 + $0x1a0] sm:$0xff]
    %v2366 = vld [vmem:[%s115 + $0x1a8] sm:$0xff]
    %v2367 = vld [vmem:[%s115 + $0x1b0] sm:$0xff]
    %v2368 = vld [vmem:[%s115 + $0x1b8] sm:$0xff]
    %v2369 = vld [vmem:[%s115 + $0x1c0] sm:$0xff]
    %v2370 = vld [vmem:[%s115 + $0x1c8] sm:$0xff]
    %v2371 = vld [vmem:[%s115 + $0x1d0] sm:$0xff]
    %v2372 = vld [vmem:[%s115 + $0x1d8] sm:$0xff]
    %v2373 = vld [vmem:[%s115 + $0x1e0] sm:$0xff]
    %v2374 = vld [vmem:[%s115 + $0x1e8] sm:$0xff]
    %v2375 = vld [vmem:[%s115 + $0x1f0] sm:$0xff]
    %v2376 = vld [vmem:[%s115 + $0x1f8] sm:$0xff]
    %v2377 = vld [vmem:[%s111] sm:$0xff]
    %v2378 = vld [vmem:[%s111 + $0x8] sm:$0xff]
    %v2381 = vperm.slane %v2377, 0
    %v2382 = vperm.slane %v2377, 1
    %v2383 = vperm.slane %v2377, 2
    %v2384 = vperm.slane %v2377, 3
    %v2385 = vperm.slane %v2377, 4
    %v2386 = vperm.slane %v2377, 5
    %v2387 = vperm.slane %v2377, 6
    %v2388 = vperm.slane %v2377, 7
    %v2389 = vperm.slane %v2378, 0
    %v2390 = vperm.slane %v2378, 1
    %v2391 = vperm.slane %v2378, 2
    %v2392 = vperm.slane %v2378, 3
    %v2393 = vperm.slane %v2378, 4
    %v2394 = vperm.slane %v2378, 5
    %v2395 = vperm.slane %v2378, 6
    %v2396 = vperm.slane %v2378, 7
    %v2414 = vsel %vm726, %v2312, 0
    %2416 = vmatpush.msra.mxu0 0.0
    %2417 = vmatpush.msra.mxu0 0.0
    %2418 = vmatpush.msra.mxu0 0.0
    %2419 = vmatpush.msra.mxu0 0.0
    %2420 = vmatpush.msra.mxu0 0.0
    %2421 = vmatpush.msra.mxu0 0.0
    %2422 = vmatpush.msra.mxu0 0.0
    %2423 = vmatpush.msra.mxu0 0.0
    %2424 = vmatpush.msra.mxu0 0.0
    %2425 = vmatpush.msra.mxu0 0.0
    %2426 = vmatpush.msra.mxu0 0.0
    %2427 = vmatpush.msra.mxu0 0.0
    %2428 = vmatpush.msra.mxu0 %v2361
    %2429 = vmatpush.msra.mxu0 %v2345
    %2430 = vmatpush.msra.mxu0 %v2329
    %2431 = vmatpush.msra.mxu0 %v2313
    %2432 = vmatmul.f32.gmra.mxu0 %v2414
    %v2433 = vpop.f32.mrf.mxu0
    %v2434 = vadd.f32 %v2381, %v2433
    %2435 = vdwg.mxu0
    %2436 = vmatpush.msra.mxu0 0.0
    %2437 = vmatpush.msra.mxu0 0.0
    %2438 = vmatpush.msra.mxu0 0.0
    %2439 = vmatpush.msra.mxu0 0.0
    %2440 = vmatpush.msra.mxu0 0.0
    %2441 = vmatpush.msra.mxu0 0.0
    %2442 = vmatpush.msra.mxu0 0.0
    %2443 = vmatpush.msra.mxu0 0.0
    %2444 = vmatpush.msra.mxu0 0.0
    %2445 = vmatpush.msra.mxu0 0.0
    %2446 = vmatpush.msra.mxu0 0.0
    %2447 = vmatpush.msra.mxu0 0.0
    %2448 = vmatpush.msra.mxu0 %v2362
    %2449 = vmatpush.msra.mxu0 %v2346
    %2450 = vmatpush.msra.mxu0 %v2330
    %2451 = vmatpush.msra.mxu0 %v2314
    %2452 = vmatmul.f32.gmra.mxu0 %v2414
    %v2453 = vpop.f32.mrf.mxu0
    %v2454 = vadd.f32 %v2382, %v2453
    %2455 = vdwg.mxu0
    %2456 = vmatpush.msra.mxu0 0.0
    %2457 = vmatpush.msra.mxu0 0.0
    %2458 = vmatpush.msra.mxu0 0.0
    %2459 = vmatpush.msra.mxu0 0.0
    %2460 = vmatpush.msra.mxu0 0.0
    %2461 = vmatpush.msra.mxu0 0.0
    %2462 = vmatpush.msra.mxu0 0.0
    %2463 = vmatpush.msra.mxu0 0.0
    %2464 = vmatpush.msra.mxu0 0.0
    %2465 = vmatpush.msra.mxu0 0.0
    %2466 = vmatpush.msra.mxu0 0.0
    %2467 = vmatpush.msra.mxu0 0.0
    %2468 = vmatpush.msra.mxu0 %v2363
    %2469 = vmatpush.msra.mxu0 %v2347
    %2470 = vmatpush.msra.mxu0 %v2331
    %2471 = vmatpush.msra.mxu0 %v2315
    %2472 = vmatmul.f32.gmra.mxu0 %v2414
    %v2473 = vpop.f32.mrf.mxu0
    %v2474 = vadd.f32 %v2383, %v2473
    %2475 = vdwg.mxu0
    %2476 = vmatpush.msra.mxu0 0.0
    %2477 = vmatpush.msra.mxu0 0.0
    %2478 = vmatpush.msra.mxu0 0.0
    %2479 = vmatpush.msra.mxu0 0.0
    %2480 = vmatpush.msra.mxu0 0.0
    %2481 = vmatpush.msra.mxu0 0.0
    %2482 = vmatpush.msra.mxu0 0.0
    %2483 = vmatpush.msra.mxu0 0.0
    %2484 = vmatpush.msra.mxu0 0.0
    %2485 = vmatpush.msra.mxu0 0.0
    %2486 = vmatpush.msra.mxu0 0.0
    %2487 = vmatpush.msra.mxu0 0.0
    %2488 = vmatpush.msra.mxu0 %v2364
    %2489 = vmatpush.msra.mxu0 %v2348
    %2490 = vmatpush.msra.mxu0 %v2332
    %2491 = vmatpush.msra.mxu0 %v2316
    %2492 = vmatmul.f32.gmra.mxu0 %v2414
    %v2493 = vpop.f32.mrf.mxu0
    %v2494 = vadd.f32 %v2384, %v2493
    %2495 = vdwg.mxu0
    %2496 = vmatpush.msra.mxu0 0.0
    %2497 = vmatpush.msra.mxu0 0.0
    %2498 = vmatpush.msra.mxu0 0.0
    %2499 = vmatpush.msra.mxu0 0.0
    %2500 = vmatpush.msra.mxu0 0.0
    %2501 = vmatpush.msra.mxu0 0.0
    %2502 = vmatpush.msra.mxu0 0.0
    %2503 = vmatpush.msra.mxu0 0.0
    %2504 = vmatpush.msra.mxu0 0.0
    %2505 = vmatpush.msra.mxu0 0.0
    %2506 = vmatpush.msra.mxu0 0.0
    %2507 = vmatpush.msra.mxu0 0.0
    %2508 = vmatpush.msra.mxu0 %v2365
    %2509 = vmatpush.msra.mxu0 %v2349
    %2510 = vmatpush.msra.mxu0 %v2333
    %2511 = vmatpush.msra.mxu0 %v2317
    %2512 = vmatmul.f32.gmra.mxu0 %v2414
    %v2513 = vpop.f32.mrf.mxu0
    %v2514 = vadd.f32 %v2385, %v2513
    %2515 = vdwg.mxu0
    %2516 = vmatpush.msra.mxu0 0.0
    %2517 = vmatpush.msra.mxu0 0.0
    %2518 = vmatpush.msra.mxu0 0.0
    %2519 = vmatpush.msra.mxu0 0.0
    %2520 = vmatpush.msra.mxu0 0.0
    %2521 = vmatpush.msra.mxu0 0.0
    %2522 = vmatpush.msra.mxu0 0.0
    %2523 = vmatpush.msra.mxu0 0.0
    %2524 = vmatpush.msra.mxu0 0.0
    %2525 = vmatpush.msra.mxu0 0.0
    %2526 = vmatpush.msra.mxu0 0.0
    %2527 = vmatpush.msra.mxu0 0.0
    %2528 = vmatpush.msra.mxu0 %v2366
    %2529 = vmatpush.msra.mxu0 %v2350
    %2530 = vmatpush.msra.mxu0 %v2334
    %2531 = vmatpush.msra.mxu0 %v2318
    %2532 = vmatmul.f32.gmra.mxu0 %v2414
    %v2533 = vpop.f32.mrf.mxu0
    %v2534 = vadd.f32 %v2386, %v2533
    %2535 = vdwg.mxu0
    %2536 = vmatpush.msra.mxu0 0.0
    %2537 = vmatpush.msra.mxu0 0.0
    %2538 = vmatpush.msra.mxu0 0.0
    %2539 = vmatpush.msra.mxu0 0.0
    %2540 = vmatpush.msra.mxu0 0.0
    %2541 = vmatpush.msra.mxu0 0.0
    %2542 = vmatpush.msra.mxu0 0.0
    %2543 = vmatpush.msra.mxu0 0.0
    %2544 = vmatpush.msra.mxu0 0.0
    %2545 = vmatpush.msra.mxu0 0.0
    %2546 = vmatpush.msra.mxu0 0.0
    %2547 = vmatpush.msra.mxu0 0.0
    %2548 = vmatpush.msra.mxu0 %v2367
    %2549 = vmatpush.msra.mxu0 %v2351
    %2550 = vmatpush.msra.mxu0 %v2335
    %2551 = vmatpush.msra.mxu0 %v2319
    %2552 = vmatmul.f32.gmra.mxu0 %v2414
    %v2553 = vpop.f32.mrf.mxu0
    %v2554 = vadd.f32 %v2387, %v2553
    %2555 = vdwg.mxu0
    %2556 = vmatpush.msra.mxu0 0.0
    %2557 = vmatpush.msra.mxu0 0.0
    %2558 = vmatpush.msra.mxu0 0.0
    %2559 = vmatpush.msra.mxu0 0.0
    %2560 = vmatpush.msra.mxu0 0.0
    %2561 = vmatpush.msra.mxu0 0.0
    %2562 = vmatpush.msra.mxu0 0.0
    %2563 = vmatpush.msra.mxu0 0.0
    %2564 = vmatpush.msra.mxu0 0.0
    %2565 = vmatpush.msra.mxu0 0.0
    %2566 = vmatpush.msra.mxu0 0.0
    %2567 = vmatpush.msra.mxu0 0.0
    %2568 = vmatpush.msra.mxu0 %v2368
    %2569 = vmatpush.msra.mxu0 %v2352
    %2570 = vmatpush.msra.mxu0 %v2336
    %2571 = vmatpush.msra.mxu0 %v2320
    %2572 = vmatmul.f32.gmra.mxu0 %v2414
    %v2573 = vpop.f32.mrf.mxu0
    %v2574 = vadd.f32 %v2388, %v2573
    %2575 = vdwg.mxu0
    %2576 = vmatpush.msra.mxu0 0.0
    %2577 = vmatpush.msra.mxu0 0.0
    %2578 = vmatpush.msra.mxu0 0.0
    %2579 = vmatpush.msra.mxu0 0.0
    %2580 = vmatpush.msra.mxu0 0.0
    %2581 = vmatpush.msra.mxu0 0.0
    %2582 = vmatpush.msra.mxu0 0.0
    %2583 = vmatpush.msra.mxu0 0.0
    %2584 = vmatpush.msra.mxu0 0.0
    %2585 = vmatpush.msra.mxu0 0.0
    %2586 = vmatpush.msra.mxu0 0.0
    %2587 = vmatpush.msra.mxu0 0.0
    %2588 = vmatpush.msra.mxu0 %v2369
    %2589 = vmatpush.msra.mxu0 %v2353
    %2590 = vmatpush.msra.mxu0 %v2337
    %2591 = vmatpush.msra.mxu0 %v2321
    %2592 = vmatmul.f32.gmra.mxu0 %v2414
    %v2593 = vpop.f32.mrf.mxu0
    %v2594 = vadd.f32 %v2389, %v2593
    %2595 = vdwg.mxu0
    %2596 = vmatpush.msra.mxu0 0.0
    %2597 = vmatpush.msra.mxu0 0.0
    %2598 = vmatpush.msra.mxu0 0.0
    %2599 = vmatpush.msra.mxu0 0.0
    %2600 = vmatpush.msra.mxu0 0.0
    %2601 = vmatpush.msra.mxu0 0.0
    %2602 = vmatpush.msra.mxu0 0.0
    %2603 = vmatpush.msra.mxu0 0.0
    %2604 = vmatpush.msra.mxu0 0.0
    %2605 = vmatpush.msra.mxu0 0.0
    %2606 = vmatpush.msra.mxu0 0.0
    %2607 = vmatpush.msra.mxu0 0.0
    %2608 = vmatpush.msra.mxu0 %v2370
    %2609 = vmatpush.msra.mxu0 %v2354
    %2610 = vmatpush.msra.mxu0 %v2338
    %2611 = vmatpush.msra.mxu0 %v2322
    %2612 = vmatmul.f32.gmra.mxu0 %v2414
    %v2613 = vpop.f32.mrf.mxu0
    %v2614 = vadd.f32 %v2390, %v2613
    %2615 = vdwg.mxu0
    %2616 = vmatpush.msra.mxu0 0.0
    %2617 = vmatpush.msra.mxu0 0.0
    %2618 = vmatpush.msra.mxu0 0.0
    %2619 = vmatpush.msra.mxu0 0.0
    %2620 = vmatpush.msra.mxu0 0.0
    %2621 = vmatpush.msra.mxu0 0.0
    %2622 = vmatpush.msra.mxu0 0.0
    %2623 = vmatpush.msra.mxu0 0.0
    %2624 = vmatpush.msra.mxu0 0.0
    %2625 = vmatpush.msra.mxu0 0.0
    %2626 = vmatpush.msra.mxu0 0.0
    %2627 = vmatpush.msra.mxu0 0.0
    %2628 = vmatpush.msra.mxu0 %v2371
    %2629 = vmatpush.msra.mxu0 %v2355
    %2630 = vmatpush.msra.mxu0 %v2339
    %2631 = vmatpush.msra.mxu0 %v2323
    %2632 = vmatmul.f32.gmra.mxu0 %v2414
    %v2633 = vpop.f32.mrf.mxu0
    %v2634 = vadd.f32 %v2391, %v2633
    %2635 = vdwg.mxu0
    %2636 = vmatpush.msra.mxu0 0.0
    %2637 = vmatpush.msra.mxu0 0.0
    %2638 = vmatpush.msra.mxu0 0.0
    %2639 = vmatpush.msra.mxu0 0.0
    %2640 = vmatpush.msra.mxu0 0.0
    %2641 = vmatpush.msra.mxu0 0.0
    %2642 = vmatpush.msra.mxu0 0.0
    %2643 = vmatpush.msra.mxu0 0.0
    %2644 = vmatpush.msra.mxu0 0.0
    %2645 = vmatpush.msra.mxu0 0.0
    %2646 = vmatpush.msra.mxu0 0.0
    %2647 = vmatpush.msra.mxu0 0.0
    %2648 = vmatpush.msra.mxu0 %v2372
    %2649 = vmatpush.msra.mxu0 %v2356
    %2650 = vmatpush.msra.mxu0 %v2340
    %2651 = vmatpush.msra.mxu0 %v2324
    %2652 = vmatmul.f32.gmra.mxu0 %v2414
    %v2653 = vpop.f32.mrf.mxu0
    %v2654 = vadd.f32 %v2392, %v2653
    %2655 = vdwg.mxu0
    %2656 = vmatpush.msra.mxu0 0.0
    %2657 = vmatpush.msra.mxu0 0.0
    %2658 = vmatpush.msra.mxu0 0.0
    %2659 = vmatpush.msra.mxu0 0.0
    %2660 = vmatpush.msra.mxu0 0.0
    %2661 = vmatpush.msra.mxu0 0.0
    %2662 = vmatpush.msra.mxu0 0.0
    %2663 = vmatpush.msra.mxu0 0.0
    %2664 = vmatpush.msra.mxu0 0.0
    %2665 = vmatpush.msra.mxu0 0.0
    %2666 = vmatpush.msra.mxu0 0.0
    %2667 = vmatpush.msra.mxu0 0.0
    %2668 = vmatpush.msra.mxu0 %v2373
    %2669 = vmatpush.msra.mxu0 %v2357
    %2670 = vmatpush.msra.mxu0 %v2341
    %2671 = vmatpush.msra.mxu0 %v2325
    %2672 = vmatmul.f32.gmra.mxu0 %v2414
    %v2673 = vpop.f32.mrf.mxu0
    %v2674 = vadd.f32 %v2393, %v2673
    %2675 = vdwg.mxu0
    %2676 = vmatpush.msra.mxu0 0.0
    %2677 = vmatpush.msra.mxu0 0.0
    %2678 = vmatpush.msra.mxu0 0.0
    %2679 = vmatpush.msra.mxu0 0.0
    %2680 = vmatpush.msra.mxu0 0.0
    %2681 = vmatpush.msra.mxu0 0.0
    %2682 = vmatpush.msra.mxu0 0.0
    %2683 = vmatpush.msra.mxu0 0.0
    %2684 = vmatpush.msra.mxu0 0.0
    %2685 = vmatpush.msra.mxu0 0.0
    %2686 = vmatpush.msra.mxu0 0.0
    %2687 = vmatpush.msra.mxu0 0.0
    %2688 = vmatpush.msra.mxu0 %v2374
    %2689 = vmatpush.msra.mxu0 %v2358
    %2690 = vmatpush.msra.mxu0 %v2342
    %2691 = vmatpush.msra.mxu0 %v2326
    %2692 = vmatmul.f32.gmra.mxu0 %v2414
    %v2693 = vpop.f32.mrf.mxu0
    %v2694 = vadd.f32 %v2394, %v2693
    %2695 = vdwg.mxu0
    %2696 = vmatpush.msra.mxu0 0.0
    %2697 = vmatpush.msra.mxu0 0.0
    %2698 = vmatpush.msra.mxu0 0.0
    %2699 = vmatpush.msra.mxu0 0.0
    %2700 = vmatpush.msra.mxu0 0.0
    %2701 = vmatpush.msra.mxu0 0.0
    %2702 = vmatpush.msra.mxu0 0.0
    %2703 = vmatpush.msra.mxu0 0.0
    %2704 = vmatpush.msra.mxu0 0.0
    %2705 = vmatpush.msra.mxu0 0.0
    %2706 = vmatpush.msra.mxu0 0.0
    %2707 = vmatpush.msra.mxu0 0.0
    %2708 = vmatpush.msra.mxu0 %v2375
    %2709 = vmatpush.msra.mxu0 %v2359
    %2710 = vmatpush.msra.mxu0 %v2343
    %2711 = vmatpush.msra.mxu0 %v2327
    %2712 = vmatmul.f32.gmra.mxu0 %v2414
    %v2713 = vpop.f32.mrf.mxu0
    %v2714 = vadd.f32 %v2395, %v2713
    %2715 = vdwg.mxu0
    %2716 = vmatpush.msra.mxu0 0.0
    %2717 = vmatpush.msra.mxu0 0.0
    %2718 = vmatpush.msra.mxu0 0.0
    %2719 = vmatpush.msra.mxu0 0.0
    %2720 = vmatpush.msra.mxu0 0.0
    %2721 = vmatpush.msra.mxu0 0.0
    %2722 = vmatpush.msra.mxu0 0.0
    %2723 = vmatpush.msra.mxu0 0.0
    %2724 = vmatpush.msra.mxu0 0.0
    %2725 = vmatpush.msra.mxu0 0.0
    %2726 = vmatpush.msra.mxu0 0.0
    %2727 = vmatpush.msra.mxu0 0.0
    %2728 = vmatpush.msra.mxu0 %v2376
    %2729 = vmatpush.msra.mxu0 %v2360
    %2730 = vmatpush.msra.mxu0 %v2344
    %2731 = vmatpush.msra.mxu0 %v2328
    %2732 = vmatmul.f32.gmra.mxu0 %v2414
    %v2733 = vpop.f32.mrf.mxu0
    %v2734 = vadd.f32 %v2396, %v2733
    %2735 = vdwg.mxu0
    %v2736 = vmax.f32 %v2434, 0.0
    %v2737 = vmax.f32 %v2454, 0.0
    %v2738 = vmax.f32 %v2474, 0.0
    %v2739 = vmax.f32 %v2494, 0.0
    %v2740 = vmax.f32 %v2514, 0.0
    %v2741 = vmax.f32 %v2534, 0.0
    %v2742 = vmax.f32 %v2554, 0.0
    %v2743 = vmax.f32 %v2574, 0.0
    %v2744 = vmax.f32 %v2594, 0.0
    %v2745 = vmax.f32 %v2614, 0.0
    %v2746 = vmax.f32 %v2634, 0.0
    %v2747 = vmax.f32 %v2654, 0.0
    %v2748 = vmax.f32 %v2674, 0.0
    %v2749 = vmax.f32 %v2694, 0.0
    %v2750 = vmax.f32 %v2714, 0.0
    %v2751 = vmax.f32 %v2734, 0.0
    %v2752 = vld [vmem:[%s117] sm:$0xff]
    %v2753 = vld [vmem:[%s117 + $0x8] sm:$0xff]
    %v2754 = vld [vmem:[%s117 + $0x10] sm:$0xff]
    %v2755 = vld [vmem:[%s117 + $0x18] sm:$0xff]
    %v2756 = vld [vmem:[%s117 + $0x20] sm:$0xff]
    %v2757 = vld [vmem:[%s117 + $0x28] sm:$0xff]
    %v2758 = vld [vmem:[%s117 + $0x30] sm:$0xff]
    %v2759 = vld [vmem:[%s117 + $0x38] sm:$0xff]
    %v2760 = vld [vmem:[%s117 + $0x40] sm:$0xff]
    %v2761 = vld [vmem:[%s117 + $0x48] sm:$0xff]
    %v2762 = vld [vmem:[%s117 + $0x50] sm:$0xff]
    %v2763 = vld [vmem:[%s117 + $0x58] sm:$0xff]
    %v2764 = vld [vmem:[%s117 + $0x60] sm:$0xff]
    %v2765 = vld [vmem:[%s117 + $0x68] sm:$0xff]
    %v2766 = vld [vmem:[%s117 + $0x70] sm:$0xff]
    %v2767 = vld [vmem:[%s117 + $0x78] sm:$0xff]
    %v2768 = vld [vmem:[%s117 + $0x80] sm:$0xff]
    %v2769 = vld [vmem:[%s117 + $0x88] sm:$0xff]
    %v2770 = vld [vmem:[%s117 + $0x90] sm:$0xff]
    %v2771 = vld [vmem:[%s117 + $0x98] sm:$0xff]
    %v2772 = vld [vmem:[%s117 + $0xa0] sm:$0xff]
    %v2773 = vld [vmem:[%s117 + $0xa8] sm:$0xff]
    %v2774 = vld [vmem:[%s117 + $0xb0] sm:$0xff]
    %v2775 = vld [vmem:[%s117 + $0xb8] sm:$0xff]
    %v2776 = vld [vmem:[%s117 + $0xc0] sm:$0xff]
    %v2777 = vld [vmem:[%s117 + $0xc8] sm:$0xff]
    %v2778 = vld [vmem:[%s117 + $0xd0] sm:$0xff]
    %v2779 = vld [vmem:[%s117 + $0xd8] sm:$0xff]
    %v2780 = vld [vmem:[%s117 + $0xe0] sm:$0xff]
    %v2781 = vld [vmem:[%s117 + $0xe8] sm:$0xff]
    %v2782 = vld [vmem:[%s117 + $0xf0] sm:$0xff]
    %v2783 = vld [vmem:[%s117 + $0xf8] sm:$0xff]
    %v2784 = vld [vmem:[%s117 + $0x100] sm:$0xff]
    %v2785 = vld [vmem:[%s117 + $0x108] sm:$0xff]
    %v2786 = vld [vmem:[%s117 + $0x110] sm:$0xff]
    %v2787 = vld [vmem:[%s117 + $0x118] sm:$0xff]
    %v2788 = vld [vmem:[%s117 + $0x120] sm:$0xff]
    %v2789 = vld [vmem:[%s117 + $0x128] sm:$0xff]
    %v2790 = vld [vmem:[%s117 + $0x130] sm:$0xff]
    %v2791 = vld [vmem:[%s117 + $0x138] sm:$0xff]
    %v2792 = vld [vmem:[%s117 + $0x140] sm:$0xff]
    %v2793 = vld [vmem:[%s117 + $0x148] sm:$0xff]
    %v2794 = vld [vmem:[%s117 + $0x150] sm:$0xff]
    %v2795 = vld [vmem:[%s117 + $0x158] sm:$0xff]
    %v2796 = vld [vmem:[%s117 + $0x160] sm:$0xff]
    %v2797 = vld [vmem:[%s117 + $0x168] sm:$0xff]
    %v2798 = vld [vmem:[%s117 + $0x170] sm:$0xff]
    %v2799 = vld [vmem:[%s117 + $0x178] sm:$0xff]
    %v2800 = vld [vmem:[%s117 + $0x180] sm:$0xff]
    %v2801 = vld [vmem:[%s117 + $0x188] sm:$0xff]
    %v2802 = vld [vmem:[%s117 + $0x190] sm:$0xff]
    %v2803 = vld [vmem:[%s117 + $0x198] sm:$0xff]
    %v2804 = vld [vmem:[%s117 + $0x1a0] sm:$0xff]
    %v2805 = vld [vmem:[%s117 + $0x1a8] sm:$0xff]
    %v2806 = vld [vmem:[%s117 + $0x1b0] sm:$0xff]
    %v2807 = vld [vmem:[%s117 + $0x1b8] sm:$0xff]
    %v2808 = vld [vmem:[%s117 + $0x1c0] sm:$0xff]
    %v2809 = vld [vmem:[%s117 + $0x1c8] sm:$0xff]
    %v2810 = vld [vmem:[%s117 + $0x1d0] sm:$0xff]
    %v2811 = vld [vmem:[%s117 + $0x1d8] sm:$0xff]
    %v2812 = vld [vmem:[%s117 + $0x1e0] sm:$0xff]
    %v2813 = vld [vmem:[%s117 + $0x1e8] sm:$0xff]
    %v2814 = vld [vmem:[%s117 + $0x1f0] sm:$0xff]
    %v2815 = vld [vmem:[%s117 + $0x1f8] sm:$0xff]
    %v2816 = vld [vmem:[%s117 + $0x200] sm:$0xff]
    %v2817 = vld [vmem:[%s117 + $0x208] sm:$0xff]
    %v2818 = vld [vmem:[%s117 + $0x210] sm:$0xff]
    %v2819 = vld [vmem:[%s117 + $0x218] sm:$0xff]
    %v2820 = vld [vmem:[%s117 + $0x220] sm:$0xff]
    %v2821 = vld [vmem:[%s117 + $0x228] sm:$0xff]
    %v2822 = vld [vmem:[%s117 + $0x230] sm:$0xff]
    %v2823 = vld [vmem:[%s117 + $0x238] sm:$0xff]
    %v2824 = vld [vmem:[%s117 + $0x240] sm:$0xff]
    %v2825 = vld [vmem:[%s117 + $0x248] sm:$0xff]
    %v2826 = vld [vmem:[%s117 + $0x250] sm:$0xff]
    %v2827 = vld [vmem:[%s117 + $0x258] sm:$0xff]
    %v2828 = vld [vmem:[%s117 + $0x260] sm:$0xff]
    %v2829 = vld [vmem:[%s117 + $0x268] sm:$0xff]
    %v2830 = vld [vmem:[%s117 + $0x270] sm:$0xff]
    %v2831 = vld [vmem:[%s117 + $0x278] sm:$0xff]
    %v2832 = vld [vmem:[%s117 + $0x280] sm:$0xff]
    %v2833 = vld [vmem:[%s117 + $0x288] sm:$0xff]
    %v2834 = vld [vmem:[%s117 + $0x290] sm:$0xff]
    %v2835 = vld [vmem:[%s117 + $0x298] sm:$0xff]
    %v2836 = vld [vmem:[%s117 + $0x2a0] sm:$0xff]
    %v2837 = vld [vmem:[%s117 + $0x2a8] sm:$0xff]
    %v2838 = vld [vmem:[%s117 + $0x2b0] sm:$0xff]
    %v2839 = vld [vmem:[%s117 + $0x2b8] sm:$0xff]
    %v2840 = vld [vmem:[%s117 + $0x2c0] sm:$0xff]
    %v2841 = vld [vmem:[%s117 + $0x2c8] sm:$0xff]
    %v2842 = vld [vmem:[%s117 + $0x2d0] sm:$0xff]
    %v2843 = vld [vmem:[%s117 + $0x2d8] sm:$0xff]
    %v2844 = vld [vmem:[%s117 + $0x2e0] sm:$0xff]
    %v2845 = vld [vmem:[%s117 + $0x2e8] sm:$0xff]
    %v2846 = vld [vmem:[%s117 + $0x2f0] sm:$0xff]
    %v2847 = vld [vmem:[%s117 + $0x2f8] sm:$0xff]
    %v2848 = vld [vmem:[%s117 + $0x300] sm:$0xff]
    %v2849 = vld [vmem:[%s117 + $0x308] sm:$0xff]
    %v2850 = vld [vmem:[%s117 + $0x310] sm:$0xff]
    %v2851 = vld [vmem:[%s117 + $0x318] sm:$0xff]
    %v2852 = vld [vmem:[%s117 + $0x320] sm:$0xff]
    %v2853 = vld [vmem:[%s117 + $0x328] sm:$0xff]
    %v2854 = vld [vmem:[%s117 + $0x330] sm:$0xff]
    %v2855 = vld [vmem:[%s117 + $0x338] sm:$0xff]
    %v2856 = vld [vmem:[%s117 + $0x340] sm:$0xff]
    %v2857 = vld [vmem:[%s117 + $0x348] sm:$0xff]
    %v2858 = vld [vmem:[%s117 + $0x350] sm:$0xff]
    %v2859 = vld [vmem:[%s117 + $0x358] sm:$0xff]
    %v2860 = vld [vmem:[%s117 + $0x360] sm:$0xff]
    %v2861 = vld [vmem:[%s117 + $0x368] sm:$0xff]
    %v2862 = vld [vmem:[%s117 + $0x370] sm:$0xff]
    %v2863 = vld [vmem:[%s117 + $0x378] sm:$0xff]
    %v2864 = vld [vmem:[%s117 + $0x380] sm:$0xff]
    %v2865 = vld [vmem:[%s117 + $0x388] sm:$0xff]
    %v2866 = vld [vmem:[%s117 + $0x390] sm:$0xff]
    %v2867 = vld [vmem:[%s117 + $0x398] sm:$0xff]
    %v2868 = vld [vmem:[%s117 + $0x3a0] sm:$0xff]
    %v2869 = vld [vmem:[%s117 + $0x3a8] sm:$0xff]
    %v2870 = vld [vmem:[%s117 + $0x3b0] sm:$0xff]
    %v2871 = vld [vmem:[%s117 + $0x3b8] sm:$0xff]
    %v2872 = vld [vmem:[%s117 + $0x3c0] sm:$0xff]
    %v2873 = vld [vmem:[%s117 + $0x3c8] sm:$0xff]
    %v2874 = vld [vmem:[%s117 + $0x3d0] sm:$0xff]
    %v2875 = vld [vmem:[%s117 + $0x3d8] sm:$0xff]
    %v2876 = vld [vmem:[%s117 + $0x3e0] sm:$0xff]
    %v2877 = vld [vmem:[%s117 + $0x3e8] sm:$0xff]
    %v2878 = vld [vmem:[%s117 + $0x3f0] sm:$0xff]
    %v2879 = vld [vmem:[%s117 + $0x3f8] sm:$0xff]
    %v2880 = vld [vmem:[%s117 + $0x400] sm:$0xff]
    %v2881 = vld [vmem:[%s117 + $0x408] sm:$0xff]
    %v2882 = vld [vmem:[%s117 + $0x410] sm:$0xff]
    %v2883 = vld [vmem:[%s117 + $0x418] sm:$0xff]
    %v2884 = vld [vmem:[%s117 + $0x420] sm:$0xff]
    %v2885 = vld [vmem:[%s117 + $0x428] sm:$0xff]
    %v2886 = vld [vmem:[%s117 + $0x430] sm:$0xff]
    %v2887 = vld [vmem:[%s117 + $0x438] sm:$0xff]
    %v2888 = vld [vmem:[%s117 + $0x440] sm:$0xff]
    %v2889 = vld [vmem:[%s117 + $0x448] sm:$0xff]
    %v2890 = vld [vmem:[%s117 + $0x450] sm:$0xff]
    %v2891 = vld [vmem:[%s117 + $0x458] sm:$0xff]
    %v2892 = vld [vmem:[%s117 + $0x460] sm:$0xff]
    %v2893 = vld [vmem:[%s117 + $0x468] sm:$0xff]
    %v2894 = vld [vmem:[%s117 + $0x470] sm:$0xff]
    %v2895 = vld [vmem:[%s117 + $0x478] sm:$0xff]
    %v2896 = vld [vmem:[%s117 + $0x480] sm:$0xff]
    %v2897 = vld [vmem:[%s117 + $0x488] sm:$0xff]
    %v2898 = vld [vmem:[%s117 + $0x490] sm:$0xff]
    %v2899 = vld [vmem:[%s117 + $0x498] sm:$0xff]
    %v2900 = vld [vmem:[%s117 + $0x4a0] sm:$0xff]
    %v2901 = vld [vmem:[%s117 + $0x4a8] sm:$0xff]
    %v2902 = vld [vmem:[%s117 + $0x4b0] sm:$0xff]
    %v2903 = vld [vmem:[%s117 + $0x4b8] sm:$0xff]
    %v2904 = vld [vmem:[%s117 + $0x4c0] sm:$0xff]
    %v2905 = vld [vmem:[%s117 + $0x4c8] sm:$0xff]
    %v2906 = vld [vmem:[%s117 + $0x4d0] sm:$0xff]
    %v2907 = vld [vmem:[%s117 + $0x4d8] sm:$0xff]
    %v2908 = vld [vmem:[%s117 + $0x4e0] sm:$0xff]
    %v2909 = vld [vmem:[%s117 + $0x4e8] sm:$0xff]
    %v2910 = vld [vmem:[%s117 + $0x4f0] sm:$0xff]
    %v2911 = vld [vmem:[%s117 + $0x4f8] sm:$0xff]
    %v2912 = vld [vmem:[%s117 + $0x500] sm:$0xff]
    %v2913 = vld [vmem:[%s117 + $0x508] sm:$0xff]
    %v2914 = vld [vmem:[%s117 + $0x510] sm:$0xff]
    %v2915 = vld [vmem:[%s117 + $0x518] sm:$0xff]
    %v2916 = vld [vmem:[%s117 + $0x520] sm:$0xff]
    %v2917 = vld [vmem:[%s117 + $0x528] sm:$0xff]
    %v2918 = vld [vmem:[%s117 + $0x530] sm:$0xff]
    %v2919 = vld [vmem:[%s117 + $0x538] sm:$0xff]
    %v2920 = vld [vmem:[%s117 + $0x540] sm:$0xff]
    %v2921 = vld [vmem:[%s117 + $0x548] sm:$0xff]
    %v2922 = vld [vmem:[%s117 + $0x550] sm:$0xff]
    %v2923 = vld [vmem:[%s117 + $0x558] sm:$0xff]
    %v2924 = vld [vmem:[%s117 + $0x560] sm:$0xff]
    %v2925 = vld [vmem:[%s117 + $0x568] sm:$0xff]
    %v2926 = vld [vmem:[%s117 + $0x570] sm:$0xff]
    %v2927 = vld [vmem:[%s117 + $0x578] sm:$0xff]
    %v2928 = vld [vmem:[%s117 + $0x580] sm:$0xff]
    %v2929 = vld [vmem:[%s117 + $0x588] sm:$0xff]
    %v2930 = vld [vmem:[%s117 + $0x590] sm:$0xff]
    %v2931 = vld [vmem:[%s117 + $0x598] sm:$0xff]
    %v2932 = vld [vmem:[%s117 + $0x5a0] sm:$0xff]
    %v2933 = vld [vmem:[%s117 + $0x5a8] sm:$0xff]
    %v2934 = vld [vmem:[%s117 + $0x5b0] sm:$0xff]
    %v2935 = vld [vmem:[%s117 + $0x5b8] sm:$0xff]
    %v2936 = vld [vmem:[%s117 + $0x5c0] sm:$0xff]
    %v2937 = vld [vmem:[%s117 + $0x5c8] sm:$0xff]
    %v2938 = vld [vmem:[%s117 + $0x5d0] sm:$0xff]
    %v2939 = vld [vmem:[%s117 + $0x5d8] sm:$0xff]
    %v2940 = vld [vmem:[%s117 + $0x5e0] sm:$0xff]
    %v2941 = vld [vmem:[%s117 + $0x5e8] sm:$0xff]
    %v2942 = vld [vmem:[%s117 + $0x5f0] sm:$0xff]
    %v2943 = vld [vmem:[%s117 + $0x5f8] sm:$0xff]
    %v2944 = vld [vmem:[%s117 + $0x600] sm:$0xff]
    %v2945 = vld [vmem:[%s117 + $0x608] sm:$0xff]
    %v2946 = vld [vmem:[%s117 + $0x610] sm:$0xff]
    %v2947 = vld [vmem:[%s117 + $0x618] sm:$0xff]
    %v2948 = vld [vmem:[%s117 + $0x620] sm:$0xff]
    %v2949 = vld [vmem:[%s117 + $0x628] sm:$0xff]
    %v2950 = vld [vmem:[%s117 + $0x630] sm:$0xff]
    %v2951 = vld [vmem:[%s117 + $0x638] sm:$0xff]
    %v2952 = vld [vmem:[%s117 + $0x640] sm:$0xff]
    %v2953 = vld [vmem:[%s117 + $0x648] sm:$0xff]
    %v2954 = vld [vmem:[%s117 + $0x650] sm:$0xff]
    %v2955 = vld [vmem:[%s117 + $0x658] sm:$0xff]
    %v2956 = vld [vmem:[%s117 + $0x660] sm:$0xff]
    %v2957 = vld [vmem:[%s117 + $0x668] sm:$0xff]
    %v2958 = vld [vmem:[%s117 + $0x670] sm:$0xff]
    %v2959 = vld [vmem:[%s117 + $0x678] sm:$0xff]
    %v2960 = vld [vmem:[%s117 + $0x680] sm:$0xff]
    %v2961 = vld [vmem:[%s117 + $0x688] sm:$0xff]
    %v2962 = vld [vmem:[%s117 + $0x690] sm:$0xff]
    %v2963 = vld [vmem:[%s117 + $0x698] sm:$0xff]
    %v2964 = vld [vmem:[%s117 + $0x6a0] sm:$0xff]
    %v2965 = vld [vmem:[%s117 + $0x6a8] sm:$0xff]
    %v2966 = vld [vmem:[%s117 + $0x6b0] sm:$0xff]
    %v2967 = vld [vmem:[%s117 + $0x6b8] sm:$0xff]
    %v2968 = vld [vmem:[%s117 + $0x6c0] sm:$0xff]
    %v2969 = vld [vmem:[%s117 + $0x6c8] sm:$0xff]
    %v2970 = vld [vmem:[%s117 + $0x6d0] sm:$0xff]
    %v2971 = vld [vmem:[%s117 + $0x6d8] sm:$0xff]
    %v2972 = vld [vmem:[%s117 + $0x6e0] sm:$0xff]
    %v2973 = vld [vmem:[%s117 + $0x6e8] sm:$0xff]
    %v2974 = vld [vmem:[%s117 + $0x6f0] sm:$0xff]
    %v2975 = vld [vmem:[%s117 + $0x6f8] sm:$0xff]
    %v2976 = vld [vmem:[%s117 + $0x700] sm:$0xff]
    %v2977 = vld [vmem:[%s117 + $0x708] sm:$0xff]
    %v2978 = vld [vmem:[%s117 + $0x710] sm:$0xff]
    %v2979 = vld [vmem:[%s117 + $0x718] sm:$0xff]
    %v2980 = vld [vmem:[%s117 + $0x720] sm:$0xff]
    %v2981 = vld [vmem:[%s117 + $0x728] sm:$0xff]
    %v2982 = vld [vmem:[%s117 + $0x730] sm:$0xff]
    %v2983 = vld [vmem:[%s117 + $0x738] sm:$0xff]
    %v2984 = vld [vmem:[%s117 + $0x740] sm:$0xff]
    %v2985 = vld [vmem:[%s117 + $0x748] sm:$0xff]
    %v2986 = vld [vmem:[%s117 + $0x750] sm:$0xff]
    %v2987 = vld [vmem:[%s117 + $0x758] sm:$0xff]
    %v2988 = vld [vmem:[%s117 + $0x760] sm:$0xff]
    %v2989 = vld [vmem:[%s117 + $0x768] sm:$0xff]
    %v2990 = vld [vmem:[%s117 + $0x770] sm:$0xff]
    %v2991 = vld [vmem:[%s117 + $0x778] sm:$0xff]
    %v2992 = vld [vmem:[%s117 + $0x780] sm:$0xff]
    %v2993 = vld [vmem:[%s117 + $0x788] sm:$0xff]
    %v2994 = vld [vmem:[%s117 + $0x790] sm:$0xff]
    %v2995 = vld [vmem:[%s117 + $0x798] sm:$0xff]
    %v2996 = vld [vmem:[%s117 + $0x7a0] sm:$0xff]
    %v2997 = vld [vmem:[%s117 + $0x7a8] sm:$0xff]
    %v2998 = vld [vmem:[%s117 + $0x7b0] sm:$0xff]
    %v2999 = vld [vmem:[%s117 + $0x7b8] sm:$0xff]
    %v3000 = vld [vmem:[%s117 + $0x7c0] sm:$0xff]
    %v3001 = vld [vmem:[%s117 + $0x7c8] sm:$0xff]
    %v3002 = vld [vmem:[%s117 + $0x7d0] sm:$0xff]
    %v3003 = vld [vmem:[%s117 + $0x7d8] sm:$0xff]
    %v3004 = vld [vmem:[%s117 + $0x7e0] sm:$0xff]
    %v3005 = vld [vmem:[%s117 + $0x7e8] sm:$0xff]
    %v3006 = vld [vmem:[%s117 + $0x7f0] sm:$0xff]
    %v3007 = vld [vmem:[%s117 + $0x7f8] sm:$0xff]
    %v3008 = vld [vmem:[#allocation33] sm:$0x1]
    %v3010 = vperm.slane %v3008, 0
    %3012 = vmatpush.msra.mxu0 %v2767
    %3013 = vmatpush.msra.mxu0 %v2766
    %3014 = vmatpush.msra.mxu0 %v2765
    %3015 = vmatpush.msra.mxu0 %v2764
    %3016 = vmatpush.msra.mxu0 %v2763
    %3017 = vmatpush.msra.mxu0 %v2762
    %3018 = vmatpush.msra.mxu0 %v2761
    %3019 = vmatpush.msra.mxu0 %v2760
    %3020 = vmatpush.msra.mxu0 %v2759
    %3021 = vmatpush.msra.mxu0 %v2758
    %3022 = vmatpush.msra.mxu0 %v2757
    %3023 = vmatpush.msra.mxu0 %v2756
    %3024 = vmatpush.msra.mxu0 %v2755
    %3025 = vmatpush.msra.mxu0 %v2754
    %3026 = vmatpush.msra.mxu0 %v2753
    %3027 = vmatpush.msra.mxu0 %v2752
    %3028 = vmatmul.f32.gmra.mxu0 %v2736
    %v3029 = vpop.f32.mrf.mxu0
    %v3030 = vadd.f32 %v3010, %v3029
    %3031 = vdwg.mxu0
    %3032 = vmatpush.msra.mxu0 %v2783
    %3033 = vmatpush.msra.mxu0 %v2782
    %3034 = vmatpush.msra.mxu0 %v2781
    %3035 = vmatpush.msra.mxu0 %v2780
    %3036 = vmatpush.msra.mxu0 %v2779
    %3037 = vmatpush.msra.mxu0 %v2778
    %3038 = vmatpush.msra.mxu0 %v2777
    %3039 = vmatpush.msra.mxu0 %v2776
    %3040 = vmatpush.msra.mxu0 %v2775
    %3041 = vmatpush.msra.mxu0 %v2774
    %3042 = vmatpush.msra.mxu0 %v2773
    %3043 = vmatpush.msra.mxu0 %v2772
    %3044 = vmatpush.msra.mxu0 %v2771
    %3045 = vmatpush.msra.mxu0 %v2770
    %3046 = vmatpush.msra.mxu0 %v2769
    %3047 = vmatpush.msra.mxu0 %v2768
    %3048 = vmatmul.f32.gmra.mxu0 %v2737
    %v3049 = vpop.f32.mrf.mxu0
    %v3050 = vadd.f32 %v3030, %v3049
    %3051 = vdwg.mxu0
    %3052 = vmatpush.msra.mxu0 %v2799
    %3053 = vmatpush.msra.mxu0 %v2798
    %3054 = vmatpush.msra.mxu0 %v2797
    %3055 = vmatpush.msra.mxu0 %v2796
    %3056 = vmatpush.msra.mxu0 %v2795
    %3057 = vmatpush.msra.mxu0 %v2794
    %3058 = vmatpush.msra.mxu0 %v2793
    %3059 = vmatpush.msra.mxu0 %v2792
    %3060 = vmatpush.msra.mxu0 %v2791
    %3061 = vmatpush.msra.mxu0 %v2790
    %3062 = vmatpush.msra.mxu0 %v2789
    %3063 = vmatpush.msra.mxu0 %v2788
    %3064 = vmatpush.msra.mxu0 %v2787
    %3065 = vmatpush.msra.mxu0 %v2786
    %3066 = vmatpush.msra.mxu0 %v2785
    %3067 = vmatpush.msra.mxu0 %v2784
    %3068 = vmatmul.f32.gmra.mxu0 %v2738
    %v3069 = vpop.f32.mrf.mxu0
    %v3070 = vadd.f32 %v3050, %v3069
    %3071 = vdwg.mxu0
    %3072 = vmatpush.msra.mxu0 %v2815
    %3073 = vmatpush.msra.mxu0 %v2814
    %3074 = vmatpush.msra.mxu0 %v2813
    %3075 = vmatpush.msra.mxu0 %v2812
    %3076 = vmatpush.msra.mxu0 %v2811
    %3077 = vmatpush.msra.mxu0 %v2810
    %3078 = vmatpush.msra.mxu0 %v2809
    %3079 = vmatpush.msra.mxu0 %v2808
    %3080 = vmatpush.msra.mxu0 %v2807
    %3081 = vmatpush.msra.mxu0 %v2806
    %3082 = vmatpush.msra.mxu0 %v2805
    %3083 = vmatpush.msra.mxu0 %v2804
    %3084 = vmatpush.msra.mxu0 %v2803
    %3085 = vmatpush.msra.mxu0 %v2802
    %3086 = vmatpush.msra.mxu0 %v2801
    %3087 = vmatpush.msra.mxu0 %v2800
    %3088 = vmatmul.f32.gmra.mxu0 %v2739
    %v3089 = vpop.f32.mrf.mxu0
    %v3090 = vadd.f32 %v3070, %v3089
    %3091 = vdwg.mxu0
    %3092 = vmatpush.msra.mxu0 %v2831
    %3093 = vmatpush.msra.mxu0 %v2830
    %3094 = vmatpush.msra.mxu0 %v2829
    %3095 = vmatpush.msra.mxu0 %v2828
    %3096 = vmatpush.msra.mxu0 %v2827
    %3097 = vmatpush.msra.mxu0 %v2826
    %3098 = vmatpush.msra.mxu0 %v2825
    %3099 = vmatpush.msra.mxu0 %v2824
    %3100 = vmatpush.msra.mxu0 %v2823
    %3101 = vmatpush.msra.mxu0 %v2822
    %3102 = vmatpush.msra.mxu0 %v2821
    %3103 = vmatpush.msra.mxu0 %v2820
    %3104 = vmatpush.msra.mxu0 %v2819
    %3105 = vmatpush.msra.mxu0 %v2818
    %3106 = vmatpush.msra.mxu0 %v2817
    %3107 = vmatpush.msra.mxu0 %v2816
    %3108 = vmatmul.f32.gmra.mxu0 %v2740
    %v3109 = vpop.f32.mrf.mxu0
    %v3110 = vadd.f32 %v3090, %v3109
    %3111 = vdwg.mxu0
    %3112 = vmatpush.msra.mxu0 %v2847
    %3113 = vmatpush.msra.mxu0 %v2846
    %3114 = vmatpush.msra.mxu0 %v2845
    %3115 = vmatpush.msra.mxu0 %v2844
    %3116 = vmatpush.msra.mxu0 %v2843
    %3117 = vmatpush.msra.mxu0 %v2842
    %3118 = vmatpush.msra.mxu0 %v2841
    %3119 = vmatpush.msra.mxu0 %v2840
    %3120 = vmatpush.msra.mxu0 %v2839
    %3121 = vmatpush.msra.mxu0 %v2838
    %3122 = vmatpush.msra.mxu0 %v2837
    %3123 = vmatpush.msra.mxu0 %v2836
    %3124 = vmatpush.msra.mxu0 %v2835
    %3125 = vmatpush.msra.mxu0 %v2834
    %3126 = vmatpush.msra.mxu0 %v2833
    %3127 = vmatpush.msra.mxu0 %v2832
    %3128 = vmatmul.f32.gmra.mxu0 %v2741
    %v3129 = vpop.f32.mrf.mxu0
    %v3130 = vadd.f32 %v3110, %v3129
    %3131 = vdwg.mxu0
    %3132 = vmatpush.msra.mxu0 %v2863
    %3133 = vmatpush.msra.mxu0 %v2862
    %3134 = vmatpush.msra.mxu0 %v2861
    %3135 = vmatpush.msra.mxu0 %v2860
    %3136 = vmatpush.msra.mxu0 %v2859
    %3137 = vmatpush.msra.mxu0 %v2858
    %3138 = vmatpush.msra.mxu0 %v2857
    %3139 = vmatpush.msra.mxu0 %v2856
    %3140 = vmatpush.msra.mxu0 %v2855
    %3141 = vmatpush.msra.mxu0 %v2854
    %3142 = vmatpush.msra.mxu0 %v2853
    %3143 = vmatpush.msra.mxu0 %v2852
    %3144 = vmatpush.msra.mxu0 %v2851
    %3145 = vmatpush.msra.mxu0 %v2850
    %3146 = vmatpush.msra.mxu0 %v2849
    %3147 = vmatpush.msra.mxu0 %v2848
    %3148 = vmatmul.f32.gmra.mxu0 %v2742
    %v3149 = vpop.f32.mrf.mxu0
    %v3150 = vadd.f32 %v3130, %v3149
    %3151 = vdwg.mxu0
    %3152 = vmatpush.msra.mxu0 %v2879
    %3153 = vmatpush.msra.mxu0 %v2878
    %3154 = vmatpush.msra.mxu0 %v2877
    %3155 = vmatpush.msra.mxu0 %v2876
    %3156 = vmatpush.msra.mxu0 %v2875
    %3157 = vmatpush.msra.mxu0 %v2874
    %3158 = vmatpush.msra.mxu0 %v2873
    %3159 = vmatpush.msra.mxu0 %v2872
    %3160 = vmatpush.msra.mxu0 %v2871
    %3161 = vmatpush.msra.mxu0 %v2870
    %3162 = vmatpush.msra.mxu0 %v2869
    %3163 = vmatpush.msra.mxu0 %v2868
    %3164 = vmatpush.msra.mxu0 %v2867
    %3165 = vmatpush.msra.mxu0 %v2866
    %3166 = vmatpush.msra.mxu0 %v2865
    %3167 = vmatpush.msra.mxu0 %v2864
    %3168 = vmatmul.f32.gmra.mxu0 %v2743
    %v3169 = vpop.f32.mrf.mxu0
    %v3170 = vadd.f32 %v3150, %v3169
    %3171 = vdwg.mxu0
    %3172 = vmatpush.msra.mxu0 %v2895
    %3173 = vmatpush.msra.mxu0 %v2894
    %3174 = vmatpush.msra.mxu0 %v2893
    %3175 = vmatpush.msra.mxu0 %v2892
    %3176 = vmatpush.msra.mxu0 %v2891
    %3177 = vmatpush.msra.mxu0 %v2890
    %3178 = vmatpush.msra.mxu0 %v2889
    %3179 = vmatpush.msra.mxu0 %v2888
    %3180 = vmatpush.msra.mxu0 %v2887
    %3181 = vmatpush.msra.mxu0 %v2886
    %3182 = vmatpush.msra.mxu0 %v2885
    %3183 = vmatpush.msra.mxu0 %v2884
    %3184 = vmatpush.msra.mxu0 %v2883
    %3185 = vmatpush.msra.mxu0 %v2882
    %3186 = vmatpush.msra.mxu0 %v2881
    %3187 = vmatpush.msra.mxu0 %v2880
    %3188 = vmatmul.f32.gmra.mxu0 %v2744
    %v3189 = vpop.f32.mrf.mxu0
    %v3190 = vadd.f32 %v3170, %v3189
    %3191 = vdwg.mxu0
    %3192 = vmatpush.msra.mxu0 %v2911
    %3193 = vmatpush.msra.mxu0 %v2910
    %3194 = vmatpush.msra.mxu0 %v2909
    %3195 = vmatpush.msra.mxu0 %v2908
    %3196 = vmatpush.msra.mxu0 %v2907
    %3197 = vmatpush.msra.mxu0 %v2906
    %3198 = vmatpush.msra.mxu0 %v2905
    %3199 = vmatpush.msra.mxu0 %v2904
    %3200 = vmatpush.msra.mxu0 %v2903
    %3201 = vmatpush.msra.mxu0 %v2902
    %3202 = vmatpush.msra.mxu0 %v2901
    %3203 = vmatpush.msra.mxu0 %v2900
    %3204 = vmatpush.msra.mxu0 %v2899
    %3205 = vmatpush.msra.mxu0 %v2898
    %3206 = vmatpush.msra.mxu0 %v2897
    %3207 = vmatpush.msra.mxu0 %v2896
    %3208 = vmatmul.f32.gmra.mxu0 %v2745
    %v3209 = vpop.f32.mrf.mxu0
    %v3210 = vadd.f32 %v3190, %v3209
    %3211 = vdwg.mxu0
    %3212 = vmatpush.msra.mxu0 %v2927
    %3213 = vmatpush.msra.mxu0 %v2926
    %3214 = vmatpush.msra.mxu0 %v2925
    %3215 = vmatpush.msra.mxu0 %v2924
    %3216 = vmatpush.msra.mxu0 %v2923
    %3217 = vmatpush.msra.mxu0 %v2922
    %3218 = vmatpush.msra.mxu0 %v2921
    %3219 = vmatpush.msra.mxu0 %v2920
    %3220 = vmatpush.msra.mxu0 %v2919
    %3221 = vmatpush.msra.mxu0 %v2918
    %3222 = vmatpush.msra.mxu0 %v2917
    %3223 = vmatpush.msra.mxu0 %v2916
    %3224 = vmatpush.msra.mxu0 %v2915
    %3225 = vmatpush.msra.mxu0 %v2914
    %3226 = vmatpush.msra.mxu0 %v2913
    %3227 = vmatpush.msra.mxu0 %v2912
    %3228 = vmatmul.f32.gmra.mxu0 %v2746
    %v3229 = vpop.f32.mrf.mxu0
    %v3230 = vadd.f32 %v3210, %v3229
    %3231 = vdwg.mxu0
    %3232 = vmatpush.msra.mxu0 %v2943
    %3233 = vmatpush.msra.mxu0 %v2942
    %3234 = vmatpush.msra.mxu0 %v2941
    %3235 = vmatpush.msra.mxu0 %v2940
    %3236 = vmatpush.msra.mxu0 %v2939
    %3237 = vmatpush.msra.mxu0 %v2938
    %3238 = vmatpush.msra.mxu0 %v2937
    %3239 = vmatpush.msra.mxu0 %v2936
    %3240 = vmatpush.msra.mxu0 %v2935
    %3241 = vmatpush.msra.mxu0 %v2934
    %3242 = vmatpush.msra.mxu0 %v2933
    %3243 = vmatpush.msra.mxu0 %v2932
    %3244 = vmatpush.msra.mxu0 %v2931
    %3245 = vmatpush.msra.mxu0 %v2930
    %3246 = vmatpush.msra.mxu0 %v2929
    %3247 = vmatpush.msra.mxu0 %v2928
    %3248 = vmatmul.f32.gmra.mxu0 %v2747
    %v3249 = vpop.f32.mrf.mxu0
    %v3250 = vadd.f32 %v3230, %v3249
    %3251 = vdwg.mxu0
    %3252 = vmatpush.msra.mxu0 %v2959
    %3253 = vmatpush.msra.mxu0 %v2958
    %3254 = vmatpush.msra.mxu0 %v2957
    %3255 = vmatpush.msra.mxu0 %v2956
    %3256 = vmatpush.msra.mxu0 %v2955
    %3257 = vmatpush.msra.mxu0 %v2954
    %3258 = vmatpush.msra.mxu0 %v2953
    %3259 = vmatpush.msra.mxu0 %v2952
    %3260 = vmatpush.msra.mxu0 %v2951
    %3261 = vmatpush.msra.mxu0 %v2950
    %3262 = vmatpush.msra.mxu0 %v2949
    %3263 = vmatpush.msra.mxu0 %v2948
    %3264 = vmatpush.msra.mxu0 %v2947
    %3265 = vmatpush.msra.mxu0 %v2946
    %3266 = vmatpush.msra.mxu0 %v2945
    %3267 = vmatpush.msra.mxu0 %v2944
    %3268 = vmatmul.f32.gmra.mxu0 %v2748
    %v3269 = vpop.f32.mrf.mxu0
    %v3270 = vadd.f32 %v3250, %v3269
    %3271 = vdwg.mxu0
    %3272 = vmatpush.msra.mxu0 %v2975
    %3273 = vmatpush.msra.mxu0 %v2974
    %3274 = vmatpush.msra.mxu0 %v2973
    %3275 = vmatpush.msra.mxu0 %v2972
    %3276 = vmatpush.msra.mxu0 %v2971
    %3277 = vmatpush.msra.mxu0 %v2970
    %3278 = vmatpush.msra.mxu0 %v2969
    %3279 = vmatpush.msra.mxu0 %v2968
    %3280 = vmatpush.msra.mxu0 %v2967
    %3281 = vmatpush.msra.mxu0 %v2966
    %3282 = vmatpush.msra.mxu0 %v2965
    %3283 = vmatpush.msra.mxu0 %v2964
    %3284 = vmatpush.msra.mxu0 %v2963
    %3285 = vmatpush.msra.mxu0 %v2962
    %3286 = vmatpush.msra.mxu0 %v2961
    %3287 = vmatpush.msra.mxu0 %v2960
    %3288 = vmatmul.f32.gmra.mxu0 %v2749
    %v3289 = vpop.f32.mrf.mxu0
    %v3290 = vadd.f32 %v3270, %v3289
    %3291 = vdwg.mxu0
    %3292 = vmatpush.msra.mxu0 %v2991
    %3293 = vmatpush.msra.mxu0 %v2990
    %3294 = vmatpush.msra.mxu0 %v2989
    %3295 = vmatpush.msra.mxu0 %v2988
    %3296 = vmatpush.msra.mxu0 %v2987
    %3297 = vmatpush.msra.mxu0 %v2986
    %3298 = vmatpush.msra.mxu0 %v2985
    %3299 = vmatpush.msra.mxu0 %v2984
    %3300 = vmatpush.msra.mxu0 %v2983
    %3301 = vmatpush.msra.mxu0 %v2982
    %3302 = vmatpush.msra.mxu0 %v2981
    %3303 = vmatpush.msra.mxu0 %v2980
    %3304 = vmatpush.msra.mxu0 %v2979
    %3305 = vmatpush.msra.mxu0 %v2978
    %3306 = vmatpush.msra.mxu0 %v2977
    %3307 = vmatpush.msra.mxu0 %v2976
    %3308 = vmatmul.f32.gmra.mxu0 %v2750
    %v3309 = vpop.f32.mrf.mxu0
    %v3310 = vadd.f32 %v3290, %v3309
    %3311 = vdwg.mxu0
    %3312 = vmatpush.msra.mxu0 %v3007
    %3313 = vmatpush.msra.mxu0 %v3006
    %3314 = vmatpush.msra.mxu0 %v3005
    %3315 = vmatpush.msra.mxu0 %v3004
    %3316 = vmatpush.msra.mxu0 %v3003
    %3317 = vmatpush.msra.mxu0 %v3002
    %3318 = vmatpush.msra.mxu0 %v3001
    %3319 = vmatpush.msra.mxu0 %v3000
    %3320 = vmatpush.msra.mxu0 %v2999
    %3321 = vmatpush.msra.mxu0 %v2998
    %3322 = vmatpush.msra.mxu0 %v2997
    %3323 = vmatpush.msra.mxu0 %v2996
    %3324 = vmatpush.msra.mxu0 %v2995
    %3325 = vmatpush.msra.mxu0 %v2994
    %3326 = vmatpush.msra.mxu0 %v2993
    %3327 = vmatpush.msra.mxu0 %v2992
    %3328 = vmatmul.f32.gmra.mxu0 %v2751
    %v3329 = vpop.f32.mrf.mxu0
    %v3330 = vadd.f32 %v3310, %v3329
    %3331 = vdwg.mxu0
    %v3332 = vadd.f32 %v2312, %v3330
    %v3333 = vsel %vm726, %v3332, 0.0
    %3334 = vadd.xlane.f32.xlu0 %v3333
    %v3335 = vpop.xlane.xlu0 %3334
    %v3336 = vmul.f32 %v3335, %v980
    %v3337 = vsub.f32 %v3332, %v3336
    %v3338 = vmul.f32 %v3337, %v3337
    %v3339 = vsel %vm726, %v3338, 0.0
    %3340 = vadd.xlane.f32.xlu0 %v3339
    %v3341 = vpop.xlane.xlu0 %3340
    %v3342 = vmul.f32 %v3341, %v980
    %v3343 = vadd.f32 %v3342, 1e-05
    %v3344 = vrsqrt.pop %v3343
    %v3345 = vmul.f32 %v3344, %v3343
    %v3346 = vmul.f32 %v3345, %v3344
    %v3347 = vmul.f32 0.5, %v3346
    %v3348 = vsub.f32 1.5, %v3347
    %v3349 = vmul.f32 %v3344, %v3348
    %vm3350 = vweird.f32 %v3343
    %vm3351 = vweird.f32 %v3344
    %vm3352 = vmor %vm3350, %vm3351
    %v3353 = vsel %vm3352, %v3344, %v3349
    %v3354 = vmul.f32 %v3337, %v3353
    %v3355 = vld [vmem:[#allocation39] sm:$0x1]
    %v3357 = vperm.slane %v3355, 0
    %v3359 = vmul.f32 %v3354, %v3357
    %v3360 = vld [vmem:[#allocation37] sm:$0x1]
    %v3362 = vperm.slane %v3360, 0
    %v3364 = vadd.f32 %v3359, %v3362
    %v3365 = vsel %vm726, %v3364, 0.0
    %3366 = vadd.xlane.f32.xlu0 %v3365
    %v3367 = vpop.xlane.xlu0 %3366
    %v3368 = vmul.f32 %v3367, %v980
    %v3369 = vsub.f32 %v3364, %v3368
    %v3370 = vmul.f32 %v3369, %v3369
    %v3371 = vsel %vm726, %v3370, 0.0
    %3372 = vadd.xlane.f32.xlu0 %v3371
    %v3373 = vpop.xlane.xlu0 %3372
    %v3374 = vmul.f32 %v3373, %v980
    %v3375 = vadd.f32 %v3374, 1e-05
    %v3376 = vrsqrt.pop %v3375
    %v3377 = vmul.f32 %v3376, %v3375
    %v3378 = vmul.f32 %v3377, %v3376
    %v3379 = vmul.f32 0.5, %v3378
    %v3380 = vsub.f32 1.5, %v3379
    %v3381 = vmul.f32 %v3376, %v3380
    %vm3382 = vweird.f32 %v3375
    %vm3383 = vweird.f32 %v3376
    %vm3384 = vmor %vm3382, %vm3383
    %v3385 = vsel %vm3384, %v3376, %v3381
    %v3386 = vmul.f32 %v3369, %v3385
    %v3387 = vld [vmem:[#allocation45] sm:$0x1]
    %v3389 = vperm.slane %v3387, 0
    %v3391 = vmul.f32 %v3386, %v3389
    %v3392 = vld [vmem:[#allocation43] sm:$0x1]
    %v3394 = vperm.slane %v3392, 0
    %v3396 = vadd.f32 %v3391, %v3394
    %v3397 = vld [vmem:[%s41] sm:$0xff]
    %v3398 = vld [vmem:[%s41 + $0x8] sm:$0xff]
    %v3399 = vld [vmem:[%s41 + $0x10] sm:$0xff]
    %v3400 = vld [vmem:[%s41 + $0x18] sm:$0xff]
    %v3401 = vld [vmem:[%s37] sm:$0x1]
    %v3403 = vperm.slane %v3401, 0
    %3405 = vmatpush.msra.mxu0 0.0
    %3406 = vmatpush.msra.mxu0 0.0
    %3407 = vmatpush.msra.mxu0 0.0
    %3408 = vmatpush.msra.mxu0 0.0
    %3409 = vmatpush.msra.mxu0 0.0
    %3410 = vmatpush.msra.mxu0 0.0
    %3411 = vmatpush.msra.mxu0 0.0
    %3412 = vmatpush.msra.mxu0 0.0
    %3413 = vmatpush.msra.mxu0 0.0
    %3414 = vmatpush.msra.mxu0 0.0
    %3415 = vmatpush.msra.mxu0 0.0
    %3416 = vmatpush.msra.mxu0 0.0
    %3417 = vmatpush.msra.mxu0 %v3400
    %3418 = vmatpush.msra.mxu0 %v3399
    %3419 = vmatpush.msra.mxu0 %v3398
    %3420 = vmatpush.msra.mxu0 %v3397
    %3421 = vmatmul.f32.gmra.mxu0 %v759
    %v3422 = vpop.f32.mrf.mxu0
    %v3423 = vadd.f32 %v3403, %v3422
    %3424 = vdwg.mxu0
    %v3425 = vld [vmem:[%s35] sm:$0x1]
    %3427 = vrot.lane.b32.xlu0 %v3423, 96
    %v3428 = vpop.permute.xlu0 %3427
    %v3429 = vsel %vm785, %v3423, 0
    %v3431 = vsel %vm785, %v3428, 0
    %3433 = vmatpush.xpose.msra.mxu0 0.0
    %3434 = vmatpush.xpose.msra.mxu0 0.0
    %3435 = vmatpush.xpose.msra.mxu0 0.0
    %3436 = vmatpush.xpose.msra.mxu0 0.0
    %3437 = vmatpush.xpose.msra.mxu0 0.0
    %3438 = vmatpush.xpose.msra.mxu0 0.0
    %3439 = vmatpush.xpose.msra.mxu0 0.0
    %3440 = vmatpush.xpose.msra.mxu0 0.0
    %3441 = vmatpush.xpose.msra.mxu0 0.0
    %3442 = vmatpush.xpose.msra.mxu0 0.0
    %3443 = vmatpush.xpose.msra.mxu0 0.0
    %3444 = vmatpush.xpose.msra.mxu0 0.0
    %3445 = vmatpush.xpose.msra.mxu0 0.0
    %3446 = vmatpush.xpose.msra.mxu0 0.0
    %3447 = vmatpush.xpose.msra.mxu0 0.0
    %3448 = vmatpush.xpose.msra.mxu0 %v3431
    %3449 = vmatmul.f32.gmra.mxu0 %v3429
    %v3450 = vpop.f32.mrf.mxu0
    %v3451 = vadd.f32 0.0, %v3450
    %3452 = vdwg.mxu0
    %v3453 = vmul.f32 %v3451, 0.25
    %v3454 = vsel %vm811, %v3453, -inf
    %3455 = vmax.xlane.f32.xlu0 %v3454
    %v3456 = vpop.xlane.xlu0 %3455
    %v3457 = vsub.f32 %v3453, %v3456
    %v3458 = vmul.f32 %v3457, 1.442695
    %v3459 = vpow.pop %v3458
    %v3460 = vsel %vm811, %v3459, 0.0
    %3461 = vadd.xlane.f32.xlu0 %v3460
    %v3462 = vpop.xlane.xlu0 %3461
    %v3463 = vrcp.pop %v3462
    %v3464 = vmul.f32 %v3459, %v3463
    %3465 = vrot.lane.b32.xlu0 %v3423, 64
    %v3466 = vpop.permute.xlu0 %3465
    %v3469 = vsel %vm811, %v3464, 0
    %3471 = vmatpush.msra.mxu0 0.0
    %3472 = vmatpush.msra.mxu0 0.0
    %3473 = vmatpush.msra.mxu0 0.0
    %3474 = vmatpush.msra.mxu0 0.0
    %3475 = vmatpush.msra.mxu0 0.0
    %3476 = vmatpush.msra.mxu0 0.0
    %3477 = vmatpush.msra.mxu0 0.0
    %3478 = vmatpush.msra.mxu0 0.0
    %3479 = vmatpush.msra.mxu0 0.0
    %3480 = vmatpush.msra.mxu0 0.0
    %3481 = vmatpush.msra.mxu0 0.0
    %3482 = vmatpush.msra.mxu0 0.0
    %3483 = vmatpush.msra.mxu0 0.0
    %3484 = vmatpush.msra.mxu0 0.0
    %3485 = vmatpush.msra.mxu0 0.0
    %3486 = vmatpush.msra.mxu0 %v3466
    %3487 = vmatmul.f32.gmra.mxu0 %v3469
    %v3488 = vpop.f32.mrf.mxu0
    %v3489 = vadd.f32 0.0, %v3488
    %3490 = vdwg.mxu0
    %v3491 = vld [vmem:[%s39] sm:$0xff]
    %v3492 = vld [vmem:[%s39 + $0x8] sm:$0xff]
    %v3494 = vsel %vm785, %v3489, 0
    %3496 = vmatpush.msra.mxu0 0.0
    %3497 = vmatpush.msra.mxu0 0.0
    %3498 = vmatpush.msra.mxu0 0.0
    %3499 = vmatpush.msra.mxu0 0.0
    %3500 = vmatpush.msra.mxu0 0.0
    %3501 = vmatpush.msra.mxu0 0.0
    %3502 = vmatpush.msra.mxu0 0.0
    %3503 = vmatpush.msra.mxu0 0.0
    %3504 = vmatpush.msra.mxu0 0.0
    %3505 = vmatpush.msra.mxu0 0.0
    %3506 = vmatpush.msra.mxu0 0.0
    %3507 = vmatpush.msra.mxu0 0.0
    %3508 = vmatpush.msra.mxu0 0.0
    %3509 = vmatpush.msra.mxu0 0.0
    %3510 = vmatpush.msra.mxu0 %v3492
    %3511 = vmatpush.msra.mxu0 %v3491
    %3512 = vmatmul.f32.gmra.mxu0 %v3494
    %v3513 = vpop.f32.mrf.mxu0
    %v3514 = vadd.f32 0.0, %v3513
    %3515 = vdwg.mxu0
    %v3517 = vperm.slane %v3425, 0
    %v3519 = vadd.f32 %v3517, %v3514
    %3520 = vrot.lane.b32.xlu0 %v3423, 112
    %v3521 = vpop.permute.xlu0 %3520
    %3522 = vrot.lane.b32.xlu0 %v3423, 80
    %v3523 = vpop.permute.xlu0 %3522
    %v3524 = vsel %vm785, %v3521, 0
    %v3526 = vsel %vm785, %v3523, 0
    %3528 = vmatpush.xpose.msra.mxu0 0.0
    %3529 = vmatpush.xpose.msra.mxu0 0.0
    %3530 = vmatpush.xpose.msra.mxu0 0.0
    %3531 = vmatpush.xpose.msra.mxu0 0.0
    %3532 = vmatpush.xpose.msra.mxu0 0.0
    %3533 = vmatpush.xpose.msra.mxu0 0.0
    %3534 = vmatpush.xpose.msra.mxu0 0.0
    %3535 = vmatpush.xpose.msra.mxu0 0.0
    %3536 = vmatpush.xpose.msra.mxu0 0.0
    %3537 = vmatpush.xpose.msra.mxu0 0.0
    %3538 = vmatpush.xpose.msra.mxu0 0.0
    %3539 = vmatpush.xpose.msra.mxu0 0.0
    %3540 = vmatpush.xpose.msra.mxu0 0.0
    %3541 = vmatpush.xpose.msra.mxu0 0.0
    %3542 = vmatpush.xpose.msra.mxu0 0.0
    %3543 = vmatpush.xpose.msra.mxu0 %v3526
    %3544 = vmatmul.f32.gmra.mxu0 %v3524
    %v3545 = vpop.f32.mrf.mxu0
    %v3546 = vadd.f32 0.0, %v3545
    %3547 = vdwg.mxu0
    %v3548 = vmul.f32 %v3546, 0.25
    %v3549 = vsel %vm811, %v3548, -inf
    %3550 = vmax.xlane.f32.xlu0 %v3549
    %v3551 = vpop.xlane.xlu0 %3550
    %v3552 = vsub.f32 %v3548, %v3551
    %v3553 = vmul.f32 %v3552, 1.442695
    %v3554 = vpow.pop %v3553
    %v3555 = vsel %vm811, %v3554, 0.0
    %3556 = vadd.xlane.f32.xlu0 %v3555
    %v3557 = vpop.xlane.xlu0 %3556
    %v3558 = vrcp.pop %v3557
    %v3559 = vmul.f32 %v3554, %v3558
    %3560 = vrot.lane.b32.xlu0 %v3423, 48
    %v3561 = vpop.permute.xlu0 %3560
    %v3564 = vsel %vm811, %v3559, 0
    %3566 = vmatpush.msra.mxu0 0.0
    %3567 = vmatpush.msra.mxu0 0.0
    %3568 = vmatpush.msra.mxu0 0.0
    %3569 = vmatpush.msra.mxu0 0.0
    %3570 = vmatpush.msra.mxu0 0.0
    %3571 = vmatpush.msra.mxu0 0.0
    %3572 = vmatpush.msra.mxu0 0.0
    %3573 = vmatpush.msra.mxu0 0.0
    %3574 = vmatpush.msra.mxu0 0.0
    %3575 = vmatpush.msra.mxu0 0.0
    %3576 = vmatpush.msra.mxu0 0.0
    %3577 = vmatpush.msra.mxu0 0.0
    %3578 = vmatpush.msra.mxu0 0.0
    %3579 = vmatpush.msra.mxu0 0.0
    %3580 = vmatpush.msra.mxu0 0.0
    %3581 = vmatpush.msra.mxu0 %v3561
    %3582 = vmatmul.f32.gmra.mxu0 %v3564
    %v3583 = vpop.f32.mrf.mxu0
    %v3584 = vadd.f32 0.0, %v3583
    %3585 = vdwg.mxu0
    %v3586 = vld [vmem:[%s39 + $0x10] sm:$0xff]
    %v3587 = vld [vmem:[%s39 + $0x18] sm:$0xff]
    %v3589 = vsel %vm785, %v3584, 0
    %3591 = vmatpush.msra.mxu0 0.0
    %3592 = vmatpush.msra.mxu0 0.0
    %3593 = vmatpush.msra.mxu0 0.0
    %3594 = vmatpush.msra.mxu0 0.0
    %3595 = vmatpush.msra.mxu0 0.0
    %3596 = vmatpush.msra.mxu0 0.0
    %3597 = vmatpush.msra.mxu0 0.0
    %3598 = vmatpush.msra.mxu0 0.0
    %3599 = vmatpush.msra.mxu0 0.0
    %3600 = vmatpush.msra.mxu0 0.0
    %3601 = vmatpush.msra.mxu0 0.0
    %3602 = vmatpush.msra.mxu0 0.0
    %3603 = vmatpush.msra.mxu0 0.0
    %3604 = vmatpush.msra.mxu0 0.0
    %3605 = vmatpush.msra.mxu0 %v3587
    %3606 = vmatpush.msra.mxu0 %v3586
    %3607 = vmatmul.f32.gmra.mxu0 %v3589
    %v3608 = vpop.f32.mrf.mxu0
    %v3609 = vadd.f32 0.0, %v3608
    %3610 = vdwg.mxu0
    %v3611 = vadd.f32 %v3519, %v3609
    %v3612 = vadd.f32 %v748, %v3611
    %v3613 = vsel %vm726, %v3612, 0.0
    %3614 = vadd.xlane.f32.xlu0 %v3613
    %v3615 = vpop.xlane.xlu0 %3614
    %v3616 = vmul.f32 %v3615, %v980
    %v3617 = vsub.f32 %v3612, %v3616
    %v3618 = vmul.f32 %v3617, %v3617
    %v3619 = vsel %vm726, %v3618, 0.0
    %3620 = vadd.xlane.f32.xlu0 %v3619
    %v3621 = vpop.xlane.xlu0 %3620
    %v3622 = vmul.f32 %v3621, %v980
    %v3623 = vadd.f32 %v3622, 1e-05
    %v3624 = vrsqrt.pop %v3623
    %v3625 = vmul.f32 %v3624, %v3623
    %v3626 = vmul.f32 %v3625, %v3624
    %v3627 = vmul.f32 0.5, %v3626
    %v3628 = vsub.f32 1.5, %v3627
    %v3629 = vmul.f32 %v3624, %v3628
    %vm3630 = vweird.f32 %v3623
    %vm3631 = vweird.f32 %v3624
    %vm3632 = vmor %vm3630, %vm3631
    %v3633 = vsel %vm3632, %v3624, %v3629
    %v3634 = vmul.f32 %v3617, %v3633
    %v3635 = vld [vmem:[%s25] sm:$0x1]
    %v3637 = vperm.slane %v3635, 0
    %v3639 = vmul.f32 %v3634, %v3637
    %v3640 = vld [vmem:[%s23] sm:$0x1]
    %v3642 = vperm.slane %v3640, 0
    %v3644 = vadd.f32 %v3639, %v3642
    %v3645 = vld [vmem:[%s13] sm:$0xff]
    %v3646 = vld [vmem:[%s13 + $0x8] sm:$0xff]
    %v3647 = vld [vmem:[%s13 + $0x10] sm:$0xff]
    %v3648 = vld [vmem:[%s13 + $0x18] sm:$0xff]
    %v3649 = vld [vmem:[%s7] sm:$0x1]
    %v3651 = vperm.slane %v3649, 0
    %v3654 = vsel %vm726, %v3644, 0
    %3656 = vmatpush.msra.mxu0 0.0
    %3657 = vmatpush.msra.mxu0 0.0
    %3658 = vmatpush.msra.mxu0 0.0
    %3659 = vmatpush.msra.mxu0 0.0
    %3660 = vmatpush.msra.mxu0 0.0
    %3661 = vmatpush.msra.mxu0 0.0
    %3662 = vmatpush.msra.mxu0 0.0
    %3663 = vmatpush.msra.mxu0 0.0
    %3664 = vmatpush.msra.mxu0 0.0
    %3665 = vmatpush.msra.mxu0 0.0
    %3666 = vmatpush.msra.mxu0 0.0
    %3667 = vmatpush.msra.mxu0 0.0
    %3668 = vmatpush.msra.mxu0 %v3648
    %3669 = vmatpush.msra.mxu0 %v3647
    %3670 = vmatpush.msra.mxu0 %v3646
    %3671 = vmatpush.msra.mxu0 %v3645
    %3672 = vmatmul.f32.gmra.mxu0 %v3654
    %v3673 = vpop.f32.mrf.mxu0
    %v3674 = vadd.f32 %v3651, %v3673
    %3675 = vdwg.mxu0
    %v3676 = vld [vmem:[%s9] sm:$0xff]
    %v3677 = vld [vmem:[%s9 + $0x8] sm:$0xff]
    %v3678 = vld [vmem:[%s9 + $0x10] sm:$0xff]
    %v3679 = vld [vmem:[%s9 + $0x18] sm:$0xff]
    %v3680 = vld [vmem:[%s3] sm:$0x1]
    %v3682 = vperm.slane %v3680, 0
    %v3685 = vsel %vm726, %v3396, 0
    %3687 = vmatpush.msra.mxu0 0.0
    %3688 = vmatpush.msra.mxu0 0.0
    %3689 = vmatpush.msra.mxu0 0.0
    %3690 = vmatpush.msra.mxu0 0.0
    %3691 = vmatpush.msra.mxu0 0.0
    %3692 = vmatpush.msra.mxu0 0.0
    %3693 = vmatpush.msra.mxu0 0.0
    %3694 = vmatpush.msra.mxu0 0.0
    %3695 = vmatpush.msra.mxu0 0.0
    %3696 = vmatpush.msra.mxu0 0.0
    %3697 = vmatpush.msra.mxu0 0.0
    %3698 = vmatpush.msra.mxu0 0.0
    %3699 = vmatpush.msra.mxu0 %v3679
    %3700 = vmatpush.msra.mxu0 %v3678
    %3701 = vmatpush.msra.mxu0 %v3677
    %3702 = vmatpush.msra.mxu0 %v3676
    %3703 = vmatmul.f32.gmra.mxu0 %v3685
    %v3704 = vpop.f32.mrf.mxu0
    %v3705 = vadd.f32 %v3682, %v3704
    %3706 = vdwg.mxu0
    %v3707 = vld [vmem:[%s5] sm:$0x1]
    %v3709 = vsel %vm785, %v3674, 0
    %v3712 = vsel %vm785, %v3705, 0
    %3714 = vmatpush.xpose.msra.mxu0 0.0
    %3715 = vmatpush.xpose.msra.mxu0 0.0
    %3716 = vmatpush.xpose.msra.mxu0 0.0
    %3717 = vmatpush.xpose.msra.mxu0 0.0
    %3718 = vmatpush.xpose.msra.mxu0 0.0
    %3719 = vmatpush.xpose.msra.mxu0 0.0
    %3720 = vmatpush.xpose.msra.mxu0 0.0
    %3721 = vmatpush.xpose.msra.mxu0 0.0
    %3722 = vmatpush.xpose.msra.mxu0 0.0
    %3723 = vmatpush.xpose.msra.mxu0 0.0
    %3724 = vmatpush.xpose.msra.mxu0 0.0
    %3725 = vmatpush.xpose.msra.mxu0 0.0
    %3726 = vmatpush.xpose.msra.mxu0 0.0
    %3727 = vmatpush.xpose.msra.mxu0 0.0
    %3728 = vmatpush.xpose.msra.mxu0 0.0
    %3729 = vmatpush.xpose.msra.mxu0 %v3712
    %3730 = vmatmul.f32.gmra.mxu0 %v3709
    %v3731 = vpop.f32.mrf.mxu0
    %v3732 = vadd.f32 0.0, %v3731
    %3733 = vdwg.mxu0
    %v3734 = vmul.f32 %v3732, 0.25
    %v3735 = vsel %vm811, %v3734, -inf
    %3736 = vmax.xlane.f32.xlu0 %v3735
    %v3737 = vpop.xlane.xlu0 %3736
    %v3738 = vsub.f32 %v3734, %v3737
    %v3739 = vmul.f32 %v3738, 1.442695
    %v3740 = vpow.pop %v3739
    %v3741 = vsel %vm811, %v3740, 0.0
    %3742 = vadd.xlane.f32.xlu0 %v3741
    %v3743 = vpop.xlane.xlu0 %3742
    %v3744 = vrcp.pop %v3743
    %v3745 = vmul.f32 %v3740, %v3744
    %3746 = vrot.lane.b32.xlu0 %v3705, 96
    %v3747 = vpop.permute.xlu0 %3746
    %v3750 = vsel %vm811, %v3745, 0
    %3752 = vmatpush.msra.mxu0 0.0
    %3753 = vmatpush.msra.mxu0 0.0
    %3754 = vmatpush.msra.mxu0 0.0
    %3755 = vmatpush.msra.mxu0 0.0
    %3756 = vmatpush.msra.mxu0 0.0
    %3757 = vmatpush.msra.mxu0 0.0
    %3758 = vmatpush.msra.mxu0 0.0
    %3759 = vmatpush.msra.mxu0 0.0
    %3760 = vmatpush.msra.mxu0 0.0
    %3761 = vmatpush.msra.mxu0 0.0
    %3762 = vmatpush.msra.mxu0 0.0
    %3763 = vmatpush.msra.mxu0 0.0
    %3764 = vmatpush.msra.mxu0 0.0
    %3765 = vmatpush.msra.mxu0 0.0
    %3766 = vmatpush.msra.mxu0 0.0
    %3767 = vmatpush.msra.mxu0 %v3747
    %3768 = vmatmul.f32.gmra.mxu0 %v3750
    %v3769 = vpop.f32.mrf.mxu0
    %v3770 = vadd.f32 0.0, %v3769
    %3771 = vdwg.mxu0
    %v3772 = vld [vmem:[%s11] sm:$0xff]
    %v3773 = vld [vmem:[%s11 + $0x8] sm:$0xff]
    %v3775 = vsel %vm785, %v3770, 0
    %3777 = vmatpush.msra.mxu0 0.0
    %3778 = vmatpush.msra.mxu0 0.0
    %3779 = vmatpush.msra.mxu0 0.0
    %3780 = vmatpush.msra.mxu0 0.0
    %3781 = vmatpush.msra.mxu0 0.0
    %3782 = vmatpush.msra.mxu0 0.0
    %3783 = vmatpush.msra.mxu0 0.0
    %3784 = vmatpush.msra.mxu0 0.0
    %3785 = vmatpush.msra.mxu0 0.0
    %3786 = vmatpush.msra.mxu0 0.0
    %3787 = vmatpush.msra.mxu0 0.0
    %3788 = vmatpush.msra.mxu0 0.0
    %3789 = vmatpush.msra.mxu0 0.0
    %3790 = vmatpush.msra.mxu0 0.0
    %3791 = vmatpush.msra.mxu0 %v3773
    %3792 = vmatpush.msra.mxu0 %v3772
    %3793 = vmatmul.f32.gmra.mxu0 %v3775
    %v3794 = vpop.f32.mrf.mxu0
    %v3795 = vadd.f32 0.0, %v3794
    %3796 = vdwg.mxu0
    %v3798 = vperm.slane %v3707, 0
    %v3800 = vadd.f32 %v3798, %v3795
    %3801 = vrot.lane.b32.xlu0 %v3674, 112
    %v3802 = vpop.permute.xlu0 %3801
    %3803 = vrot.lane.b32.xlu0 %v3705, 112
    %v3804 = vpop.permute.xlu0 %3803
    %v3805 = vsel %vm785, %v3802, 0
    %v3807 = vsel %vm785, %v3804, 0
    %3809 = vmatpush.xpose.msra.mxu0 0.0
    %3810 = vmatpush.xpose.msra.mxu0 0.0
    %3811 = vmatpush.xpose.msra.mxu0 0.0
    %3812 = vmatpush.xpose.msra.mxu0 0.0
    %3813 = vmatpush.xpose.msra.mxu0 0.0
    %3814 = vmatpush.xpose.msra.mxu0 0.0
    %3815 = vmatpush.xpose.msra.mxu0 0.0
    %3816 = vmatpush.xpose.msra.mxu0 0.0
    %3817 = vmatpush.xpose.msra.mxu0 0.0
    %3818 = vmatpush.xpose.msra.mxu0 0.0
    %3819 = vmatpush.xpose.msra.mxu0 0.0
    %3820 = vmatpush.xpose.msra.mxu0 0.0
    %3821 = vmatpush.xpose.msra.mxu0 0.0
    %3822 = vmatpush.xpose.msra.mxu0 0.0
    %3823 = vmatpush.xpose.msra.mxu0 0.0
    %3824 = vmatpush.xpose.msra.mxu0 %v3807
    %3825 = vmatmul.f32.gmra.mxu0 %v3805
    %v3826 = vpop.f32.mrf.mxu0
    %v3827 = vadd.f32 0.0, %v3826
    %3828 = vdwg.mxu0
    %v3829 = vmul.f32 %v3827, 0.25
    %v3830 = vsel %vm811, %v3829, -inf
    %3831 = vmax.xlane.f32.xlu0 %v3830
    %v3832 = vpop.xlane.xlu0 %3831
    %v3833 = vsub.f32 %v3829, %v3832
    %v3834 = vmul.f32 %v3833, 1.442695
    %v3835 = vpow.pop %v3834
    %v3836 = vsel %vm811, %v3835, 0.0
    %3837 = vadd.xlane.f32.xlu0 %v3836
    %v3838 = vpop.xlane.xlu0 %3837
    %v3839 = vrcp.pop %v3838
    %v3840 = vmul.f32 %v3835, %v3839
    %3841 = vrot.lane.b32.xlu0 %v3705, 80
    %v3842 = vpop.permute.xlu0 %3841
    %v3845 = vsel %vm811, %v3840, 0
    %3847 = vmatpush.msra.mxu0 0.0
    %3848 = vmatpush.msra.mxu0 0.0
    %3849 = vmatpush.msra.mxu0 0.0
    %3850 = vmatpush.msra.mxu0 0.0
    %3851 = vmatpush.msra.mxu0 0.0
    %3852 = vmatpush.msra.mxu0 0.0
    %3853 = vmatpush.msra.mxu0 0.0
    %3854 = vmatpush.msra.mxu0 0.0
    %3855 = vmatpush.msra.mxu0 0.0
    %3856 = vmatpush.msra.mxu0 0.0
    %3857 = vmatpush.msra.mxu0 0.0
    %3858 = vmatpush.msra.mxu0 0.0
    %3859 = vmatpush.msra.mxu0 0.0
    %3860 = vmatpush.msra.mxu0 0.0
    %3861 = vmatpush.msra.mxu0 0.0
    %3862 = vmatpush.msra.mxu0 %v3842
    %3863 = vmatmul.f32.gmra.mxu0 %v3845
    %v3864 = vpop.f32.mrf.mxu0
    %v3865 = vadd.f32 0.0, %v3864
    %3866 = vdwg.mxu0
    %v3867 = vld [vmem:[%s11 + $0x10] sm:$0xff]
    %v3868 = vld [vmem:[%s11 + $0x18] sm:$0xff]
    %v3870 = vsel %vm785, %v3865, 0
    %3872 = vmatpush.msra.mxu0 0.0
    %3873 = vmatpush.msra.mxu0 0.0
    %3874 = vmatpush.msra.mxu0 0.0
    %3875 = vmatpush.msra.mxu0 0.0
    %3876 = vmatpush.msra.mxu0 0.0
    %3877 = vmatpush.msra.mxu0 0.0
    %3878 = vmatpush.msra.mxu0 0.0
    %3879 = vmatpush.msra.mxu0 0.0
    %3880 = vmatpush.msra.mxu0 0.0
    %3881 = vmatpush.msra.mxu0 0.0
    %3882 = vmatpush.msra.mxu0 0.0
    %3883 = vmatpush.msra.mxu0 0.0
    %3884 = vmatpush.msra.mxu0 0.0
    %3885 = vmatpush.msra.mxu0 0.0
    %3886 = vmatpush.msra.mxu0 %v3868
    %3887 = vmatpush.msra.mxu0 %v3867
    %3888 = vmatmul.f32.gmra.mxu0 %v3870
    %v3889 = vpop.f32.mrf.mxu0
    %v3890 = vadd.f32 0.0, %v3889
    %3891 = vdwg.mxu0
    %v3892 = vadd.f32 %v3800, %v3890
    %v3893 = vadd.f32 %v3644, %v3892
    %v3894 = vsel %vm726, %v3893, 0.0
    %3895 = vadd.xlane.f32.xlu0 %v3894
    %v3896 = vpop.xlane.xlu0 %3895
    %v3897 = vmul.f32 %v3896, %v980
    %v3898 = vsub.f32 %v3893, %v3897
    %v3899 = vmul.f32 %v3898, %v3898
    %v3900 = vsel %vm726, %v3899, 0.0
    %3901 = vadd.xlane.f32.xlu0 %v3900
    %v3902 = vpop.xlane.xlu0 %3901
    %v3903 = vmul.f32 %v3902, %v980
    %v3904 = vadd.f32 %v3903, 1e-05
    %v3905 = vrsqrt.pop %v3904
    %v3906 = vmul.f32 %v3905, %v3904
    %v3907 = vmul.f32 %v3906, %v3905
    %v3908 = vmul.f32 0.5, %v3907
    %v3909 = vsub.f32 1.5, %v3908
    %v3910 = vmul.f32 %v3905, %v3909
    %vm3911 = vweird.f32 %v3904
    %vm3912 = vweird.f32 %v3905
    %vm3913 = vmor %vm3911, %vm3912
    %v3914 = vsel %vm3913, %v3905, %v3910
    %v3915 = vmul.f32 %v3898, %v3914
    %v3916 = vld [vmem:[%s29] sm:$0x1]
    %v3918 = vperm.slane %v3916, 0
    %v3920 = vmul.f32 %v3915, %v3918
    %v3921 = vld [vmem:[%s27] sm:$0x1]
    %v3923 = vperm.slane %v3921, 0
    %v3925 = vadd.f32 %v3920, %v3923
    %v3926 = vld [vmem:[%s19] sm:$0xff]
    %v3927 = vld [vmem:[%s19 + $0x8] sm:$0xff]
    %v3928 = vld [vmem:[%s19 + $0x10] sm:$0xff]
    %v3929 = vld [vmem:[%s19 + $0x18] sm:$0xff]
    %v3930 = vld [vmem:[%s19 + $0x20] sm:$0xff]
    %v3931 = vld [vmem:[%s19 + $0x28] sm:$0xff]
    %v3932 = vld [vmem:[%s19 + $0x30] sm:$0xff]
    %v3933 = vld [vmem:[%s19 + $0x38] sm:$0xff]
    %v3934 = vld [vmem:[%s19 + $0x40] sm:$0xff]
    %v3935 = vld [vmem:[%s19 + $0x48] sm:$0xff]
    %v3936 = vld [vmem:[%s19 + $0x50] sm:$0xff]
    %v3937 = vld [vmem:[%s19 + $0x58] sm:$0xff]
    %v3938 = vld [vmem:[%s19 + $0x60] sm:$0xff]
    %v3939 = vld [vmem:[%s19 + $0x68] sm:$0xff]
    %v3940 = vld [vmem:[%s19 + $0x70] sm:$0xff]
    %v3941 = vld [vmem:[%s19 + $0x78] sm:$0xff]
    %v3942 = vld [vmem:[%s19 + $0x80] sm:$0xff]
    %v3943 = vld [vmem:[%s19 + $0x88] sm:$0xff]
    %v3944 = vld [vmem:[%s19 + $0x90] sm:$0xff]
    %v3945 = vld [vmem:[%s19 + $0x98] sm:$0xff]
    %v3946 = vld [vmem:[%s19 + $0xa0] sm:$0xff]
    %v3947 = vld [vmem:[%s19 + $0xa8] sm:$0xff]
    %v3948 = vld [vmem:[%s19 + $0xb0] sm:$0xff]
    %v3949 = vld [vmem:[%s19 + $0xb8] sm:$0xff]
    %v3950 = vld [vmem:[%s19 + $0xc0] sm:$0xff]
    %v3951 = vld [vmem:[%s19 + $0xc8] sm:$0xff]
    %v3952 = vld [vmem:[%s19 + $0xd0] sm:$0xff]
    %v3953 = vld [vmem:[%s19 + $0xd8] sm:$0xff]
    %v3954 = vld [vmem:[%s19 + $0xe0] sm:$0xff]
    %v3955 = vld [vmem:[%s19 + $0xe8] sm:$0xff]
    %v3956 = vld [vmem:[%s19 + $0xf0] sm:$0xff]
    %v3957 = vld [vmem:[%s19 + $0xf8] sm:$0xff]
    %v3958 = vld [vmem:[%s19 + $0x100] sm:$0xff]
    %v3959 = vld [vmem:[%s19 + $0x108] sm:$0xff]
    %v3960 = vld [vmem:[%s19 + $0x110] sm:$0xff]
    %v3961 = vld [vmem:[%s19 + $0x118] sm:$0xff]
    %v3962 = vld [vmem:[%s19 + $0x120] sm:$0xff]
    %v3963 = vld [vmem:[%s19 + $0x128] sm:$0xff]
    %v3964 = vld [vmem:[%s19 + $0x130] sm:$0xff]
    %v3965 = vld [vmem:[%s19 + $0x138] sm:$0xff]
    %v3966 = vld [vmem:[%s19 + $0x140] sm:$0xff]
    %v3967 = vld [vmem:[%s19 + $0x148] sm:$0xff]
    %v3968 = vld [vmem:[%s19 + $0x150] sm:$0xff]
    %v3969 = vld [vmem:[%s19 + $0x158] sm:$0xff]
    %v3970 = vld [vmem:[%s19 + $0x160] sm:$0xff]
    %v3971 = vld [vmem:[%s19 + $0x168] sm:$0xff]
    %v3972 = vld [vmem:[%s19 + $0x170] sm:$0xff]
    %v3973 = vld [vmem:[%s19 + $0x178] sm:$0xff]
    %v3974 = vld [vmem:[%s19 + $0x180] sm:$0xff]
    %v3975 = vld [vmem:[%s19 + $0x188] sm:$0xff]
    %v3976 = vld [vmem:[%s19 + $0x190] sm:$0xff]
    %v3977 = vld [vmem:[%s19 + $0x198] sm:$0xff]
    %v3978 = vld [vmem:[%s19 + $0x1a0] sm:$0xff]
    %v3979 = vld [vmem:[%s19 + $0x1a8] sm:$0xff]
    %v3980 = vld [vmem:[%s19 + $0x1b0] sm:$0xff]
    %v3981 = vld [vmem:[%s19 + $0x1b8] sm:$0xff]
    %v3982 = vld [vmem:[%s19 + $0x1c0] sm:$0xff]
    %v3983 = vld [vmem:[%s19 + $0x1c8] sm:$0xff]
    %v3984 = vld [vmem:[%s19 + $0x1d0] sm:$0xff]
    %v3985 = vld [vmem:[%s19 + $0x1d8] sm:$0xff]
    %v3986 = vld [vmem:[%s19 + $0x1e0] sm:$0xff]
    %v3987 = vld [vmem:[%s19 + $0x1e8] sm:$0xff]
    %v3988 = vld [vmem:[%s19 + $0x1f0] sm:$0xff]
    %v3989 = vld [vmem:[%s19 + $0x1f8] sm:$0xff]
    %v3990 = vld [vmem:[%s15] sm:$0xff]
    %v3991 = vld [vmem:[%s15 + $0x8] sm:$0xff]
    %v3994 = vperm.slane %v3990, 0
    %v3995 = vperm.slane %v3990, 1
    %v3996 = vperm.slane %v3990, 2
    %v3997 = vperm.slane %v3990, 3
    %v3998 = vperm.slane %v3990, 4
    %v3999 = vperm.slane %v3990, 5
    %v4000 = vperm.slane %v3990, 6
    %v4001 = vperm.slane %v3990, 7
    %v4002 = vperm.slane %v3991, 0
    %v4003 = vperm.slane %v3991, 1
    %v4004 = vperm.slane %v3991, 2
    %v4005 = vperm.slane %v3991, 3
    %v4006 = vperm.slane %v3991, 4
    %v4007 = vperm.slane %v3991, 5
    %v4008 = vperm.slane %v3991, 6
    %v4009 = vperm.slane %v3991, 7
    %v4027 = vsel %vm726, %v3925, 0
    %4029 = vmatpush.msra.mxu0 0.0
    %4030 = vmatpush.msra.mxu0 0.0
    %4031 = vmatpush.msra.mxu0 0.0
    %4032 = vmatpush.msra.mxu0 0.0
    %4033 = vmatpush.msra.mxu0 0.0
    %4034 = vmatpush.msra.mxu0 0.0
    %4035 = vmatpush.msra.mxu0 0.0
    %4036 = vmatpush.msra.mxu0 0.0
    %4037 = vmatpush.msra.mxu0 0.0
    %4038 = vmatpush.msra.mxu0 0.0
    %4039 = vmatpush.msra.mxu0 0.0
    %4040 = vmatpush.msra.mxu0 0.0
    %4041 = vmatpush.msra.mxu0 %v3974
    %4042 = vmatpush.msra.mxu0 %v3958
    %4043 = vmatpush.msra.mxu0 %v3942
    %4044 = vmatpush.msra.mxu0 %v3926
    %4045 = vmatmul.f32.gmra.mxu0 %v4027
    %v4046 = vpop.f32.mrf.mxu0
    %v4047 = vadd.f32 %v3994, %v4046
    %4048 = vdwg.mxu0
    %4049 = vmatpush.msra.mxu0 0.0
    %4050 = vmatpush.msra.mxu0 0.0
    %4051 = vmatpush.msra.mxu0 0.0
    %4052 = vmatpush.msra.mxu0 0.0
    %4053 = vmatpush.msra.mxu0 0.0
    %4054 = vmatpush.msra.mxu0 0.0
    %4055 = vmatpush.msra.mxu0 0.0
    %4056 = vmatpush.msra.mxu0 0.0
    %4057 = vmatpush.msra.mxu0 0.0
    %4058 = vmatpush.msra.mxu0 0.0
    %4059 = vmatpush.msra.mxu0 0.0
    %4060 = vmatpush.msra.mxu0 0.0
    %4061 = vmatpush.msra.mxu0 %v3975
    %4062 = vmatpush.msra.mxu0 %v3959
    %4063 = vmatpush.msra.mxu0 %v3943
    %4064 = vmatpush.msra.mxu0 %v3927
    %4065 = vmatmul.f32.gmra.mxu0 %v4027
    %v4066 = vpop.f32.mrf.mxu0
    %v4067 = vadd.f32 %v3995, %v4066
    %4068 = vdwg.mxu0
    %4069 = vmatpush.msra.mxu0 0.0
    %4070 = vmatpush.msra.mxu0 0.0
    %4071 = vmatpush.msra.mxu0 0.0
    %4072 = vmatpush.msra.mxu0 0.0
    %4073 = vmatpush.msra.mxu0 0.0
    %4074 = vmatpush.msra.mxu0 0.0
    %4075 = vmatpush.msra.mxu0 0.0
    %4076 = vmatpush.msra.mxu0 0.0
    %4077 = vmatpush.msra.mxu0 0.0
    %4078 = vmatpush.msra.mxu0 0.0
    %4079 = vmatpush.msra.mxu0 0.0
    %4080 = vmatpush.msra.mxu0 0.0
    %4081 = vmatpush.msra.mxu0 %v3976
    %4082 = vmatpush.msra.mxu0 %v3960
    %4083 = vmatpush.msra.mxu0 %v3944
    %4084 = vmatpush.msra.mxu0 %v3928
    %4085 = vmatmul.f32.gmra.mxu0 %v4027
    %v4086 = vpop.f32.mrf.mxu0
    %v4087 = vadd.f32 %v3996, %v4086
    %4088 = vdwg.mxu0
    %4089 = vmatpush.msra.mxu0 0.0
    %4090 = vmatpush.msra.mxu0 0.0
    %4091 = vmatpush.msra.mxu0 0.0
    %4092 = vmatpush.msra.mxu0 0.0
    %4093 = vmatpush.msra.mxu0 0.0
    %4094 = vmatpush.msra.mxu0 0.0
    %4095 = vmatpush.msra.mxu0 0.0
    %4096 = vmatpush.msra.mxu0 0.0
    %4097 = vmatpush.msra.mxu0 0.0
    %4098 = vmatpush.msra.mxu0 0.0
    %4099 = vmatpush.msra.mxu0 0.0
    %4100 = vmatpush.msra.mxu0 0.0
    %4101 = vmatpush.msra.mxu0 %v3977
    %4102 = vmatpush.msra.mxu0 %v3961
    %4103 = vmatpush.msra.mxu0 %v3945
    %4104 = vmatpush.msra.mxu0 %v3929
    %4105 = vmatmul.f32.gmra.mxu0 %v4027
    %v4106 = vpop.f32.mrf.mxu0
    %v4107 = vadd.f32 %v3997, %v4106
    %4108 = vdwg.mxu0
    %4109 = vmatpush.msra.mxu0 0.0
    %4110 = vmatpush.msra.mxu0 0.0
    %4111 = vmatpush.msra.mxu0 0.0
    %4112 = vmatpush.msra.mxu0 0.0
    %4113 = vmatpush.msra.mxu0 0.0
    %4114 = vmatpush.msra.mxu0 0.0
    %4115 = vmatpush.msra.mxu0 0.0
    %4116 = vmatpush.msra.mxu0 0.0
    %4117 = vmatpush.msra.mxu0 0.0
    %4118 = vmatpush.msra.mxu0 0.0
    %4119 = vmatpush.msra.mxu0 0.0
    %4120 = vmatpush.msra.mxu0 0.0
    %4121 = vmatpush.msra.mxu0 %v3978
    %4122 = vmatpush.msra.mxu0 %v3962
    %4123 = vmatpush.msra.mxu0 %v3946
    %4124 = vmatpush.msra.mxu0 %v3930
    %4125 = vmatmul.f32.gmra.mxu0 %v4027
    %v4126 = vpop.f32.mrf.mxu0
    %v4127 = vadd.f32 %v3998, %v4126
    %4128 = vdwg.mxu0
    %4129 = vmatpush.msra.mxu0 0.0
    %4130 = vmatpush.msra.mxu0 0.0
    %4131 = vmatpush.msra.mxu0 0.0
    %4132 = vmatpush.msra.mxu0 0.0
    %4133 = vmatpush.msra.mxu0 0.0
    %4134 = vmatpush.msra.mxu0 0.0
    %4135 = vmatpush.msra.mxu0 0.0
    %4136 = vmatpush.msra.mxu0 0.0
    %4137 = vmatpush.msra.mxu0 0.0
    %4138 = vmatpush.msra.mxu0 0.0
    %4139 = vmatpush.msra.mxu0 0.0
    %4140 = vmatpush.msra.mxu0 0.0
    %4141 = vmatpush.msra.mxu0 %v3979
    %4142 = vmatpush.msra.mxu0 %v3963
    %4143 = vmatpush.msra.mxu0 %v3947
    %4144 = vmatpush.msra.mxu0 %v3931
    %4145 = vmatmul.f32.gmra.mxu0 %v4027
    %v4146 = vpop.f32.mrf.mxu0
    %v4147 = vadd.f32 %v3999, %v4146
    %4148 = vdwg.mxu0
    %4149 = vmatpush.msra.mxu0 0.0
    %4150 = vmatpush.msra.mxu0 0.0
    %4151 = vmatpush.msra.mxu0 0.0
    %4152 = vmatpush.msra.mxu0 0.0
    %4153 = vmatpush.msra.mxu0 0.0
    %4154 = vmatpush.msra.mxu0 0.0
    %4155 = vmatpush.msra.mxu0 0.0
    %4156 = vmatpush.msra.mxu0 0.0
    %4157 = vmatpush.msra.mxu0 0.0
    %4158 = vmatpush.msra.mxu0 0.0
    %4159 = vmatpush.msra.mxu0 0.0
    %4160 = vmatpush.msra.mxu0 0.0
    %4161 = vmatpush.msra.mxu0 %v3980
    %4162 = vmatpush.msra.mxu0 %v3964
    %4163 = vmatpush.msra.mxu0 %v3948
    %4164 = vmatpush.msra.mxu0 %v3932
    %4165 = vmatmul.f32.gmra.mxu0 %v4027
    %v4166 = vpop.f32.mrf.mxu0
    %v4167 = vadd.f32 %v4000, %v4166
    %4168 = vdwg.mxu0
    %4169 = vmatpush.msra.mxu0 0.0
    %4170 = vmatpush.msra.mxu0 0.0
    %4171 = vmatpush.msra.mxu0 0.0
    %4172 = vmatpush.msra.mxu0 0.0
    %4173 = vmatpush.msra.mxu0 0.0
    %4174 = vmatpush.msra.mxu0 0.0
    %4175 = vmatpush.msra.mxu0 0.0
    %4176 = vmatpush.msra.mxu0 0.0
    %4177 = vmatpush.msra.mxu0 0.0
    %4178 = vmatpush.msra.mxu0 0.0
    %4179 = vmatpush.msra.mxu0 0.0
    %4180 = vmatpush.msra.mxu0 0.0
    %4181 = vmatpush.msra.mxu0 %v3981
    %4182 = vmatpush.msra.mxu0 %v3965
    %4183 = vmatpush.msra.mxu0 %v3949
    %4184 = vmatpush.msra.mxu0 %v3933
    %4185 = vmatmul.f32.gmra.mxu0 %v4027
    %v4186 = vpop.f32.mrf.mxu0
    %v4187 = vadd.f32 %v4001, %v4186
    %4188 = vdwg.mxu0
    %4189 = vmatpush.msra.mxu0 0.0
    %4190 = vmatpush.msra.mxu0 0.0
    %4191 = vmatpush.msra.mxu0 0.0
    %4192 = vmatpush.msra.mxu0 0.0
    %4193 = vmatpush.msra.mxu0 0.0
    %4194 = vmatpush.msra.mxu0 0.0
    %4195 = vmatpush.msra.mxu0 0.0
    %4196 = vmatpush.msra.mxu0 0.0
    %4197 = vmatpush.msra.mxu0 0.0
    %4198 = vmatpush.msra.mxu0 0.0
    %4199 = vmatpush.msra.mxu0 0.0
    %4200 = vmatpush.msra.mxu0 0.0
    %4201 = vmatpush.msra.mxu0 %v3982
    %4202 = vmatpush.msra.mxu0 %v3966
    %4203 = vmatpush.msra.mxu0 %v3950
    %4204 = vmatpush.msra.mxu0 %v3934
    %4205 = vmatmul.f32.gmra.mxu0 %v4027
    %v4206 = vpop.f32.mrf.mxu0
    %v4207 = vadd.f32 %v4002, %v4206
    %4208 = vdwg.mxu0
    %4209 = vmatpush.msra.mxu0 0.0
    %4210 = vmatpush.msra.mxu0 0.0
    %4211 = vmatpush.msra.mxu0 0.0
    %4212 = vmatpush.msra.mxu0 0.0
    %4213 = vmatpush.msra.mxu0 0.0
    %4214 = vmatpush.msra.mxu0 0.0
    %4215 = vmatpush.msra.mxu0 0.0
    %4216 = vmatpush.msra.mxu0 0.0
    %4217 = vmatpush.msra.mxu0 0.0
    %4218 = vmatpush.msra.mxu0 0.0
    %4219 = vmatpush.msra.mxu0 0.0
    %4220 = vmatpush.msra.mxu0 0.0
    %4221 = vmatpush.msra.mxu0 %v3983
    %4222 = vmatpush.msra.mxu0 %v3967
    %4223 = vmatpush.msra.mxu0 %v3951
    %4224 = vmatpush.msra.mxu0 %v3935
    %4225 = vmatmul.f32.gmra.mxu0 %v4027
    %v4226 = vpop.f32.mrf.mxu0
    %v4227 = vadd.f32 %v4003, %v4226
    %4228 = vdwg.mxu0
    %4229 = vmatpush.msra.mxu0 0.0
    %4230 = vmatpush.msra.mxu0 0.0
    %4231 = vmatpush.msra.mxu0 0.0
    %4232 = vmatpush.msra.mxu0 0.0
    %4233 = vmatpush.msra.mxu0 0.0
    %4234 = vmatpush.msra.mxu0 0.0
    %4235 = vmatpush.msra.mxu0 0.0
    %4236 = vmatpush.msra.mxu0 0.0
    %4237 = vmatpush.msra.mxu0 0.0
    %4238 = vmatpush.msra.mxu0 0.0
    %4239 = vmatpush.msra.mxu0 0.0
    %4240 = vmatpush.msra.mxu0 0.0
    %4241 = vmatpush.msra.mxu0 %v3984
    %4242 = vmatpush.msra.mxu0 %v3968
    %4243 = vmatpush.msra.mxu0 %v3952
    %4244 = vmatpush.msra.mxu0 %v3936
    %4245 = vmatmul.f32.gmra.mxu0 %v4027
    %v4246 = vpop.f32.mrf.mxu0
    %v4247 = vadd.f32 %v4004, %v4246
    %4248 = vdwg.mxu0
    %4249 = vmatpush.msra.mxu0 0.0
    %4250 = vmatpush.msra.mxu0 0.0
    %4251 = vmatpush.msra.mxu0 0.0
    %4252 = vmatpush.msra.mxu0 0.0
    %4253 = vmatpush.msra.mxu0 0.0
    %4254 = vmatpush.msra.mxu0 0.0
    %4255 = vmatpush.msra.mxu0 0.0
    %4256 = vmatpush.msra.mxu0 0.0
    %4257 = vmatpush.msra.mxu0 0.0
    %4258 = vmatpush.msra.mxu0 0.0
    %4259 = vmatpush.msra.mxu0 0.0
    %4260 = vmatpush.msra.mxu0 0.0
    %4261 = vmatpush.msra.mxu0 %v3985
    %4262 = vmatpush.msra.mxu0 %v3969
    %4263 = vmatpush.msra.mxu0 %v3953
    %4264 = vmatpush.msra.mxu0 %v3937
    %4265 = vmatmul.f32.gmra.mxu0 %v4027
    %v4266 = vpop.f32.mrf.mxu0
    %v4267 = vadd.f32 %v4005, %v4266
    %4268 = vdwg.mxu0
    %4269 = vmatpush.msra.mxu0 0.0
    %4270 = vmatpush.msra.mxu0 0.0
    %4271 = vmatpush.msra.mxu0 0.0
    %4272 = vmatpush.msra.mxu0 0.0
    %4273 = vmatpush.msra.mxu0 0.0
    %4274 = vmatpush.msra.mxu0 0.0
    %4275 = vmatpush.msra.mxu0 0.0
    %4276 = vmatpush.msra.mxu0 0.0
    %4277 = vmatpush.msra.mxu0 0.0
    %4278 = vmatpush.msra.mxu0 0.0
    %4279 = vmatpush.msra.mxu0 0.0
    %4280 = vmatpush.msra.mxu0 0.0
    %4281 = vmatpush.msra.mxu0 %v3986
    %4282 = vmatpush.msra.mxu0 %v3970
    %4283 = vmatpush.msra.mxu0 %v3954
    %4284 = vmatpush.msra.mxu0 %v3938
    %4285 = vmatmul.f32.gmra.mxu0 %v4027
    %v4286 = vpop.f32.mrf.mxu0
    %v4287 = vadd.f32 %v4006, %v4286
    %4288 = vdwg.mxu0
    %4289 = vmatpush.msra.mxu0 0.0
    %4290 = vmatpush.msra.mxu0 0.0
    %4291 = vmatpush.msra.mxu0 0.0
    %4292 = vmatpush.msra.mxu0 0.0
    %4293 = vmatpush.msra.mxu0 0.0
    %4294 = vmatpush.msra.mxu0 0.0
    %4295 = vmatpush.msra.mxu0 0.0
    %4296 = vmatpush.msra.mxu0 0.0
    %4297 = vmatpush.msra.mxu0 0.0
    %4298 = vmatpush.msra.mxu0 0.0
    %4299 = vmatpush.msra.mxu0 0.0
    %4300 = vmatpush.msra.mxu0 0.0
    %4301 = vmatpush.msra.mxu0 %v3987
    %4302 = vmatpush.msra.mxu0 %v3971
    %4303 = vmatpush.msra.mxu0 %v3955
    %4304 = vmatpush.msra.mxu0 %v3939
    %4305 = vmatmul.f32.gmra.mxu0 %v4027
    %v4306 = vpop.f32.mrf.mxu0
    %v4307 = vadd.f32 %v4007, %v4306
    %4308 = vdwg.mxu0
    %4309 = vmatpush.msra.mxu0 0.0
    %4310 = vmatpush.msra.mxu0 0.0
    %4311 = vmatpush.msra.mxu0 0.0
    %4312 = vmatpush.msra.mxu0 0.0
    %4313 = vmatpush.msra.mxu0 0.0
    %4314 = vmatpush.msra.mxu0 0.0
    %4315 = vmatpush.msra.mxu0 0.0
    %4316 = vmatpush.msra.mxu0 0.0
    %4317 = vmatpush.msra.mxu0 0.0
    %4318 = vmatpush.msra.mxu0 0.0
    %4319 = vmatpush.msra.mxu0 0.0
    %4320 = vmatpush.msra.mxu0 0.0
    %4321 = vmatpush.msra.mxu0 %v3988
    %4322 = vmatpush.msra.mxu0 %v3972
    %4323 = vmatpush.msra.mxu0 %v3956
    %4324 = vmatpush.msra.mxu0 %v3940
    %4325 = vmatmul.f32.gmra.mxu0 %v4027
    %v4326 = vpop.f32.mrf.mxu0
    %v4327 = vadd.f32 %v4008, %v4326
    %4328 = vdwg.mxu0
    %4329 = vmatpush.msra.mxu0 0.0
    %4330 = vmatpush.msra.mxu0 0.0
    %4331 = vmatpush.msra.mxu0 0.0
    %4332 = vmatpush.msra.mxu0 0.0
    %4333 = vmatpush.msra.mxu0 0.0
    %4334 = vmatpush.msra.mxu0 0.0
    %4335 = vmatpush.msra.mxu0 0.0
    %4336 = vmatpush.msra.mxu0 0.0
    %4337 = vmatpush.msra.mxu0 0.0
    %4338 = vmatpush.msra.mxu0 0.0
    %4339 = vmatpush.msra.mxu0 0.0
    %4340 = vmatpush.msra.mxu0 0.0
    %4341 = vmatpush.msra.mxu0 %v3989
    %4342 = vmatpush.msra.mxu0 %v3973
    %4343 = vmatpush.msra.mxu0 %v3957
    %4344 = vmatpush.msra.mxu0 %v3941
    %4345 = vmatmul.f32.gmra.mxu0 %v4027
    %v4346 = vpop.f32.mrf.mxu0
    %v4347 = vadd.f32 %v4009, %v4346
    %4348 = vdwg.mxu0
    %v4349 = vmax.f32 %v4047, 0.0
    %v4350 = vmax.f32 %v4067, 0.0
    %v4351 = vmax.f32 %v4087, 0.0
    %v4352 = vmax.f32 %v4107, 0.0
    %v4353 = vmax.f32 %v4127, 0.0
    %v4354 = vmax.f32 %v4147, 0.0
    %v4355 = vmax.f32 %v4167, 0.0
    %v4356 = vmax.f32 %v4187, 0.0
    %v4357 = vmax.f32 %v4207, 0.0
    %v4358 = vmax.f32 %v4227, 0.0
    %v4359 = vmax.f32 %v4247, 0.0
    %v4360 = vmax.f32 %v4267, 0.0
    %v4361 = vmax.f32 %v4287, 0.0
    %v4362 = vmax.f32 %v4307, 0.0
    %v4363 = vmax.f32 %v4327, 0.0
    %v4364 = vmax.f32 %v4347, 0.0
    %v4365 = vld [vmem:[%s21] sm:$0xff]
    %v4366 = vld [vmem:[%s21 + $0x8] sm:$0xff]
    %v4367 = vld [vmem:[%s21 + $0x10] sm:$0xff]
    %v4368 = vld [vmem:[%s21 + $0x18] sm:$0xff]
    %v4369 = vld [vmem:[%s21 + $0x20] sm:$0xff]
    %v4370 = vld [vmem:[%s21 + $0x28] sm:$0xff]
    %v4371 = vld [vmem:[%s21 + $0x30] sm:$0xff]
    %v4372 = vld [vmem:[%s21 + $0x38] sm:$0xff]
    %v4373 = vld [vmem:[%s21 + $0x40] sm:$0xff]
    %v4374 = vld [vmem:[%s21 + $0x48] sm:$0xff]
    %v4375 = vld [vmem:[%s21 + $0x50] sm:$0xff]
    %v4376 = vld [vmem:[%s21 + $0x58] sm:$0xff]
    %v4377 = vld [vmem:[%s21 + $0x60] sm:$0xff]
    %v4378 = vld [vmem:[%s21 + $0x68] sm:$0xff]
    %v4379 = vld [vmem:[%s21 + $0x70] sm:$0xff]
    %v4380 = vld [vmem:[%s21 + $0x78] sm:$0xff]
    %v4381 = vld [vmem:[%s21 + $0x80] sm:$0xff]
    %v4382 = vld [vmem:[%s21 + $0x88] sm:$0xff]
    %v4383 = vld [vmem:[%s21 + $0x90] sm:$0xff]
    %v4384 = vld [vmem:[%s21 + $0x98] sm:$0xff]
    %v4385 = vld [vmem:[%s21 + $0xa0] sm:$0xff]
    %v4386 = vld [vmem:[%s21 + $0xa8] sm:$0xff]
    %v4387 = vld [vmem:[%s21 + $0xb0] sm:$0xff]
    %v4388 = vld [vmem:[%s21 + $0xb8] sm:$0xff]
    %v4389 = vld [vmem:[%s21 + $0xc0] sm:$0xff]
    %v4390 = vld [vmem:[%s21 + $0xc8] sm:$0xff]
    %v4391 = vld [vmem:[%s21 + $0xd0] sm:$0xff]
    %v4392 = vld [vmem:[%s21 + $0xd8] sm:$0xff]
    %v4393 = vld [vmem:[%s21 + $0xe0] sm:$0xff]
    %v4394 = vld [vmem:[%s21 + $0xe8] sm:$0xff]
    %v4395 = vld [vmem:[%s21 + $0xf0] sm:$0xff]
    %v4396 = vld [vmem:[%s21 + $0xf8] sm:$0xff]
    %v4397 = vld [vmem:[%s21 + $0x100] sm:$0xff]
    %v4398 = vld [vmem:[%s21 + $0x108] sm:$0xff]
    %v4399 = vld [vmem:[%s21 + $0x110] sm:$0xff]
    %v4400 = vld [vmem:[%s21 + $0x118] sm:$0xff]
    %v4401 = vld [vmem:[%s21 + $0x120] sm:$0xff]
    %v4402 = vld [vmem:[%s21 + $0x128] sm:$0xff]
    %v4403 = vld [vmem:[%s21 + $0x130] sm:$0xff]
    %v4404 = vld [vmem:[%s21 + $0x138] sm:$0xff]
    %v4405 = vld [vmem:[%s21 + $0x140] sm:$0xff]
    %v4406 = vld [vmem:[%s21 + $0x148] sm:$0xff]
    %v4407 = vld [vmem:[%s21 + $0x150] sm:$0xff]
    %v4408 = vld [vmem:[%s21 + $0x158] sm:$0xff]
    %v4409 = vld [vmem:[%s21 + $0x160] sm:$0xff]
    %v4410 = vld [vmem:[%s21 + $0x168] sm:$0xff]
    %v4411 = vld [vmem:[%s21 + $0x170] sm:$0xff]
    %v4412 = vld [vmem:[%s21 + $0x178] sm:$0xff]
    %v4413 = vld [vmem:[%s21 + $0x180] sm:$0xff]
    %v4414 = vld [vmem:[%s21 + $0x188] sm:$0xff]
    %v4415 = vld [vmem:[%s21 + $0x190] sm:$0xff]
    %v4416 = vld [vmem:[%s21 + $0x198] sm:$0xff]
    %v4417 = vld [vmem:[%s21 + $0x1a0] sm:$0xff]
    %v4418 = vld [vmem:[%s21 + $0x1a8] sm:$0xff]
    %v4419 = vld [vmem:[%s21 + $0x1b0] sm:$0xff]
    %v4420 = vld [vmem:[%s21 + $0x1b8] sm:$0xff]
    %v4421 = vld [vmem:[%s21 + $0x1c0] sm:$0xff]
    %v4422 = vld [vmem:[%s21 + $0x1c8] sm:$0xff]
    %v4423 = vld [vmem:[%s21 + $0x1d0] sm:$0xff]
    %v4424 = vld [vmem:[%s21 + $0x1d8] sm:$0xff]
    %v4425 = vld [vmem:[%s21 + $0x1e0] sm:$0xff]
    %v4426 = vld [vmem:[%s21 + $0x1e8] sm:$0xff]
    %v4427 = vld [vmem:[%s21 + $0x1f0] sm:$0xff]
    %v4428 = vld [vmem:[%s21 + $0x1f8] sm:$0xff]
    %v4429 = vld [vmem:[%s21 + $0x200] sm:$0xff]
    %v4430 = vld [vmem:[%s21 + $0x208] sm:$0xff]
    %v4431 = vld [vmem:[%s21 + $0x210] sm:$0xff]
    %v4432 = vld [vmem:[%s21 + $0x218] sm:$0xff]
    %v4433 = vld [vmem:[%s21 + $0x220] sm:$0xff]
    %v4434 = vld [vmem:[%s21 + $0x228] sm:$0xff]
    %v4435 = vld [vmem:[%s21 + $0x230] sm:$0xff]
    %v4436 = vld [vmem:[%s21 + $0x238] sm:$0xff]
    %v4437 = vld [vmem:[%s21 + $0x240] sm:$0xff]
    %v4438 = vld [vmem:[%s21 + $0x248] sm:$0xff]
    %v4439 = vld [vmem:[%s21 + $0x250] sm:$0xff]
    %v4440 = vld [vmem:[%s21 + $0x258] sm:$0xff]
    %v4441 = vld [vmem:[%s21 + $0x260] sm:$0xff]
    %v4442 = vld [vmem:[%s21 + $0x268] sm:$0xff]
    %v4443 = vld [vmem:[%s21 + $0x270] sm:$0xff]
    %v4444 = vld [vmem:[%s21 + $0x278] sm:$0xff]
    %v4445 = vld [vmem:[%s21 + $0x280] sm:$0xff]
    %v4446 = vld [vmem:[%s21 + $0x288] sm:$0xff]
    %v4447 = vld [vmem:[%s21 + $0x290] sm:$0xff]
    %v4448 = vld [vmem:[%s21 + $0x298] sm:$0xff]
    %v4449 = vld [vmem:[%s21 + $0x2a0] sm:$0xff]
    %v4450 = vld [vmem:[%s21 + $0x2a8] sm:$0xff]
    %v4451 = vld [vmem:[%s21 + $0x2b0] sm:$0xff]
    %v4452 = vld [vmem:[%s21 + $0x2b8] sm:$0xff]
    %v4453 = vld [vmem:[%s21 + $0x2c0] sm:$0xff]
    %v4454 = vld [vmem:[%s21 + $0x2c8] sm:$0xff]
    %v4455 = vld [vmem:[%s21 + $0x2d0] sm:$0xff]
    %v4456 = vld [vmem:[%s21 + $0x2d8] sm:$0xff]
    %v4457 = vld [vmem:[%s21 + $0x2e0] sm:$0xff]
    %v4458 = vld [vmem:[%s21 + $0x2e8] sm:$0xff]
    %v4459 = vld [vmem:[%s21 + $0x2f0] sm:$0xff]
    %v4460 = vld [vmem:[%s21 + $0x2f8] sm:$0xff]
    %v4461 = vld [vmem:[%s21 + $0x300] sm:$0xff]
    %v4462 = vld [vmem:[%s21 + $0x308] sm:$0xff]
    %v4463 = vld [vmem:[%s21 + $0x310] sm:$0xff]
    %v4464 = vld [vmem:[%s21 + $0x318] sm:$0xff]
    %v4465 = vld [vmem:[%s21 + $0x320] sm:$0xff]
    %v4466 = vld [vmem:[%s21 + $0x328] sm:$0xff]
    %v4467 = vld [vmem:[%s21 + $0x330] sm:$0xff]
    %v4468 = vld [vmem:[%s21 + $0x338] sm:$0xff]
    %v4469 = vld [vmem:[%s21 + $0x340] sm:$0xff]
    %v4470 = vld [vmem:[%s21 + $0x348] sm:$0xff]
    %v4471 = vld [vmem:[%s21 + $0x350] sm:$0xff]
    %v4472 = vld [vmem:[%s21 + $0x358] sm:$0xff]
    %v4473 = vld [vmem:[%s21 + $0x360] sm:$0xff]
    %v4474 = vld [vmem:[%s21 + $0x368] sm:$0xff]
    %v4475 = vld [vmem:[%s21 + $0x370] sm:$0xff]
    %v4476 = vld [vmem:[%s21 + $0x378] sm:$0xff]
    %v4477 = vld [vmem:[%s21 + $0x380] sm:$0xff]
    %v4478 = vld [vmem:[%s21 + $0x388] sm:$0xff]
    %v4479 = vld [vmem:[%s21 + $0x390] sm:$0xff]
    %v4480 = vld [vmem:[%s21 + $0x398] sm:$0xff]
    %v4481 = vld [vmem:[%s21 + $0x3a0] sm:$0xff]
    %v4482 = vld [vmem:[%s21 + $0x3a8] sm:$0xff]
    %v4483 = vld [vmem:[%s21 + $0x3b0] sm:$0xff]
    %v4484 = vld [vmem:[%s21 + $0x3b8] sm:$0xff]
    %v4485 = vld [vmem:[%s21 + $0x3c0] sm:$0xff]
    %v4486 = vld [vmem:[%s21 + $0x3c8] sm:$0xff]
    %v4487 = vld [vmem:[%s21 + $0x3d0] sm:$0xff]
    %v4488 = vld [vmem:[%s21 + $0x3d8] sm:$0xff]
    %v4489 = vld [vmem:[%s21 + $0x3e0] sm:$0xff]
    %v4490 = vld [vmem:[%s21 + $0x3e8] sm:$0xff]
    %v4491 = vld [vmem:[%s21 + $0x3f0] sm:$0xff]
    %v4492 = vld [vmem:[%s21 + $0x3f8] sm:$0xff]
    %v4493 = vld [vmem:[%s21 + $0x400] sm:$0xff]
    %v4494 = vld [vmem:[%s21 + $0x408] sm:$0xff]
    %v4495 = vld [vmem:[%s21 + $0x410] sm:$0xff]
    %v4496 = vld [vmem:[%s21 + $0x418] sm:$0xff]
    %v4497 = vld [vmem:[%s21 + $0x420] sm:$0xff]
    %v4498 = vld [vmem:[%s21 + $0x428] sm:$0xff]
    %v4499 = vld [vmem:[%s21 + $0x430] sm:$0xff]
    %v4500 = vld [vmem:[%s21 + $0x438] sm:$0xff]
    %v4501 = vld [vmem:[%s21 + $0x440] sm:$0xff]
    %v4502 = vld [vmem:[%s21 + $0x448] sm:$0xff]
    %v4503 = vld [vmem:[%s21 + $0x450] sm:$0xff]
    %v4504 = vld [vmem:[%s21 + $0x458] sm:$0xff]
    %v4505 = vld [vmem:[%s21 + $0x460] sm:$0xff]
    %v4506 = vld [vmem:[%s21 + $0x468] sm:$0xff]
    %v4507 = vld [vmem:[%s21 + $0x470] sm:$0xff]
    %v4508 = vld [vmem:[%s21 + $0x478] sm:$0xff]
    %v4509 = vld [vmem:[%s21 + $0x480] sm:$0xff]
    %v4510 = vld [vmem:[%s21 + $0x488] sm:$0xff]
    %v4511 = vld [vmem:[%s21 + $0x490] sm:$0xff]
    %v4512 = vld [vmem:[%s21 + $0x498] sm:$0xff]
    %v4513 = vld [vmem:[%s21 + $0x4a0] sm:$0xff]
    %v4514 = vld [vmem:[%s21 + $0x4a8] sm:$0xff]
    %v4515 = vld [vmem:[%s21 + $0x4b0] sm:$0xff]
    %v4516 = vld [vmem:[%s21 + $0x4b8] sm:$0xff]
    %v4517 = vld [vmem:[%s21 + $0x4c0] sm:$0xff]
    %v4518 = vld [vmem:[%s21 + $0x4c8] sm:$0xff]
    %v4519 = vld [vmem:[%s21 + $0x4d0] sm:$0xff]
    %v4520 = vld [vmem:[%s21 + $0x4d8] sm:$0xff]
    %v4521 = vld [vmem:[%s21 + $0x4e0] sm:$0xff]
    %v4522 = vld [vmem:[%s21 + $0x4e8] sm:$0xff]
    %v4523 = vld [vmem:[%s21 + $0x4f0] sm:$0xff]
    %v4524 = vld [vmem:[%s21 + $0x4f8] sm:$0xff]
    %v4525 = vld [vmem:[%s21 + $0x500] sm:$0xff]
    %v4526 = vld [vmem:[%s21 + $0x508] sm:$0xff]
    %v4527 = vld [vmem:[%s21 + $0x510] sm:$0xff]
    %v4528 = vld [vmem:[%s21 + $0x518] sm:$0xff]
    %v4529 = vld [vmem:[%s21 + $0x520] sm:$0xff]
    %v4530 = vld [vmem:[%s21 + $0x528] sm:$0xff]
    %v4531 = vld [vmem:[%s21 + $0x530] sm:$0xff]
    %v4532 = vld [vmem:[%s21 + $0x538] sm:$0xff]
    %v4533 = vld [vmem:[%s21 + $0x540] sm:$0xff]
    %v4534 = vld [vmem:[%s21 + $0x548] sm:$0xff]
    %v4535 = vld [vmem:[%s21 + $0x550] sm:$0xff]
    %v4536 = vld [vmem:[%s21 + $0x558] sm:$0xff]
    %v4537 = vld [vmem:[%s21 + $0x560] sm:$0xff]
    %v4538 = vld [vmem:[%s21 + $0x568] sm:$0xff]
    %v4539 = vld [vmem:[%s21 + $0x570] sm:$0xff]
    %v4540 = vld [vmem:[%s21 + $0x578] sm:$0xff]
    %v4541 = vld [vmem:[%s21 + $0x580] sm:$0xff]
    %v4542 = vld [vmem:[%s21 + $0x588] sm:$0xff]
    %v4543 = vld [vmem:[%s21 + $0x590] sm:$0xff]
    %v4544 = vld [vmem:[%s21 + $0x598] sm:$0xff]
    %v4545 = vld [vmem:[%s21 + $0x5a0] sm:$0xff]
    %v4546 = vld [vmem:[%s21 + $0x5a8] sm:$0xff]
    %v4547 = vld [vmem:[%s21 + $0x5b0] sm:$0xff]
    %v4548 = vld [vmem:[%s21 + $0x5b8] sm:$0xff]
    %v4549 = vld [vmem:[%s21 + $0x5c0] sm:$0xff]
    %v4550 = vld [vmem:[%s21 + $0x5c8] sm:$0xff]
    %v4551 = vld [vmem:[%s21 + $0x5d0] sm:$0xff]
    %v4552 = vld [vmem:[%s21 + $0x5d8] sm:$0xff]
    %v4553 = vld [vmem:[%s21 + $0x5e0] sm:$0xff]
    %v4554 = vld [vmem:[%s21 + $0x5e8] sm:$0xff]
    %v4555 = vld [vmem:[%s21 + $0x5f0] sm:$0xff]
    %v4556 = vld [vmem:[%s21 + $0x5f8] sm:$0xff]
    %v4557 = vld [vmem:[%s21 + $0x600] sm:$0xff]
    %v4558 = vld [vmem:[%s21 + $0x608] sm:$0xff]
    %v4559 = vld [vmem:[%s21 + $0x610] sm:$0xff]
    %v4560 = vld [vmem:[%s21 + $0x618] sm:$0xff]
    %v4561 = vld [vmem:[%s21 + $0x620] sm:$0xff]
    %v4562 = vld [vmem:[%s21 + $0x628] sm:$0xff]
    %v4563 = vld [vmem:[%s21 + $0x630] sm:$0xff]
    %v4564 = vld [vmem:[%s21 + $0x638] sm:$0xff]
    %v4565 = vld [vmem:[%s21 + $0x640] sm:$0xff]
    %v4566 = vld [vmem:[%s21 + $0x648] sm:$0xff]
    %v4567 = vld [vmem:[%s21 + $0x650] sm:$0xff]
    %v4568 = vld [vmem:[%s21 + $0x658] sm:$0xff]
    %v4569 = vld [vmem:[%s21 + $0x660] sm:$0xff]
    %v4570 = vld [vmem:[%s21 + $0x668] sm:$0xff]
    %v4571 = vld [vmem:[%s21 + $0x670] sm:$0xff]
    %v4572 = vld [vmem:[%s21 + $0x678] sm:$0xff]
    %v4573 = vld [vmem:[%s21 + $0x680] sm:$0xff]
    %v4574 = vld [vmem:[%s21 + $0x688] sm:$0xff]
    %v4575 = vld [vmem:[%s21 + $0x690] sm:$0xff]
    %v4576 = vld [vmem:[%s21 + $0x698] sm:$0xff]
    %v4577 = vld [vmem:[%s21 + $0x6a0] sm:$0xff]
    %v4578 = vld [vmem:[%s21 + $0x6a8] sm:$0xff]
    %v4579 = vld [vmem:[%s21 + $0x6b0] sm:$0xff]
    %v4580 = vld [vmem:[%s21 + $0x6b8] sm:$0xff]
    %v4581 = vld [vmem:[%s21 + $0x6c0] sm:$0xff]
    %v4582 = vld [vmem:[%s21 + $0x6c8] sm:$0xff]
    %v4583 = vld [vmem:[%s21 + $0x6d0] sm:$0xff]
    %v4584 = vld [vmem:[%s21 + $0x6d8] sm:$0xff]
    %v4585 = vld [vmem:[%s21 + $0x6e0] sm:$0xff]
    %v4586 = vld [vmem:[%s21 + $0x6e8] sm:$0xff]
    %v4587 = vld [vmem:[%s21 + $0x6f0] sm:$0xff]
    %v4588 = vld [vmem:[%s21 + $0x6f8] sm:$0xff]
    %v4589 = vld [vmem:[%s21 + $0x700] sm:$0xff]
    %v4590 = vld [vmem:[%s21 + $0x708] sm:$0xff]
    %v4591 = vld [vmem:[%s21 + $0x710] sm:$0xff]
    %v4592 = vld [vmem:[%s21 + $0x718] sm:$0xff]
    %v4593 = vld [vmem:[%s21 + $0x720] sm:$0xff]
    %v4594 = vld [vmem:[%s21 + $0x728] sm:$0xff]
    %v4595 = vld [vmem:[%s21 + $0x730] sm:$0xff]
    %v4596 = vld [vmem:[%s21 + $0x738] sm:$0xff]
    %v4597 = vld [vmem:[%s21 + $0x740] sm:$0xff]
    %v4598 = vld [vmem:[%s21 + $0x748] sm:$0xff]
    %v4599 = vld [vmem:[%s21 + $0x750] sm:$0xff]
    %v4600 = vld [vmem:[%s21 + $0x758] sm:$0xff]
    %v4601 = vld [vmem:[%s21 + $0x760] sm:$0xff]
    %v4602 = vld [vmem:[%s21 + $0x768] sm:$0xff]
    %v4603 = vld [vmem:[%s21 + $0x770] sm:$0xff]
    %v4604 = vld [vmem:[%s21 + $0x778] sm:$0xff]
    %v4605 = vld [vmem:[%s21 + $0x780] sm:$0xff]
    %v4606 = vld [vmem:[%s21 + $0x788] sm:$0xff]
    %v4607 = vld [vmem:[%s21 + $0x790] sm:$0xff]
    %v4608 = vld [vmem:[%s21 + $0x798] sm:$0xff]
    %v4609 = vld [vmem:[%s21 + $0x7a0] sm:$0xff]
    %v4610 = vld [vmem:[%s21 + $0x7a8] sm:$0xff]
    %v4611 = vld [vmem:[%s21 + $0x7b0] sm:$0xff]
    %v4612 = vld [vmem:[%s21 + $0x7b8] sm:$0xff]
    %v4613 = vld [vmem:[%s21 + $0x7c0] sm:$0xff]
    %v4614 = vld [vmem:[%s21 + $0x7c8] sm:$0xff]
    %v4615 = vld [vmem:[%s21 + $0x7d0] sm:$0xff]
    %v4616 = vld [vmem:[%s21 + $0x7d8] sm:$0xff]
    %v4617 = vld [vmem:[%s21 + $0x7e0] sm:$0xff]
    %v4618 = vld [vmem:[%s21 + $0x7e8] sm:$0xff]
    %v4619 = vld [vmem:[%s21 + $0x7f0] sm:$0xff]
    %v4620 = vld [vmem:[%s21 + $0x7f8] sm:$0xff]
    %v4621 = vld [vmem:[%s17] sm:$0x1]
    %v4623 = vperm.slane %v4621, 0
    %4625 = vmatpush.msra.mxu0 %v4380
    %4626 = vmatpush.msra.mxu0 %v4379
    %4627 = vmatpush.msra.mxu0 %v4378
    %4628 = vmatpush.msra.mxu0 %v4377
    %4629 = vmatpush.msra.mxu0 %v4376
    %4630 = vmatpush.msra.mxu0 %v4375
    %4631 = vmatpush.msra.mxu0 %v4374
    %4632 = vmatpush.msra.mxu0 %v4373
    %4633 = vmatpush.msra.mxu0 %v4372
    %4634 = vmatpush.msra.mxu0 %v4371
    %4635 = vmatpush.msra.mxu0 %v4370
    %4636 = vmatpush.msra.mxu0 %v4369
    %4637 = vmatpush.msra.mxu0 %v4368
    %4638 = vmatpush.msra.mxu0 %v4367
    %4639 = vmatpush.msra.mxu0 %v4366
    %4640 = vmatpush.msra.mxu0 %v4365
    %4641 = vmatmul.f32.gmra.mxu0 %v4349
    %v4642 = vpop.f32.mrf.mxu0
    %v4643 = vadd.f32 %v4623, %v4642
    %4644 = vdwg.mxu0
    %4645 = vmatpush.msra.mxu0 %v4396
    %4646 = vmatpush.msra.mxu0 %v4395
    %4647 = vmatpush.msra.mxu0 %v4394
    %4648 = vmatpush.msra.mxu0 %v4393
    %4649 = vmatpush.msra.mxu0 %v4392
    %4650 = vmatpush.msra.mxu0 %v4391
    %4651 = vmatpush.msra.mxu0 %v4390
    %4652 = vmatpush.msra.mxu0 %v4389
    %4653 = vmatpush.msra.mxu0 %v4388
    %4654 = vmatpush.msra.mxu0 %v4387
    %4655 = vmatpush.msra.mxu0 %v4386
    %4656 = vmatpush.msra.mxu0 %v4385
    %4657 = vmatpush.msra.mxu0 %v4384
    %4658 = vmatpush.msra.mxu0 %v4383
    %4659 = vmatpush.msra.mxu0 %v4382
    %4660 = vmatpush.msra.mxu0 %v4381
    %4661 = vmatmul.f32.gmra.mxu0 %v4350
    %v4662 = vpop.f32.mrf.mxu0
    %v4663 = vadd.f32 %v4643, %v4662
    %4664 = vdwg.mxu0
    %4665 = vmatpush.msra.mxu0 %v4412
    %4666 = vmatpush.msra.mxu0 %v4411
    %4667 = vmatpush.msra.mxu0 %v4410
    %4668 = vmatpush.msra.mxu0 %v4409
    %4669 = vmatpush.msra.mxu0 %v4408
    %4670 = vmatpush.msra.mxu0 %v4407
    %4671 = vmatpush.msra.mxu0 %v4406
    %4672 = vmatpush.msra.mxu0 %v4405
    %4673 = vmatpush.msra.mxu0 %v4404
    %4674 = vmatpush.msra.mxu0 %v4403
    %4675 = vmatpush.msra.mxu0 %v4402
    %4676 = vmatpush.msra.mxu0 %v4401
    %4677 = vmatpush.msra.mxu0 %v4400
    %4678 = vmatpush.msra.mxu0 %v4399
    %4679 = vmatpush.msra.mxu0 %v4398
    %4680 = vmatpush.msra.mxu0 %v4397
    %4681 = vmatmul.f32.gmra.mxu0 %v4351
    %v4682 = vpop.f32.mrf.mxu0
    %v4683 = vadd.f32 %v4663, %v4682
    %4684 = vdwg.mxu0
    %4685 = vmatpush.msra.mxu0 %v4428
    %4686 = vmatpush.msra.mxu0 %v4427
    %4687 = vmatpush.msra.mxu0 %v4426
    %4688 = vmatpush.msra.mxu0 %v4425
    %4689 = vmatpush.msra.mxu0 %v4424
    %4690 = vmatpush.msra.mxu0 %v4423
    %4691 = vmatpush.msra.mxu0 %v4422
    %4692 = vmatpush.msra.mxu0 %v4421
    %4693 = vmatpush.msra.mxu0 %v4420
    %4694 = vmatpush.msra.mxu0 %v4419
    %4695 = vmatpush.msra.mxu0 %v4418
    %4696 = vmatpush.msra.mxu0 %v4417
    %4697 = vmatpush.msra.mxu0 %v4416
    %4698 = vmatpush.msra.mxu0 %v4415
    %4699 = vmatpush.msra.mxu0 %v4414
    %4700 = vmatpush.msra.mxu0 %v4413
    %4701 = vmatmul.f32.gmra.mxu0 %v4352
    %v4702 = vpop.f32.mrf.mxu0
    %v4703 = vadd.f32 %v4683, %v4702
    %4704 = vdwg.mxu0
    %4705 = vmatpush.msra.mxu0 %v4444
    %4706 = vmatpush.msra.mxu0 %v4443
    %4707 = vmatpush.msra.mxu0 %v4442
    %4708 = vmatpush.msra.mxu0 %v4441
    %4709 = vmatpush.msra.mxu0 %v4440
    %4710 = vmatpush.msra.mxu0 %v4439
    %4711 = vmatpush.msra.mxu0 %v4438
    %4712 = vmatpush.msra.mxu0 %v4437
    %4713 = vmatpush.msra.mxu0 %v4436
    %4714 = vmatpush.msra.mxu0 %v4435
    %4715 = vmatpush.msra.mxu0 %v4434
    %4716 = vmatpush.msra.mxu0 %v4433
    %4717 = vmatpush.msra.mxu0 %v4432
    %4718 = vmatpush.msra.mxu0 %v4431
    %4719 = vmatpush.msra.mxu0 %v4430
    %4720 = vmatpush.msra.mxu0 %v4429
    %4721 = vmatmul.f32.gmra.mxu0 %v4353
    %v4722 = vpop.f32.mrf.mxu0
    %v4723 = vadd.f32 %v4703, %v4722
    %4724 = vdwg.mxu0
    %4725 = vmatpush.msra.mxu0 %v4460
    %4726 = vmatpush.msra.mxu0 %v4459
    %4727 = vmatpush.msra.mxu0 %v4458
    %4728 = vmatpush.msra.mxu0 %v4457
    %4729 = vmatpush.msra.mxu0 %v4456
    %4730 = vmatpush.msra.mxu0 %v4455
    %4731 = vmatpush.msra.mxu0 %v4454
    %4732 = vmatpush.msra.mxu0 %v4453
    %4733 = vmatpush.msra.mxu0 %v4452
    %4734 = vmatpush.msra.mxu0 %v4451
    %4735 = vmatpush.msra.mxu0 %v4450
    %4736 = vmatpush.msra.mxu0 %v4449
    %4737 = vmatpush.msra.mxu0 %v4448
    %4738 = vmatpush.msra.mxu0 %v4447
    %4739 = vmatpush.msra.mxu0 %v4446
    %4740 = vmatpush.msra.mxu0 %v4445
    %4741 = vmatmul.f32.gmra.mxu0 %v4354
    %v4742 = vpop.f32.mrf.mxu0
    %v4743 = vadd.f32 %v4723, %v4742
    %4744 = vdwg.mxu0
    %4745 = vmatpush.msra.mxu0 %v4476
    %4746 = vmatpush.msra.mxu0 %v4475
    %4747 = vmatpush.msra.mxu0 %v4474
    %4748 = vmatpush.msra.mxu0 %v4473
    %4749 = vmatpush.msra.mxu0 %v4472
    %4750 = vmatpush.msra.mxu0 %v4471
    %4751 = vmatpush.msra.mxu0 %v4470
    %4752 = vmatpush.msra.mxu0 %v4469
    %4753 = vmatpush.msra.mxu0 %v4468
    %4754 = vmatpush.msra.mxu0 %v4467
    %4755 = vmatpush.msra.mxu0 %v4466
    %4756 = vmatpush.msra.mxu0 %v4465
    %4757 = vmatpush.msra.mxu0 %v4464
    %4758 = vmatpush.msra.mxu0 %v4463
    %4759 = vmatpush.msra.mxu0 %v4462
    %4760 = vmatpush.msra.mxu0 %v4461
    %4761 = vmatmul.f32.gmra.mxu0 %v4355
    %v4762 = vpop.f32.mrf.mxu0
    %v4763 = vadd.f32 %v4743, %v4762
    %4764 = vdwg.mxu0
    %4765 = vmatpush.msra.mxu0 %v4492
    %4766 = vmatpush.msra.mxu0 %v4491
    %4767 = vmatpush.msra.mxu0 %v4490
    %4768 = vmatpush.msra.mxu0 %v4489
    %4769 = vmatpush.msra.mxu0 %v4488
    %4770 = vmatpush.msra.mxu0 %v4487
    %4771 = vmatpush.msra.mxu0 %v4486
    %4772 = vmatpush.msra.mxu0 %v4485
    %4773 = vmatpush.msra.mxu0 %v4484
    %4774 = vmatpush.msra.mxu0 %v4483
    %4775 = vmatpush.msra.mxu0 %v4482
    %4776 = vmatpush.msra.mxu0 %v4481
    %4777 = vmatpush.msra.mxu0 %v4480
    %4778 = vmatpush.msra.mxu0 %v4479
    %4779 = vmatpush.msra.mxu0 %v4478
    %4780 = vmatpush.msra.mxu0 %v4477
    %4781 = vmatmul.f32.gmra.mxu0 %v4356
    %v4782 = vpop.f32.mrf.mxu0
    %v4783 = vadd.f32 %v4763, %v4782
    %4784 = vdwg.mxu0
    %4785 = vmatpush.msra.mxu0 %v4508
    %4786 = vmatpush.msra.mxu0 %v4507
    %4787 = vmatpush.msra.mxu0 %v4506
    %4788 = vmatpush.msra.mxu0 %v4505
    %4789 = vmatpush.msra.mxu0 %v4504
    %4790 = vmatpush.msra.mxu0 %v4503
    %4791 = vmatpush.msra.mxu0 %v4502
    %4792 = vmatpush.msra.mxu0 %v4501
    %4793 = vmatpush.msra.mxu0 %v4500
    %4794 = vmatpush.msra.mxu0 %v4499
    %4795 = vmatpush.msra.mxu0 %v4498
    %4796 = vmatpush.msra.mxu0 %v4497
    %4797 = vmatpush.msra.mxu0 %v4496
    %4798 = vmatpush.msra.mxu0 %v4495
    %4799 = vmatpush.msra.mxu0 %v4494
    %4800 = vmatpush.msra.mxu0 %v4493
    %4801 = vmatmul.f32.gmra.mxu0 %v4357
    %v4802 = vpop.f32.mrf.mxu0
    %v4803 = vadd.f32 %v4783, %v4802
    %4804 = vdwg.mxu0
    %4805 = vmatpush.msra.mxu0 %v4524
    %4806 = vmatpush.msra.mxu0 %v4523
    %4807 = vmatpush.msra.mxu0 %v4522
    %4808 = vmatpush.msra.mxu0 %v4521
    %4809 = vmatpush.msra.mxu0 %v4520
    %4810 = vmatpush.msra.mxu0 %v4519
    %4811 = vmatpush.msra.mxu0 %v4518
    %4812 = vmatpush.msra.mxu0 %v4517
    %4813 = vmatpush.msra.mxu0 %v4516
    %4814 = vmatpush.msra.mxu0 %v4515
    %4815 = vmatpush.msra.mxu0 %v4514
    %4816 = vmatpush.msra.mxu0 %v4513
    %4817 = vmatpush.msra.mxu0 %v4512
    %4818 = vmatpush.msra.mxu0 %v4511
    %4819 = vmatpush.msra.mxu0 %v4510
    %4820 = vmatpush.msra.mxu0 %v4509
    %4821 = vmatmul.f32.gmra.mxu0 %v4358
    %v4822 = vpop.f32.mrf.mxu0
    %v4823 = vadd.f32 %v4803, %v4822
    %4824 = vdwg.mxu0
    %4825 = vmatpush.msra.mxu0 %v4540
    %4826 = vmatpush.msra.mxu0 %v4539
    %4827 = vmatpush.msra.mxu0 %v4538
    %4828 = vmatpush.msra.mxu0 %v4537
    %4829 = vmatpush.msra.mxu0 %v4536
    %4830 = vmatpush.msra.mxu0 %v4535
    %4831 = vmatpush.msra.mxu0 %v4534
    %4832 = vmatpush.msra.mxu0 %v4533
    %4833 = vmatpush.msra.mxu0 %v4532
    %4834 = vmatpush.msra.mxu0 %v4531
    %4835 = vmatpush.msra.mxu0 %v4530
    %4836 = vmatpush.msra.mxu0 %v4529
    %4837 = vmatpush.msra.mxu0 %v4528
    %4838 = vmatpush.msra.mxu0 %v4527
    %4839 = vmatpush.msra.mxu0 %v4526
    %4840 = vmatpush.msra.mxu0 %v4525
    %4841 = vmatmul.f32.gmra.mxu0 %v4359
    %v4842 = vpop.f32.mrf.mxu0
    %v4843 = vadd.f32 %v4823, %v4842
    %4844 = vdwg.mxu0
    %4845 = vmatpush.msra.mxu0 %v4556
    %4846 = vmatpush.msra.mxu0 %v4555
    %4847 = vmatpush.msra.mxu0 %v4554
    %4848 = vmatpush.msra.mxu0 %v4553
    %4849 = vmatpush.msra.mxu0 %v4552
    %4850 = vmatpush.msra.mxu0 %v4551
    %4851 = vmatpush.msra.mxu0 %v4550
    %4852 = vmatpush.msra.mxu0 %v4549
    %4853 = vmatpush.msra.mxu0 %v4548
    %4854 = vmatpush.msra.mxu0 %v4547
    %4855 = vmatpush.msra.mxu0 %v4546
    %4856 = vmatpush.msra.mxu0 %v4545
    %4857 = vmatpush.msra.mxu0 %v4544
    %4858 = vmatpush.msra.mxu0 %v4543
    %4859 = vmatpush.msra.mxu0 %v4542
    %4860 = vmatpush.msra.mxu0 %v4541
    %4861 = vmatmul.f32.gmra.mxu0 %v4360
    %v4862 = vpop.f32.mrf.mxu0
    %v4863 = vadd.f32 %v4843, %v4862
    %4864 = vdwg.mxu0
    %4865 = vmatpush.msra.mxu0 %v4572
    %4866 = vmatpush.msra.mxu0 %v4571
    %4867 = vmatpush.msra.mxu0 %v4570
    %4868 = vmatpush.msra.mxu0 %v4569
    %4869 = vmatpush.msra.mxu0 %v4568
    %4870 = vmatpush.msra.mxu0 %v4567
    %4871 = vmatpush.msra.mxu0 %v4566
    %4872 = vmatpush.msra.mxu0 %v4565
    %4873 = vmatpush.msra.mxu0 %v4564
    %4874 = vmatpush.msra.mxu0 %v4563
    %4875 = vmatpush.msra.mxu0 %v4562
    %4876 = vmatpush.msra.mxu0 %v4561
    %4877 = vmatpush.msra.mxu0 %v4560
    %4878 = vmatpush.msra.mxu0 %v4559
    %4879 = vmatpush.msra.mxu0 %v4558
    %4880 = vmatpush.msra.mxu0 %v4557
    %4881 = vmatmul.f32.gmra.mxu0 %v4361
    %v4882 = vpop.f32.mrf.mxu0
    %v4883 = vadd.f32 %v4863, %v4882
    %4884 = vdwg.mxu0
    %4885 = vmatpush.msra.mxu0 %v4588
    %4886 = vmatpush.msra.mxu0 %v4587
    %4887 = vmatpush.msra.mxu0 %v4586
    %4888 = vmatpush.msra.mxu0 %v4585
    %4889 = vmatpush.msra.mxu0 %v4584
    %4890 = vmatpush.msra.mxu0 %v4583
    %4891 = vmatpush.msra.mxu0 %v4582
    %4892 = vmatpush.msra.mxu0 %v4581
    %4893 = vmatpush.msra.mxu0 %v4580
    %4894 = vmatpush.msra.mxu0 %v4579
    %4895 = vmatpush.msra.mxu0 %v4578
    %4896 = vmatpush.msra.mxu0 %v4577
    %4897 = vmatpush.msra.mxu0 %v4576
    %4898 = vmatpush.msra.mxu0 %v4575
    %4899 = vmatpush.msra.mxu0 %v4574
    %4900 = vmatpush.msra.mxu0 %v4573
    %4901 = vmatmul.f32.gmra.mxu0 %v4362
    %v4902 = vpop.f32.mrf.mxu0
    %v4903 = vadd.f32 %v4883, %v4902
    %4904 = vdwg.mxu0
    %4905 = vmatpush.msra.mxu0 %v4604
    %4906 = vmatpush.msra.mxu0 %v4603
    %4907 = vmatpush.msra.mxu0 %v4602
    %4908 = vmatpush.msra.mxu0 %v4601
    %4909 = vmatpush.msra.mxu0 %v4600
    %4910 = vmatpush.msra.mxu0 %v4599
    %4911 = vmatpush.msra.mxu0 %v4598
    %4912 = vmatpush.msra.mxu0 %v4597
    %4913 = vmatpush.msra.mxu0 %v4596
    %4914 = vmatpush.msra.mxu0 %v4595
    %4915 = vmatpush.msra.mxu0 %v4594
    %4916 = vmatpush.msra.mxu0 %v4593
    %4917 = vmatpush.msra.mxu0 %v4592
    %4918 = vmatpush.msra.mxu0 %v4591
    %4919 = vmatpush.msra.mxu0 %v4590
    %4920 = vmatpush.msra.mxu0 %v4589
    %4921 = vmatmul.f32.gmra.mxu0 %v4363
    %v4922 = vpop.f32.mrf.mxu0
    %v4923 = vadd.f32 %v4903, %v4922
    %4924 = vdwg.mxu0
    %4925 = vmatpush.msra.mxu0 %v4620
    %4926 = vmatpush.msra.mxu0 %v4619
    %4927 = vmatpush.msra.mxu0 %v4618
    %4928 = vmatpush.msra.mxu0 %v4617
    %4929 = vmatpush.msra.mxu0 %v4616
    %4930 = vmatpush.msra.mxu0 %v4615
    %4931 = vmatpush.msra.mxu0 %v4614
    %4932 = vmatpush.msra.mxu0 %v4613
    %4933 = vmatpush.msra.mxu0 %v4612
    %4934 = vmatpush.msra.mxu0 %v4611
    %4935 = vmatpush.msra.mxu0 %v4610
    %4936 = vmatpush.msra.mxu0 %v4609
    %4937 = vmatpush.msra.mxu0 %v4608
    %4938 = vmatpush.msra.mxu0 %v4607
    %4939 = vmatpush.msra.mxu0 %v4606
    %4940 = vmatpush.msra.mxu0 %v4605
    %4941 = vmatmul.f32.gmra.mxu0 %v4364
    %v4942 = vpop.f32.mrf.mxu0
    %v4943 = vadd.f32 %v4923, %v4942
    %4944 = vdwg.mxu0
    %v4945 = vadd.f32 %v3925, %v4943
    %v4946 = vsel %vm726, %v4945, 0.0
    %4947 = vadd.xlane.f32.xlu0 %v4946
    %v4948 = vpop.xlane.xlu0 %4947
    %v4949 = vmul.f32 %v4948, %v980
    %v4950 = vsub.f32 %v4945, %v4949
    %v4951 = vmul.f32 %v4950, %v4950
    %v4952 = vsel %vm726, %v4951, 0.0
    %4953 = vadd.xlane.f32.xlu0 %v4952
    %v4954 = vpop.xlane.xlu0 %4953
    %v4955 = vmul.f32 %v4954, %v980
    %v4956 = vadd.f32 %v4955, 1e-05
    %v4957 = vrsqrt.pop %v4956
    %v4958 = vmul.f32 %v4957, %v4956
    %v4959 = vmul.f32 %v4958, %v4957
    %v4960 = vmul.f32 0.5, %v4959
    %v4961 = vsub.f32 1.5, %v4960
    %v4962 = vmul.f32 %v4957, %v4961
    %vm4963 = vweird.f32 %v4956
    %vm4964 = vweird.f32 %v4957
    %vm4965 = vmor %vm4963, %vm4964
    %v4966 = vsel %vm4965, %v4957, %v4962
    %v4967 = vmul.f32 %v4950, %v4966
    %v4968 = vld [vmem:[%s33] sm:$0x1]
    %v4970 = vperm.slane %v4968, 0
    %v4972 = vmul.f32 %v4967, %v4970
    %v4973 = vld [vmem:[%s31] sm:$0x1]
    %v4975 = vperm.slane %v4973, 0
    %v4977 = vadd.f32 %v4972, %v4975
    %v4978 = vld [vmem:[%s81] sm:$0xff]
    %v4979 = vld [vmem:[%s81 + $0x8] sm:$0xff]
    %v4980 = vld [vmem:[%s81 + $0x10] sm:$0xff]
    %v4981 = vld [vmem:[%s81 + $0x18] sm:$0xff]
    %v4982 = vld [vmem:[#allocation18] sm:$0x1]
    %v4984 = vperm.slane %v4982, 0
    %v4987 = vsel %vm726, %v4977, 0
    %4989 = vmatpush.msra.mxu0 0.0
    %4990 = vmatpush.msra.mxu0 0.0
    %4991 = vmatpush.msra.mxu0 0.0
    %4992 = vmatpush.msra.mxu0 0.0
    %4993 = vmatpush.msra.mxu0 0.0
    %4994 = vmatpush.msra.mxu0 0.0
    %4995 = vmatpush.msra.mxu0 0.0
    %4996 = vmatpush.msra.mxu0 0.0
    %4997 = vmatpush.msra.mxu0 0.0
    %4998 = vmatpush.msra.mxu0 0.0
    %4999 = vmatpush.msra.mxu0 0.0
    %5000 = vmatpush.msra.mxu0 0.0
    %5001 = vmatpush.msra.mxu0 %v4981
    %5002 = vmatpush.msra.mxu0 %v4980
    %5003 = vmatpush.msra.mxu0 %v4979
    %5004 = vmatpush.msra.mxu0 %v4978
    %5005 = vmatmul.f32.gmra.mxu0 %v4987
    %v5006 = vpop.f32.mrf.mxu0
    %v5007 = vadd.f32 %v4984, %v5006
    %5008 = vdwg.mxu0
    %v5009 = vld [vmem:[#allocation16] sm:$0x1]
    %5011 = vrot.lane.b32.xlu0 %v5007, 96
    %v5012 = vpop.permute.xlu0 %5011
    %v5013 = vsel %vm785, %v5007, 0
    %v5015 = vsel %vm785, %v5012, 0
    %5017 = vmatpush.xpose.msra.mxu0 0.0
    %5018 = vmatpush.xpose.msra.mxu0 0.0
    %5019 = vmatpush.xpose.msra.mxu0 0.0
    %5020 = vmatpush.xpose.msra.mxu0 0.0
    %5021 = vmatpush.xpose.msra.mxu0 0.0
    %5022 = vmatpush.xpose.msra.mxu0 0.0
    %5023 = vmatpush.xpose.msra.mxu0 0.0
    %5024 = vmatpush.xpose.msra.mxu0 0.0
    %5025 = vmatpush.xpose.msra.mxu0 0.0
    %5026 = vmatpush.xpose.msra.mxu0 0.0
    %5027 = vmatpush.xpose.msra.mxu0 0.0
    %5028 = vmatpush.xpose.msra.mxu0 0.0
    %5029 = vmatpush.xpose.msra.mxu0 0.0
    %5030 = vmatpush.xpose.msra.mxu0 0.0
    %5031 = vmatpush.xpose.msra.mxu0 0.0
    %5032 = vmatpush.xpose.msra.mxu0 %v5015
    %5033 = vmatmul.f32.gmra.mxu0 %v5013
    %v5034 = vpop.f32.mrf.mxu0
    %v5035 = vadd.f32 0.0, %v5034
    %5036 = vdwg.mxu0
    %v5037 = vmul.f32 %v5035, 0.25
    %v5038 = vsel %vm811, %v5037, -inf
    %5039 = vmax.xlane.f32.xlu0 %v5038
    %v5040 = vpop.xlane.xlu0 %5039
    %v5041 = vsub.f32 %v5037, %v5040
    %v5042 = vmul.f32 %v5041, 1.442695
    %v5043 = vpow.pop %v5042
    %v5044 = vsel %vm811, %v5043, 0.0
    %5045 = vadd.xlane.f32.xlu0 %v5044
    %v5046 = vpop.xlane.xlu0 %5045
    %v5047 = vrcp.pop %v5046
    %v5048 = vmul.f32 %v5043, %v5047
    %5049 = vrot.lane.b32.xlu0 %v5007, 64
    %v5050 = vpop.permute.xlu0 %5049
    %v5053 = vsel %vm811, %v5048, 0
    %5055 = vmatpush.msra.mxu0 0.0
    %5056 = vmatpush.msra.mxu0 0.0
    %5057 = vmatpush.msra.mxu0 0.0
    %5058 = vmatpush.msra.mxu0 0.0
    %5059 = vmatpush.msra.mxu0 0.0
    %5060 = vmatpush.msra.mxu0 0.0
    %5061 = vmatpush.msra.mxu0 0.0
    %5062 = vmatpush.msra.mxu0 0.0
    %5063 = vmatpush.msra.mxu0 0.0
    %5064 = vmatpush.msra.mxu0 0.0
    %5065 = vmatpush.msra.mxu0 0.0
    %5066 = vmatpush.msra.mxu0 0.0
    %5067 = vmatpush.msra.mxu0 0.0
    %5068 = vmatpush.msra.mxu0 0.0
    %5069 = vmatpush.msra.mxu0 0.0
    %5070 = vmatpush.msra.mxu0 %v5050
    %5071 = vmatmul.f32.gmra.mxu0 %v5053
    %v5072 = vpop.f32.mrf.mxu0
    %v5073 = vadd.f32 0.0, %v5072
    %5074 = vdwg.mxu0
    %v5075 = vld [vmem:[%s79] sm:$0xff]
    %v5076 = vld [vmem:[%s79 + $0x8] sm:$0xff]
    %v5078 = vsel %vm785, %v5073, 0
    %5080 = vmatpush.msra.mxu0 0.0
    %5081 = vmatpush.msra.mxu0 0.0
    %5082 = vmatpush.msra.mxu0 0.0
    %5083 = vmatpush.msra.mxu0 0.0
    %5084 = vmatpush.msra.mxu0 0.0
    %5085 = vmatpush.msra.mxu0 0.0
    %5086 = vmatpush.msra.mxu0 0.0
    %5087 = vmatpush.msra.mxu0 0.0
    %5088 = vmatpush.msra.mxu0 0.0
    %5089 = vmatpush.msra.mxu0 0.0
    %5090 = vmatpush.msra.mxu0 0.0
    %5091 = vmatpush.msra.mxu0 0.0
    %5092 = vmatpush.msra.mxu0 0.0
    %5093 = vmatpush.msra.mxu0 0.0
    %5094 = vmatpush.msra.mxu0 %v5076
    %5095 = vmatpush.msra.mxu0 %v5075
    %5096 = vmatmul.f32.gmra.mxu0 %v5078
    %v5097 = vpop.f32.mrf.mxu0
    %v5098 = vadd.f32 0.0, %v5097
    %5099 = vdwg.mxu0
    %v5101 = vperm.slane %v5009, 0
    %v5103 = vadd.f32 %v5101, %v5098
    %5104 = vrot.lane.b32.xlu0 %v5007, 112
    %v5105 = vpop.permute.xlu0 %5104
    %5106 = vrot.lane.b32.xlu0 %v5007, 80
    %v5107 = vpop.permute.xlu0 %5106
    %v5108 = vsel %vm785, %v5105, 0
    %v5110 = vsel %vm785, %v5107, 0
    %5112 = vmatpush.xpose.msra.mxu0 0.0
    %5113 = vmatpush.xpose.msra.mxu0 0.0
    %5114 = vmatpush.xpose.msra.mxu0 0.0
    %5115 = vmatpush.xpose.msra.mxu0 0.0
    %5116 = vmatpush.xpose.msra.mxu0 0.0
    %5117 = vmatpush.xpose.msra.mxu0 0.0
    %5118 = vmatpush.xpose.msra.mxu0 0.0
    %5119 = vmatpush.xpose.msra.mxu0 0.0
    %5120 = vmatpush.xpose.msra.mxu0 0.0
    %5121 = vmatpush.xpose.msra.mxu0 0.0
    %5122 = vmatpush.xpose.msra.mxu0 0.0
    %5123 = vmatpush.xpose.msra.mxu0 0.0
    %5124 = vmatpush.xpose.msra.mxu0 0.0
    %5125 = vmatpush.xpose.msra.mxu0 0.0
    %5126 = vmatpush.xpose.msra.mxu0 0.0
    %5127 = vmatpush.xpose.msra.mxu0 %v5110
    %5128 = vmatmul.f32.gmra.mxu0 %v5108
    %v5129 = vpop.f32.mrf.mxu0
    %v5130 = vadd.f32 0.0, %v5129
    %5131 = vdwg.mxu0
    %v5132 = vmul.f32 %v5130, 0.25
    %v5133 = vsel %vm811, %v5132, -inf
    %5134 = vmax.xlane.f32.xlu0 %v5133
    %v5135 = vpop.xlane.xlu0 %5134
    %v5136 = vsub.f32 %v5132, %v5135
    %v5137 = vmul.f32 %v5136, 1.442695
    %v5138 = vpow.pop %v5137
    %v5139 = vsel %vm811, %v5138, 0.0
    %5140 = vadd.xlane.f32.xlu0 %v5139
    %v5141 = vpop.xlane.xlu0 %5140
    %v5142 = vrcp.pop %v5141
    %v5143 = vmul.f32 %v5138, %v5142
    %5144 = vrot.lane.b32.xlu0 %v5007, 48
    %v5145 = vpop.permute.xlu0 %5144
    %v5148 = vsel %vm811, %v5143, 0
    %5150 = vmatpush.msra.mxu0 0.0
    %5151 = vmatpush.msra.mxu0 0.0
    %5152 = vmatpush.msra.mxu0 0.0
    %5153 = vmatpush.msra.mxu0 0.0
    %5154 = vmatpush.msra.mxu0 0.0
    %5155 = vmatpush.msra.mxu0 0.0
    %5156 = vmatpush.msra.mxu0 0.0
    %5157 = vmatpush.msra.mxu0 0.0
    %5158 = vmatpush.msra.mxu0 0.0
    %5159 = vmatpush.msra.mxu0 0.0
    %5160 = vmatpush.msra.mxu0 0.0
    %5161 = vmatpush.msra.mxu0 0.0
    %5162 = vmatpush.msra.mxu0 0.0
    %5163 = vmatpush.msra.mxu0 0.0
    %5164 = vmatpush.msra.mxu0 0.0
    %5165 = vmatpush.msra.mxu0 %v5145
    %5166 = vmatmul.f32.gmra.mxu0 %v5148
    %v5167 = vpop.f32.mrf.mxu0
    %v5168 = vadd.f32 0.0, %v5167
    %5169 = vdwg.mxu0
    %v5170 = vld [vmem:[%s79 + $0x10] sm:$0xff]
    %v5171 = vld [vmem:[%s79 + $0x18] sm:$0xff]
    %v5173 = vsel %vm785, %v5168, 0
    %5175 = vmatpush.msra.mxu0 0.0
    %5176 = vmatpush.msra.mxu0 0.0
    %5177 = vmatpush.msra.mxu0 0.0
    %5178 = vmatpush.msra.mxu0 0.0
    %5179 = vmatpush.msra.mxu0 0.0
    %5180 = vmatpush.msra.mxu0 0.0
    %5181 = vmatpush.msra.mxu0 0.0
    %5182 = vmatpush.msra.mxu0 0.0
    %5183 = vmatpush.msra.mxu0 0.0
    %5184 = vmatpush.msra.mxu0 0.0
    %5185 = vmatpush.msra.mxu0 0.0
    %5186 = vmatpush.msra.mxu0 0.0
    %5187 = vmatpush.msra.mxu0 0.0
    %5188 = vmatpush.msra.mxu0 0.0
    %5189 = vmatpush.msra.mxu0 %v5171
    %5190 = vmatpush.msra.mxu0 %v5170
    %5191 = vmatmul.f32.gmra.mxu0 %v5173
    %v5192 = vpop.f32.mrf.mxu0
    %v5193 = vadd.f32 0.0, %v5192
    %5194 = vdwg.mxu0
    %v5195 = vadd.f32 %v5103, %v5193
    %v5196 = vadd.f32 %v4977, %v5195
    %v5197 = vsel %vm726, %v5196, 0.0
    %5198 = vadd.xlane.f32.xlu0 %v5197
    %v5199 = vpop.xlane.xlu0 %5198
    %v5200 = vmul.f32 %v5199, %v980
    %v5201 = vsub.f32 %v5196, %v5200
    %v5202 = vmul.f32 %v5201, %v5201
    %v5203 = vsel %vm726, %v5202, 0.0
    %5204 = vadd.xlane.f32.xlu0 %v5203
    %v5205 = vpop.xlane.xlu0 %5204
    %v5206 = vmul.f32 %v5205, %v980
    %v5207 = vadd.f32 %v5206, 1e-05
    %v5208 = vrsqrt.pop %v5207
    %v5209 = vmul.f32 %v5208, %v5207
    %v5210 = vmul.f32 %v5209, %v5208
    %v5211 = vmul.f32 0.5, %v5210
    %v5212 = vsub.f32 1.5, %v5211
    %v5213 = vmul.f32 %v5208, %v5212
    %vm5214 = vweird.f32 %v5207
    %vm5215 = vweird.f32 %v5208
    %vm5216 = vmor %vm5214, %vm5215
    %v5217 = vsel %vm5216, %v5208, %v5213
    %v5218 = vmul.f32 %v5201, %v5217
    %v5219 = vld [vmem:[#allocation9] sm:$0x1]
    %v5221 = vperm.slane %v5219, 0
    %v5223 = vmul.f32 %v5218, %v5221
    %v5224 = vld [vmem:[#allocation7] sm:$0x1]
    %v5226 = vperm.slane %v5224, 0
    %v5228 = vadd.f32 %v5223, %v5226
    %v5229 = vld [vmem:[%s53] sm:$0xff]
    %v5230 = vld [vmem:[%s53 + $0x8] sm:$0xff]
    %v5231 = vld [vmem:[%s53 + $0x10] sm:$0xff]
    %v5232 = vld [vmem:[%s53 + $0x18] sm:$0xff]
    %v5233 = vld [vmem:[#allocation4] sm:$0x1]
    %v5235 = vperm.slane %v5233, 0
    %v5238 = vsel %vm726, %v5228, 0
    %5240 = vmatpush.msra.mxu0 0.0
    %5241 = vmatpush.msra.mxu0 0.0
    %5242 = vmatpush.msra.mxu0 0.0
    %5243 = vmatpush.msra.mxu0 0.0
    %5244 = vmatpush.msra.mxu0 0.0
    %5245 = vmatpush.msra.mxu0 0.0
    %5246 = vmatpush.msra.mxu0 0.0
    %5247 = vmatpush.msra.mxu0 0.0
    %5248 = vmatpush.msra.mxu0 0.0
    %5249 = vmatpush.msra.mxu0 0.0
    %5250 = vmatpush.msra.mxu0 0.0
    %5251 = vmatpush.msra.mxu0 0.0
    %5252 = vmatpush.msra.mxu0 %v5232
    %5253 = vmatpush.msra.mxu0 %v5231
    %5254 = vmatpush.msra.mxu0 %v5230
    %5255 = vmatpush.msra.mxu0 %v5229
    %5256 = vmatmul.f32.gmra.mxu0 %v5238
    %v5257 = vpop.f32.mrf.mxu0
    %v5258 = vadd.f32 %v5235, %v5257
    %5259 = vdwg.mxu0
    %v5260 = vld [vmem:[%s49] sm:$0xff]
    %v5261 = vld [vmem:[%s49 + $0x8] sm:$0xff]
    %v5262 = vld [vmem:[%s49 + $0x10] sm:$0xff]
    %v5263 = vld [vmem:[%s49 + $0x18] sm:$0xff]
    %v5264 = vld [vmem:[%s43] sm:$0x1]
    %v5266 = vperm.slane %v5264, 0
    %5268 = vmatpush.msra.mxu0 0.0
    %5269 = vmatpush.msra.mxu0 0.0
    %5270 = vmatpush.msra.mxu0 0.0
    %5271 = vmatpush.msra.mxu0 0.0
    %5272 = vmatpush.msra.mxu0 0.0
    %5273 = vmatpush.msra.mxu0 0.0
    %5274 = vmatpush.msra.mxu0 0.0
    %5275 = vmatpush.msra.mxu0 0.0
    %5276 = vmatpush.msra.mxu0 0.0
    %5277 = vmatpush.msra.mxu0 0.0
    %5278 = vmatpush.msra.mxu0 0.0
    %5279 = vmatpush.msra.mxu0 0.0
    %5280 = vmatpush.msra.mxu0 %v5263
    %5281 = vmatpush.msra.mxu0 %v5262
    %5282 = vmatpush.msra.mxu0 %v5261
    %5283 = vmatpush.msra.mxu0 %v5260
    %5284 = vmatmul.f32.gmra.mxu0 %v3685
    %v5285 = vpop.f32.mrf.mxu0
    %v5286 = vadd.f32 %v5266, %v5285
    %5287 = vdwg.mxu0
    %v5288 = vld [vmem:[#allocation2] sm:$0x1]
    %v5290 = vsel %vm785, %v5258, 0
    %v5293 = vsel %vm785, %v5286, 0
    %5295 = vmatpush.xpose.msra.mxu0 0.0
    %5296 = vmatpush.xpose.msra.mxu0 0.0
    %5297 = vmatpush.xpose.msra.mxu0 0.0
    %5298 = vmatpush.xpose.msra.mxu0 0.0
    %5299 = vmatpush.xpose.msra.mxu0 0.0
    %5300 = vmatpush.xpose.msra.mxu0 0.0
    %5301 = vmatpush.xpose.msra.mxu0 0.0
    %5302 = vmatpush.xpose.msra.mxu0 0.0
    %5303 = vmatpush.xpose.msra.mxu0 0.0
    %5304 = vmatpush.xpose.msra.mxu0 0.0
    %5305 = vmatpush.xpose.msra.mxu0 0.0
    %5306 = vmatpush.xpose.msra.mxu0 0.0
    %5307 = vmatpush.xpose.msra.mxu0 0.0
    %5308 = vmatpush.xpose.msra.mxu0 0.0
    %5309 = vmatpush.xpose.msra.mxu0 0.0
    %5310 = vmatpush.xpose.msra.mxu0 %v5293
    %5311 = vmatmul.f32.gmra.mxu0 %v5290
    %v5312 = vpop.f32.mrf.mxu0
    %v5313 = vadd.f32 0.0, %v5312
    %5314 = vdwg.mxu0
    %v5315 = vmul.f32 %v5313, 0.25
    %v5316 = vsel %vm811, %v5315, -inf
    %5317 = vmax.xlane.f32.xlu0 %v5316
    %v5318 = vpop.xlane.xlu0 %5317
    %v5319 = vsub.f32 %v5315, %v5318
    %v5320 = vmul.f32 %v5319, 1.442695
    %v5321 = vpow.pop %v5320
    %v5322 = vsel %vm811, %v5321, 0.0
    %5323 = vadd.xlane.f32.xlu0 %v5322
    %v5324 = vpop.xlane.xlu0 %5323
    %v5325 = vrcp.pop %v5324
    %v5326 = vmul.f32 %v5321, %v5325
    %5327 = vrot.lane.b32.xlu0 %v5286, 96
    %v5328 = vpop.permute.xlu0 %5327
    %v5331 = vsel %vm811, %v5326, 0
    %5333 = vmatpush.msra.mxu0 0.0
    %5334 = vmatpush.msra.mxu0 0.0
    %5335 = vmatpush.msra.mxu0 0.0
    %5336 = vmatpush.msra.mxu0 0.0
    %5337 = vmatpush.msra.mxu0 0.0
    %5338 = vmatpush.msra.mxu0 0.0
    %5339 = vmatpush.msra.mxu0 0.0
    %5340 = vmatpush.msra.mxu0 0.0
    %5341 = vmatpush.msra.mxu0 0.0
    %5342 = vmatpush.msra.mxu0 0.0
    %5343 = vmatpush.msra.mxu0 0.0
    %5344 = vmatpush.msra.mxu0 0.0
    %5345 = vmatpush.msra.mxu0 0.0
    %5346 = vmatpush.msra.mxu0 0.0
    %5347 = vmatpush.msra.mxu0 0.0
    %5348 = vmatpush.msra.mxu0 %v5328
    %5349 = vmatmul.f32.gmra.mxu0 %v5331
    %v5350 = vpop.f32.mrf.mxu0
    %v5351 = vadd.f32 0.0, %v5350
    %5352 = vdwg.mxu0
    %v5353 = vld [vmem:[%s51] sm:$0xff]
    %v5354 = vld [vmem:[%s51 + $0x8] sm:$0xff]
    %v5356 = vsel %vm785, %v5351, 0
    %5358 = vmatpush.msra.mxu0 0.0
    %5359 = vmatpush.msra.mxu0 0.0
    %5360 = vmatpush.msra.mxu0 0.0
    %5361 = vmatpush.msra.mxu0 0.0
    %5362 = vmatpush.msra.mxu0 0.0
    %5363 = vmatpush.msra.mxu0 0.0
    %5364 = vmatpush.msra.mxu0 0.0
    %5365 = vmatpush.msra.mxu0 0.0
    %5366 = vmatpush.msra.mxu0 0.0
    %5367 = vmatpush.msra.mxu0 0.0
    %5368 = vmatpush.msra.mxu0 0.0
    %5369 = vmatpush.msra.mxu0 0.0
    %5370 = vmatpush.msra.mxu0 0.0
    %5371 = vmatpush.msra.mxu0 0.0
    %5372 = vmatpush.msra.mxu0 %v5354
    %5373 = vmatpush.msra.mxu0 %v5353
    %5374 = vmatmul.f32.gmra.mxu0 %v5356
    %v5375 = vpop.f32.mrf.mxu0
    %v5376 = vadd.f32 0.0, %v5375
    %5377 = vdwg.mxu0
    %v5379 = vperm.slane %v5288, 0
    %v5381 = vadd.f32 %v5379, %v5376
    %5382 = vrot.lane.b32.xlu0 %v5258, 112
    %v5383 = vpop.permute.xlu0 %5382
    %5384 = vrot.lane.b32.xlu0 %v5286, 112
    %v5385 = vpop.permute.xlu0 %5384
    %v5386 = vsel %vm785, %v5383, 0
    %v5388 = vsel %vm785, %v5385, 0
    %5390 = vmatpush.xpose.msra.mxu0 0.0
    %5391 = vmatpush.xpose.msra.mxu0 0.0
    %5392 = vmatpush.xpose.msra.mxu0 0.0
    %5393 = vmatpush.xpose.msra.mxu0 0.0
    %5394 = vmatpush.xpose.msra.mxu0 0.0
    %5395 = vmatpush.xpose.msra.mxu0 0.0
    %5396 = vmatpush.xpose.msra.mxu0 0.0
    %5397 = vmatpush.xpose.msra.mxu0 0.0
    %5398 = vmatpush.xpose.msra.mxu0 0.0
    %5399 = vmatpush.xpose.msra.mxu0 0.0
    %5400 = vmatpush.xpose.msra.mxu0 0.0
    %5401 = vmatpush.xpose.msra.mxu0 0.0
    %5402 = vmatpush.xpose.msra.mxu0 0.0
    %5403 = vmatpush.xpose.msra.mxu0 0.0
    %5404 = vmatpush.xpose.msra.mxu0 0.0
    %5405 = vmatpush.xpose.msra.mxu0 %v5388
    %5406 = vmatmul.f32.gmra.mxu0 %v5386
    %v5407 = vpop.f32.mrf.mxu0
    %v5408 = vadd.f32 0.0, %v5407
    %5409 = vdwg.mxu0
    %v5410 = vmul.f32 %v5408, 0.25
    %v5411 = vsel %vm811, %v5410, -inf
    %5412 = vmax.xlane.f32.xlu0 %v5411
    %v5413 = vpop.xlane.xlu0 %5412
    %v5414 = vsub.f32 %v5410, %v5413
    %v5415 = vmul.f32 %v5414, 1.442695
    %v5416 = vpow.pop %v5415
    %v5417 = vsel %vm811, %v5416, 0.0
    %5418 = vadd.xlane.f32.xlu0 %v5417
    %v5419 = vpop.xlane.xlu0 %5418
    %v5420 = vrcp.pop %v5419
    %v5421 = vmul.f32 %v5416, %v5420
    %5422 = vrot.lane.b32.xlu0 %v5286, 80
    %v5423 = vpop.permute.xlu0 %5422
    %v5426 = vsel %vm811, %v5421, 0
    %5428 = vmatpush.msra.mxu0 0.0
    %5429 = vmatpush.msra.mxu0 0.0
    %5430 = vmatpush.msra.mxu0 0.0
    %5431 = vmatpush.msra.mxu0 0.0
    %5432 = vmatpush.msra.mxu0 0.0
    %5433 = vmatpush.msra.mxu0 0.0
    %5434 = vmatpush.msra.mxu0 0.0
    %5435 = vmatpush.msra.mxu0 0.0
    %5436 = vmatpush.msra.mxu0 0.0
    %5437 = vmatpush.msra.mxu0 0.0
    %5438 = vmatpush.msra.mxu0 0.0
    %5439 = vmatpush.msra.mxu0 0.0
    %5440 = vmatpush.msra.mxu0 0.0
    %5441 = vmatpush.msra.mxu0 0.0
    %5442 = vmatpush.msra.mxu0 0.0
    %5443 = vmatpush.msra.mxu0 %v5423
    %5444 = vmatmul.f32.gmra.mxu0 %v5426
    %v5445 = vpop.f32.mrf.mxu0
    %v5446 = vadd.f32 0.0, %v5445
    %5447 = vdwg.mxu0
    %v5448 = vld [vmem:[%s51 + $0x10] sm:$0xff]
    %v5449 = vld [vmem:[%s51 + $0x18] sm:$0xff]
    %v5451 = vsel %vm785, %v5446, 0
    %5453 = vmatpush.msra.mxu0 0.0
    %5454 = vmatpush.msra.mxu0 0.0
    %5455 = vmatpush.msra.mxu0 0.0
    %5456 = vmatpush.msra.mxu0 0.0
    %5457 = vmatpush.msra.mxu0 0.0
    %5458 = vmatpush.msra.mxu0 0.0
    %5459 = vmatpush.msra.mxu0 0.0
    %5460 = vmatpush.msra.mxu0 0.0
    %5461 = vmatpush.msra.mxu0 0.0
    %5462 = vmatpush.msra.mxu0 0.0
    %5463 = vmatpush.msra.mxu0 0.0
    %5464 = vmatpush.msra.mxu0 0.0
    %5465 = vmatpush.msra.mxu0 0.0
    %5466 = vmatpush.msra.mxu0 0.0
    %5467 = vmatpush.msra.mxu0 %v5449
    %5468 = vmatpush.msra.mxu0 %v5448
    %5469 = vmatmul.f32.gmra.mxu0 %v5451
    %v5470 = vpop.f32.mrf.mxu0
    %v5471 = vadd.f32 0.0, %v5470
    %5472 = vdwg.mxu0
    %v5473 = vadd.f32 %v5381, %v5471
    %v5474 = vadd.f32 %v5228, %v5473
    %v5475 = vsel %vm726, %v5474, 0.0
    %5476 = vadd.xlane.f32.xlu0 %v5475
    %v5477 = vpop.xlane.xlu0 %5476
    %v5478 = vmul.f32 %v5477, %v980
    %v5479 = vsub.f32 %v5474, %v5478
    %v5480 = vmul.f32 %v5479, %v5479
    %v5481 = vsel %vm726, %v5480, 0.0
    %5482 = vadd.xlane.f32.xlu0 %v5481
    %v5483 = vpop.xlane.xlu0 %5482
    %v5484 = vmul.f32 %v5483, %v980
    %v5485 = vadd.f32 %v5484, 1e-05
    %v5486 = vrsqrt.pop %v5485
    %v5487 = vmul.f32 %v5486, %v5485
    %v5488 = vmul.f32 %v5487, %v5486
    %v5489 = vmul.f32 0.5, %v5488
    %v5490 = vsub.f32 1.5, %v5489
    %v5491 = vmul.f32 %v5486, %v5490
    %vm5492 = vweird.f32 %v5485
    %vm5493 = vweird.f32 %v5486
    %vm5494 = vmor %vm5492, %vm5493
    %v5495 = vsel %vm5494, %v5486, %v5491
    %v5496 = vmul.f32 %v5479, %v5495
    %v5497 = vld [vmem:[#allocation12] sm:$0x1]
    %v5499 = vperm.slane %v5497, 0
    %v5501 = vmul.f32 %v5496, %v5499
    %v5502 = vld [vmem:[#allocation10] sm:$0x1]
    %v5504 = vperm.slane %v5502, 0
    %v5506 = vadd.f32 %v5501, %v5504
    %v5507 = vld [vmem:[%s59] sm:$0xff]
    %v5508 = vld [vmem:[%s59 + $0x8] sm:$0xff]
    %v5509 = vld [vmem:[%s59 + $0x10] sm:$0xff]
    %v5510 = vld [vmem:[%s59 + $0x18] sm:$0xff]
    %v5511 = vld [vmem:[%s59 + $0x20] sm:$0xff]
    %v5512 = vld [vmem:[%s59 + $0x28] sm:$0xff]
    %v5513 = vld [vmem:[%s59 + $0x30] sm:$0xff]
    %v5514 = vld [vmem:[%s59 + $0x38] sm:$0xff]
    %v5515 = vld [vmem:[%s59 + $0x40] sm:$0xff]
    %v5516 = vld [vmem:[%s59 + $0x48] sm:$0xff]
    %v5517 = vld [vmem:[%s59 + $0x50] sm:$0xff]
    %v5518 = vld [vmem:[%s59 + $0x58] sm:$0xff]
    %v5519 = vld [vmem:[%s59 + $0x60] sm:$0xff]
    %v5520 = vld [vmem:[%s59 + $0x68] sm:$0xff]
    %v5521 = vld [vmem:[%s59 + $0x70] sm:$0xff]
    %v5522 = vld [vmem:[%s59 + $0x78] sm:$0xff]
    %v5523 = vld [vmem:[%s59 + $0x80] sm:$0xff]
    %v5524 = vld [vmem:[%s59 + $0x88] sm:$0xff]
    %v5525 = vld [vmem:[%s59 + $0x90] sm:$0xff]
    %v5526 = vld [vmem:[%s59 + $0x98] sm:$0xff]
    %v5527 = vld [vmem:[%s59 + $0xa0] sm:$0xff]
    %v5528 = vld [vmem:[%s59 + $0xa8] sm:$0xff]
    %v5529 = vld [vmem:[%s59 + $0xb0] sm:$0xff]
    %v5530 = vld [vmem:[%s59 + $0xb8] sm:$0xff]
    %v5531 = vld [vmem:[%s59 + $0xc0] sm:$0xff]
    %v5532 = vld [vmem:[%s59 + $0xc8] sm:$0xff]
    %v5533 = vld [vmem:[%s59 + $0xd0] sm:$0xff]
    %v5534 = vld [vmem:[%s59 + $0xd8] sm:$0xff]
    %v5535 = vld [vmem:[%s59 + $0xe0] sm:$0xff]
    %v5536 = vld [vmem:[%s59 + $0xe8] sm:$0xff]
    %v5537 = vld [vmem:[%s59 + $0xf0] sm:$0xff]
    %v5538 = vld [vmem:[%s59 + $0xf8] sm:$0xff]
    %v5539 = vld [vmem:[%s59 + $0x100] sm:$0xff]
    %v5540 = vld [vmem:[%s59 + $0x108] sm:$0xff]
    %v5541 = vld [vmem:[%s59 + $0x110] sm:$0xff]
    %v5542 = vld [vmem:[%s59 + $0x118] sm:$0xff]
    %v5543 = vld [vmem:[%s59 + $0x120] sm:$0xff]
    %v5544 = vld [vmem:[%s59 + $0x128] sm:$0xff]
    %v5545 = vld [vmem:[%s59 + $0x130] sm:$0xff]
    %v5546 = vld [vmem:[%s59 + $0x138] sm:$0xff]
    %v5547 = vld [vmem:[%s59 + $0x140] sm:$0xff]
    %v5548 = vld [vmem:[%s59 + $0x148] sm:$0xff]
    %v5549 = vld [vmem:[%s59 + $0x150] sm:$0xff]
    %v5550 = vld [vmem:[%s59 + $0x158] sm:$0xff]
    %v5551 = vld [vmem:[%s59 + $0x160] sm:$0xff]
    %v5552 = vld [vmem:[%s59 + $0x168] sm:$0xff]
    %v5553 = vld [vmem:[%s59 + $0x170] sm:$0xff]
    %v5554 = vld [vmem:[%s59 + $0x178] sm:$0xff]
    %v5555 = vld [vmem:[%s59 + $0x180] sm:$0xff]
    %v5556 = vld [vmem:[%s59 + $0x188] sm:$0xff]
    %v5557 = vld [vmem:[%s59 + $0x190] sm:$0xff]
    %v5558 = vld [vmem:[%s59 + $0x198] sm:$0xff]
    %v5559 = vld [vmem:[%s59 + $0x1a0] sm:$0xff]
    %v5560 = vld [vmem:[%s59 + $0x1a8] sm:$0xff]
    %v5561 = vld [vmem:[%s59 + $0x1b0] sm:$0xff]
    %v5562 = vld [vmem:[%s59 + $0x1b8] sm:$0xff]
    %v5563 = vld [vmem:[%s59 + $0x1c0] sm:$0xff]
    %v5564 = vld [vmem:[%s59 + $0x1c8] sm:$0xff]
    %v5565 = vld [vmem:[%s59 + $0x1d0] sm:$0xff]
    %v5566 = vld [vmem:[%s59 + $0x1d8] sm:$0xff]
    %v5567 = vld [vmem:[%s59 + $0x1e0] sm:$0xff]
    %v5568 = vld [vmem:[%s59 + $0x1e8] sm:$0xff]
    %v5569 = vld [vmem:[%s59 + $0x1f0] sm:$0xff]
    %v5570 = vld [vmem:[%s59 + $0x1f8] sm:$0xff]
    %v5571 = vld [vmem:[%s55] sm:$0xff]
    %v5572 = vld [vmem:[%s55 + $0x8] sm:$0xff]
    %v5575 = vperm.slane %v5571, 0
    %v5576 = vperm.slane %v5571, 1
    %v5577 = vperm.slane %v5571, 2
    %v5578 = vperm.slane %v5571, 3
    %v5579 = vperm.slane %v5571, 4
    %v5580 = vperm.slane %v5571, 5
    %v5581 = vperm.slane %v5571, 6
    %v5582 = vperm.slane %v5571, 7
    %v5583 = vperm.slane %v5572, 0
    %v5584 = vperm.slane %v5572, 1
    %v5585 = vperm.slane %v5572, 2
    %v5586 = vperm.slane %v5572, 3
    %v5587 = vperm.slane %v5572, 4
    %v5588 = vperm.slane %v5572, 5
    %v5589 = vperm.slane %v5572, 6
    %v5590 = vperm.slane %v5572, 7
    %v5608 = vsel %vm726, %v5506, 0
    %5610 = vmatpush.msra.mxu0 0.0
    %5611 = vmatpush.msra.mxu0 0.0
    %5612 = vmatpush.msra.mxu0 0.0
    %5613 = vmatpush.msra.mxu0 0.0
    %5614 = vmatpush.msra.mxu0 0.0
    %5615 = vmatpush.msra.mxu0 0.0
    %5616 = vmatpush.msra.mxu0 0.0
    %5617 = vmatpush.msra.mxu0 0.0
    %5618 = vmatpush.msra.mxu0 0.0
    %5619 = vmatpush.msra.mxu0 0.0
    %5620 = vmatpush.msra.mxu0 0.0
    %5621 = vmatpush.msra.mxu0 0.0
    %5622 = vmatpush.msra.mxu0 %v5555
    %5623 = vmatpush.msra.mxu0 %v5539
    %5624 = vmatpush.msra.mxu0 %v5523
    %5625 = vmatpush.msra.mxu0 %v5507
    %5626 = vmatmul.f32.gmra.mxu0 %v5608
    %v5627 = vpop.f32.mrf.mxu0
    %v5628 = vadd.f32 %v5575, %v5627
    %5629 = vdwg.mxu0
    %5630 = vmatpush.msra.mxu0 0.0
    %5631 = vmatpush.msra.mxu0 0.0
    %5632 = vmatpush.msra.mxu0 0.0
    %5633 = vmatpush.msra.mxu0 0.0
    %5634 = vmatpush.msra.mxu0 0.0
    %5635 = vmatpush.msra.mxu0 0.0
    %5636 = vmatpush.msra.mxu0 0.0
    %5637 = vmatpush.msra.mxu0 0.0
    %5638 = vmatpush.msra.mxu0 0.0
    %5639 = vmatpush.msra.mxu0 0.0
    %5640 = vmatpush.msra.mxu0 0.0
    %5641 = vmatpush.msra.mxu0 0.0
    %5642 = vmatpush.msra.mxu0 %v5556
    %5643 = vmatpush.msra.mxu0 %v5540
    %5644 = vmatpush.msra.mxu0 %v5524
    %5645 = vmatpush.msra.mxu0 %v5508
    %5646 = vmatmul.f32.gmra.mxu0 %v5608
    %v5647 = vpop.f32.mrf.mxu0
    %v5648 = vadd.f32 %v5576, %v5647
    %5649 = vdwg.mxu0
    %5650 = vmatpush.msra.mxu0 0.0
    %5651 = vmatpush.msra.mxu0 0.0
    %5652 = vmatpush.msra.mxu0 0.0
    %5653 = vmatpush.msra.mxu0 0.0
    %5654 = vmatpush.msra.mxu0 0.0
    %5655 = vmatpush.msra.mxu0 0.0
    %5656 = vmatpush.msra.mxu0 0.0
    %5657 = vmatpush.msra.mxu0 0.0
    %5658 = vmatpush.msra.mxu0 0.0
    %5659 = vmatpush.msra.mxu0 0.0
    %5660 = vmatpush.msra.mxu0 0.0
    %5661 = vmatpush.msra.mxu0 0.0
    %5662 = vmatpush.msra.mxu0 %v5557
    %5663 = vmatpush.msra.mxu0 %v5541
    %5664 = vmatpush.msra.mxu0 %v5525
    %5665 = vmatpush.msra.mxu0 %v5509
    %5666 = vmatmul.f32.gmra.mxu0 %v5608
    %v5667 = vpop.f32.mrf.mxu0
    %v5668 = vadd.f32 %v5577, %v5667
    %5669 = vdwg.mxu0
    %5670 = vmatpush.msra.mxu0 0.0
    %5671 = vmatpush.msra.mxu0 0.0
    %5672 = vmatpush.msra.mxu0 0.0
    %5673 = vmatpush.msra.mxu0 0.0
    %5674 = vmatpush.msra.mxu0 0.0
    %5675 = vmatpush.msra.mxu0 0.0
    %5676 = vmatpush.msra.mxu0 0.0
    %5677 = vmatpush.msra.mxu0 0.0
    %5678 = vmatpush.msra.mxu0 0.0
    %5679 = vmatpush.msra.mxu0 0.0
    %5680 = vmatpush.msra.mxu0 0.0
    %5681 = vmatpush.msra.mxu0 0.0
    %5682 = vmatpush.msra.mxu0 %v5558
    %5683 = vmatpush.msra.mxu0 %v5542
    %5684 = vmatpush.msra.mxu0 %v5526
    %5685 = vmatpush.msra.mxu0 %v5510
    %5686 = vmatmul.f32.gmra.mxu0 %v5608
    %v5687 = vpop.f32.mrf.mxu0
    %v5688 = vadd.f32 %v5578, %v5687
    %5689 = vdwg.mxu0
    %5690 = vmatpush.msra.mxu0 0.0
    %5691 = vmatpush.msra.mxu0 0.0
    %5692 = vmatpush.msra.mxu0 0.0
    %5693 = vmatpush.msra.mxu0 0.0
    %5694 = vmatpush.msra.mxu0 0.0
    %5695 = vmatpush.msra.mxu0 0.0
    %5696 = vmatpush.msra.mxu0 0.0
    %5697 = vmatpush.msra.mxu0 0.0
    %5698 = vmatpush.msra.mxu0 0.0
    %5699 = vmatpush.msra.mxu0 0.0
    %5700 = vmatpush.msra.mxu0 0.0
    %5701 = vmatpush.msra.mxu0 0.0
    %5702 = vmatpush.msra.mxu0 %v5559
    %5703 = vmatpush.msra.mxu0 %v5543
    %5704 = vmatpush.msra.mxu0 %v5527
    %5705 = vmatpush.msra.mxu0 %v5511
    %5706 = vmatmul.f32.gmra.mxu0 %v5608
    %v5707 = vpop.f32.mrf.mxu0
    %v5708 = vadd.f32 %v5579, %v5707
    %5709 = vdwg.mxu0
    %5710 = vmatpush.msra.mxu0 0.0
    %5711 = vmatpush.msra.mxu0 0.0
    %5712 = vmatpush.msra.mxu0 0.0
    %5713 = vmatpush.msra.mxu0 0.0
    %5714 = vmatpush.msra.mxu0 0.0
    %5715 = vmatpush.msra.mxu0 0.0
    %5716 = vmatpush.msra.mxu0 0.0
    %5717 = vmatpush.msra.mxu0 0.0
    %5718 = vmatpush.msra.mxu0 0.0
    %5719 = vmatpush.msra.mxu0 0.0
    %5720 = vmatpush.msra.mxu0 0.0
    %5721 = vmatpush.msra.mxu0 0.0
    %5722 = vmatpush.msra.mxu0 %v5560
    %5723 = vmatpush.msra.mxu0 %v5544
    %5724 = vmatpush.msra.mxu0 %v5528
    %5725 = vmatpush.msra.mxu0 %v5512
    %5726 = vmatmul.f32.gmra.mxu0 %v5608
    %v5727 = vpop.f32.mrf.mxu0
    %v5728 = vadd.f32 %v5580, %v5727
    %5729 = vdwg.mxu0
    %5730 = vmatpush.msra.mxu0 0.0
    %5731 = vmatpush.msra.mxu0 0.0
    %5732 = vmatpush.msra.mxu0 0.0
    %5733 = vmatpush.msra.mxu0 0.0
    %5734 = vmatpush.msra.mxu0 0.0
    %5735 = vmatpush.msra.mxu0 0.0
    %5736 = vmatpush.msra.mxu0 0.0
    %5737 = vmatpush.msra.mxu0 0.0
    %5738 = vmatpush.msra.mxu0 0.0
    %5739 = vmatpush.msra.mxu0 0.0
    %5740 = vmatpush.msra.mxu0 0.0
    %5741 = vmatpush.msra.mxu0 0.0
    %5742 = vmatpush.msra.mxu0 %v5561
    %5743 = vmatpush.msra.mxu0 %v5545
    %5744 = vmatpush.msra.mxu0 %v5529
    %5745 = vmatpush.msra.mxu0 %v5513
    %5746 = vmatmul.f32.gmra.mxu0 %v5608
    %v5747 = vpop.f32.mrf.mxu0
    %v5748 = vadd.f32 %v5581, %v5747
    %5749 = vdwg.mxu0
    %5750 = vmatpush.msra.mxu0 0.0
    %5751 = vmatpush.msra.mxu0 0.0
    %5752 = vmatpush.msra.mxu0 0.0
    %5753 = vmatpush.msra.mxu0 0.0
    %5754 = vmatpush.msra.mxu0 0.0
    %5755 = vmatpush.msra.mxu0 0.0
    %5756 = vmatpush.msra.mxu0 0.0
    %5757 = vmatpush.msra.mxu0 0.0
    %5758 = vmatpush.msra.mxu0 0.0
    %5759 = vmatpush.msra.mxu0 0.0
    %5760 = vmatpush.msra.mxu0 0.0
    %5761 = vmatpush.msra.mxu0 0.0
    %5762 = vmatpush.msra.mxu0 %v5562
    %5763 = vmatpush.msra.mxu0 %v5546
    %5764 = vmatpush.msra.mxu0 %v5530
    %5765 = vmatpush.msra.mxu0 %v5514
    %5766 = vmatmul.f32.gmra.mxu0 %v5608
    %v5767 = vpop.f32.mrf.mxu0
    %v5768 = vadd.f32 %v5582, %v5767
    %5769 = vdwg.mxu0
    %5770 = vmatpush.msra.mxu0 0.0
    %5771 = vmatpush.msra.mxu0 0.0
    %5772 = vmatpush.msra.mxu0 0.0
    %5773 = vmatpush.msra.mxu0 0.0
    %5774 = vmatpush.msra.mxu0 0.0
    %5775 = vmatpush.msra.mxu0 0.0
    %5776 = vmatpush.msra.mxu0 0.0
    %5777 = vmatpush.msra.mxu0 0.0
    %5778 = vmatpush.msra.mxu0 0.0
    %5779 = vmatpush.msra.mxu0 0.0
    %5780 = vmatpush.msra.mxu0 0.0
    %5781 = vmatpush.msra.mxu0 0.0
    %5782 = vmatpush.msra.mxu0 %v5563
    %5783 = vmatpush.msra.mxu0 %v5547
    %5784 = vmatpush.msra.mxu0 %v5531
    %5785 = vmatpush.msra.mxu0 %v5515
    %5786 = vmatmul.f32.gmra.mxu0 %v5608
    %v5787 = vpop.f32.mrf.mxu0
    %v5788 = vadd.f32 %v5583, %v5787
    %5789 = vdwg.mxu0
    %5790 = vmatpush.msra.mxu0 0.0
    %5791 = vmatpush.msra.mxu0 0.0
    %5792 = vmatpush.msra.mxu0 0.0
    %5793 = vmatpush.msra.mxu0 0.0
    %5794 = vmatpush.msra.mxu0 0.0
    %5795 = vmatpush.msra.mxu0 0.0
    %5796 = vmatpush.msra.mxu0 0.0
    %5797 = vmatpush.msra.mxu0 0.0
    %5798 = vmatpush.msra.mxu0 0.0
    %5799 = vmatpush.msra.mxu0 0.0
    %5800 = vmatpush.msra.mxu0 0.0
    %5801 = vmatpush.msra.mxu0 0.0
    %5802 = vmatpush.msra.mxu0 %v5564
    %5803 = vmatpush.msra.mxu0 %v5548
    %5804 = vmatpush.msra.mxu0 %v5532
    %5805 = vmatpush.msra.mxu0 %v5516
    %5806 = vmatmul.f32.gmra.mxu0 %v5608
    %v5807 = vpop.f32.mrf.mxu0
    %v5808 = vadd.f32 %v5584, %v5807
    %5809 = vdwg.mxu0
    %5810 = vmatpush.msra.mxu0 0.0
    %5811 = vmatpush.msra.mxu0 0.0
    %5812 = vmatpush.msra.mxu0 0.0
    %5813 = vmatpush.msra.mxu0 0.0
    %5814 = vmatpush.msra.mxu0 0.0
    %5815 = vmatpush.msra.mxu0 0.0
    %5816 = vmatpush.msra.mxu0 0.0
    %5817 = vmatpush.msra.mxu0 0.0
    %5818 = vmatpush.msra.mxu0 0.0
    %5819 = vmatpush.msra.mxu0 0.0
    %5820 = vmatpush.msra.mxu0 0.0
    %5821 = vmatpush.msra.mxu0 0.0
    %5822 = vmatpush.msra.mxu0 %v5565
    %5823 = vmatpush.msra.mxu0 %v5549
    %5824 = vmatpush.msra.mxu0 %v5533
    %5825 = vmatpush.msra.mxu0 %v5517
    %5826 = vmatmul.f32.gmra.mxu0 %v5608
    %v5827 = vpop.f32.mrf.mxu0
    %v5828 = vadd.f32 %v5585, %v5827
    %5829 = vdwg.mxu0
    %5830 = vmatpush.msra.mxu0 0.0
    %5831 = vmatpush.msra.mxu0 0.0
    %5832 = vmatpush.msra.mxu0 0.0
    %5833 = vmatpush.msra.mxu0 0.0
    %5834 = vmatpush.msra.mxu0 0.0
    %5835 = vmatpush.msra.mxu0 0.0
    %5836 = vmatpush.msra.mxu0 0.0
    %5837 = vmatpush.msra.mxu0 0.0
    %5838 = vmatpush.msra.mxu0 0.0
    %5839 = vmatpush.msra.mxu0 0.0
    %5840 = vmatpush.msra.mxu0 0.0
    %5841 = vmatpush.msra.mxu0 0.0
    %5842 = vmatpush.msra.mxu0 %v5566
    %5843 = vmatpush.msra.mxu0 %v5550
    %5844 = vmatpush.msra.mxu0 %v5534
    %5845 = vmatpush.msra.mxu0 %v5518
    %5846 = vmatmul.f32.gmra.mxu0 %v5608
    %v5847 = vpop.f32.mrf.mxu0
    %v5848 = vadd.f32 %v5586, %v5847
    %5849 = vdwg.mxu0
    %5850 = vmatpush.msra.mxu0 0.0
    %5851 = vmatpush.msra.mxu0 0.0
    %5852 = vmatpush.msra.mxu0 0.0
    %5853 = vmatpush.msra.mxu0 0.0
    %5854 = vmatpush.msra.mxu0 0.0
    %5855 = vmatpush.msra.mxu0 0.0
    %5856 = vmatpush.msra.mxu0 0.0
    %5857 = vmatpush.msra.mxu0 0.0
    %5858 = vmatpush.msra.mxu0 0.0
    %5859 = vmatpush.msra.mxu0 0.0
    %5860 = vmatpush.msra.mxu0 0.0
    %5861 = vmatpush.msra.mxu0 0.0
    %5862 = vmatpush.msra.mxu0 %v5567
    %5863 = vmatpush.msra.mxu0 %v5551
    %5864 = vmatpush.msra.mxu0 %v5535
    %5865 = vmatpush.msra.mxu0 %v5519
    %5866 = vmatmul.f32.gmra.mxu0 %v5608
    %v5867 = vpop.f32.mrf.mxu0
    %v5868 = vadd.f32 %v5587, %v5867
    %5869 = vdwg.mxu0
    %5870 = vmatpush.msra.mxu0 0.0
    %5871 = vmatpush.msra.mxu0 0.0
    %5872 = vmatpush.msra.mxu0 0.0
    %5873 = vmatpush.msra.mxu0 0.0
    %5874 = vmatpush.msra.mxu0 0.0
    %5875 = vmatpush.msra.mxu0 0.0
    %5876 = vmatpush.msra.mxu0 0.0
    %5877 = vmatpush.msra.mxu0 0.0
    %5878 = vmatpush.msra.mxu0 0.0
    %5879 = vmatpush.msra.mxu0 0.0
    %5880 = vmatpush.msra.mxu0 0.0
    %5881 = vmatpush.msra.mxu0 0.0
    %5882 = vmatpush.msra.mxu0 %v5568
    %5883 = vmatpush.msra.mxu0 %v5552
    %5884 = vmatpush.msra.mxu0 %v5536
    %5885 = vmatpush.msra.mxu0 %v5520
    %5886 = vmatmul.f32.gmra.mxu0 %v5608
    %v5887 = vpop.f32.mrf.mxu0
    %v5888 = vadd.f32 %v5588, %v5887
    %5889 = vdwg.mxu0
    %5890 = vmatpush.msra.mxu0 0.0
    %5891 = vmatpush.msra.mxu0 0.0
    %5892 = vmatpush.msra.mxu0 0.0
    %5893 = vmatpush.msra.mxu0 0.0
    %5894 = vmatpush.msra.mxu0 0.0
    %5895 = vmatpush.msra.mxu0 0.0
    %5896 = vmatpush.msra.mxu0 0.0
    %5897 = vmatpush.msra.mxu0 0.0
    %5898 = vmatpush.msra.mxu0 0.0
    %5899 = vmatpush.msra.mxu0 0.0
    %5900 = vmatpush.msra.mxu0 0.0
    %5901 = vmatpush.msra.mxu0 0.0
    %5902 = vmatpush.msra.mxu0 %v5569
    %5903 = vmatpush.msra.mxu0 %v5553
    %5904 = vmatpush.msra.mxu0 %v5537
    %5905 = vmatpush.msra.mxu0 %v5521
    %5906 = vmatmul.f32.gmra.mxu0 %v5608
    %v5907 = vpop.f32.mrf.mxu0
    %v5908 = vadd.f32 %v5589, %v5907
    %5909 = vdwg.mxu0
    %5910 = vmatpush.msra.mxu0 0.0
    %5911 = vmatpush.msra.mxu0 0.0
    %5912 = vmatpush.msra.mxu0 0.0
    %5913 = vmatpush.msra.mxu0 0.0
    %5914 = vmatpush.msra.mxu0 0.0
    %5915 = vmatpush.msra.mxu0 0.0
    %5916 = vmatpush.msra.mxu0 0.0
    %5917 = vmatpush.msra.mxu0 0.0
    %5918 = vmatpush.msra.mxu0 0.0
    %5919 = vmatpush.msra.mxu0 0.0
    %5920 = vmatpush.msra.mxu0 0.0
    %5921 = vmatpush.msra.mxu0 0.0
    %5922 = vmatpush.msra.mxu0 %v5570
    %5923 = vmatpush.msra.mxu0 %v5554
    %5924 = vmatpush.msra.mxu0 %v5538
    %5925 = vmatpush.msra.mxu0 %v5522
    %5926 = vmatmul.f32.gmra.mxu0 %v5608
    %v5927 = vpop.f32.mrf.mxu0
    %v5928 = vadd.f32 %v5590, %v5927
    %5929 = vdwg.mxu0
    %v5930 = vmax.f32 %v5628, 0.0
    %v5931 = vmax.f32 %v5648, 0.0
    %v5932 = vmax.f32 %v5668, 0.0
    %v5933 = vmax.f32 %v5688, 0.0
    %v5934 = vmax.f32 %v5708, 0.0
    %v5935 = vmax.f32 %v5728, 0.0
    %v5936 = vmax.f32 %v5748, 0.0
    %v5937 = vmax.f32 %v5768, 0.0
    %v5938 = vmax.f32 %v5788, 0.0
    %v5939 = vmax.f32 %v5808, 0.0
    %v5940 = vmax.f32 %v5828, 0.0
    %v5941 = vmax.f32 %v5848, 0.0
    %v5942 = vmax.f32 %v5868, 0.0
    %v5943 = vmax.f32 %v5888, 0.0
    %v5944 = vmax.f32 %v5908, 0.0
    %v5945 = vmax.f32 %v5928, 0.0
    %v5946 = vld [vmem:[%s61] sm:$0xff]
    %v5947 = vld [vmem:[%s61 + $0x8] sm:$0xff]
    %v5948 = vld [vmem:[%s61 + $0x10] sm:$0xff]
    %v5949 = vld [vmem:[%s61 + $0x18] sm:$0xff]
    %v5950 = vld [vmem:[%s61 + $0x20] sm:$0xff]
    %v5951 = vld [vmem:[%s61 + $0x28] sm:$0xff]
    %v5952 = vld [vmem:[%s61 + $0x30] sm:$0xff]
    %v5953 = vld [vmem:[%s61 + $0x38] sm:$0xff]
    %v5954 = vld [vmem:[%s61 + $0x40] sm:$0xff]
    %v5955 = vld [vmem:[%s61 + $0x48] sm:$0xff]
    %v5956 = vld [vmem:[%s61 + $0x50] sm:$0xff]
    %v5957 = vld [vmem:[%s61 + $0x58] sm:$0xff]
    %v5958 = vld [vmem:[%s61 + $0x60] sm:$0xff]
    %v5959 = vld [vmem:[%s61 + $0x68] sm:$0xff]
    %v5960 = vld [vmem:[%s61 + $0x70] sm:$0xff]
    %v5961 = vld [vmem:[%s61 + $0x78] sm:$0xff]
    %v5962 = vld [vmem:[%s61 + $0x80] sm:$0xff]
    %v5963 = vld [vmem:[%s61 + $0x88] sm:$0xff]
    %v5964 = vld [vmem:[%s61 + $0x90] sm:$0xff]
    %v5965 = vld [vmem:[%s61 + $0x98] sm:$0xff]
    %v5966 = vld [vmem:[%s61 + $0xa0] sm:$0xff]
    %v5967 = vld [vmem:[%s61 + $0xa8] sm:$0xff]
    %v5968 = vld [vmem:[%s61 + $0xb0] sm:$0xff]
    %v5969 = vld [vmem:[%s61 + $0xb8] sm:$0xff]
    %v5970 = vld [vmem:[%s61 + $0xc0] sm:$0xff]
    %v5971 = vld [vmem:[%s61 + $0xc8] sm:$0xff]
    %v5972 = vld [vmem:[%s61 + $0xd0] sm:$0xff]
    %v5973 = vld [vmem:[%s61 + $0xd8] sm:$0xff]
    %v5974 = vld [vmem:[%s61 + $0xe0] sm:$0xff]
    %v5975 = vld [vmem:[%s61 + $0xe8] sm:$0xff]
    %v5976 = vld [vmem:[%s61 + $0xf0] sm:$0xff]
    %v5977 = vld [vmem:[%s61 + $0xf8] sm:$0xff]
    %v5978 = vld [vmem:[%s61 + $0x100] sm:$0xff]
    %v5979 = vld [vmem:[%s61 + $0x108] sm:$0xff]
    %v5980 = vld [vmem:[%s61 + $0x110] sm:$0xff]
    %v5981 = vld [vmem:[%s61 + $0x118] sm:$0xff]
    %v5982 = vld [vmem:[%s61 + $0x120] sm:$0xff]
    %v5983 = vld [vmem:[%s61 + $0x128] sm:$0xff]
    %v5984 = vld [vmem:[%s61 + $0x130] sm:$0xff]
    %v5985 = vld [vmem:[%s61 + $0x138] sm:$0xff]
    %v5986 = vld [vmem:[%s61 + $0x140] sm:$0xff]
    %v5987 = vld [vmem:[%s61 + $0x148] sm:$0xff]
    %v5988 = vld [vmem:[%s61 + $0x150] sm:$0xff]
    %v5989 = vld [vmem:[%s61 + $0x158] sm:$0xff]
    %v5990 = vld [vmem:[%s61 + $0x160] sm:$0xff]
    %v5991 = vld [vmem:[%s61 + $0x168] sm:$0xff]
    %v5992 = vld [vmem:[%s61 + $0x170] sm:$0xff]
    %v5993 = vld [vmem:[%s61 + $0x178] sm:$0xff]
    %v5994 = vld [vmem:[%s61 + $0x180] sm:$0xff]
    %v5995 = vld [vmem:[%s61 + $0x188] sm:$0xff]
    %v5996 = vld [vmem:[%s61 + $0x190] sm:$0xff]
    %v5997 = vld [vmem:[%s61 + $0x198] sm:$0xff]
    %v5998 = vld [vmem:[%s61 + $0x1a0] sm:$0xff]
    %v5999 = vld [vmem:[%s61 + $0x1a8] sm:$0xff]
    %v6000 = vld [vmem:[%s61 + $0x1b0] sm:$0xff]
    %v6001 = vld [vmem:[%s61 + $0x1b8] sm:$0xff]
    %v6002 = vld [vmem:[%s61 + $0x1c0] sm:$0xff]
    %v6003 = vld [vmem:[%s61 + $0x1c8] sm:$0xff]
    %v6004 = vld [vmem:[%s61 + $0x1d0] sm:$0xff]
    %v6005 = vld [vmem:[%s61 + $0x1d8] sm:$0xff]
    %v6006 = vld [vmem:[%s61 + $0x1e0] sm:$0xff]
    %v6007 = vld [vmem:[%s61 + $0x1e8] sm:$0xff]
    %v6008 = vld [vmem:[%s61 + $0x1f0] sm:$0xff]
    %v6009 = vld [vmem:[%s61 + $0x1f8] sm:$0xff]
    %v6010 = vld [vmem:[%s61 + $0x200] sm:$0xff]
    %v6011 = vld [vmem:[%s61 + $0x208] sm:$0xff]
    %v6012 = vld [vmem:[%s61 + $0x210] sm:$0xff]
    %v6013 = vld [vmem:[%s61 + $0x218] sm:$0xff]
    %v6014 = vld [vmem:[%s61 + $0x220] sm:$0xff]
    %v6015 = vld [vmem:[%s61 + $0x228] sm:$0xff]
    %v6016 = vld [vmem:[%s61 + $0x230] sm:$0xff]
    %v6017 = vld [vmem:[%s61 + $0x238] sm:$0xff]
    %v6018 = vld [vmem:[%s61 + $0x240] sm:$0xff]
    %v6019 = vld [vmem:[%s61 + $0x248] sm:$0xff]
    %v6020 = vld [vmem:[%s61 + $0x250] sm:$0xff]
    %v6021 = vld [vmem:[%s61 + $0x258] sm:$0xff]
    %v6022 = vld [vmem:[%s61 + $0x260] sm:$0xff]
    %v6023 = vld [vmem:[%s61 + $0x268] sm:$0xff]
    %v6024 = vld [vmem:[%s61 + $0x270] sm:$0xff]
    %v6025 = vld [vmem:[%s61 + $0x278] sm:$0xff]
    %v6026 = vld [vmem:[%s61 + $0x280] sm:$0xff]
    %v6027 = vld [vmem:[%s61 + $0x288] sm:$0xff]
    %v6028 = vld [vmem:[%s61 + $0x290] sm:$0xff]
    %v6029 = vld [vmem:[%s61 + $0x298] sm:$0xff]
    %v6030 = vld [vmem:[%s61 + $0x2a0] sm:$0xff]
    %v6031 = vld [vmem:[%s61 + $0x2a8] sm:$0xff]
    %v6032 = vld [vmem:[%s61 + $0x2b0] sm:$0xff]
    %v6033 = vld [vmem:[%s61 + $0x2b8] sm:$0xff]
    %v6034 = vld [vmem:[%s61 + $0x2c0] sm:$0xff]
    %v6035 = vld [vmem:[%s61 + $0x2c8] sm:$0xff]
    %v6036 = vld [vmem:[%s61 + $0x2d0] sm:$0xff]
    %v6037 = vld [vmem:[%s61 + $0x2d8] sm:$0xff]
    %v6038 = vld [vmem:[%s61 + $0x2e0] sm:$0xff]
    %v6039 = vld [vmem:[%s61 + $0x2e8] sm:$0xff]
    %v6040 = vld [vmem:[%s61 + $0x2f0] sm:$0xff]
    %v6041 = vld [vmem:[%s61 + $0x2f8] sm:$0xff]
    %v6042 = vld [vmem:[%s61 + $0x300] sm:$0xff]
    %v6043 = vld [vmem:[%s61 + $0x308] sm:$0xff]
    %v6044 = vld [vmem:[%s61 + $0x310] sm:$0xff]
    %v6045 = vld [vmem:[%s61 + $0x318] sm:$0xff]
    %v6046 = vld [vmem:[%s61 + $0x320] sm:$0xff]
    %v6047 = vld [vmem:[%s61 + $0x328] sm:$0xff]
    %v6048 = vld [vmem:[%s61 + $0x330] sm:$0xff]
    %v6049 = vld [vmem:[%s61 + $0x338] sm:$0xff]
    %v6050 = vld [vmem:[%s61 + $0x340] sm:$0xff]
    %v6051 = vld [vmem:[%s61 + $0x348] sm:$0xff]
    %v6052 = vld [vmem:[%s61 + $0x350] sm:$0xff]
    %v6053 = vld [vmem:[%s61 + $0x358] sm:$0xff]
    %v6054 = vld [vmem:[%s61 + $0x360] sm:$0xff]
    %v6055 = vld [vmem:[%s61 + $0x368] sm:$0xff]
    %v6056 = vld [vmem:[%s61 + $0x370] sm:$0xff]
    %v6057 = vld [vmem:[%s61 + $0x378] sm:$0xff]
    %v6058 = vld [vmem:[%s61 + $0x380] sm:$0xff]
    %v6059 = vld [vmem:[%s61 + $0x388] sm:$0xff]
    %v6060 = vld [vmem:[%s61 + $0x390] sm:$0xff]
    %v6061 = vld [vmem:[%s61 + $0x398] sm:$0xff]
    %v6062 = vld [vmem:[%s61 + $0x3a0] sm:$0xff]
    %v6063 = vld [vmem:[%s61 + $0x3a8] sm:$0xff]
    %v6064 = vld [vmem:[%s61 + $0x3b0] sm:$0xff]
    %v6065 = vld [vmem:[%s61 + $0x3b8] sm:$0xff]
    %v6066 = vld [vmem:[%s61 + $0x3c0] sm:$0xff]
    %v6067 = vld [vmem:[%s61 + $0x3c8] sm:$0xff]
    %v6068 = vld [vmem:[%s61 + $0x3d0] sm:$0xff]
    %v6069 = vld [vmem:[%s61 + $0x3d8] sm:$0xff]
    %v6070 = vld [vmem:[%s61 + $0x3e0] sm:$0xff]
    %v6071 = vld [vmem:[%s61 + $0x3e8] sm:$0xff]
    %v6072 = vld [vmem:[%s61 + $0x3f0] sm:$0xff]
    %v6073 = vld [vmem:[%s61 + $0x3f8] sm:$0xff]
    %v6074 = vld [vmem:[%s61 + $0x400] sm:$0xff]
    %v6075 = vld [vmem:[%s61 + $0x408] sm:$0xff]
    %v6076 = vld [vmem:[%s61 + $0x410] sm:$0xff]
    %v6077 = vld [vmem:[%s61 + $0x418] sm:$0xff]
    %v6078 = vld [vmem:[%s61 + $0x420] sm:$0xff]
    %v6079 = vld [vmem:[%s61 + $0x428] sm:$0xff]
    %v6080 = vld [vmem:[%s61 + $0x430] sm:$0xff]
    %v6081 = vld [vmem:[%s61 + $0x438] sm:$0xff]
    %v6082 = vld [vmem:[%s61 + $0x440] sm:$0xff]
    %v6083 = vld [vmem:[%s61 + $0x448] sm:$0xff]
    %v6084 = vld [vmem:[%s61 + $0x450] sm:$0xff]
    %v6085 = vld [vmem:[%s61 + $0x458] sm:$0xff]
    %v6086 = vld [vmem:[%s61 + $0x460] sm:$0xff]
    %v6087 = vld [vmem:[%s61 + $0x468] sm:$0xff]
    %v6088 = vld [vmem:[%s61 + $0x470] sm:$0xff]
    %v6089 = vld [vmem:[%s61 + $0x478] sm:$0xff]
    %v6090 = vld [vmem:[%s61 + $0x480] sm:$0xff]
    %v6091 = vld [vmem:[%s61 + $0x488] sm:$0xff]
    %v6092 = vld [vmem:[%s61 + $0x490] sm:$0xff]
    %v6093 = vld [vmem:[%s61 + $0x498] sm:$0xff]
    %v6094 = vld [vmem:[%s61 + $0x4a0] sm:$0xff]
    %v6095 = vld [vmem:[%s61 + $0x4a8] sm:$0xff]
    %v6096 = vld [vmem:[%s61 + $0x4b0] sm:$0xff]
    %v6097 = vld [vmem:[%s61 + $0x4b8] sm:$0xff]
    %v6098 = vld [vmem:[%s61 + $0x4c0] sm:$0xff]
    %v6099 = vld [vmem:[%s61 + $0x4c8] sm:$0xff]
    %v6100 = vld [vmem:[%s61 + $0x4d0] sm:$0xff]
    %v6101 = vld [vmem:[%s61 + $0x4d8] sm:$0xff]
    %v6102 = vld [vmem:[%s61 + $0x4e0] sm:$0xff]
    %v6103 = vld [vmem:[%s61 + $0x4e8] sm:$0xff]
    %v6104 = vld [vmem:[%s61 + $0x4f0] sm:$0xff]
    %v6105 = vld [vmem:[%s61 + $0x4f8] sm:$0xff]
    %v6106 = vld [vmem:[%s61 + $0x500] sm:$0xff]
    %v6107 = vld [vmem:[%s61 + $0x508] sm:$0xff]
    %v6108 = vld [vmem:[%s61 + $0x510] sm:$0xff]
    %v6109 = vld [vmem:[%s61 + $0x518] sm:$0xff]
    %v6110 = vld [vmem:[%s61 + $0x520] sm:$0xff]
    %v6111 = vld [vmem:[%s61 + $0x528] sm:$0xff]
    %v6112 = vld [vmem:[%s61 + $0x530] sm:$0xff]
    %v6113 = vld [vmem:[%s61 + $0x538] sm:$0xff]
    %v6114 = vld [vmem:[%s61 + $0x540] sm:$0xff]
    %v6115 = vld [vmem:[%s61 + $0x548] sm:$0xff]
    %v6116 = vld [vmem:[%s61 + $0x550] sm:$0xff]
    %v6117 = vld [vmem:[%s61 + $0x558] sm:$0xff]
    %v6118 = vld [vmem:[%s61 + $0x560] sm:$0xff]
    %v6119 = vld [vmem:[%s61 + $0x568] sm:$0xff]
    %v6120 = vld [vmem:[%s61 + $0x570] sm:$0xff]
    %v6121 = vld [vmem:[%s61 + $0x578] sm:$0xff]
    %v6122 = vld [vmem:[%s61 + $0x580] sm:$0xff]
    %v6123 = vld [vmem:[%s61 + $0x588] sm:$0xff]
    %v6124 = vld [vmem:[%s61 + $0x590] sm:$0xff]
    %v6125 = vld [vmem:[%s61 + $0x598] sm:$0xff]
    %v6126 = vld [vmem:[%s61 + $0x5a0] sm:$0xff]
    %v6127 = vld [vmem:[%s61 + $0x5a8] sm:$0xff]
    %v6128 = vld [vmem:[%s61 + $0x5b0] sm:$0xff]
    %v6129 = vld [vmem:[%s61 + $0x5b8] sm:$0xff]
    %v6130 = vld [vmem:[%s61 + $0x5c0] sm:$0xff]
    %v6131 = vld [vmem:[%s61 + $0x5c8] sm:$0xff]
    %v6132 = vld [vmem:[%s61 + $0x5d0] sm:$0xff]
    %v6133 = vld [vmem:[%s61 + $0x5d8] sm:$0xff]
    %v6134 = vld [vmem:[%s61 + $0x5e0] sm:$0xff]
    %v6135 = vld [vmem:[%s61 + $0x5e8] sm:$0xff]
    %v6136 = vld [vmem:[%s61 + $0x5f0] sm:$0xff]
    %v6137 = vld [vmem:[%s61 + $0x5f8] sm:$0xff]
    %v6138 = vld [vmem:[%s61 + $0x600] sm:$0xff]
    %v6139 = vld [vmem:[%s61 + $0x608] sm:$0xff]
    %v6140 = vld [vmem:[%s61 + $0x610] sm:$0xff]
    %v6141 = vld [vmem:[%s61 + $0x618] sm:$0xff]
    %v6142 = vld [vmem:[%s61 + $0x620] sm:$0xff]
    %v6143 = vld [vmem:[%s61 + $0x628] sm:$0xff]
    %v6144 = vld [vmem:[%s61 + $0x630] sm:$0xff]
    %v6145 = vld [vmem:[%s61 + $0x638] sm:$0xff]
    %v6146 = vld [vmem:[%s61 + $0x640] sm:$0xff]
    %v6147 = vld [vmem:[%s61 + $0x648] sm:$0xff]
    %v6148 = vld [vmem:[%s61 + $0x650] sm:$0xff]
    %v6149 = vld [vmem:[%s61 + $0x658] sm:$0xff]
    %v6150 = vld [vmem:[%s61 + $0x660] sm:$0xff]
    %v6151 = vld [vmem:[%s61 + $0x668] sm:$0xff]
    %v6152 = vld [vmem:[%s61 + $0x670] sm:$0xff]
    %v6153 = vld [vmem:[%s61 + $0x678] sm:$0xff]
    %v6154 = vld [vmem:[%s61 + $0x680] sm:$0xff]
    %v6155 = vld [vmem:[%s61 + $0x688] sm:$0xff]
    %v6156 = vld [vmem:[%s61 + $0x690] sm:$0xff]
    %v6157 = vld [vmem:[%s61 + $0x698] sm:$0xff]
    %v6158 = vld [vmem:[%s61 + $0x6a0] sm:$0xff]
    %v6159 = vld [vmem:[%s61 + $0x6a8] sm:$0xff]
    %v6160 = vld [vmem:[%s61 + $0x6b0] sm:$0xff]
    %v6161 = vld [vmem:[%s61 + $0x6b8] sm:$0xff]
    %v6162 = vld [vmem:[%s61 + $0x6c0] sm:$0xff]
    %v6163 = vld [vmem:[%s61 + $0x6c8] sm:$0xff]
    %v6164 = vld [vmem:[%s61 + $0x6d0] sm:$0xff]
    %v6165 = vld [vmem:[%s61 + $0x6d8] sm:$0xff]
    %v6166 = vld [vmem:[%s61 + $0x6e0] sm:$0xff]
    %v6167 = vld [vmem:[%s61 + $0x6e8] sm:$0xff]
    %v6168 = vld [vmem:[%s61 + $0x6f0] sm:$0xff]
    %v6169 = vld [vmem:[%s61 + $0x6f8] sm:$0xff]
    %v6170 = vld [vmem:[%s61 + $0x700] sm:$0xff]
    %v6171 = vld [vmem:[%s61 + $0x708] sm:$0xff]
    %v6172 = vld [vmem:[%s61 + $0x710] sm:$0xff]
    %v6173 = vld [vmem:[%s61 + $0x718] sm:$0xff]
    %v6174 = vld [vmem:[%s61 + $0x720] sm:$0xff]
    %v6175 = vld [vmem:[%s61 + $0x728] sm:$0xff]
    %v6176 = vld [vmem:[%s61 + $0x730] sm:$0xff]
    %v6177 = vld [vmem:[%s61 + $0x738] sm:$0xff]
    %v6178 = vld [vmem:[%s61 + $0x740] sm:$0xff]
    %v6179 = vld [vmem:[%s61 + $0x748] sm:$0xff]
    %v6180 = vld [vmem:[%s61 + $0x750] sm:$0xff]
    %v6181 = vld [vmem:[%s61 + $0x758] sm:$0xff]
    %v6182 = vld [vmem:[%s61 + $0x760] sm:$0xff]
    %v6183 = vld [vmem:[%s61 + $0x768] sm:$0xff]
    %v6184 = vld [vmem:[%s61 + $0x770] sm:$0xff]
    %v6185 = vld [vmem:[%s61 + $0x778] sm:$0xff]
    %v6186 = vld [vmem:[%s61 + $0x780] sm:$0xff]
    %v6187 = vld [vmem:[%s61 + $0x788] sm:$0xff]
    %v6188 = vld [vmem:[%s61 + $0x790] sm:$0xff]
    %v6189 = vld [vmem:[%s61 + $0x798] sm:$0xff]
    %v6190 = vld [vmem:[%s61 + $0x7a0] sm:$0xff]
    %v6191 = vld [vmem:[%s61 + $0x7a8] sm:$0xff]
    %v6192 = vld [vmem:[%s61 + $0x7b0] sm:$0xff]
    %v6193 = vld [vmem:[%s61 + $0x7b8] sm:$0xff]
    %v6194 = vld [vmem:[%s61 + $0x7c0] sm:$0xff]
    %v6195 = vld [vmem:[%s61 + $0x7c8] sm:$0xff]
    %v6196 = vld [vmem:[%s61 + $0x7d0] sm:$0xff]
    %v6197 = vld [vmem:[%s61 + $0x7d8] sm:$0xff]
    %v6198 = vld [vmem:[%s61 + $0x7e0] sm:$0xff]
    %v6199 = vld [vmem:[%s61 + $0x7e8] sm:$0xff]
    %v6200 = vld [vmem:[%s61 + $0x7f0] sm:$0xff]
    %v6201 = vld [vmem:[%s61 + $0x7f8] sm:$0xff]
    %v6202 = vld [vmem:[#allocation6] sm:$0x1]
    %v6204 = vperm.slane %v6202, 0
    %6206 = vmatpush.msra.mxu0 %v5961
    %6207 = vmatpush.msra.mxu0 %v5960
    %6208 = vmatpush.msra.mxu0 %v5959
    %6209 = vmatpush.msra.mxu0 %v5958
    %6210 = vmatpush.msra.mxu0 %v5957
    %6211 = vmatpush.msra.mxu0 %v5956
    %6212 = vmatpush.msra.mxu0 %v5955
    %6213 = vmatpush.msra.mxu0 %v5954
    %6214 = vmatpush.msra.mxu0 %v5953
    %6215 = vmatpush.msra.mxu0 %v5952
    %6216 = vmatpush.msra.mxu0 %v5951
    %6217 = vmatpush.msra.mxu0 %v5950
    %6218 = vmatpush.msra.mxu0 %v5949
    %6219 = vmatpush.msra.mxu0 %v5948
    %6220 = vmatpush.msra.mxu0 %v5947
    %6221 = vmatpush.msra.mxu0 %v5946
    %6222 = vmatmul.f32.gmra.mxu0 %v5930
    %v6223 = vpop.f32.mrf.mxu0
    %v6224 = vadd.f32 %v6204, %v6223
    %6225 = vdwg.mxu0
    %6226 = vmatpush.msra.mxu0 %v5977
    %6227 = vmatpush.msra.mxu0 %v5976
    %6228 = vmatpush.msra.mxu0 %v5975
    %6229 = vmatpush.msra.mxu0 %v5974
    %6230 = vmatpush.msra.mxu0 %v5973
    %6231 = vmatpush.msra.mxu0 %v5972
    %6232 = vmatpush.msra.mxu0 %v5971
    %6233 = vmatpush.msra.mxu0 %v5970
    %6234 = vmatpush.msra.mxu0 %v5969
    %6235 = vmatpush.msra.mxu0 %v5968
    %6236 = vmatpush.msra.mxu0 %v5967
    %6237 = vmatpush.msra.mxu0 %v5966
    %6238 = vmatpush.msra.mxu0 %v5965
    %6239 = vmatpush.msra.mxu0 %v5964
    %6240 = vmatpush.msra.mxu0 %v5963
    %6241 = vmatpush.msra.mxu0 %v5962
    %6242 = vmatmul.f32.gmra.mxu0 %v5931
    %v6243 = vpop.f32.mrf.mxu0
    %v6244 = vadd.f32 %v6224, %v6243
    %6245 = vdwg.mxu0
    %6246 = vmatpush.msra.mxu0 %v5993
    %6247 = vmatpush.msra.mxu0 %v5992
    %6248 = vmatpush.msra.mxu0 %v5991
    %6249 = vmatpush.msra.mxu0 %v5990
    %6250 = vmatpush.msra.mxu0 %v5989
    %6251 = vmatpush.msra.mxu0 %v5988
    %6252 = vmatpush.msra.mxu0 %v5987
    %6253 = vmatpush.msra.mxu0 %v5986
    %6254 = vmatpush.msra.mxu0 %v5985
    %6255 = vmatpush.msra.mxu0 %v5984
    %6256 = vmatpush.msra.mxu0 %v5983
    %6257 = vmatpush.msra.mxu0 %v5982
    %6258 = vmatpush.msra.mxu0 %v5981
    %6259 = vmatpush.msra.mxu0 %v5980
    %6260 = vmatpush.msra.mxu0 %v5979
    %6261 = vmatpush.msra.mxu0 %v5978
    %6262 = vmatmul.f32.gmra.mxu0 %v5932
    %v6263 = vpop.f32.mrf.mxu0
    %v6264 = vadd.f32 %v6244, %v6263
    %6265 = vdwg.mxu0
    %6266 = vmatpush.msra.mxu0 %v6009
    %6267 = vmatpush.msra.mxu0 %v6008
    %6268 = vmatpush.msra.mxu0 %v6007
    %6269 = vmatpush.msra.mxu0 %v6006
    %6270 = vmatpush.msra.mxu0 %v6005
    %6271 = vmatpush.msra.mxu0 %v6004
    %6272 = vmatpush.msra.mxu0 %v6003
    %6273 = vmatpush.msra.mxu0 %v6002
    %6274 = vmatpush.msra.mxu0 %v6001
    %6275 = vmatpush.msra.mxu0 %v6000
    %6276 = vmatpush.msra.mxu0 %v5999
    %6277 = vmatpush.msra.mxu0 %v5998
    %6278 = vmatpush.msra.mxu0 %v5997
    %6279 = vmatpush.msra.mxu0 %v5996
    %6280 = vmatpush.msra.mxu0 %v5995
    %6281 = vmatpush.msra.mxu0 %v5994
    %6282 = vmatmul.f32.gmra.mxu0 %v5933
    %v6283 = vpop.f32.mrf.mxu0
    %v6284 = vadd.f32 %v6264, %v6283
    %6285 = vdwg.mxu0
    %6286 = vmatpush.msra.mxu0 %v6025
    %6287 = vmatpush.msra.mxu0 %v6024
    %6288 = vmatpush.msra.mxu0 %v6023
    %6289 = vmatpush.msra.mxu0 %v6022
    %6290 = vmatpush.msra.mxu0 %v6021
    %6291 = vmatpush.msra.mxu0 %v6020
    %6292 = vmatpush.msra.mxu0 %v6019
    %6293 = vmatpush.msra.mxu0 %v6018
    %6294 = vmatpush.msra.mxu0 %v6017
    %6295 = vmatpush.msra.mxu0 %v6016
    %6296 = vmatpush.msra.mxu0 %v6015
    %6297 = vmatpush.msra.mxu0 %v6014
    %6298 = vmatpush.msra.mxu0 %v6013
    %6299 = vmatpush.msra.mxu0 %v6012
    %6300 = vmatpush.msra.mxu0 %v6011
    %6301 = vmatpush.msra.mxu0 %v6010
    %6302 = vmatmul.f32.gmra.mxu0 %v5934
    %v6303 = vpop.f32.mrf.mxu0
    %v6304 = vadd.f32 %v6284, %v6303
    %6305 = vdwg.mxu0
    %6306 = vmatpush.msra.mxu0 %v6041
    %6307 = vmatpush.msra.mxu0 %v6040
    %6308 = vmatpush.msra.mxu0 %v6039
    %6309 = vmatpush.msra.mxu0 %v6038
    %6310 = vmatpush.msra.mxu0 %v6037
    %6311 = vmatpush.msra.mxu0 %v6036
    %6312 = vmatpush.msra.mxu0 %v6035
    %6313 = vmatpush.msra.mxu0 %v6034
    %6314 = vmatpush.msra.mxu0 %v6033
    %6315 = vmatpush.msra.mxu0 %v6032
    %6316 = vmatpush.msra.mxu0 %v6031
    %6317 = vmatpush.msra.mxu0 %v6030
    %6318 = vmatpush.msra.mxu0 %v6029
    %6319 = vmatpush.msra.mxu0 %v6028
    %6320 = vmatpush.msra.mxu0 %v6027
    %6321 = vmatpush.msra.mxu0 %v6026
    %6322 = vmatmul.f32.gmra.mxu0 %v5935
    %v6323 = vpop.f32.mrf.mxu0
    %v6324 = vadd.f32 %v6304, %v6323
    %6325 = vdwg.mxu0
    %6326 = vmatpush.msra.mxu0 %v6057
    %6327 = vmatpush.msra.mxu0 %v6056
    %6328 = vmatpush.msra.mxu0 %v6055
    %6329 = vmatpush.msra.mxu0 %v6054
    %6330 = vmatpush.msra.mxu0 %v6053
    %6331 = vmatpush.msra.mxu0 %v6052
    %6332 = vmatpush.msra.mxu0 %v6051
    %6333 = vmatpush.msra.mxu0 %v6050
    %6334 = vmatpush.msra.mxu0 %v6049
    %6335 = vmatpush.msra.mxu0 %v6048
    %6336 = vmatpush.msra.mxu0 %v6047
    %6337 = vmatpush.msra.mxu0 %v6046
    %6338 = vmatpush.msra.mxu0 %v6045
    %6339 = vmatpush.msra.mxu0 %v6044
    %6340 = vmatpush.msra.mxu0 %v6043
    %6341 = vmatpush.msra.mxu0 %v6042
    %6342 = vmatmul.f32.gmra.mxu0 %v5936
    %v6343 = vpop.f32.mrf.mxu0
    %v6344 = vadd.f32 %v6324, %v6343
    %6345 = vdwg.mxu0
    %6346 = vmatpush.msra.mxu0 %v6073
    %6347 = vmatpush.msra.mxu0 %v6072
    %6348 = vmatpush.msra.mxu0 %v6071
    %6349 = vmatpush.msra.mxu0 %v6070
    %6350 = vmatpush.msra.mxu0 %v6069
    %6351 = vmatpush.msra.mxu0 %v6068
    %6352 = vmatpush.msra.mxu0 %v6067
    %6353 = vmatpush.msra.mxu0 %v6066
    %6354 = vmatpush.msra.mxu0 %v6065
    %6355 = vmatpush.msra.mxu0 %v6064
    %6356 = vmatpush.msra.mxu0 %v6063
    %6357 = vmatpush.msra.mxu0 %v6062
    %6358 = vmatpush.msra.mxu0 %v6061
    %6359 = vmatpush.msra.mxu0 %v6060
    %6360 = vmatpush.msra.mxu0 %v6059
    %6361 = vmatpush.msra.mxu0 %v6058
    %6362 = vmatmul.f32.gmra.mxu0 %v5937
    %v6363 = vpop.f32.mrf.mxu0
    %v6364 = vadd.f32 %v6344, %v6363
    %6365 = vdwg.mxu0
    %6366 = vmatpush.msra.mxu0 %v6089
    %6367 = vmatpush.msra.mxu0 %v6088
    %6368 = vmatpush.msra.mxu0 %v6087
    %6369 = vmatpush.msra.mxu0 %v6086
    %6370 = vmatpush.msra.mxu0 %v6085
    %6371 = vmatpush.msra.mxu0 %v6084
    %6372 = vmatpush.msra.mxu0 %v6083
    %6373 = vmatpush.msra.mxu0 %v6082
    %6374 = vmatpush.msra.mxu0 %v6081
    %6375 = vmatpush.msra.mxu0 %v6080
    %6376 = vmatpush.msra.mxu0 %v6079
    %6377 = vmatpush.msra.mxu0 %v6078
    %6378 = vmatpush.msra.mxu0 %v6077
    %6379 = vmatpush.msra.mxu0 %v6076
    %6380 = vmatpush.msra.mxu0 %v6075
    %6381 = vmatpush.msra.mxu0 %v6074
    %6382 = vmatmul.f32.gmra.mxu0 %v5938
    %v6383 = vpop.f32.mrf.mxu0
    %v6384 = vadd.f32 %v6364, %v6383
    %6385 = vdwg.mxu0
    %6386 = vmatpush.msra.mxu0 %v6105
    %6387 = vmatpush.msra.mxu0 %v6104
    %6388 = vmatpush.msra.mxu0 %v6103
    %6389 = vmatpush.msra.mxu0 %v6102
    %6390 = vmatpush.msra.mxu0 %v6101
    %6391 = vmatpush.msra.mxu0 %v6100
    %6392 = vmatpush.msra.mxu0 %v6099
    %6393 = vmatpush.msra.mxu0 %v6098
    %6394 = vmatpush.msra.mxu0 %v6097
    %6395 = vmatpush.msra.mxu0 %v6096
    %6396 = vmatpush.msra.mxu0 %v6095
    %6397 = vmatpush.msra.mxu0 %v6094
    %6398 = vmatpush.msra.mxu0 %v6093
    %6399 = vmatpush.msra.mxu0 %v6092
    %6400 = vmatpush.msra.mxu0 %v6091
    %6401 = vmatpush.msra.mxu0 %v6090
    %6402 = vmatmul.f32.gmra.mxu0 %v5939
    %v6403 = vpop.f32.mrf.mxu0
    %v6404 = vadd.f32 %v6384, %v6403
    %6405 = vdwg.mxu0
    %6406 = vmatpush.msra.mxu0 %v6121
    %6407 = vmatpush.msra.mxu0 %v6120
    %6408 = vmatpush.msra.mxu0 %v6119
    %6409 = vmatpush.msra.mxu0 %v6118
    %6410 = vmatpush.msra.mxu0 %v6117
    %6411 = vmatpush.msra.mxu0 %v6116
    %6412 = vmatpush.msra.mxu0 %v6115
    %6413 = vmatpush.msra.mxu0 %v6114
    %6414 = vmatpush.msra.mxu0 %v6113
    %6415 = vmatpush.msra.mxu0 %v6112
    %6416 = vmatpush.msra.mxu0 %v6111
    %6417 = vmatpush.msra.mxu0 %v6110
    %6418 = vmatpush.msra.mxu0 %v6109
    %6419 = vmatpush.msra.mxu0 %v6108
    %6420 = vmatpush.msra.mxu0 %v6107
    %6421 = vmatpush.msra.mxu0 %v6106
    %6422 = vmatmul.f32.gmra.mxu0 %v5940
    %v6423 = vpop.f32.mrf.mxu0
    %v6424 = vadd.f32 %v6404, %v6423
    %6425 = vdwg.mxu0
    %6426 = vmatpush.msra.mxu0 %v6137
    %6427 = vmatpush.msra.mxu0 %v6136
    %6428 = vmatpush.msra.mxu0 %v6135
    %6429 = vmatpush.msra.mxu0 %v6134
    %6430 = vmatpush.msra.mxu0 %v6133
    %6431 = vmatpush.msra.mxu0 %v6132
    %6432 = vmatpush.msra.mxu0 %v6131
    %6433 = vmatpush.msra.mxu0 %v6130
    %6434 = vmatpush.msra.mxu0 %v6129
    %6435 = vmatpush.msra.mxu0 %v6128
    %6436 = vmatpush.msra.mxu0 %v6127
    %6437 = vmatpush.msra.mxu0 %v6126
    %6438 = vmatpush.msra.mxu0 %v6125
    %6439 = vmatpush.msra.mxu0 %v6124
    %6440 = vmatpush.msra.mxu0 %v6123
    %6441 = vmatpush.msra.mxu0 %v6122
    %6442 = vmatmul.f32.gmra.mxu0 %v5941
    %v6443 = vpop.f32.mrf.mxu0
    %v6444 = vadd.f32 %v6424, %v6443
    %6445 = vdwg.mxu0
    %6446 = vmatpush.msra.mxu0 %v6153
    %6447 = vmatpush.msra.mxu0 %v6152
    %6448 = vmatpush.msra.mxu0 %v6151
    %6449 = vmatpush.msra.mxu0 %v6150
    %6450 = vmatpush.msra.mxu0 %v6149
    %6451 = vmatpush.msra.mxu0 %v6148
    %6452 = vmatpush.msra.mxu0 %v6147
    %6453 = vmatpush.msra.mxu0 %v6146
    %6454 = vmatpush.msra.mxu0 %v6145
    %6455 = vmatpush.msra.mxu0 %v6144
    %6456 = vmatpush.msra.mxu0 %v6143
    %6457 = vmatpush.msra.mxu0 %v6142
    %6458 = vmatpush.msra.mxu0 %v6141
    %6459 = vmatpush.msra.mxu0 %v6140
    %6460 = vmatpush.msra.mxu0 %v6139
    %6461 = vmatpush.msra.mxu0 %v6138
    %6462 = vmatmul.f32.gmra.mxu0 %v5942
    %v6463 = vpop.f32.mrf.mxu0
    %v6464 = vadd.f32 %v6444, %v6463
    %6465 = vdwg.mxu0
    %6466 = vmatpush.msra.mxu0 %v6169
    %6467 = vmatpush.msra.mxu0 %v6168
    %6468 = vmatpush.msra.mxu0 %v6167
    %6469 = vmatpush.msra.mxu0 %v6166
    %6470 = vmatpush.msra.mxu0 %v6165
    %6471 = vmatpush.msra.mxu0 %v6164
    %6472 = vmatpush.msra.mxu0 %v6163
    %6473 = vmatpush.msra.mxu0 %v6162
    %6474 = vmatpush.msra.mxu0 %v6161
    %6475 = vmatpush.msra.mxu0 %v6160
    %6476 = vmatpush.msra.mxu0 %v6159
    %6477 = vmatpush.msra.mxu0 %v6158
    %6478 = vmatpush.msra.mxu0 %v6157
    %6479 = vmatpush.msra.mxu0 %v6156
    %6480 = vmatpush.msra.mxu0 %v6155
    %6481 = vmatpush.msra.mxu0 %v6154
    %6482 = vmatmul.f32.gmra.mxu0 %v5943
    %v6483 = vpop.f32.mrf.mxu0
    %v6484 = vadd.f32 %v6464, %v6483
    %6485 = vdwg.mxu0
    %6486 = vmatpush.msra.mxu0 %v6185
    %6487 = vmatpush.msra.mxu0 %v6184
    %6488 = vmatpush.msra.mxu0 %v6183
    %6489 = vmatpush.msra.mxu0 %v6182
    %6490 = vmatpush.msra.mxu0 %v6181
    %6491 = vmatpush.msra.mxu0 %v6180
    %6492 = vmatpush.msra.mxu0 %v6179
    %6493 = vmatpush.msra.mxu0 %v6178
    %6494 = vmatpush.msra.mxu0 %v6177
    %6495 = vmatpush.msra.mxu0 %v6176
    %6496 = vmatpush.msra.mxu0 %v6175
    %6497 = vmatpush.msra.mxu0 %v6174
    %6498 = vmatpush.msra.mxu0 %v6173
    %6499 = vmatpush.msra.mxu0 %v6172
    %6500 = vmatpush.msra.mxu0 %v6171
    %6501 = vmatpush.msra.mxu0 %v6170
    %6502 = vmatmul.f32.gmra.mxu0 %v5944
    %v6503 = vpop.f32.mrf.mxu0
    %v6504 = vadd.f32 %v6484, %v6503
    %6505 = vdwg.mxu0
    %6506 = vmatpush.msra.mxu0 %v6201
    %6507 = vmatpush.msra.mxu0 %v6200
    %6508 = vmatpush.msra.mxu0 %v6199
    %6509 = vmatpush.msra.mxu0 %v6198
    %6510 = vmatpush.msra.mxu0 %v6197
    %6511 = vmatpush.msra.mxu0 %v6196
    %6512 = vmatpush.msra.mxu0 %v6195
    %6513 = vmatpush.msra.mxu0 %v6194
    %6514 = vmatpush.msra.mxu0 %v6193
    %6515 = vmatpush.msra.mxu0 %v6192
    %6516 = vmatpush.msra.mxu0 %v6191
    %6517 = vmatpush.msra.mxu0 %v6190
    %6518 = vmatpush.msra.mxu0 %v6189
    %6519 = vmatpush.msra.mxu0 %v6188
    %6520 = vmatpush.msra.mxu0 %v6187
    %6521 = vmatpush.msra.mxu0 %v6186
    %6522 = vmatmul.f32.gmra.mxu0 %v5945
    %v6523 = vpop.f32.mrf.mxu0
    %v6524 = vadd.f32 %v6504, %v6523
    %6525 = vdwg.mxu0
    %v6526 = vadd.f32 %v5506, %v6524
    %v6527 = vsel %vm726, %v6526, 0.0
    %6528 = vadd.xlane.f32.xlu0 %v6527
    %v6529 = vpop.xlane.xlu0 %6528
    %v6530 = vmul.f32 %v6529, %v980
    %v6531 = vsub.f32 %v6526, %v6530
    %v6532 = vmul.f32 %v6531, %v6531
    %v6533 = vsel %vm726, %v6532, 0.0
    %6534 = vadd.xlane.f32.xlu0 %v6533
    %v6535 = vpop.xlane.xlu0 %6534
    %v6536 = vmul.f32 %v6535, %v980
    %v6537 = vadd.f32 %v6536, 1e-05
    %v6538 = vrsqrt.pop %v6537
    %v6539 = vmul.f32 %v6538, %v6537
    %v6540 = vmul.f32 %v6539, %v6538
    %v6541 = vmul.f32 0.5, %v6540
    %v6542 = vsub.f32 1.5, %v6541
    %v6543 = vmul.f32 %v6538, %v6542
    %vm6544 = vweird.f32 %v6537
    %vm6545 = vweird.f32 %v6538
    %vm6546 = vmor %vm6544, %vm6545
    %v6547 = vsel %vm6546, %v6538, %v6543
    %v6548 = vmul.f32 %v6531, %v6547
    %v6549 = vld [vmem:[#allocation15] sm:$0x1]
    %v6551 = vperm.slane %v6549, 0
    %v6553 = vmul.f32 %v6548, %v6551
    %v6554 = vld [vmem:[#allocation13] sm:$0x1]
    %v6556 = vperm.slane %v6554, 0
    %v6558 = vadd.f32 %v6553, %v6556
    %v6559 = vsel %vm726, %v6558, 0.0
    %6560 = vadd.xlane.f32.xlu0 %v6559
    %v6561 = vpop.xlane.xlu0 %6560
    %v6562 = vmul.f32 %v6561, %v980
    %v6563 = vsub.f32 %v6558, %v6562
    %v6564 = vmul.f32 %v6563, %v6563
    %v6565 = vsel %vm726, %v6564, 0.0
    %6566 = vadd.xlane.f32.xlu0 %v6565
    %v6567 = vpop.xlane.xlu0 %6566
    %v6568 = vmul.f32 %v6567, %v980
    %v6569 = vadd.f32 %v6568, 1e-05
    %v6570 = vrsqrt.pop %v6569
    %v6571 = vmul.f32 %v6570, %v6569
    %v6572 = vmul.f32 %v6571, %v6570
    %v6573 = vmul.f32 0.5, %v6572
    %v6574 = vsub.f32 1.5, %v6573
    %v6575 = vmul.f32 %v6570, %v6574
    %vm6576 = vweird.f32 %v6569
    %vm6577 = vweird.f32 %v6570
    %vm6578 = vmor %vm6576, %vm6577
    %v6579 = vsel %vm6578, %v6570, %v6575
    %v6580 = vmul.f32 %v6563, %v6579
    %v6581 = vld [vmem:[#allocation21] sm:$0x1]
    %v6583 = vperm.slane %v6581, 0
    %v6585 = vmul.f32 %v6580, %v6583
    %v6586 = vld [vmem:[#allocation19] sm:$0x1]
    %v6588 = vperm.slane %v6586, 0
    %v6590 = vadd.f32 %v6585, %v6588
    %v6591 = vld [vmem:[%s145] sm:$0xff]
    %v6592 = vld [vmem:[%s145 + $0x8] sm:$0xff]
    %v6593 = vld [vmem:[%s145 + $0x10] sm:$0xff]
    %v6594 = vld [vmem:[%s145 + $0x18] sm:$0xff]
    %v6595 = vld [vmem:[#allocation48] sm:$0x1]
    %v6597 = vperm.slane %v6595, 0
    %v6600 = vsel %vm726, %v6590, 0
    %6602 = vmatpush.msra.mxu0 0.0
    %6603 = vmatpush.msra.mxu0 0.0
    %6604 = vmatpush.msra.mxu0 0.0
    %6605 = vmatpush.msra.mxu0 0.0
    %6606 = vmatpush.msra.mxu0 0.0
    %6607 = vmatpush.msra.mxu0 0.0
    %6608 = vmatpush.msra.mxu0 0.0
    %6609 = vmatpush.msra.mxu0 0.0
    %6610 = vmatpush.msra.mxu0 0.0
    %6611 = vmatpush.msra.mxu0 0.0
    %6612 = vmatpush.msra.mxu0 0.0
    %6613 = vmatpush.msra.mxu0 0.0
    %6614 = vmatpush.msra.mxu0 %v6594
    %6615 = vmatpush.msra.mxu0 %v6593
    %6616 = vmatpush.msra.mxu0 %v6592
    %6617 = vmatpush.msra.mxu0 %v6591
    %6618 = vmatmul.f32.gmra.mxu0 %v6600
    %v6619 = vpop.f32.mrf.mxu0
    %v6620 = vadd.f32 %v6597, %v6619
    %6621 = vdwg.mxu0
    %vm6622 = vcmask 23552
    %6623 = vst.msk [vmem:[%s147] sm:$0xff] %vm6622, %v6620
    // Predicated region
    $region418: #{transformer_forward.1} parent=1 // pred_check
      _
    $region419: #{transformer_forward.1} parent=1 // pred_check_branch
      %6625 = sbr.rel (0) target = $region421
    $region420: #{transformer_forward.1} parent=1 // pred_region
      _
    $region421: #{transformer_forward.1} parent=1 // pred_fallthru
      _
    // Predicated region
    $region422: #{transformer_forward.1} parent=1 // pred_check
      _
    $region423: #{transformer_forward.1} parent=1 // pred_check_branch
      %6627 = sbr.rel (0) target = $region425
    $region424: #{transformer_forward.1} parent=1 // pred_region
      _
    $region425: #{transformer_forward.1} parent=1 // pred_fallthru
      _
    %6628 = vsyncpa [#allocation3], 1
    %6629 = vsyncpa [#allocation5], 1
    %6630 = vsyncpa [#allocation8], 1
    %6631 = vsyncpa [#allocation11], 1
    %6632 = vsyncpa [#allocation14], 1
    %6633 = vsyncpa [#allocation17], 1
    %6634 = vsyncpa [#allocation20], 1
    %6635 = vsyncpa [#allocation23], 1
    %6636 = vsyncpa [#allocation26], 1
    %6637 = vsyncpa [#allocation29], 1
    %6638 = vsyncpa [#allocation32], 1
    %6639 = vsyncpa [#allocation35], 1
    %6640 = vsyncpa [#allocation38], 1
    %6641 = vsyncpa [#allocation41], 1
    %6642 = vsyncpa [#allocation44], 1
    %6643 = vsyncpa [#allocation47], 1

</llo_original>
